<compile_context>
chip_gen: v5e
topology: v5e:2x2
jax: 0.10.0
libtpu: 0.0.40
codegen_flags: <defaults>
</compile_context>

<pallas_src>
import functools
import math

import jax
import jax.numpy as jnp
from jax import lax
from jax.experimental import pallas as pl
from jax.experimental.pallas import tpu as pltpu

_VMEM = pl.BlockSpec(memory_space=pltpu.MemorySpace.VMEM)


def _vmem_limit_bytes(*shapes):
    """Explicit scoped-VMEM limit: I/O (double-buffered) + headroom for in-kernel temps.

    Clamped to [32 MiB default, 64 MiB v7x physical] so it is safe on every generation.
    """
    n = sum(4 * math.prod(s) for s in shapes)
    return int(min(max(3 * n + (4 << 20), 32 << 20), 64 << 20))


# ---------------------------------------------------------------------------
# In-kernel helpers
# ---------------------------------------------------------------------------

def _kth_largest_sqdist(dist, kth):
    """Exact k-th largest element of a non-negative f32 matrix (ties as in torch.topk).

    Bisection on the IEEE-754 bit pattern (monotone for non-negative floats): 31 static
    VPU compare + reduce passes over the already-resident (M, M) block. Replaces the
    previous extra pallas_call + HBM round trip + XLA sort over M^2 elements.
    """
    bits = pltpu.bitcast(dist, jnp.int32)
    t = jnp.int32(0)
    for b in range(30, -1, -1):                      # bit 31 is the sign bit: always 0
        trial = t | jnp.int32(1 << b)
        count = jnp.sum((bits >= trial).astype(jnp.int32))
        t = jnp.where(count >= kth, trial, t)
    # t is now the bit pattern of the k-th largest value; pick the value itself.
    return jnp.max(jnp.where(bits == t, dist, jnp.float32(0.0)))


def _xtx(a, b):
    """a^T-free Gram helper: contract last dims -> a @ b.T on the MXU."""
    return lax.dot_general(a, b, dimension_numbers=(((1,), (1,)), ((), ())),
                           preferred_element_type=jnp.float32)


def _tdot(a, b):
    """Contract first dims -> a^T @ b on the MXU."""
    return lax.dot_general(a, b, dimension_numbers=(((0,), (0,)), ((), ())),
                           preferred_element_type=jnp.float32)


# ---------------------------------------------------------------------------
# Pallas kernels
# ---------------------------------------------------------------------------

def _mige_pre_kernel(x_ref, y_ref, k_ref, gjx_ref, gjy_ref, gmy_ref, *, kth):
    """sqdist + bandwidth + RBF Gram + analytic averaged kernel gradient, both branches."""
    x = x_ref[...]                                           # (M, Dx)
    y = y_ref[...]                                           # (M, Dy)
    m = x.shape[0]

    # ---- pairwise squared distances via the Gram identity (MXU) ----
    gxx = _xtx(x, x)
    gyy = _xtx(y, y)
    rx = jnp.sum(x * x, axis=1, keepdims=True)               # (M, 1)
    ry = jnp.sum(y * y, axis=1, keepdims=True)
    # clamp at 0: catastrophic cancellation can give tiny negatives
    dist_m = jnp.maximum(ry + jnp.transpose(ry) - 2.0 * gyy, 0.0)          # sqdist(y)
    dist_j = jnp.maximum(rx + jnp.transpose(rx) - 2.0 * gxx, 0.0) + dist_m  # sqdist(concat(x,y))

    # ---- per-branch bandwidth: (M*M//2)-th largest pairwise sq-distance ----
    wsq_j = _kth_largest_sqdist(dist_j, kth)
    wsq_m = _kth_largest_sqdist(dist_m, kth)

    # ---- RBF Gram and analytic gk1 = (s*colsum(K) - K^T s)/(M w^2) ----
    cj = 0.5 / wsq_j                                          # 0.5 / w^2
    cm = 0.5 / wsq_m
    kj = jnp.exp(-dist_j * cj)                                # EUP-bound; nothing to tune here
    km = jnp.exp(-dist_m * cm)
    k_ref[0] = kj
    k_ref[1] = km

    ksum_j = jnp.sum(kj, axis=1, keepdims=True)               # symmetric: row-sum == col-sum
    ksum_m = jnp.sum(km, axis=1, keepdims=True)
    scale_j = (2.0 * cj) / m                                   # 1 / (M w^2)
    scale_m = (2.0 * cm) / m

    # joint branch kept feature-separable: gk1_joint = [gk1_jx | gk1_jy]
    gjx_ref[...] = (x * ksum_j - _tdot(kj, x)) * scale_j
    gjy_ref[...] = (y * ksum_j - _tdot(kj, y)) * scale_j
    gmy_ref[...] = (y * ksum_m - _tdot(km, y)) * scale_m


def _mige_score_kernel(x_ref, y_ref, gjx_ref, gjy_ref, gmy_ref, v_ref, ev_ref, out_ref):
    """Surrogate entropies via the K·V = V·Λ fold, reduced to the final MI scalar.

    H_surr = -sum_{m,d} (V^T s)[m,d] * (V^T gk1)[m,d] / evals[m]
    """
    x = x_ref[...]                                            # (M, Dx)
    y = y_ref[...]                                            # (M, Dy)
    vj = v_ref[0]                                             # (M, M) eigenvectors (columns)
    vm = v_ref[1]
    evj = ev_ref[0]                                           # (M, 1) eigenvalues
    evm = ev_ref[1]

    # joint branch: concat(x, y) handled feature-separably (never materialized)
    rd_j = (jnp.sum(_tdot(vj, x) * _tdot(vj, gjx_ref[...]), axis=1, keepdims=True)
            + jnp.sum(_tdot(vj, y) * _tdot(vj, gjy_ref[...]), axis=1, keepdims=True))
    rd_m = jnp.sum(_tdot(vm, y) * _tdot(vm, gmy_ref[...]), axis=1, keepdims=True)

    # unregularized 1/evals matches the reference's n_eigen_threshold=None behaviour
    surr_j = -jnp.sum(rd_j / evj)
    surr_m = -jnp.sum(rd_m / evm)

    out_ref[...] = jnp.full(out_ref.shape, surr_j - surr_m, jnp.float32)  # lane-dense store


# ---------------------------------------------------------------------------
# pallas_call wrappers
# ---------------------------------------------------------------------------

def _mige_pre(x, y):
    m, dx = x.shape
    dy = y.shape[1]
    kth = (m * m) // 2
    out_shape = (
        jax.ShapeDtypeStruct((2, m, m), jnp.float32),         # RBF Gram (joint, marginal) -> eigh
        jax.ShapeDtypeStruct((m, dx), jnp.float32),           # gk1 joint, x-features
        jax.ShapeDtypeStruct((m, dy), jnp.float32),           # gk1 joint, y-features
        jax.ShapeDtypeStruct((m, dy), jnp.float32),           # gk1 marginal
    )
    vmem = _vmem_limit_bytes((m, dx), (m, dy), (2, m, m), (m, dx), (m, dy), (m, dy),
                             (m, m), (m, m), (m, m))          # + in-kernel dist/K temporaries
    return pl.pallas_call(
        functools.partial(_mige_pre_kernel, kth=kth),
        out_shape=out_shape,
        in_specs=[_VMEM, _VMEM],
        out_specs=(_VMEM, _VMEM, _VMEM, _VMEM),
        compiler_params=pltpu.CompilerParams(vmem_limit_bytes=vmem),
    )(x, y)


def _mige_score(x, y, gjx, gjy, gmy, evecs, evals):
    m = x.shape[0]
    vmem = _vmem_limit_bytes(x.shape, y.shape, gjx.shape, gjy.shape, gmy.shape,
                             evecs.shape, (2, m, 1), (8, 128))
    out = pl.pallas_call(
        _mige_score_kernel,
        out_shape=jax.ShapeDtypeStruct((8, 128), jnp.float32),
        in_specs=[_VMEM] * 7,
        out_specs=_VMEM,
        compiler_params=pltpu.CompilerParams(vmem_limit_bytes=vmem),
    )(x, y, gjx, gjy, gmy, evecs, evals.reshape(2, m, 1))
    return out[0, 0]


# ---------------------------------------------------------------------------
# Forward pass (module semantics)
# ---------------------------------------------------------------------------

@jax.jit
def mutual_information_gradient_estimator(x, y):
    """Forward of MutualInformationGradientEstimator(n_eigen=None, n_eigen_threshold=None)."""
    k_stack, gjx, gjy, gmy = _mige_pre(x, y)

    # TODO(synk): symmetric eigendecomposition (torch.symeig) has no Pallas TPU primitive;
    # computed with batched jnp.linalg.eigh (ascending eigenvalues; all modes used).
    evals, evecs = jnp.linalg.eigh(k_stack)                   # (2, M), (2, M, M)

    return _mige_score(x, y, gjx, gjy, gmy, evecs, evals)     # scalar MI surrogate


# ---------------------------------------------------------------------------
# Demo
# ---------------------------------------------------------------------------

if __name__ == "__main__":
    key = jax.random.PRNGKey(0)
    kx, ky = jax.random.split(key)

    M, DX, DY = 64, 64, 64
    x = jax.random.normal(kx, (M, DX), dtype=jnp.float32)
    # Make y correlated with x so mutual information is nontrivial.
    y = 0.5 * x[:, :DY] + 0.5 * jax.random.normal(ky, (M, DY), dtype=jnp.float32)

    loss = mutual_information_gradient_estimator(x, y)
    loss = jax.block_until_ready(loss)

    assert loss.shape == ()
    assert bool(jnp.isfinite(loss))
    print("KERNEL_OK")
</pallas_src>

<mosaic_0001>
module attributes {stable_mosaic.version = 11 : i64} {
  func.func @_mige_pre_kernel(%arg0: memref<64x64xf32, #tpu.memory_space<vmem>>, %arg1: memref<64x64xf32, #tpu.memory_space<vmem>>, %arg2: memref<2x64x64xf32, #tpu.memory_space<vmem>>, %arg3: memref<64x64xf32, #tpu.memory_space<vmem>>, %arg4: memref<64x64xf32, #tpu.memory_space<vmem>>, %arg5: memref<64x64xf32, #tpu.memory_space<vmem>>) attributes {dimension_semantics = [], scalar_prefetch = 0 : i64, scratch_operands = 0 : i64, tpu.core_type = #tpu.core_type<tc>} {
    %c0 = arith.constant 0 : index
    %c0_0 = arith.constant 0 : index
    %0 = vector.load %arg0[%c0, %c0_0] : memref<64x64xf32, #tpu.memory_space<vmem>>, vector<64x64xf32>
    %c0_1 = arith.constant 0 : index
    %c0_2 = arith.constant 0 : index
    %1 = vector.load %arg1[%c0_1, %c0_2] : memref<64x64xf32, #tpu.memory_space<vmem>>, vector<64x64xf32>
    %cst = arith.constant dense<0.000000e+00> : vector<64x64xf32>
    %2 = tpu.matmul %0, %0, %cst {dimension_numbers = #tpu.dot_dimension_numbers<[1], [1], [0], [0], [0, 0, 1, 0], [], []>} : vector<64x64xf32>, vector<64x64xf32>, vector<64x64xf32> -> vector<64x64xf32>
    %cst_3 = arith.constant dense<0.000000e+00> : vector<64x64xf32>
    %3 = tpu.matmul %1, %1, %cst_3 {dimension_numbers = #tpu.dot_dimension_numbers<[1], [1], [0], [0], [0, 0, 1, 0], [], []>} : vector<64x64xf32>, vector<64x64xf32>, vector<64x64xf32> -> vector<64x64xf32>
    %4 = arith.mulf %0, %0 : vector<64x64xf32>
    %cst_4 = arith.constant dense<0.000000e+00> : vector<64xf32>
    %5 = vector.multi_reduction <add>, %4, %cst_4 [1] : vector<64x64xf32> to vector<64xf32>
    %6 = vector.shape_cast %5 : vector<64xf32> to vector<64x1xf32>
    %7 = arith.mulf %1, %1 : vector<64x64xf32>
    %cst_5 = arith.constant dense<0.000000e+00> : vector<64xf32>
    %8 = vector.multi_reduction <add>, %7, %cst_5 [1] : vector<64x64xf32> to vector<64xf32>
    %9 = vector.shape_cast %8 : vector<64xf32> to vector<64x1xf32>
    %10 = tpu.transpose %9, [1, 0] : vector<64x1xf32> -> vector<1x64xf32>
    %11 = vector.broadcast %9 : vector<64x1xf32> to vector<64x64xf32>
    %12 = vector.broadcast %10 : vector<1x64xf32> to vector<64x64xf32>
    %13 = arith.addf %11, %12 : vector<64x64xf32>
    %cst_6 = arith.constant 2.000000e+00 : f32
    %14 = vector.broadcast %cst_6 : f32 to vector<64x64xf32>
    %15 = arith.mulf %14, %3 : vector<64x64xf32>
    %16 = arith.subf %13, %15 : vector<64x64xf32>
    %cst_7 = arith.constant 0.000000e+00 : f32
    %17 = vector.broadcast %cst_7 : f32 to vector<64x64xf32>
    %18 = arith.maximumf %16, %17 : vector<64x64xf32>
    %19 = tpu.transpose %6, [1, 0] : vector<64x1xf32> -> vector<1x64xf32>
    %20 = vector.broadcast %6 : vector<64x1xf32> to vector<64x64xf32>
    %21 = vector.broadcast %19 : vector<1x64xf32> to vector<64x64xf32>
    %22 = arith.addf %20, %21 : vector<64x64xf32>
    %cst_8 = arith.constant 2.000000e+00 : f32
    %23 = vector.broadcast %cst_8 : f32 to vector<64x64xf32>
    %24 = arith.mulf %23, %2 : vector<64x64xf32>
    %25 = arith.subf %22, %24 : vector<64x64xf32>
    %cst_9 = arith.constant 0.000000e+00 : f32
    %26 = vector.broadcast %cst_9 : f32 to vector<64x64xf32>
    %27 = arith.maximumf %25, %26 : vector<64x64xf32>
    %28 = arith.addf %27, %18 : vector<64x64xf32>
    %29 = tpu.bitcast %28 : vector<64x64xf32> -> vector<64x64xi32>
    %c0_i32 = arith.constant 0 : i32
    %c1073741824_i32 = arith.constant 1073741824 : i32
    %30 = arith.ori %c0_i32, %c1073741824_i32 : i32
    %31 = vector.broadcast %30 : i32 to vector<64x64xi32>
    %32 = arith.cmpi sge, %29, %31 : vector<64x64xi32>
    %33 = arith.extui %32 : vector<64x64xi1> to vector<64x64xi32>
    %34 = vector.shape_cast %33 : vector<64x64xi32> to vector<1x64x64xi32>
    %cst_10 = arith.constant dense<0> : vector<1xi32>
    %35 = vector.multi_reduction <add>, %34, %cst_10 [1, 2] : vector<1x64x64xi32> to vector<1xi32>
    %36 = vector.shape_cast %35 : vector<1xi32> to vector<1x1x1xi32>
    %37 = vector.extract %36[0, 0, 0] : i32 from vector<1x1x1xi32>
    %c2048_i32 = arith.constant 2048 : i32
    %38 = arith.cmpi sge, %37, %c2048_i32 : i32
    %c0_i32_11 = arith.constant 0 : i32
    %39 = arith.select %38, %30, %c0_i32_11 : i32
    %c536870912_i32 = arith.constant 536870912 : i32
    %40 = arith.ori %39, %c536870912_i32 : i32
    %41 = vector.broadcast %40 : i32 to vector<64x64xi32>
    %42 = arith.cmpi sge, %29, %41 : vector<64x64xi32>
    %43 = arith.extui %42 : vector<64x64xi1> to vector<64x64xi32>
    %44 = vector.shape_cast %43 : vector<64x64xi32> to vector<1x64x64xi32>
    %cst_12 = arith.constant dense<0> : vector<1xi32>
    %45 = vector.multi_reduction <add>, %44, %cst_12 [1, 2] : vector<1x64x64xi32> to vector<1xi32>
    %46 = vector.shape_cast %45 : vector<1xi32> to vector<1x1x1xi32>
    %47 = vector.extract %46[0, 0, 0] : i32 from vector<1x1x1xi32>
    %c2048_i32_13 = arith.constant 2048 : i32
    %48 = arith.cmpi sge, %47, %c2048_i32_13 : i32
    %49 = arith.select %48, %40, %39 : i32
    %c268435456_i32 = arith.constant 268435456 : i32
    %50 = arith.ori %49, %c268435456_i32 : i32
    %51 = vector.broadcast %50 : i32 to vector<64x64xi32>
    %52 = arith.cmpi sge, %29, %51 : vector<64x64xi32>
    %53 = arith.extui %52 : vector<64x64xi1> to vector<64x64xi32>
    %54 = vector.shape_cast %53 : vector<64x64xi32> to vector<1x64x64xi32>
    %cst_14 = arith.constant dense<0> : vector<1xi32>
    %55 = vector.multi_reduction <add>, %54, %cst_14 [1, 2] : vector<1x64x64xi32> to vector<1xi32>
    %56 = vector.shape_cast %55 : vector<1xi32> to vector<1x1x1xi32>
    %57 = vector.extract %56[0, 0, 0] : i32 from vector<1x1x1xi32>
    %c2048_i32_15 = arith.constant 2048 : i32
    %58 = arith.cmpi sge, %57, %c2048_i32_15 : i32
    %59 = arith.select %58, %50, %49 : i32
    %c134217728_i32 = arith.constant 134217728 : i32
    %60 = arith.ori %59, %c134217728_i32 : i32
    %61 = vector.broadcast %60 : i32 to vector<64x64xi32>
    %62 = arith.cmpi sge, %29, %61 : vector<64x64xi32>
    %63 = arith.extui %62 : vector<64x64xi1> to vector<64x64xi32>
    %64 = vector.shape_cast %63 : vector<64x64xi32> to vector<1x64x64xi32>
    %cst_16 = arith.constant dense<0> : vector<1xi32>
    %65 = vector.multi_reduction <add>, %64, %cst_16 [1, 2] : vector<1x64x64xi32> to vector<1xi32>
    %66 = vector.shape_cast %65 : vector<1xi32> to vector<1x1x1xi32>
    %67 = vector.extract %66[0, 0, 0] : i32 from vector<1x1x1xi32>
    %c2048_i32_17 = arith.constant 2048 : i32
    %68 = arith.cmpi sge, %67, %c2048_i32_17 : i32
    %69 = arith.select %68, %60, %59 : i32
    %c67108864_i32 = arith.constant 67108864 : i32
    %70 = arith.ori %69, %c67108864_i32 : i32
    %71 = vector.broadcast %70 : i32 to vector<64x64xi32>
    %72 = arith.cmpi sge, %29, %71 : vector<64x64xi32>
    %73 = arith.extui %72 : vector<64x64xi1> to vector<64x64xi32>
    %74 = vector.shape_cast %73 : vector<64x64xi32> to vector<1x64x64xi32>
    %cst_18 = arith.constant dense<0> : vector<1xi32>
    %75 = vector.multi_reduction <add>, %74, %cst_18 [1, 2] : vector<1x64x64xi32> to vector<1xi32>
    %76 = vector.shape_cast %75 : vector<1xi32> to vector<1x1x1xi32>
    %77 = vector.extract %76[0, 0, 0] : i32 from vector<1x1x1xi32>
    %c2048_i32_19 = arith.constant 2048 : i32
    %78 = arith.cmpi sge, %77, %c2048_i32_19 : i32
    %79 = arith.select %78, %70, %69 : i32
    %c33554432_i32 = arith.constant 33554432 : i32
    %80 = arith.ori %79, %c33554432_i32 : i32
    %81 = vector.broadcast %80 : i32 to vector<64x64xi32>
    %82 = arith.cmpi sge, %29, %81 : vector<64x64xi32>
    %83 = arith.extui %82 : vector<64x64xi1> to vector<64x64xi32>
    %84 = vector.shape_cast %83 : vector<64x64xi32> to vector<1x64x64xi32>
    %cst_20 = arith.constant dense<0> : vector<1xi32>
    %85 = vector.multi_reduction <add>, %84, %cst_20 [1, 2] : vector<1x64x64xi32> to vector<1xi32>
    %86 = vector.shape_cast %85 : vector<1xi32> to vector<1x1x1xi32>
    %87 = vector.extract %86[0, 0, 0] : i32 from vector<1x1x1xi32>
    %c2048_i32_21 = arith.constant 2048 : i32
    %88 = arith.cmpi sge, %87, %c2048_i32_21 : i32
    %89 = arith.select %88, %80, %79 : i32
    %c16777216_i32 = arith.constant 16777216 : i32
    %90 = arith.ori %89, %c16777216_i32 : i32
    %91 = vector.broadcast %90 : i32 to vector<64x64xi32>
    %92 = arith.cmpi sge, %29, %91 : vector<64x64xi32>
    %93 = arith.extui %92 : vector<64x64xi1> to vector<64x64xi32>
    %94 = vector.shape_cast %93 : vector<64x64xi32> to vector<1x64x64xi32>
    %cst_22 = arith.constant dense<0> : vector<1xi32>
    %95 = vector.multi_reduction <add>, %94, %cst_22 [1, 2] : vector<1x64x64xi32> to vector<1xi32>
    %96 = vector.shape_cast %95 : vector<1xi32> to vector<1x1x1xi32>
    %97 = vector.extract %96[0, 0, 0] : i32 from vector<1x1x1xi32>
    %c2048_i32_23 = arith.constant 2048 : i32
    %98 = arith.cmpi sge, %97, %c2048_i32_23 : i32
    %99 = arith.select %98, %90, %89 : i32
    %c8388608_i32 = arith.constant 8388608 : i32
    %100 = arith.ori %99, %c8388608_i32 : i32
    %101 = vector.broadcast %100 : i32 to vector<64x64xi32>
    %102 = arith.cmpi sge, %29, %101 : vector<64x64xi32>
    %103 = arith.extui %102 : vector<64x64xi1> to vector<64x64xi32>
    %104 = vector.shape_cast %103 : vector<64x64xi32> to vector<1x64x64xi32>
    %cst_24 = arith.constant dense<0> : vector<1xi32>
    %105 = vector.multi_reduction <add>, %104, %cst_24 [1, 2] : vector<1x64x64xi32> to vector<1xi32>
    %106 = vector.shape_cast %105 : vector<1xi32> to vector<1x1x1xi32>
    %107 = vector.extract %106[0, 0, 0] : i32 from vector<1x1x1xi32>
    %c2048_i32_25 = arith.constant 2048 : i32
    %108 = arith.cmpi sge, %107, %c2048_i32_25 : i32
    %109 = arith.select %108, %100, %99 : i32
    %c4194304_i32 = arith.constant 4194304 : i32
    %110 = arith.ori %109, %c4194304_i32 : i32
    %111 = vector.broadcast %110 : i32 to vector<64x64xi32>
    %112 = arith.cmpi sge, %29, %111 : vector<64x64xi32>
    %113 = arith.extui %112 : vector<64x64xi1> to vector<64x64xi32>
    %114 = vector.shape_cast %113 : vector<64x64xi32> to vector<1x64x64xi32>
    %cst_26 = arith.constant dense<0> : vector<1xi32>
    %115 = vector.multi_reduction <add>, %114, %cst_26 [1, 2] : vector<1x64x64xi32> to vector<1xi32>
    %116 = vector.shape_cast %115 : vector<1xi32> to vector<1x1x1xi32>
    %117 = vector.extract %116[0, 0, 0] : i32 from vector<1x1x1xi32>
    %c2048_i32_27 = arith.constant 2048 : i32
    %118 = arith.cmpi sge, %117, %c2048_i32_27 : i32
    %119 = arith.select %118, %110, %109 : i32
    %c2097152_i32 = arith.constant 2097152 : i32
    %120 = arith.ori %119, %c2097152_i32 : i32
    %121 = vector.broadcast %120 : i32 to vector<64x64xi32>
    %122 = arith.cmpi sge, %29, %121 : vector<64x64xi32>
    %123 = arith.extui %122 : vector<64x64xi1> to vector<64x64xi32>
    %124 = vector.shape_cast %123 : vector<64x64xi32> to vector<1x64x64xi32>
    %cst_28 = arith.constant dense<0> : vector<1xi32>
    %125 = vector.multi_reduction <add>, %124, %cst_28 [1, 2] : vector<1x64x64xi32> to vector<1xi32>
    %126 = vector.shape_cast %125 : vector<1xi32> to vector<1x1x1xi32>
    %127 = vector.extract %126[0, 0, 0] : i32 from vector<1x1x1xi32>
    %c2048_i32_29 = arith.constant 2048 : i32
    %128 = arith.cmpi sge, %127, %c2048_i32_29 : i32
    %129 = arith.select %128, %120, %119 : i32
    %c1048576_i32 = arith.constant 1048576 : i32
    %130 = arith.ori %129, %c1048576_i32 : i32
    %131 = vector.broadcast %130 : i32 to vector<64x64xi32>
    %132 = arith.cmpi sge, %29, %131 : vector<64x64xi32>
    %133 = arith.extui %132 : vector<64x64xi1> to vector<64x64xi32>
    %134 = vector.shape_cast %133 : vector<64x64xi32> to vector<1x64x64xi32>
    %cst_30 = arith.constant dense<0> : vector<1xi32>
    %135 = vector.multi_reduction <add>, %134, %cst_30 [1, 2] : vector<1x64x64xi32> to vector<1xi32>
    %136 = vector.shape_cast %135 : vector<1xi32> to vector<1x1x1xi32>
    %137 = vector.extract %136[0, 0, 0] : i32 from vector<1x1x1xi32>
    %c2048_i32_31 = arith.constant 2048 : i32
    %138 = arith.cmpi sge, %137, %c2048_i32_31 : i32
    %139 = arith.select %138, %130, %129 : i32
    %c524288_i32 = arith.constant 524288 : i32
    %140 = arith.ori %139, %c524288_i32 : i32
    %141 = vector.broadcast %140 : i32 to vector<64x64xi32>
    %142 = arith.cmpi sge, %29, %141 : vector<64x64xi32>
    %143 = arith.extui %142 : vector<64x64xi1> to vector<64x64xi32>
    %144 = vector.shape_cast %143 : vector<64x64xi32> to vector<1x64x64xi32>
    %cst_32 = arith.constant dense<0> : vector<1xi32>
    %145 = vector.multi_reduction <add>, %144, %cst_32 [1, 2] : vector<1x64x64xi32> to vector<1xi32>
    %146 = vector.shape_cast %145 : vector<1xi32> to vector<1x1x1xi32>
    %147 = vector.extract %146[0, 0, 0] : i32 from vector<1x1x1xi32>
    %c2048_i32_33 = arith.constant 2048 : i32
    %148 = arith.cmpi sge, %147, %c2048_i32_33 : i32
    %149 = arith.select %148, %140, %139 : i32
    %c262144_i32 = arith.constant 262144 : i32
    %150 = arith.ori %149, %c262144_i32 : i32
    %151 = vector.broadcast %150 : i32 to vector<64x64xi32>
    %152 = arith.cmpi sge, %29, %151 : vector<64x64xi32>
    %153 = arith.extui %152 : vector<64x64xi1> to vector<64x64xi32>
    %154 = vector.shape_cast %153 : vector<64x64xi32> to vector<1x64x64xi32>
    %cst_34 = arith.constant dense<0> : vector<1xi32>
    %155 = vector.multi_reduction <add>, %154, %cst_34 [1, 2] : vector<1x64x64xi32> to vector<1xi32>
    %156 = vector.shape_cast %155 : vector<1xi32> to vector<1x1x1xi32>
    %157 = vector.extract %156[0, 0, 0] : i32 from vector<1x1x1xi32>
    %c2048_i32_35 = arith.constant 2048 : i32
    %158 = arith.cmpi sge, %157, %c2048_i32_35 : i32
    %159 = arith.select %158, %150, %149 : i32
    %c131072_i32 = arith.constant 131072 : i32
    %160 = arith.ori %159, %c131072_i32 : i32
    %161 = vector.broadcast %160 : i32 to vector<64x64xi32>
    %162 = arith.cmpi sge, %29, %161 : vector<64x64xi32>
    %163 = arith.extui %162 : vector<64x64xi1> to vector<64x64xi32>
    %164 = vector.shape_cast %163 : vector<64x64xi32> to vector<1x64x64xi32>
    %cst_36 = arith.constant dense<0> : vector<1xi32>
    %165 = vector.multi_reduction <add>, %164, %cst_36 [1, 2] : vector<1x64x64xi32> to vector<1xi32>
    %166 = vector.shape_cast %165 : vector<1xi32> to vector<1x1x1xi32>
    %167 = vector.extract %166[0, 0, 0] : i32 from vector<1x1x1xi32>
    %c2048_i32_37 = arith.constant 2048 : i32
    %168 = arith.cmpi sge, %167, %c2048_i32_37 : i32
    %169 = arith.select %168, %160, %159 : i32
    %c65536_i32 = arith.constant 65536 : i32
    %170 = arith.ori %169, %c65536_i32 : i32
    %171 = vector.broadcast %170 : i32 to vector<64x64xi32>
    %172 = arith.cmpi sge, %29, %171 : vector<64x64xi32>
    %173 = arith.extui %172 : vector<64x64xi1> to vector<64x64xi32>
    %174 = vector.shape_cast %173 : vector<64x64xi32> to vector<1x64x64xi32>
    %cst_38 = arith.constant dense<0> : vector<1xi32>
    %175 = vector.multi_reduction <add>, %174, %cst_38 [1, 2] : vector<1x64x64xi32> to vector<1xi32>
    %176 = vector.shape_cast %175 : vector<1xi32> to vector<1x1x1xi32>
    %177 = vector.extract %176[0, 0, 0] : i32 from vector<1x1x1xi32>
    %c2048_i32_39 = arith.constant 2048 : i32
    %178 = arith.cmpi sge, %177, %c2048_i32_39 : i32
    %179 = arith.select %178, %170, %169 : i32
    %c32768_i32 = arith.constant 32768 : i32
    %180 = arith.ori %179, %c32768_i32 : i32
    %181 = vector.broadcast %180 : i32 to vector<64x64xi32>
    %182 = arith.cmpi sge, %29, %181 : vector<64x64xi32>
    %183 = arith.extui %182 : vector<64x64xi1> to vector<64x64xi32>
    %184 = vector.shape_cast %183 : vector<64x64xi32> to vector<1x64x64xi32>
    %cst_40 = arith.constant dense<0> : vector<1xi32>
    %185 = vector.multi_reduction <add>, %184, %cst_40 [1, 2] : vector<1x64x64xi32> to vector<1xi32>
    %186 = vector.shape_cast %185 : vector<1xi32> to vector<1x1x1xi32>
    %187 = vector.extract %186[0, 0, 0] : i32 from vector<1x1x1xi32>
    %c2048_i32_41 = arith.constant 2048 : i32
    %188 = arith.cmpi sge, %187, %c2048_i32_41 : i32
    %189 = arith.select %188, %180, %179 : i32
    %c16384_i32 = arith.constant 16384 : i32
    %190 = arith.ori %189, %c16384_i32 : i32
    %191 = vector.broadcast %190 : i32 to vector<64x64xi32>
    %192 = arith.cmpi sge, %29, %191 : vector<64x64xi32>
    %193 = arith.extui %192 : vector<64x64xi1> to vector<64x64xi32>
    %194 = vector.shape_cast %193 : vector<64x64xi32> to vector<1x64x64xi32>
    %cst_42 = arith.constant dense<0> : vector<1xi32>
    %195 = vector.multi_reduction <add>, %194, %cst_42 [1, 2] : vector<1x64x64xi32> to vector<1xi32>
    %196 = vector.shape_cast %195 : vector<1xi32> to vector<1x1x1xi32>
    %197 = vector.extract %196[0, 0, 0] : i32 from vector<1x1x1xi32>
    %c2048_i32_43 = arith.constant 2048 : i32
    %198 = arith.cmpi sge, %197, %c2048_i32_43 : i32
    %199 = arith.select %198, %190, %189 : i32
    %c8192_i32 = arith.constant 8192 : i32
    %200 = arith.ori %199, %c8192_i32 : i32
    %201 = vector.broadcast %200 : i32 to vector<64x64xi32>
    %202 = arith.cmpi sge, %29, %201 : vector<64x64xi32>
    %203 = arith.extui %202 : vector<64x64xi1> to vector<64x64xi32>
    %204 = vector.shape_cast %203 : vector<64x64xi32> to vector<1x64x64xi32>
    %cst_44 = arith.constant dense<0> : vector<1xi32>
    %205 = vector.multi_reduction <add>, %204, %cst_44 [1, 2] : vector<1x64x64xi32> to vector<1xi32>
    %206 = vector.shape_cast %205 : vector<1xi32> to vector<1x1x1xi32>
    %207 = vector.extract %206[0, 0, 0] : i32 from vector<1x1x1xi32>
    %c2048_i32_45 = arith.constant 2048 : i32
    %208 = arith.cmpi sge, %207, %c2048_i32_45 : i32
    %209 = arith.select %208, %200, %199 : i32
    %c4096_i32 = arith.constant 4096 : i32
    %210 = arith.ori %209, %c4096_i32 : i32
    %211 = vector.broadcast %210 : i32 to vector<64x64xi32>
    %212 = arith.cmpi sge, %29, %211 : vector<64x64xi32>
    %213 = arith.extui %212 : vector<64x64xi1> to vector<64x64xi32>
    %214 = vector.shape_cast %213 : vector<64x64xi32> to vector<1x64x64xi32>
    %cst_46 = arith.constant dense<0> : vector<1xi32>
    %215 = vector.multi_reduction <add>, %214, %cst_46 [1, 2] : vector<1x64x64xi32> to vector<1xi32>
    %216 = vector.shape_cast %215 : vector<1xi32> to vector<1x1x1xi32>
    %217 = vector.extract %216[0, 0, 0] : i32 from vector<1x1x1xi32>
    %c2048_i32_47 = arith.constant 2048 : i32
    %218 = arith.cmpi sge, %217, %c2048_i32_47 : i32
    %219 = arith.select %218, %210, %209 : i32
    %c2048_i32_48 = arith.constant 2048 : i32
    %220 = arith.ori %219, %c2048_i32_48 : i32
    %221 = vector.broadcast %220 : i32 to vector<64x64xi32>
    %222 = arith.cmpi sge, %29, %221 : vector<64x64xi32>
    %223 = arith.extui %222 : vector<64x64xi1> to vector<64x64xi32>
    %224 = vector.shape_cast %223 : vector<64x64xi32> to vector<1x64x64xi32>
    %cst_49 = arith.constant dense<0> : vector<1xi32>
    %225 = vector.multi_reduction <add>, %224, %cst_49 [1, 2] : vector<1x64x64xi32> to vector<1xi32>
    %226 = vector.shape_cast %225 : vector<1xi32> to vector<1x1x1xi32>
    %227 = vector.extract %226[0, 0, 0] : i32 from vector<1x1x1xi32>
    %c2048_i32_50 = arith.constant 2048 : i32
    %228 = arith.cmpi sge, %227, %c2048_i32_50 : i32
    %229 = arith.select %228, %220, %219 : i32
    %c1024_i32 = arith.constant 1024 : i32
    %230 = arith.ori %229, %c1024_i32 : i32
    %231 = vector.broadcast %230 : i32 to vector<64x64xi32>
    %232 = arith.cmpi sge, %29, %231 : vector<64x64xi32>
    %233 = arith.extui %232 : vector<64x64xi1> to vector<64x64xi32>
    %234 = vector.shape_cast %233 : vector<64x64xi32> to vector<1x64x64xi32>
    %cst_51 = arith.constant dense<0> : vector<1xi32>
    %235 = vector.multi_reduction <add>, %234, %cst_51 [1, 2] : vector<1x64x64xi32> to vector<1xi32>
    %236 = vector.shape_cast %235 : vector<1xi32> to vector<1x1x1xi32>
    %237 = vector.extract %236[0, 0, 0] : i32 from vector<1x1x1xi32>
    %c2048_i32_52 = arith.constant 2048 : i32
    %238 = arith.cmpi sge, %237, %c2048_i32_52 : i32
    %239 = arith.select %238, %230, %229 : i32
    %c512_i32 = arith.constant 512 : i32
    %240 = arith.ori %239, %c512_i32 : i32
    %241 = vector.broadcast %240 : i32 to vector<64x64xi32>
    %242 = arith.cmpi sge, %29, %241 : vector<64x64xi32>
    %243 = arith.extui %242 : vector<64x64xi1> to vector<64x64xi32>
    %244 = vector.shape_cast %243 : vector<64x64xi32> to vector<1x64x64xi32>
    %cst_53 = arith.constant dense<0> : vector<1xi32>
    %245 = vector.multi_reduction <add>, %244, %cst_53 [1, 2] : vector<1x64x64xi32> to vector<1xi32>
    %246 = vector.shape_cast %245 : vector<1xi32> to vector<1x1x1xi32>
    %247 = vector.extract %246[0, 0, 0] : i32 from vector<1x1x1xi32>
    %c2048_i32_54 = arith.constant 2048 : i32
    %248 = arith.cmpi sge, %247, %c2048_i32_54 : i32
    %249 = arith.select %248, %240, %239 : i32
    %c256_i32 = arith.constant 256 : i32
    %250 = arith.ori %249, %c256_i32 : i32
    %251 = vector.broadcast %250 : i32 to vector<64x64xi32>
    %252 = arith.cmpi sge, %29, %251 : vector<64x64xi32>
    %253 = arith.extui %252 : vector<64x64xi1> to vector<64x64xi32>
    %254 = vector.shape_cast %253 : vector<64x64xi32> to vector<1x64x64xi32>
    %cst_55 = arith.constant dense<0> : vector<1xi32>
    %255 = vector.multi_reduction <add>, %254, %cst_55 [1, 2] : vector<1x64x64xi32> to vector<1xi32>
    %256 = vector.shape_cast %255 : vector<1xi32> to vector<1x1x1xi32>
    %257 = vector.extract %256[0, 0, 0] : i32 from vector<1x1x1xi32>
    %c2048_i32_56 = arith.constant 2048 : i32
    %258 = arith.cmpi sge, %257, %c2048_i32_56 : i32
    %259 = arith.select %258, %250, %249 : i32
    %c128_i32 = arith.constant 128 : i32
    %260 = arith.ori %259, %c128_i32 : i32
    %261 = vector.broadcast %260 : i32 to vector<64x64xi32>
    %262 = arith.cmpi sge, %29, %261 : vector<64x64xi32>
    %263 = arith.extui %262 : vector<64x64xi1> to vector<64x64xi32>
    %264 = vector.shape_cast %263 : vector<64x64xi32> to vector<1x64x64xi32>
    %cst_57 = arith.constant dense<0> : vector<1xi32>
    %265 = vector.multi_reduction <add>, %264, %cst_57 [1, 2] : vector<1x64x64xi32> to vector<1xi32>
    %266 = vector.shape_cast %265 : vector<1xi32> to vector<1x1x1xi32>
    %267 = vector.extract %266[0, 0, 0] : i32 from vector<1x1x1xi32>
    %c2048_i32_58 = arith.constant 2048 : i32
    %268 = arith.cmpi sge, %267, %c2048_i32_58 : i32
    %269 = arith.select %268, %260, %259 : i32
    %c64_i32 = arith.constant 64 : i32
    %270 = arith.ori %269, %c64_i32 : i32
    %271 = vector.broadcast %270 : i32 to vector<64x64xi32>
    %272 = arith.cmpi sge, %29, %271 : vector<64x64xi32>
    %273 = arith.extui %272 : vector<64x64xi1> to vector<64x64xi32>
    %274 = vector.shape_cast %273 : vector<64x64xi32> to vector<1x64x64xi32>
    %cst_59 = arith.constant dense<0> : vector<1xi32>
    %275 = vector.multi_reduction <add>, %274, %cst_59 [1, 2] : vector<1x64x64xi32> to vector<1xi32>
    %276 = vector.shape_cast %275 : vector<1xi32> to vector<1x1x1xi32>
    %277 = vector.extract %276[0, 0, 0] : i32 from vector<1x1x1xi32>
    %c2048_i32_60 = arith.constant 2048 : i32
    %278 = arith.cmpi sge, %277, %c2048_i32_60 : i32
    %279 = arith.select %278, %270, %269 : i32
    %c32_i32 = arith.constant 32 : i32
    %280 = arith.ori %279, %c32_i32 : i32
    %281 = vector.broadcast %280 : i32 to vector<64x64xi32>
    %282 = arith.cmpi sge, %29, %281 : vector<64x64xi32>
    %283 = arith.extui %282 : vector<64x64xi1> to vector<64x64xi32>
    %284 = vector.shape_cast %283 : vector<64x64xi32> to vector<1x64x64xi32>
    %cst_61 = arith.constant dense<0> : vector<1xi32>
    %285 = vector.multi_reduction <add>, %284, %cst_61 [1, 2] : vector<1x64x64xi32> to vector<1xi32>
    %286 = vector.shape_cast %285 : vector<1xi32> to vector<1x1x1xi32>
    %287 = vector.extract %286[0, 0, 0] : i32 from vector<1x1x1xi32>
    %c2048_i32_62 = arith.constant 2048 : i32
    %288 = arith.cmpi sge, %287, %c2048_i32_62 : i32
    %289 = arith.select %288, %280, %279 : i32
    %c16_i32 = arith.constant 16 : i32
    %290 = arith.ori %289, %c16_i32 : i32
    %291 = vector.broadcast %290 : i32 to vector<64x64xi32>
    %292 = arith.cmpi sge, %29, %291 : vector<64x64xi32>
    %293 = arith.extui %292 : vector<64x64xi1> to vector<64x64xi32>
    %294 = vector.shape_cast %293 : vector<64x64xi32> to vector<1x64x64xi32>
    %cst_63 = arith.constant dense<0> : vector<1xi32>
    %295 = vector.multi_reduction <add>, %294, %cst_63 [1, 2] : vector<1x64x64xi32> to vector<1xi32>
    %296 = vector.shape_cast %295 : vector<1xi32> to vector<1x1x1xi32>
    %297 = vector.extract %296[0, 0, 0] : i32 from vector<1x1x1xi32>
    %c2048_i32_64 = arith.constant 2048 : i32
    %298 = arith.cmpi sge, %297, %c2048_i32_64 : i32
    %299 = arith.select %298, %290, %289 : i32
    %c8_i32 = arith.constant 8 : i32
    %300 = arith.ori %299, %c8_i32 : i32
    %301 = vector.broadcast %300 : i32 to vector<64x64xi32>
    %302 = arith.cmpi sge, %29, %301 : vector<64x64xi32>
    %303 = arith.extui %302 : vector<64x64xi1> to vector<64x64xi32>
    %304 = vector.shape_cast %303 : vector<64x64xi32> to vector<1x64x64xi32>
    %cst_65 = arith.constant dense<0> : vector<1xi32>
    %305 = vector.multi_reduction <add>, %304, %cst_65 [1, 2] : vector<1x64x64xi32> to vector<1xi32>
    %306 = vector.shape_cast %305 : vector<1xi32> to vector<1x1x1xi32>
    %307 = vector.extract %306[0, 0, 0] : i32 from vector<1x1x1xi32>
    %c2048_i32_66 = arith.constant 2048 : i32
    %308 = arith.cmpi sge, %307, %c2048_i32_66 : i32
    %309 = arith.select %308, %300, %299 : i32
    %c4_i32 = arith.constant 4 : i32
    %310 = arith.ori %309, %c4_i32 : i32
    %311 = vector.broadcast %310 : i32 to vector<64x64xi32>
    %312 = arith.cmpi sge, %29, %311 : vector<64x64xi32>
    %313 = arith.extui %312 : vector<64x64xi1> to vector<64x64xi32>
    %314 = vector.shape_cast %313 : vector<64x64xi32> to vector<1x64x64xi32>
    %cst_67 = arith.constant dense<0> : vector<1xi32>
    %315 = vector.multi_reduction <add>, %314, %cst_67 [1, 2] : vector<1x64x64xi32> to vector<1xi32>
    %316 = vector.shape_cast %315 : vector<1xi32> to vector<1x1x1xi32>
    %317 = vector.extract %316[0, 0, 0] : i32 from vector<1x1x1xi32>
    %c2048_i32_68 = arith.constant 2048 : i32
    %318 = arith.cmpi sge, %317, %c2048_i32_68 : i32
    %319 = arith.select %318, %310, %309 : i32
    %c2_i32 = arith.constant 2 : i32
    %320 = arith.ori %319, %c2_i32 : i32
    %321 = vector.broadcast %320 : i32 to vector<64x64xi32>
    %322 = arith.cmpi sge, %29, %321 : vector<64x64xi32>
    %323 = arith.extui %322 : vector<64x64xi1> to vector<64x64xi32>
    %324 = vector.shape_cast %323 : vector<64x64xi32> to vector<1x64x64xi32>
    %cst_69 = arith.constant dense<0> : vector<1xi32>
    %325 = vector.multi_reduction <add>, %324, %cst_69 [1, 2] : vector<1x64x64xi32> to vector<1xi32>
    %326 = vector.shape_cast %325 : vector<1xi32> to vector<1x1x1xi32>
    %327 = vector.extract %326[0, 0, 0] : i32 from vector<1x1x1xi32>
    %c2048_i32_70 = arith.constant 2048 : i32
    %328 = arith.cmpi sge, %327, %c2048_i32_70 : i32
    %329 = arith.select %328, %320, %319 : i32
    %c1_i32 = arith.constant 1 : i32
    %330 = arith.ori %329, %c1_i32 : i32
    %331 = vector.broadcast %330 : i32 to vector<64x64xi32>
    %332 = arith.cmpi sge, %29, %331 : vector<64x64xi32>
    %333 = arith.extui %332 : vector<64x64xi1> to vector<64x64xi32>
    %334 = vector.shape_cast %333 : vector<64x64xi32> to vector<1x64x64xi32>
    %cst_71 = arith.constant dense<0> : vector<1xi32>
    %335 = vector.multi_reduction <add>, %334, %cst_71 [1, 2] : vector<1x64x64xi32> to vector<1xi32>
    %336 = vector.shape_cast %335 : vector<1xi32> to vector<1x1x1xi32>
    %337 = vector.extract %336[0, 0, 0] : i32 from vector<1x1x1xi32>
    %c2048_i32_72 = arith.constant 2048 : i32
    %338 = arith.cmpi sge, %337, %c2048_i32_72 : i32
    %339 = arith.select %338, %330, %329 : i32
    %340 = vector.broadcast %339 : i32 to vector<64x64xi32>
    %341 = arith.cmpi eq, %29, %340 : vector<64x64xi32>
    %cst_73 = arith.constant 0.000000e+00 : f32
    %342 = vector.broadcast %cst_73 : f32 to vector<64x64xf32>
    %343 = arith.select %341, %28, %342 : vector<64x64xi1>, vector<64x64xf32>
    %344 = vector.shape_cast %343 : vector<64x64xf32> to vector<1x64x64xf32>
    %cst_74 = arith.constant dense<0xFF800000> : vector<1xf32>
    %345 = vector.multi_reduction <maximumf>, %344, %cst_74 [1, 2] : vector<1x64x64xf32> to vector<1xf32>
    %346 = vector.shape_cast %345 : vector<1xf32> to vector<1x1x1xf32>
    %347 = vector.extract %346[0, 0, 0] : f32 from vector<1x1x1xf32>
    %348 = tpu.bitcast %18 : vector<64x64xf32> -> vector<64x64xi32>
    %c0_i32_75 = arith.constant 0 : i32
    %c1073741824_i32_76 = arith.constant 1073741824 : i32
    %349 = arith.ori %c0_i32_75, %c1073741824_i32_76 : i32
    %350 = vector.broadcast %349 : i32 to vector<64x64xi32>
    %351 = arith.cmpi sge, %348, %350 : vector<64x64xi32>
    %352 = arith.extui %351 : vector<64x64xi1> to vector<64x64xi32>
    %353 = vector.shape_cast %352 : vector<64x64xi32> to vector<1x64x64xi32>
    %cst_77 = arith.constant dense<0> : vector<1xi32>
    %354 = vector.multi_reduction <add>, %353, %cst_77 [1, 2] : vector<1x64x64xi32> to vector<1xi32>
    %355 = vector.shape_cast %354 : vector<1xi32> to vector<1x1x1xi32>
    %356 = vector.extract %355[0, 0, 0] : i32 from vector<1x1x1xi32>
    %c2048_i32_78 = arith.constant 2048 : i32
    %357 = arith.cmpi sge, %356, %c2048_i32_78 : i32
    %c0_i32_79 = arith.constant 0 : i32
    %358 = arith.select %357, %349, %c0_i32_79 : i32
    %c536870912_i32_80 = arith.constant 536870912 : i32
    %359 = arith.ori %358, %c536870912_i32_80 : i32
    %360 = vector.broadcast %359 : i32 to vector<64x64xi32>
    %361 = arith.cmpi sge, %348, %360 : vector<64x64xi32>
    %362 = arith.extui %361 : vector<64x64xi1> to vector<64x64xi32>
    %363 = vector.shape_cast %362 : vector<64x64xi32> to vector<1x64x64xi32>
    %cst_81 = arith.constant dense<0> : vector<1xi32>
    %364 = vector.multi_reduction <add>, %363, %cst_81 [1, 2] : vector<1x64x64xi32> to vector<1xi32>
    %365 = vector.shape_cast %364 : vector<1xi32> to vector<1x1x1xi32>
    %366 = vector.extract %365[0, 0, 0] : i32 from vector<1x1x1xi32>
    %c2048_i32_82 = arith.constant 2048 : i32
    %367 = arith.cmpi sge, %366, %c2048_i32_82 : i32
    %368 = arith.select %367, %359, %358 : i32
    %c268435456_i32_83 = arith.constant 268435456 : i32
    %369 = arith.ori %368, %c268435456_i32_83 : i32
    %370 = vector.broadcast %369 : i32 to vector<64x64xi32>
    %371 = arith.cmpi sge, %348, %370 : vector<64x64xi32>
    %372 = arith.extui %371 : vector<64x64xi1> to vector<64x64xi32>
    %373 = vector.shape_cast %372 : vector<64x64xi32> to vector<1x64x64xi32>
    %cst_84 = arith.constant dense<0> : vector<1xi32>
    %374 = vector.multi_reduction <add>, %373, %cst_84 [1, 2] : vector<1x64x64xi32> to vector<1xi32>
    %375 = vector.shape_cast %374 : vector<1xi32> to vector<1x1x1xi32>
    %376 = vector.extract %375[0, 0, 0] : i32 from vector<1x1x1xi32>
    %c2048_i32_85 = arith.constant 2048 : i32
    %377 = arith.cmpi sge, %376, %c2048_i32_85 : i32
    %378 = arith.select %377, %369, %368 : i32
    %c134217728_i32_86 = arith.constant 134217728 : i32
    %379 = arith.ori %378, %c134217728_i32_86 : i32
    %380 = vector.broadcast %379 : i32 to vector<64x64xi32>
    %381 = arith.cmpi sge, %348, %380 : vector<64x64xi32>
    %382 = arith.extui %381 : vector<64x64xi1> to vector<64x64xi32>
    %383 = vector.shape_cast %382 : vector<64x64xi32> to vector<1x64x64xi32>
    %cst_87 = arith.constant dense<0> : vector<1xi32>
    %384 = vector.multi_reduction <add>, %383, %cst_87 [1, 2] : vector<1x64x64xi32> to vector<1xi32>
    %385 = vector.shape_cast %384 : vector<1xi32> to vector<1x1x1xi32>
    %386 = vector.extract %385[0, 0, 0] : i32 from vector<1x1x1xi32>
    %c2048_i32_88 = arith.constant 2048 : i32
    %387 = arith.cmpi sge, %386, %c2048_i32_88 : i32
    %388 = arith.select %387, %379, %378 : i32
    %c67108864_i32_89 = arith.constant 67108864 : i32
    %389 = arith.ori %388, %c67108864_i32_89 : i32
    %390 = vector.broadcast %389 : i32 to vector<64x64xi32>
    %391 = arith.cmpi sge, %348, %390 : vector<64x64xi32>
    %392 = arith.extui %391 : vector<64x64xi1> to vector<64x64xi32>
    %393 = vector.shape_cast %392 : vector<64x64xi32> to vector<1x64x64xi32>
    %cst_90 = arith.constant dense<0> : vector<1xi32>
    %394 = vector.multi_reduction <add>, %393, %cst_90 [1, 2] : vector<1x64x64xi32> to vector<1xi32>
    %395 = vector.shape_cast %394 : vector<1xi32> to vector<1x1x1xi32>
    %396 = vector.extract %395[0, 0, 0] : i32 from vector<1x1x1xi32>
    %c2048_i32_91 = arith.constant 2048 : i32
    %397 = arith.cmpi sge, %396, %c2048_i32_91 : i32
    %398 = arith.select %397, %389, %388 : i32
    %c33554432_i32_92 = arith.constant 33554432 : i32
    %399 = arith.ori %398, %c33554432_i32_92 : i32
    %400 = vector.broadcast %399 : i32 to vector<64x64xi32>
    %401 = arith.cmpi sge, %348, %400 : vector<64x64xi32>
    %402 = arith.extui %401 : vector<64x64xi1> to vector<64x64xi32>
    %403 = vector.shape_cast %402 : vector<64x64xi32> to vector<1x64x64xi32>
    %cst_93 = arith.constant dense<0> : vector<1xi32>
    %404 = vector.multi_reduction <add>, %403, %cst_93 [1, 2] : vector<1x64x64xi32> to vector<1xi32>
    %405 = vector.shape_cast %404 : vector<1xi32> to vector<1x1x1xi32>
    %406 = vector.extract %405[0, 0, 0] : i32 from vector<1x1x1xi32>
    %c2048_i32_94 = arith.constant 2048 : i32
    %407 = arith.cmpi sge, %406, %c2048_i32_94 : i32
    %408 = arith.select %407, %399, %398 : i32
    %c16777216_i32_95 = arith.constant 16777216 : i32
    %409 = arith.ori %408, %c16777216_i32_95 : i32
    %410 = vector.broadcast %409 : i32 to vector<64x64xi32>
    %411 = arith.cmpi sge, %348, %410 : vector<64x64xi32>
    %412 = arith.extui %411 : vector<64x64xi1> to vector<64x64xi32>
    %413 = vector.shape_cast %412 : vector<64x64xi32> to vector<1x64x64xi32>
    %cst_96 = arith.constant dense<0> : vector<1xi32>
    %414 = vector.multi_reduction <add>, %413, %cst_96 [1, 2] : vector<1x64x64xi32> to vector<1xi32>
    %415 = vector.shape_cast %414 : vector<1xi32> to vector<1x1x1xi32>
    %416 = vector.extract %415[0, 0, 0] : i32 from vector<1x1x1xi32>
    %c2048_i32_97 = arith.constant 2048 : i32
    %417 = arith.cmpi sge, %416, %c2048_i32_97 : i32
    %418 = arith.select %417, %409, %408 : i32
    %c8388608_i32_98 = arith.constant 8388608 : i32
    %419 = arith.ori %418, %c8388608_i32_98 : i32
    %420 = vector.broadcast %419 : i32 to vector<64x64xi32>
    %421 = arith.cmpi sge, %348, %420 : vector<64x64xi32>
    %422 = arith.extui %421 : vector<64x64xi1> to vector<64x64xi32>
    %423 = vector.shape_cast %422 : vector<64x64xi32> to vector<1x64x64xi32>
    %cst_99 = arith.constant dense<0> : vector<1xi32>
    %424 = vector.multi_reduction <add>, %423, %cst_99 [1, 2] : vector<1x64x64xi32> to vector<1xi32>
    %425 = vector.shape_cast %424 : vector<1xi32> to vector<1x1x1xi32>
    %426 = vector.extract %425[0, 0, 0] : i32 from vector<1x1x1xi32>
    %c2048_i32_100 = arith.constant 2048 : i32
    %427 = arith.cmpi sge, %426, %c2048_i32_100 : i32
    %428 = arith.select %427, %419, %418 : i32
    %c4194304_i32_101 = arith.constant 4194304 : i32
    %429 = arith.ori %428, %c4194304_i32_101 : i32
    %430 = vector.broadcast %429 : i32 to vector<64x64xi32>
    %431 = arith.cmpi sge, %348, %430 : vector<64x64xi32>
    %432 = arith.extui %431 : vector<64x64xi1> to vector<64x64xi32>
    %433 = vector.shape_cast %432 : vector<64x64xi32> to vector<1x64x64xi32>
    %cst_102 = arith.constant dense<0> : vector<1xi32>
    %434 = vector.multi_reduction <add>, %433, %cst_102 [1, 2] : vector<1x64x64xi32> to vector<1xi32>
    %435 = vector.shape_cast %434 : vector<1xi32> to vector<1x1x1xi32>
    %436 = vector.extract %435[0, 0, 0] : i32 from vector<1x1x1xi32>
    %c2048_i32_103 = arith.constant 2048 : i32
    %437 = arith.cmpi sge, %436, %c2048_i32_103 : i32
    %438 = arith.select %437, %429, %428 : i32
    %c2097152_i32_104 = arith.constant 2097152 : i32
    %439 = arith.ori %438, %c2097152_i32_104 : i32
    %440 = vector.broadcast %439 : i32 to vector<64x64xi32>
    %441 = arith.cmpi sge, %348, %440 : vector<64x64xi32>
    %442 = arith.extui %441 : vector<64x64xi1> to vector<64x64xi32>
    %443 = vector.shape_cast %442 : vector<64x64xi32> to vector<1x64x64xi32>
    %cst_105 = arith.constant dense<0> : vector<1xi32>
    %444 = vector.multi_reduction <add>, %443, %cst_105 [1, 2] : vector<1x64x64xi32> to vector<1xi32>
    %445 = vector.shape_cast %444 : vector<1xi32> to vector<1x1x1xi32>
    %446 = vector.extract %445[0, 0, 0] : i32 from vector<1x1x1xi32>
    %c2048_i32_106 = arith.constant 2048 : i32
    %447 = arith.cmpi sge, %446, %c2048_i32_106 : i32
    %448 = arith.select %447, %439, %438 : i32
    %c1048576_i32_107 = arith.constant 1048576 : i32
    %449 = arith.ori %448, %c1048576_i32_107 : i32
    %450 = vector.broadcast %449 : i32 to vector<64x64xi32>
    %451 = arith.cmpi sge, %348, %450 : vector<64x64xi32>
    %452 = arith.extui %451 : vector<64x64xi1> to vector<64x64xi32>
    %453 = vector.shape_cast %452 : vector<64x64xi32> to vector<1x64x64xi32>
    %cst_108 = arith.constant dense<0> : vector<1xi32>
    %454 = vector.multi_reduction <add>, %453, %cst_108 [1, 2] : vector<1x64x64xi32> to vector<1xi32>
    %455 = vector.shape_cast %454 : vector<1xi32> to vector<1x1x1xi32>
    %456 = vector.extract %455[0, 0, 0] : i32 from vector<1x1x1xi32>
    %c2048_i32_109 = arith.constant 2048 : i32
    %457 = arith.cmpi sge, %456, %c2048_i32_109 : i32
    %458 = arith.select %457, %449, %448 : i32
    %c524288_i32_110 = arith.constant 524288 : i32
    %459 = arith.ori %458, %c524288_i32_110 : i32
    %460 = vector.broadcast %459 : i32 to vector<64x64xi32>
    %461 = arith.cmpi sge, %348, %460 : vector<64x64xi32>
    %462 = arith.extui %461 : vector<64x64xi1> to vector<64x64xi32>
    %463 = vector.shape_cast %462 : vector<64x64xi32> to vector<1x64x64xi32>
    %cst_111 = arith.constant dense<0> : vector<1xi32>
    %464 = vector.multi_reduction <add>, %463, %cst_111 [1, 2] : vector<1x64x64xi32> to vector<1xi32>
    %465 = vector.shape_cast %464 : vector<1xi32> to vector<1x1x1xi32>
    %466 = vector.extract %465[0, 0, 0] : i32 from vector<1x1x1xi32>
    %c2048_i32_112 = arith.constant 2048 : i32
    %467 = arith.cmpi sge, %466, %c2048_i32_112 : i32
    %468 = arith.select %467, %459, %458 : i32
    %c262144_i32_113 = arith.constant 262144 : i32
    %469 = arith.ori %468, %c262144_i32_113 : i32
    %470 = vector.broadcast %469 : i32 to vector<64x64xi32>
    %471 = arith.cmpi sge, %348, %470 : vector<64x64xi32>
    %472 = arith.extui %471 : vector<64x64xi1> to vector<64x64xi32>
    %473 = vector.shape_cast %472 : vector<64x64xi32> to vector<1x64x64xi32>
    %cst_114 = arith.constant dense<0> : vector<1xi32>
    %474 = vector.multi_reduction <add>, %473, %cst_114 [1, 2] : vector<1x64x64xi32> to vector<1xi32>
    %475 = vector.shape_cast %474 : vector<1xi32> to vector<1x1x1xi32>
    %476 = vector.extract %475[0, 0, 0] : i32 from vector<1x1x1xi32>
    %c2048_i32_115 = arith.constant 2048 : i32
    %477 = arith.cmpi sge, %476, %c2048_i32_115 : i32
    %478 = arith.select %477, %469, %468 : i32
    %c131072_i32_116 = arith.constant 131072 : i32
    %479 = arith.ori %478, %c131072_i32_116 : i32
    %480 = vector.broadcast %479 : i32 to vector<64x64xi32>
    %481 = arith.cmpi sge, %348, %480 : vector<64x64xi32>
    %482 = arith.extui %481 : vector<64x64xi1> to vector<64x64xi32>
    %483 = vector.shape_cast %482 : vector<64x64xi32> to vector<1x64x64xi32>
    %cst_117 = arith.constant dense<0> : vector<1xi32>
    %484 = vector.multi_reduction <add>, %483, %cst_117 [1, 2] : vector<1x64x64xi32> to vector<1xi32>
    %485 = vector.shape_cast %484 : vector<1xi32> to vector<1x1x1xi32>
    %486 = vector.extract %485[0, 0, 0] : i32 from vector<1x1x1xi32>
    %c2048_i32_118 = arith.constant 2048 : i32
    %487 = arith.cmpi sge, %486, %c2048_i32_118 : i32
    %488 = arith.select %487, %479, %478 : i32
    %c65536_i32_119 = arith.constant 65536 : i32
    %489 = arith.ori %488, %c65536_i32_119 : i32
    %490 = vector.broadcast %489 : i32 to vector<64x64xi32>
    %491 = arith.cmpi sge, %348, %490 : vector<64x64xi32>
    %492 = arith.extui %491 : vector<64x64xi1> to vector<64x64xi32>
    %493 = vector.shape_cast %492 : vector<64x64xi32> to vector<1x64x64xi32>
    %cst_120 = arith.constant dense<0> : vector<1xi32>
    %494 = vector.multi_reduction <add>, %493, %cst_120 [1, 2] : vector<1x64x64xi32> to vector<1xi32>
    %495 = vector.shape_cast %494 : vector<1xi32> to vector<1x1x1xi32>
    %496 = vector.extract %495[0, 0, 0] : i32 from vector<1x1x1xi32>
    %c2048_i32_121 = arith.constant 2048 : i32
    %497 = arith.cmpi sge, %496, %c2048_i32_121 : i32
    %498 = arith.select %497, %489, %488 : i32
    %c32768_i32_122 = arith.constant 32768 : i32
    %499 = arith.ori %498, %c32768_i32_122 : i32
    %500 = vector.broadcast %499 : i32 to vector<64x64xi32>
    %501 = arith.cmpi sge, %348, %500 : vector<64x64xi32>
    %502 = arith.extui %501 : vector<64x64xi1> to vector<64x64xi32>
    %503 = vector.shape_cast %502 : vector<64x64xi32> to vector<1x64x64xi32>
    %cst_123 = arith.constant dense<0> : vector<1xi32>
    %504 = vector.multi_reduction <add>, %503, %cst_123 [1, 2] : vector<1x64x64xi32> to vector<1xi32>
    %505 = vector.shape_cast %504 : vector<1xi32> to vector<1x1x1xi32>
    %506 = vector.extract %505[0, 0, 0] : i32 from vector<1x1x1xi32>
    %c2048_i32_124 = arith.constant 2048 : i32
    %507 = arith.cmpi sge, %506, %c2048_i32_124 : i32
    %508 = arith.select %507, %499, %498 : i32
    %c16384_i32_125 = arith.constant 16384 : i32
    %509 = arith.ori %508, %c16384_i32_125 : i32
    %510 = vector.broadcast %509 : i32 to vector<64x64xi32>
    %511 = arith.cmpi sge, %348, %510 : vector<64x64xi32>
    %512 = arith.extui %511 : vector<64x64xi1> to vector<64x64xi32>
    %513 = vector.shape_cast %512 : vector<64x64xi32> to vector<1x64x64xi32>
    %cst_126 = arith.constant dense<0> : vector<1xi32>
    %514 = vector.multi_reduction <add>, %513, %cst_126 [1, 2] : vector<1x64x64xi32> to vector<1xi32>
    %515 = vector.shape_cast %514 : vector<1xi32> to vector<1x1x1xi32>
    %516 = vector.extract %515[0, 0, 0] : i32 from vector<1x1x1xi32>
    %c2048_i32_127 = arith.constant 2048 : i32
    %517 = arith.cmpi sge, %516, %c2048_i32_127 : i32
    %518 = arith.select %517, %509, %508 : i32
    %c8192_i32_128 = arith.constant 8192 : i32
    %519 = arith.ori %518, %c8192_i32_128 : i32
    %520 = vector.broadcast %519 : i32 to vector<64x64xi32>
    %521 = arith.cmpi sge, %348, %520 : vector<64x64xi32>
    %522 = arith.extui %521 : vector<64x64xi1> to vector<64x64xi32>
    %523 = vector.shape_cast %522 : vector<64x64xi32> to vector<1x64x64xi32>
    %cst_129 = arith.constant dense<0> : vector<1xi32>
    %524 = vector.multi_reduction <add>, %523, %cst_129 [1, 2] : vector<1x64x64xi32> to vector<1xi32>
    %525 = vector.shape_cast %524 : vector<1xi32> to vector<1x1x1xi32>
    %526 = vector.extract %525[0, 0, 0] : i32 from vector<1x1x1xi32>
    %c2048_i32_130 = arith.constant 2048 : i32
    %527 = arith.cmpi sge, %526, %c2048_i32_130 : i32
    %528 = arith.select %527, %519, %518 : i32
    %c4096_i32_131 = arith.constant 4096 : i32
    %529 = arith.ori %528, %c4096_i32_131 : i32
    %530 = vector.broadcast %529 : i32 to vector<64x64xi32>
    %531 = arith.cmpi sge, %348, %530 : vector<64x64xi32>
    %532 = arith.extui %531 : vector<64x64xi1> to vector<64x64xi32>
    %533 = vector.shape_cast %532 : vector<64x64xi32> to vector<1x64x64xi32>
    %cst_132 = arith.constant dense<0> : vector<1xi32>
    %534 = vector.multi_reduction <add>, %533, %cst_132 [1, 2] : vector<1x64x64xi32> to vector<1xi32>
    %535 = vector.shape_cast %534 : vector<1xi32> to vector<1x1x1xi32>
    %536 = vector.extract %535[0, 0, 0] : i32 from vector<1x1x1xi32>
    %c2048_i32_133 = arith.constant 2048 : i32
    %537 = arith.cmpi sge, %536, %c2048_i32_133 : i32
    %538 = arith.select %537, %529, %528 : i32
    %c2048_i32_134 = arith.constant 2048 : i32
    %539 = arith.ori %538, %c2048_i32_134 : i32
    %540 = vector.broadcast %539 : i32 to vector<64x64xi32>
    %541 = arith.cmpi sge, %348, %540 : vector<64x64xi32>
    %542 = arith.extui %541 : vector<64x64xi1> to vector<64x64xi32>
    %543 = vector.shape_cast %542 : vector<64x64xi32> to vector<1x64x64xi32>
    %cst_135 = arith.constant dense<0> : vector<1xi32>
    %544 = vector.multi_reduction <add>, %543, %cst_135 [1, 2] : vector<1x64x64xi32> to vector<1xi32>
    %545 = vector.shape_cast %544 : vector<1xi32> to vector<1x1x1xi32>
    %546 = vector.extract %545[0, 0, 0] : i32 from vector<1x1x1xi32>
    %c2048_i32_136 = arith.constant 2048 : i32
    %547 = arith.cmpi sge, %546, %c2048_i32_136 : i32
    %548 = arith.select %547, %539, %538 : i32
    %c1024_i32_137 = arith.constant 1024 : i32
    %549 = arith.ori %548, %c1024_i32_137 : i32
    %550 = vector.broadcast %549 : i32 to vector<64x64xi32>
    %551 = arith.cmpi sge, %348, %550 : vector<64x64xi32>
    %552 = arith.extui %551 : vector<64x64xi1> to vector<64x64xi32>
    %553 = vector.shape_cast %552 : vector<64x64xi32> to vector<1x64x64xi32>
    %cst_138 = arith.constant dense<0> : vector<1xi32>
    %554 = vector.multi_reduction <add>, %553, %cst_138 [1, 2] : vector<1x64x64xi32> to vector<1xi32>
    %555 = vector.shape_cast %554 : vector<1xi32> to vector<1x1x1xi32>
    %556 = vector.extract %555[0, 0, 0] : i32 from vector<1x1x1xi32>
    %c2048_i32_139 = arith.constant 2048 : i32
    %557 = arith.cmpi sge, %556, %c2048_i32_139 : i32
    %558 = arith.select %557, %549, %548 : i32
    %c512_i32_140 = arith.constant 512 : i32
    %559 = arith.ori %558, %c512_i32_140 : i32
    %560 = vector.broadcast %559 : i32 to vector<64x64xi32>
    %561 = arith.cmpi sge, %348, %560 : vector<64x64xi32>
    %562 = arith.extui %561 : vector<64x64xi1> to vector<64x64xi32>
    %563 = vector.shape_cast %562 : vector<64x64xi32> to vector<1x64x64xi32>
    %cst_141 = arith.constant dense<0> : vector<1xi32>
    %564 = vector.multi_reduction <add>, %563, %cst_141 [1, 2] : vector<1x64x64xi32> to vector<1xi32>
    %565 = vector.shape_cast %564 : vector<1xi32> to vector<1x1x1xi32>
    %566 = vector.extract %565[0, 0, 0] : i32 from vector<1x1x1xi32>
    %c2048_i32_142 = arith.constant 2048 : i32
    %567 = arith.cmpi sge, %566, %c2048_i32_142 : i32
    %568 = arith.select %567, %559, %558 : i32
    %c256_i32_143 = arith.constant 256 : i32
    %569 = arith.ori %568, %c256_i32_143 : i32
    %570 = vector.broadcast %569 : i32 to vector<64x64xi32>
    %571 = arith.cmpi sge, %348, %570 : vector<64x64xi32>
    %572 = arith.extui %571 : vector<64x64xi1> to vector<64x64xi32>
    %573 = vector.shape_cast %572 : vector<64x64xi32> to vector<1x64x64xi32>
    %cst_144 = arith.constant dense<0> : vector<1xi32>
    %574 = vector.multi_reduction <add>, %573, %cst_144 [1, 2] : vector<1x64x64xi32> to vector<1xi32>
    %575 = vector.shape_cast %574 : vector<1xi32> to vector<1x1x1xi32>
    %576 = vector.extract %575[0, 0, 0] : i32 from vector<1x1x1xi32>
    %c2048_i32_145 = arith.constant 2048 : i32
    %577 = arith.cmpi sge, %576, %c2048_i32_145 : i32
    %578 = arith.select %577, %569, %568 : i32
    %c128_i32_146 = arith.constant 128 : i32
    %579 = arith.ori %578, %c128_i32_146 : i32
    %580 = vector.broadcast %579 : i32 to vector<64x64xi32>
    %581 = arith.cmpi sge, %348, %580 : vector<64x64xi32>
    %582 = arith.extui %581 : vector<64x64xi1> to vector<64x64xi32>
    %583 = vector.shape_cast %582 : vector<64x64xi32> to vector<1x64x64xi32>
    %cst_147 = arith.constant dense<0> : vector<1xi32>
    %584 = vector.multi_reduction <add>, %583, %cst_147 [1, 2] : vector<1x64x64xi32> to vector<1xi32>
    %585 = vector.shape_cast %584 : vector<1xi32> to vector<1x1x1xi32>
    %586 = vector.extract %585[0, 0, 0] : i32 from vector<1x1x1xi32>
    %c2048_i32_148 = arith.constant 2048 : i32
    %587 = arith.cmpi sge, %586, %c2048_i32_148 : i32
    %588 = arith.select %587, %579, %578 : i32
    %c64_i32_149 = arith.constant 64 : i32
    %589 = arith.ori %588, %c64_i32_149 : i32
    %590 = vector.broadcast %589 : i32 to vector<64x64xi32>
    %591 = arith.cmpi sge, %348, %590 : vector<64x64xi32>
    %592 = arith.extui %591 : vector<64x64xi1> to vector<64x64xi32>
    %593 = vector.shape_cast %592 : vector<64x64xi32> to vector<1x64x64xi32>
    %cst_150 = arith.constant dense<0> : vector<1xi32>
    %594 = vector.multi_reduction <add>, %593, %cst_150 [1, 2] : vector<1x64x64xi32> to vector<1xi32>
    %595 = vector.shape_cast %594 : vector<1xi32> to vector<1x1x1xi32>
    %596 = vector.extract %595[0, 0, 0] : i32 from vector<1x1x1xi32>
    %c2048_i32_151 = arith.constant 2048 : i32
    %597 = arith.cmpi sge, %596, %c2048_i32_151 : i32
    %598 = arith.select %597, %589, %588 : i32
    %c32_i32_152 = arith.constant 32 : i32
    %599 = arith.ori %598, %c32_i32_152 : i32
    %600 = vector.broadcast %599 : i32 to vector<64x64xi32>
    %601 = arith.cmpi sge, %348, %600 : vector<64x64xi32>
    %602 = arith.extui %601 : vector<64x64xi1> to vector<64x64xi32>
    %603 = vector.shape_cast %602 : vector<64x64xi32> to vector<1x64x64xi32>
    %cst_153 = arith.constant dense<0> : vector<1xi32>
    %604 = vector.multi_reduction <add>, %603, %cst_153 [1, 2] : vector<1x64x64xi32> to vector<1xi32>
    %605 = vector.shape_cast %604 : vector<1xi32> to vector<1x1x1xi32>
    %606 = vector.extract %605[0, 0, 0] : i32 from vector<1x1x1xi32>
    %c2048_i32_154 = arith.constant 2048 : i32
    %607 = arith.cmpi sge, %606, %c2048_i32_154 : i32
    %608 = arith.select %607, %599, %598 : i32
    %c16_i32_155 = arith.constant 16 : i32
    %609 = arith.ori %608, %c16_i32_155 : i32
    %610 = vector.broadcast %609 : i32 to vector<64x64xi32>
    %611 = arith.cmpi sge, %348, %610 : vector<64x64xi32>
    %612 = arith.extui %611 : vector<64x64xi1> to vector<64x64xi32>
    %613 = vector.shape_cast %612 : vector<64x64xi32> to vector<1x64x64xi32>
    %cst_156 = arith.constant dense<0> : vector<1xi32>
    %614 = vector.multi_reduction <add>, %613, %cst_156 [1, 2] : vector<1x64x64xi32> to vector<1xi32>
    %615 = vector.shape_cast %614 : vector<1xi32> to vector<1x1x1xi32>
    %616 = vector.extract %615[0, 0, 0] : i32 from vector<1x1x1xi32>
    %c2048_i32_157 = arith.constant 2048 : i32
    %617 = arith.cmpi sge, %616, %c2048_i32_157 : i32
    %618 = arith.select %617, %609, %608 : i32
    %c8_i32_158 = arith.constant 8 : i32
    %619 = arith.ori %618, %c8_i32_158 : i32
    %620 = vector.broadcast %619 : i32 to vector<64x64xi32>
    %621 = arith.cmpi sge, %348, %620 : vector<64x64xi32>
    %622 = arith.extui %621 : vector<64x64xi1> to vector<64x64xi32>
    %623 = vector.shape_cast %622 : vector<64x64xi32> to vector<1x64x64xi32>
    %cst_159 = arith.constant dense<0> : vector<1xi32>
    %624 = vector.multi_reduction <add>, %623, %cst_159 [1, 2] : vector<1x64x64xi32> to vector<1xi32>
    %625 = vector.shape_cast %624 : vector<1xi32> to vector<1x1x1xi32>
    %626 = vector.extract %625[0, 0, 0] : i32 from vector<1x1x1xi32>
    %c2048_i32_160 = arith.constant 2048 : i32
    %627 = arith.cmpi sge, %626, %c2048_i32_160 : i32
    %628 = arith.select %627, %619, %618 : i32
    %c4_i32_161 = arith.constant 4 : i32
    %629 = arith.ori %628, %c4_i32_161 : i32
    %630 = vector.broadcast %629 : i32 to vector<64x64xi32>
    %631 = arith.cmpi sge, %348, %630 : vector<64x64xi32>
    %632 = arith.extui %631 : vector<64x64xi1> to vector<64x64xi32>
    %633 = vector.shape_cast %632 : vector<64x64xi32> to vector<1x64x64xi32>
    %cst_162 = arith.constant dense<0> : vector<1xi32>
    %634 = vector.multi_reduction <add>, %633, %cst_162 [1, 2] : vector<1x64x64xi32> to vector<1xi32>
    %635 = vector.shape_cast %634 : vector<1xi32> to vector<1x1x1xi32>
    %636 = vector.extract %635[0, 0, 0] : i32 from vector<1x1x1xi32>
    %c2048_i32_163 = arith.constant 2048 : i32
    %637 = arith.cmpi sge, %636, %c2048_i32_163 : i32
    %638 = arith.select %637, %629, %628 : i32
    %c2_i32_164 = arith.constant 2 : i32
    %639 = arith.ori %638, %c2_i32_164 : i32
    %640 = vector.broadcast %639 : i32 to vector<64x64xi32>
    %641 = arith.cmpi sge, %348, %640 : vector<64x64xi32>
    %642 = arith.extui %641 : vector<64x64xi1> to vector<64x64xi32>
    %643 = vector.shape_cast %642 : vector<64x64xi32> to vector<1x64x64xi32>
    %cst_165 = arith.constant dense<0> : vector<1xi32>
    %644 = vector.multi_reduction <add>, %643, %cst_165 [1, 2] : vector<1x64x64xi32> to vector<1xi32>
    %645 = vector.shape_cast %644 : vector<1xi32> to vector<1x1x1xi32>
    %646 = vector.extract %645[0, 0, 0] : i32 from vector<1x1x1xi32>
    %c2048_i32_166 = arith.constant 2048 : i32
    %647 = arith.cmpi sge, %646, %c2048_i32_166 : i32
    %648 = arith.select %647, %639, %638 : i32
    %c1_i32_167 = arith.constant 1 : i32
    %649 = arith.ori %648, %c1_i32_167 : i32
    %650 = vector.broadcast %649 : i32 to vector<64x64xi32>
    %651 = arith.cmpi sge, %348, %650 : vector<64x64xi32>
    %652 = arith.extui %651 : vector<64x64xi1> to vector<64x64xi32>
    %653 = vector.shape_cast %652 : vector<64x64xi32> to vector<1x64x64xi32>
    %cst_168 = arith.constant dense<0> : vector<1xi32>
    %654 = vector.multi_reduction <add>, %653, %cst_168 [1, 2] : vector<1x64x64xi32> to vector<1xi32>
    %655 = vector.shape_cast %654 : vector<1xi32> to vector<1x1x1xi32>
    %656 = vector.extract %655[0, 0, 0] : i32 from vector<1x1x1xi32>
    %c2048_i32_169 = arith.constant 2048 : i32
    %657 = arith.cmpi sge, %656, %c2048_i32_169 : i32
    %658 = arith.select %657, %649, %648 : i32
    %659 = vector.broadcast %658 : i32 to vector<64x64xi32>
    %660 = arith.cmpi eq, %348, %659 : vector<64x64xi32>
    %cst_170 = arith.constant 0.000000e+00 : f32
    %661 = vector.broadcast %cst_170 : f32 to vector<64x64xf32>
    %662 = arith.select %660, %18, %661 : vector<64x64xi1>, vector<64x64xf32>
    %663 = vector.shape_cast %662 : vector<64x64xf32> to vector<1x64x64xf32>
    %cst_171 = arith.constant dense<0xFF800000> : vector<1xf32>
    %664 = vector.multi_reduction <maximumf>, %663, %cst_171 [1, 2] : vector<1x64x64xf32> to vector<1xf32>
    %665 = vector.shape_cast %664 : vector<1xf32> to vector<1x1x1xf32>
    %666 = vector.extract %665[0, 0, 0] : f32 from vector<1x1x1xf32>
    %cst_172 = arith.constant 5.000000e-01 : f32
    %667 = arith.divf %cst_172, %347 : f32
    %cst_173 = arith.constant 5.000000e-01 : f32
    %668 = arith.divf %cst_173, %666 : f32
    %cst_174 = arith.constant 0.000000e+00 : f32
    %669 = vector.broadcast %cst_174 : f32 to vector<64x64xf32>
    %670 = arith.subf %669, %28 : vector<64x64xf32>
    %671 = vector.broadcast %667 : f32 to vector<64x64xf32>
    %672 = arith.mulf %670, %671 : vector<64x64xf32>
    %673 = math.exp %672 : vector<64x64xf32>
    %cst_175 = arith.constant 0.000000e+00 : f32
    %674 = vector.broadcast %cst_175 : f32 to vector<64x64xf32>
    %675 = arith.subf %674, %18 : vector<64x64xf32>
    %676 = vector.broadcast %668 : f32 to vector<64x64xf32>
    %677 = arith.mulf %675, %676 : vector<64x64xf32>
    %678 = math.exp %677 : vector<64x64xf32>
    %c0_176 = arith.constant 0 : index
    %c0_177 = arith.constant 0 : index
    %c0_178 = arith.constant 0 : index
    %679 = vector.load %arg2[%c0_176, %c0_177, %c0_178] : memref<2x64x64xf32, #tpu.memory_space<vmem>>, vector<1x64x64xf32>
    %680 = vector.shape_cast %679 : vector<1x64x64xf32> to vector<64x64xf32>
    %681 = vector.shape_cast %673 : vector<64x64xf32> to vector<1x64x64xf32>
    tpu.vector_store %arg2[%c0_176, %c0_177, %c0_178], %681 {strides = array<i32>} : memref<2x64x64xf32, #tpu.memory_space<vmem>>, vector<1x64x64xf32>,
    %c1 = arith.constant 1 : index
    %c0_179 = arith.constant 0 : index
    %c0_180 = arith.constant 0 : index
    %682 = vector.load %arg2[%c1, %c0_179, %c0_180] : memref<2x64x64xf32, #tpu.memory_space<vmem>>, vector<1x64x64xf32>
    %683 = vector.shape_cast %682 : vector<1x64x64xf32> to vector<64x64xf32>
    %684 = vector.shape_cast %678 : vector<64x64xf32> to vector<1x64x64xf32>
    tpu.vector_store %arg2[%c1, %c0_179, %c0_180], %684 {strides = array<i32>} : memref<2x64x64xf32, #tpu.memory_space<vmem>>, vector<1x64x64xf32>,
    %cst_181 = arith.constant dense<0.000000e+00> : vector<64xf32>
    %685 = vector.multi_reduction <add>, %673, %cst_181 [1] : vector<64x64xf32> to vector<64xf32>
    %686 = vector.shape_cast %685 : vector<64xf32> to vector<64x1xf32>
    %cst_182 = arith.constant dense<0.000000e+00> : vector<64xf32>
    %687 = vector.multi_reduction <add>, %678, %cst_182 [1] : vector<64x64xf32> to vector<64xf32>
    %688 = vector.shape_cast %687 : vector<64xf32> to vector<64x1xf32>
    %cst_183 = arith.constant 2.000000e+00 : f32
    %689 = arith.mulf %cst_183, %667 : f32
    %cst_184 = arith.constant 6.400000e+01 : f32
    %690 = arith.divf %689, %cst_184 : f32
    %cst_185 = arith.constant 2.000000e+00 : f32
    %691 = arith.mulf %cst_185, %668 : f32
    %cst_186 = arith.constant 6.400000e+01 : f32
    %692 = arith.divf %691, %cst_186 : f32
    %693 = vector.broadcast %686 : vector<64x1xf32> to vector<64x64xf32>
    %694 = arith.mulf %0, %693 : vector<64x64xf32>
    %cst_187 = arith.constant dense<0.000000e+00> : vector<64x64xf32>
    %695 = tpu.matmul %673, %0, %cst_187 {dimension_numbers = #tpu.dot_dimension_numbers<[0], [0], [1], [1], [0, 1, 1, 1], [], []>} : vector<64x64xf32>, vector<64x64xf32>, vector<64x64xf32> -> vector<64x64xf32>
    %696 = arith.subf %694, %695 : vector<64x64xf32>
    %697 = vector.broadcast %690 : f32 to vector<64x64xf32>
    %698 = arith.mulf %696, %697 : vector<64x64xf32>
    %c0_188 = arith.constant 0 : index
    %c0_189 = arith.constant 0 : index
    %699 = vector.load %arg3[%c0_188, %c0_189] : memref<64x64xf32, #tpu.memory_space<vmem>>, vector<64x64xf32>
    tpu.vector_store %arg3[%c0_188, %c0_189], %698 {strides = array<i32>} : memref<64x64xf32, #tpu.memory_space<vmem>>, vector<64x64xf32>,
    %700 = vector.broadcast %686 : vector<64x1xf32> to vector<64x64xf32>
    %701 = arith.mulf %1, %700 : vector<64x64xf32>
    %cst_190 = arith.constant dense<0.000000e+00> : vector<64x64xf32>
    %702 = tpu.matmul %673, %1, %cst_190 {dimension_numbers = #tpu.dot_dimension_numbers<[0], [0], [1], [1], [0, 1, 1, 1], [], []>} : vector<64x64xf32>, vector<64x64xf32>, vector<64x64xf32> -> vector<64x64xf32>
    %703 = arith.subf %701, %702 : vector<64x64xf32>
    %704 = vector.broadcast %690 : f32 to vector<64x64xf32>
    %705 = arith.mulf %703, %704 : vector<64x64xf32>
    %c0_191 = arith.constant 0 : index
    %c0_192 = arith.constant 0 : index
    %706 = vector.load %arg4[%c0_191, %c0_192] : memref<64x64xf32, #tpu.memory_space<vmem>>, vector<64x64xf32>
    tpu.vector_store %arg4[%c0_191, %c0_192], %705 {strides = array<i32>} : memref<64x64xf32, #tpu.memory_space<vmem>>, vector<64x64xf32>,
    %707 = vector.broadcast %688 : vector<64x1xf32> to vector<64x64xf32>
    %708 = arith.mulf %1, %707 : vector<64x64xf32>
    %cst_193 = arith.constant dense<0.000000e+00> : vector<64x64xf32>
    %709 = tpu.matmul %678, %1, %cst_193 {dimension_numbers = #tpu.dot_dimension_numbers<[0], [0], [1], [1], [0, 1, 1, 1], [], []>} : vector<64x64xf32>, vector<64x64xf32>, vector<64x64xf32> -> vector<64x64xf32>
    %710 = arith.subf %708, %709 : vector<64x64xf32>
    %711 = vector.broadcast %692 : f32 to vector<64x64xf32>
    %712 = arith.mulf %710, %711 : vector<64x64xf32>
    %c0_194 = arith.constant 0 : index
    %c0_195 = arith.constant 0 : index
    %713 = vector.load %arg5[%c0_194, %c0_195] : memref<64x64xf32, #tpu.memory_space<vmem>>, vector<64x64xf32>
    tpu.vector_store %arg5[%c0_194, %c0_195], %712 {strides = array<i32>} : memref<64x64xf32, #tpu.memory_space<vmem>>, vector<64x64xf32>,
    return
  }
}

module attributes {stable_mosaic.version = 11 : i64} {
  func.func @_mige_score_kernel(%arg0: memref<64x64xf32, #tpu.memory_space<vmem>>, %arg1: memref<64x64xf32, #tpu.memory_space<vmem>>, %arg2: memref<64x64xf32, #tpu.memory_space<vmem>>, %arg3: memref<64x64xf32, #tpu.memory_space<vmem>>, %arg4: memref<64x64xf32, #tpu.memory_space<vmem>>, %arg5: memref<2x64x64xf32, #tpu.memory_space<vmem>>, %arg6: memref<2x64x1xf32, #tpu.memory_space<vmem>>, %arg7: memref<8x128xf32, #tpu.memory_space<vmem>>) attributes {dimension_semantics = [], scalar_prefetch = 0 : i64, scratch_operands = 0 : i64, tpu.core_type = #tpu.core_type<tc>} {
    %c0 = arith.constant 0 : index
    %c0_0 = arith.constant 0 : index
    %0 = vector.load %arg0[%c0, %c0_0] : memref<64x64xf32, #tpu.memory_space<vmem>>, vector<64x64xf32>
    %c0_1 = arith.constant 0 : index
    %c0_2 = arith.constant 0 : index
    %1 = vector.load %arg1[%c0_1, %c0_2] : memref<64x64xf32, #tpu.memory_space<vmem>>, vector<64x64xf32>
    %c0_3 = arith.constant 0 : index
    %c0_4 = arith.constant 0 : index
    %c0_5 = arith.constant 0 : index
    %2 = vector.load %arg5[%c0_3, %c0_4, %c0_5] : memref<2x64x64xf32, #tpu.memory_space<vmem>>, vector<1x64x64xf32>
    %3 = vector.shape_cast %2 : vector<1x64x64xf32> to vector<64x64xf32>
    %c1 = arith.constant 1 : index
    %c0_6 = arith.constant 0 : index
    %c0_7 = arith.constant 0 : index
    %4 = vector.load %arg5[%c1, %c0_6, %c0_7] : memref<2x64x64xf32, #tpu.memory_space<vmem>>, vector<1x64x64xf32>
    %5 = vector.shape_cast %4 : vector<1x64x64xf32> to vector<64x64xf32>
    %c0_8 = arith.constant 0 : index
    %c0_9 = arith.constant 0 : index
    %c0_10 = arith.constant 0 : index
    %6 = vector.load %arg6[%c0_8, %c0_9, %c0_10] : memref<2x64x1xf32, #tpu.memory_space<vmem>>, vector<1x64x1xf32>
    %7 = vector.shape_cast %6 : vector<1x64x1xf32> to vector<64x1xf32>
    %c1_11 = arith.constant 1 : index
    %c0_12 = arith.constant 0 : index
    %c0_13 = arith.constant 0 : index
    %8 = vector.load %arg6[%c1_11, %c0_12, %c0_13] : memref<2x64x1xf32, #tpu.memory_space<vmem>>, vector<1x64x1xf32>
    %9 = vector.shape_cast %8 : vector<1x64x1xf32> to vector<64x1xf32>
    %cst = arith.constant dense<0.000000e+00> : vector<64x64xf32>
    %10 = tpu.matmul %3, %0, %cst {dimension_numbers = #tpu.dot_dimension_numbers<[0], [0], [1], [1], [0, 1, 1, 1], [], []>} : vector<64x64xf32>, vector<64x64xf32>, vector<64x64xf32> -> vector<64x64xf32>
    %c0_14 = arith.constant 0 : index
    %c0_15 = arith.constant 0 : index
    %11 = vector.load %arg2[%c0_14, %c0_15] : memref<64x64xf32, #tpu.memory_space<vmem>>, vector<64x64xf32>
    %cst_16 = arith.constant dense<0.000000e+00> : vector<64x64xf32>
    %12 = tpu.matmul %3, %11, %cst_16 {dimension_numbers = #tpu.dot_dimension_numbers<[0], [0], [1], [1], [0, 1, 1, 1], [], []>} : vector<64x64xf32>, vector<64x64xf32>, vector<64x64xf32> -> vector<64x64xf32>
    %13 = arith.mulf %10, %12 : vector<64x64xf32>
    %cst_17 = arith.constant dense<0.000000e+00> : vector<64xf32>
    %14 = vector.multi_reduction <add>, %13, %cst_17 [1] : vector<64x64xf32> to vector<64xf32>
    %15 = vector.shape_cast %14 : vector<64xf32> to vector<64x1xf32>
    %cst_18 = arith.constant dense<0.000000e+00> : vector<64x64xf32>
    %16 = tpu.matmul %3, %1, %cst_18 {dimension_numbers = #tpu.dot_dimension_numbers<[0], [0], [1], [1], [0, 1, 1, 1], [], []>} : vector<64x64xf32>, vector<64x64xf32>, vector<64x64xf32> -> vector<64x64xf32>
    %c0_19 = arith.constant 0 : index
    %c0_20 = arith.constant 0 : index
    %17 = vector.load %arg3[%c0_19, %c0_20] : memref<64x64xf32, #tpu.memory_space<vmem>>, vector<64x64xf32>
    %cst_21 = arith.constant dense<0.000000e+00> : vector<64x64xf32>
    %18 = tpu.matmul %3, %17, %cst_21 {dimension_numbers = #tpu.dot_dimension_numbers<[0], [0], [1], [1], [0, 1, 1, 1], [], []>} : vector<64x64xf32>, vector<64x64xf32>, vector<64x64xf32> -> vector<64x64xf32>
    %19 = arith.mulf %16, %18 : vector<64x64xf32>
    %cst_22 = arith.constant dense<0.000000e+00> : vector<64xf32>
    %20 = vector.multi_reduction <add>, %19, %cst_22 [1] : vector<64x64xf32> to vector<64xf32>
    %21 = vector.shape_cast %20 : vector<64xf32> to vector<64x1xf32>
    %22 = arith.addf %15, %21 : vector<64x1xf32>
    %cst_23 = arith.constant dense<0.000000e+00> : vector<64x64xf32>
    %23 = tpu.matmul %5, %1, %cst_23 {dimension_numbers = #tpu.dot_dimension_numbers<[0], [0], [1], [1], [0, 1, 1, 1], [], []>} : vector<64x64xf32>, vector<64x64xf32>, vector<64x64xf32> -> vector<64x64xf32>
    %c0_24 = arith.constant 0 : index
    %c0_25 = arith.constant 0 : index
    %24 = vector.load %arg4[%c0_24, %c0_25] : memref<64x64xf32, #tpu.memory_space<vmem>>, vector<64x64xf32>
    %cst_26 = arith.constant dense<0.000000e+00> : vector<64x64xf32>
    %25 = tpu.matmul %5, %24, %cst_26 {dimension_numbers = #tpu.dot_dimension_numbers<[0], [0], [1], [1], [0, 1, 1, 1], [], []>} : vector<64x64xf32>, vector<64x64xf32>, vector<64x64xf32> -> vector<64x64xf32>
    %26 = arith.mulf %23, %25 : vector<64x64xf32>
    %cst_27 = arith.constant dense<0.000000e+00> : vector<64xf32>
    %27 = vector.multi_reduction <add>, %26, %cst_27 [1] : vector<64x64xf32> to vector<64xf32>
    %28 = vector.shape_cast %27 : vector<64xf32> to vector<64x1xf32>
    %29 = arith.divf %22, %7 : vector<64x1xf32>
    %30 = vector.shape_cast %29 : vector<64x1xf32> to vector<1x64x1xf32>
    %cst_28 = arith.constant dense<0.000000e+00> : vector<1xf32>
    %31 = vector.multi_reduction <add>, %30, %cst_28 [1, 2] : vector<1x64x1xf32> to vector<1xf32>
    %32 = vector.shape_cast %31 : vector<1xf32> to vector<1x1x1xf32>
    %33 = vector.extract %32[0, 0, 0] : f32 from vector<1x1x1xf32>
    %cst_29 = arith.constant 0.000000e+00 : f32
    %34 = arith.subf %cst_29, %33 : f32
    %35 = arith.divf %28, %9 : vector<64x1xf32>
    %36 = vector.shape_cast %35 : vector<64x1xf32> to vector<1x64x1xf32>
    %cst_30 = arith.constant dense<0.000000e+00> : vector<1xf32>
    %37 = vector.multi_reduction <add>, %36, %cst_30 [1, 2] : vector<1x64x1xf32> to vector<1xf32>
    %38 = vector.shape_cast %37 : vector<1xf32> to vector<1x1x1xf32>
    %39 = vector.extract %38[0, 0, 0] : f32 from vector<1x1x1xf32>
    %cst_31 = arith.constant 0.000000e+00 : f32
    %40 = arith.subf %cst_31, %39 : f32
    %41 = arith.subf %34, %40 : f32
    %42 = vector.broadcast %41 : f32 to vector<8x128xf32>
    %c0_32 = arith.constant 0 : index
    %c0_33 = arith.constant 0 : index
    %43 = vector.load %arg7[%c0_32, %c0_33] : memref<8x128xf32, #tpu.memory_space<vmem>>, vector<8x128xf32>
    tpu.vector_store %arg7[%c0_32, %c0_33], %42 {strides = array<i32>} : memref<8x128xf32, #tpu.memory_space<vmem>>, vector<8x128xf32>,
    return
  }
}

</mosaic_0001>

<llo_original>
// kernel: custom-call.2
$region0: #{custom-call.2}
  %s0 = inlined_call_operand.vmem [shape: f32[2,32,32], index: 0, kind: input, shape index: {}]
  %s1 = inlined_call_operand.vmem [shape: f32[2,32,32], index: 1, kind: input, shape index: {}]
  %s2 = inlined_call_operand.vmem [shape: f32[2,32,32], index: 2, kind: input, shape index: {}]
  %s3 = inlined_call_operand.vmem [shape: f32[2,32,32], index: 3, kind: input, shape index: {}]
  %s4 = inlined_call_operand.vmem [shape: f32[2,32], index: 4, kind: output, shape index: {0}]
  %s5 = inlined_call_operand.vmem [shape: f32[2,32], index: 5, kind: output, shape index: {1}]
  %s6 = inlined_call_operand.vmem [shape: f32[2,32,32], index: 6, kind: output, shape index: {2}]
  %s7 = inlined_call_operand.vmem [shape: f32[2,32,32], index: 7, kind: output, shape index: {3}]
  %s8 = inlined_call_operand.vmem [shape: f32[2,32,32], index: 8, kind: output, shape index: {4}]
  %s9 = inlined_call_operand.vmem [shape: f32[2,32,32], index: 9, kind: output, shape index: {5}]
  %10 = xla_tuple %s4, %s5, %s6, %s7, %s8, %s9
  $region1: #{custom-call.2} parent=0
    #allocation0 [shape = 'u8[32768]{0}', space=vmem, size = 0x8000, scoped, tag = 'operand span for operand 0']
    #allocation1 [shape = 'u8[32768]{0}', space=vmem, size = 0x8000, scoped, tag = 'operand span for operand 1']
    #allocation2 [shape = 'u8[32768]{0}', space=vmem, size = 0x8000, scoped, tag = 'operand span for operand 2']
    #allocation3 [shape = 'u8[32768]{0}', space=vmem, size = 0x8000, scoped, tag = 'operand span for operand 3']
    #allocation4 [shape = 'u8[4096]{0}', space=vmem, size = 0x1000, scoped, tag = 'operand span for operand 4']
    #allocation5 [shape = 'u8[2048]{0}', space=vmem, size = 0x800, scoped, tag = 'packed  for operand 4']
    #allocation6 [shape = 'u8[4096]{0}', space=vmem, size = 0x1000, scoped, tag = 'operand span for operand 5']
    #allocation7 [shape = 'u8[2048]{0}', space=vmem, size = 0x800, scoped, tag = 'packed  for operand 5']
    #allocation8 [shape = 'u8[32768]{0}', space=vmem, size = 0x8000, scoped, tag = 'operand span for operand 6']
    #allocation9 [shape = 'u8[32768]{0}', space=vmem, size = 0x8000, scoped, tag = 'operand span for operand 7']
    #allocation10 [shape = 'u8[32768]{0}', space=vmem, size = 0x8000, scoped, tag = 'operand span for operand 8']
    #allocation11 [shape = 'u8[32768]{0}', space=vmem, size = 0x8000, scoped, tag = 'operand span for operand 9']
    loop: start=0, step=1, limit=4
    $region2: #{custom-call.2} parent=1 // loop_pre_header
      _
    $region3: #{custom-call.2} parent=1 // loop_header
      %s12 = sphi 0, %s16
      %p13 = scmp.ge.s32.totalorder %s12, 4
      %s24 = sphi 0, %s26
      %s27 = sphi 0, %s24
      %s28 = sphi 0, %s27
      %s44 = sphi 0, %s28
      %s52 = sphi 0, %s54
      %s55 = sphi 0, %s52
      %s56 = sphi 0, %s55
      %s72 = sphi 0, %s56
    $region4: #{custom-call.2} parent=1 // loop_header_branch
      %15 = sbr.rel (%p13) target = $region8
    $region5: #{custom-call.2} parent=1 // loop_body
      %s17 = ssub.s32 %s12, 1
      %s18 = ssub.s32 %s12, 2
      %s19 = sadd.s32 %s12, 1
      %s20 = sshrl.u32 %s12, 3
      %s21 = sshrl.u32 %s19, 3
      %s22 = ssub.s32 %s20, %s21
      %p23 = scmp.eq.s32.totalorder %s22, 0
      %s25 = sadd.s32 %s24, 1
      %s26 = scalar_select %p23, %s24, %s25
      %p29 = pneg %p23
      %p30 = scmp.eq.s32.totalorder %s12, 1
      %p31 = por %p29, %p30
      %p32 = scmp.ne.s32.totalorder %s24, %s27
      %p33 = scmp.eq.s32.totalorder %s12, 0
      %p34 = por %p32, %p33
      %p35 = scmp.ne.s32.totalorder %s24, %s27
      %p36 = scmp.eq.s32.totalorder %s17, 1
      %p37 = por %p35, %p36
      %p38 = scmp.ne.s32.totalorder %s27, %s28
      %p39 = scmp.eq.s32.totalorder %s17, 0
      %p40 = por %p38, %p39
      %p41 = scmp.ne.s32.totalorder %s27, %s28
      %p42 = scmp.eq.s32.totalorder %s18, 1
      %p43 = por %p41, %p42
      %p45 = scmp.ne.s32.totalorder %s28, %s44
      %p46 = scmp.eq.s32.totalorder %s18, 0
      %p47 = por %p45, %p46
      %s48 = sshrl.u32 %s12, 3
      %s49 = sshrl.u32 %s19, 3
      %s50 = ssub.s32 %s48, %s49
      %p51 = scmp.eq.s32.totalorder %s50, 0
      %s53 = sadd.s32 %s52, 1
      %s54 = scalar_select %p51, %s52, %s53
      %p57 = pneg %p51
      %p58 = scmp.eq.s32.totalorder %s12, 1
      %p59 = por %p57, %p58
      %p60 = scmp.ne.s32.totalorder %s52, %s55
      %p61 = scmp.eq.s32.totalorder %s12, 0
      %p62 = por %p60, %p61
      %p63 = scmp.ne.s32.totalorder %s52, %s55
      %p64 = scmp.eq.s32.totalorder %s17, 1
      %p65 = por %p63, %p64
      %p66 = scmp.ne.s32.totalorder %s55, %s56
      %p67 = scmp.eq.s32.totalorder %s17, 0
      %p68 = por %p66, %p67
      %p69 = scmp.ne.s32.totalorder %s55, %s56
      %p70 = scmp.eq.s32.totalorder %s18, 1
      %p71 = por %p69, %p70
      %p73 = scmp.ne.s32.totalorder %s56, %s72
      %p74 = scmp.eq.s32.totalorder %s18, 0
      %p75 = por %p73, %p74
      %p76 = scmp.le.s32.totalorder 1, %s12
      %p77 = scmp.lt.s32.totalorder %s12, 3
      %p78 = pnand %p76, %p77
      %p79 = pneg %p78
      // Predicated region
      $region9: #{custom-call.2} parent=5 // pred_check
        _
      $region10: #{custom-call.2} parent=5 // pred_check_branch
        %81 = sbr.rel (%p78) target = $region12
      $region11: #{custom-call.2} parent=5 // pred_region
        %s82 = ssub.s32 %s12, 1
      $region12: #{custom-call.2} parent=5 // pred_fallthru
        _
      %p83 = scmp.lt.s32.totalorder %s12, 2
      // Predicated region
      $region13: #{custom-call.2} parent=5 // pred_check
        %p84 = pneg %p83
      $region14: #{custom-call.2} parent=5 // pred_check_branch
        %86 = sbr.rel (%p84) target = $region16
      $region15: #{custom-call.2} parent=5 // pred_region
        %s87 = sand.u32 %s12, 1
        %s88 = sand.u32 %s12, 1
        %s89 = smul.addr %s88, 32
        %s90 = scalar_lea.vmem [#allocation0], %s89
        %s91 = smul.addr %s12, 32
        %s92 = scalar_lea.vmem %s0, %s91
        // Predicated region
        $region17: #{custom-call.2} parent=15 // pred_check
          _
        $region18: #{custom-call.2} parent=15 // pred_check_branch
          %94 = sbr.rel (0) target = $region20
        $region19: #{custom-call.2} parent=15 // pred_region
          // Predicated region
          $region21: #{custom-call.2} parent=19 // pred_check
            _
          $region22: #{custom-call.2} parent=19 // pred_check_branch
            %96 = sbr.rel (0) target = $region24
          $region23: #{custom-call.2} parent=19 // pred_region
            loop: start=0, step=1, limit=1
            $region25: #{custom-call.2} parent=23 // loop_pre_header
              _
            $region26: #{custom-call.2} parent=23 // loop_header
              %s98 = sphi 0, %s102
              %p99 = scmp.ge.s32.totalorder %s98, 1
              %s103 = sphi %s92, %s92
              %s104 = sphi %s90, %s90
            $region27: #{custom-call.2} parent=23 // loop_header_branch
              %101 = sbr.rel (%p99) target = $region31
            $region28: #{custom-call.2} parent=23 // loop_body
              %v105 = vld [vmem:[%s103] sm:$0xff]
              %106 = vst [vmem:[%s104] sm:$0xff] %v105
              %v107 = vld [vmem:[%s103 + $0x8] sm:$0xff]
              %108 = vst [vmem:[%s104 + $0x8] sm:$0xff] %v107
              %v109 = vld [vmem:[%s103 + $0x10] sm:$0xff]
              %110 = vst [vmem:[%s104 + $0x10] sm:$0xff] %v109
              %v111 = vld [vmem:[%s103 + $0x18] sm:$0xff]
              %112 = vst [vmem:[%s104 + $0x18] sm:$0xff] %v111
            $region29: #{custom-call.2} parent=23 // loop_footer
              %s102 = sadd.s32 1, %s98
            $region30: #{custom-call.2} parent=23 // loop_footer_branch
              %97 = sbr.rel target = $region26
            $region31: #{custom-call.2} parent=23 // loop_exit
              _
          $region24: #{custom-call.2} parent=19 // pred_fallthru
            _
          // Predicated region
          $region32: #{custom-call.2} parent=19 // pred_check
            _
          $region33: #{custom-call.2} parent=19 // pred_check_branch
            %114 = sbr.rel target = $region35
          $region34: #{custom-call.2} parent=19 // pred_region
            _
          $region35: #{custom-call.2} parent=19 // pred_fallthru
            _
        $region20: #{custom-call.2} parent=15 // pred_fallthru
          _
        %115 = vnop
        %s116 = sand.u32 %s12, 1
        %s117 = sand.u32 %s12, 1
        %s118 = smul.addr %s117, 32
        %s119 = scalar_lea.vmem [#allocation1], %s118
        %s120 = smul.addr %s12, 32
        %s121 = scalar_lea.vmem %s1, %s120
        // Predicated region
        $region36: #{custom-call.2} parent=15 // pred_check
          _
        $region37: #{custom-call.2} parent=15 // pred_check_branch
          %123 = sbr.rel (0) target = $region39
        $region38: #{custom-call.2} parent=15 // pred_region
          // Predicated region
          $region40: #{custom-call.2} parent=38 // pred_check
            _
          $region41: #{custom-call.2} parent=38 // pred_check_branch
            %125 = sbr.rel (0) target = $region43
          $region42: #{custom-call.2} parent=38 // pred_region
            loop: start=0, step=1, limit=1
            $region44: #{custom-call.2} parent=42 // loop_pre_header
              _
            $region45: #{custom-call.2} parent=42 // loop_header
              %s127 = sphi 0, %s131
              %p128 = scmp.ge.s32.totalorder %s127, 1
              %s132 = sphi %s121, %s121
              %s133 = sphi %s119, %s119
            $region46: #{custom-call.2} parent=42 // loop_header_branch
              %130 = sbr.rel (%p128) target = $region50
            $region47: #{custom-call.2} parent=42 // loop_body
              %v134 = vld [vmem:[%s132] sm:$0xff]
              %135 = vst [vmem:[%s133] sm:$0xff] %v134
              %v136 = vld [vmem:[%s132 + $0x8] sm:$0xff]
              %137 = vst [vmem:[%s133 + $0x8] sm:$0xff] %v136
              %v138 = vld [vmem:[%s132 + $0x10] sm:$0xff]
              %139 = vst [vmem:[%s133 + $0x10] sm:$0xff] %v138
              %v140 = vld [vmem:[%s132 + $0x18] sm:$0xff]
              %141 = vst [vmem:[%s133 + $0x18] sm:$0xff] %v140
            $region48: #{custom-call.2} parent=42 // loop_footer
              %s131 = sadd.s32 1, %s127
            $region49: #{custom-call.2} parent=42 // loop_footer_branch
              %126 = sbr.rel target = $region45
            $region50: #{custom-call.2} parent=42 // loop_exit
              _
          $region43: #{custom-call.2} parent=38 // pred_fallthru
            _
          // Predicated region
          $region51: #{custom-call.2} parent=38 // pred_check
            _
          $region52: #{custom-call.2} parent=38 // pred_check_branch
            %143 = sbr.rel target = $region54
          $region53: #{custom-call.2} parent=38 // pred_region
            _
          $region54: #{custom-call.2} parent=38 // pred_fallthru
            _
        $region39: #{custom-call.2} parent=15 // pred_fallthru
          _
        %144 = vnop
        %s145 = sand.u32 %s12, 1
        %s146 = sand.u32 %s12, 1
        %s147 = smul.addr %s146, 32
        %s148 = scalar_lea.vmem [#allocation2], %s147
        %s149 = smul.addr %s12, 32
        %s150 = scalar_lea.vmem %s2, %s149
        // Predicated region
        $region55: #{custom-call.2} parent=15 // pred_check
          _
        $region56: #{custom-call.2} parent=15 // pred_check_branch
          %152 = sbr.rel (0) target = $region58
        $region57: #{custom-call.2} parent=15 // pred_region
          // Predicated region
          $region59: #{custom-call.2} parent=57 // pred_check
            _
          $region60: #{custom-call.2} parent=57 // pred_check_branch
            %154 = sbr.rel (0) target = $region62
          $region61: #{custom-call.2} parent=57 // pred_region
            loop: start=0, step=1, limit=1
            $region63: #{custom-call.2} parent=61 // loop_pre_header
              _
            $region64: #{custom-call.2} parent=61 // loop_header
              %s156 = sphi 0, %s160
              %p157 = scmp.ge.s32.totalorder %s156, 1
              %s161 = sphi %s150, %s150
              %s162 = sphi %s148, %s148
            $region65: #{custom-call.2} parent=61 // loop_header_branch
              %159 = sbr.rel (%p157) target = $region69
            $region66: #{custom-call.2} parent=61 // loop_body
              %v163 = vld [vmem:[%s161] sm:$0xff]
              %164 = vst [vmem:[%s162] sm:$0xff] %v163
              %v165 = vld [vmem:[%s161 + $0x8] sm:$0xff]
              %166 = vst [vmem:[%s162 + $0x8] sm:$0xff] %v165
              %v167 = vld [vmem:[%s161 + $0x10] sm:$0xff]
              %168 = vst [vmem:[%s162 + $0x10] sm:$0xff] %v167
              %v169 = vld [vmem:[%s161 + $0x18] sm:$0xff]
              %170 = vst [vmem:[%s162 + $0x18] sm:$0xff] %v169
            $region67: #{custom-call.2} parent=61 // loop_footer
              %s160 = sadd.s32 1, %s156
            $region68: #{custom-call.2} parent=61 // loop_footer_branch
              %155 = sbr.rel target = $region64
            $region69: #{custom-call.2} parent=61 // loop_exit
              _
          $region62: #{custom-call.2} parent=57 // pred_fallthru
            _
          // Predicated region
          $region70: #{custom-call.2} parent=57 // pred_check
            _
          $region71: #{custom-call.2} parent=57 // pred_check_branch
            %172 = sbr.rel target = $region73
          $region72: #{custom-call.2} parent=57 // pred_region
            _
          $region73: #{custom-call.2} parent=57 // pred_fallthru
            _
        $region58: #{custom-call.2} parent=15 // pred_fallthru
          _
        %173 = vnop
        %s174 = sand.u32 %s12, 1
        %s175 = sand.u32 %s12, 1
        %s176 = smul.addr %s175, 32
        %s177 = scalar_lea.vmem [#allocation3], %s176
        %s178 = smul.addr %s12, 32
        %s179 = scalar_lea.vmem %s3, %s178
        // Predicated region
        $region74: #{custom-call.2} parent=15 // pred_check
          _
        $region75: #{custom-call.2} parent=15 // pred_check_branch
          %181 = sbr.rel (0) target = $region77
        $region76: #{custom-call.2} parent=15 // pred_region
          // Predicated region
          $region78: #{custom-call.2} parent=76 // pred_check
            _
          $region79: #{custom-call.2} parent=76 // pred_check_branch
            %183 = sbr.rel (0) target = $region81
          $region80: #{custom-call.2} parent=76 // pred_region
            loop: start=0, step=1, limit=1
            $region82: #{custom-call.2} parent=80 // loop_pre_header
              _
            $region83: #{custom-call.2} parent=80 // loop_header
              %s185 = sphi 0, %s189
              %p186 = scmp.ge.s32.totalorder %s185, 1
              %s190 = sphi %s179, %s179
              %s191 = sphi %s177, %s177
            $region84: #{custom-call.2} parent=80 // loop_header_branch
              %188 = sbr.rel (%p186) target = $region88
            $region85: #{custom-call.2} parent=80 // loop_body
              %v192 = vld [vmem:[%s190] sm:$0xff]
              %193 = vst [vmem:[%s191] sm:$0xff] %v192
              %v194 = vld [vmem:[%s190 + $0x8] sm:$0xff]
              %195 = vst [vmem:[%s191 + $0x8] sm:$0xff] %v194
              %v196 = vld [vmem:[%s190 + $0x10] sm:$0xff]
              %197 = vst [vmem:[%s191 + $0x10] sm:$0xff] %v196
              %v198 = vld [vmem:[%s190 + $0x18] sm:$0xff]
              %199 = vst [vmem:[%s191 + $0x18] sm:$0xff] %v198
            $region86: #{custom-call.2} parent=80 // loop_footer
              %s189 = sadd.s32 1, %s185
            $region87: #{custom-call.2} parent=80 // loop_footer_branch
              %184 = sbr.rel target = $region83
            $region88: #{custom-call.2} parent=80 // loop_exit
              _
          $region81: #{custom-call.2} parent=76 // pred_fallthru
            _
          // Predicated region
          $region89: #{custom-call.2} parent=76 // pred_check
            _
          $region90: #{custom-call.2} parent=76 // pred_check_branch
            %201 = sbr.rel target = $region92
          $region91: #{custom-call.2} parent=76 // pred_region
            _
          $region92: #{custom-call.2} parent=76 // pred_fallthru
            _
        $region77: #{custom-call.2} parent=15 // pred_fallthru
          _
        %202 = vnop
      $region16: #{custom-call.2} parent=5 // pred_fallthru
        _
      %p203 = scmp.le.s32.totalorder 1, %s12
      %p204 = scmp.lt.s32.totalorder %s12, 3
      %p205 = pnand %p203, %p204
      %p206 = pneg %p205
      // Predicated region
      $region93: #{custom-call.2} parent=5 // pred_check
        _
      $region94: #{custom-call.2} parent=5 // pred_check_branch
        %208 = sbr.rel (%p205) target = $region96
      $region95: #{custom-call.2} parent=5 // pred_region
        #allocation12 [shape = 'f32[32,32]{1,0}', space=vmem, size = 0x4000, scoped, tag = 'a top-left matrix']
        #allocation13 [shape = 'f32[32,32]{1,0}', space=vmem, size = 0x4000, scoped, tag = 'a top-right matrix']
        #allocation14 [shape = 'f32[32,32]{1,0}', space=vmem, size = 0x4000, scoped, tag = 'a bottom-left matrix']
        #allocation15 [shape = 'f32[32,32]{1,0}', space=vmem, size = 0x4000, scoped, tag = 'a bottom-right matrix']
        %s209 = ssub.s32 %s12, 1
        %s210 = sand.u32 %s17, 1
        %s211 = sand.u32 %s17, 1
        %s212 = smul.addr %s211, 32
        %s213 = scalar_lea.vmem [#allocation0], %s212
        %s214 = sand.u32 %s17, 1
        %s215 = sand.u32 %s17, 1
        %s216 = smul.addr %s215, 32
        %s217 = scalar_lea.vmem [#allocation1], %s216
        %s218 = sand.u32 %s17, 1
        %s219 = sand.u32 %s17, 1
        %s220 = smul.addr %s219, 32
        %s221 = scalar_lea.vmem [#allocation2], %s220
        %s222 = sand.u32 %s17, 1
        %s223 = sand.u32 %s17, 1
        %s224 = smul.addr %s223, 32
        %s225 = scalar_lea.vmem [#allocation3], %s224
        %s226 = sand.u32 %s17, 1
        %s227 = sand.u32 %s17, 1
        %s228 = smul.addr %s227, 32
        %s229 = scalar_lea.vmem [#allocation0], %s228
        %s230 = sand.u32 %s17, 1
        %s231 = sand.u32 %s17, 1
        %s232 = smul.addr %s231, 32
        %s233 = scalar_lea.vmem [#allocation1], %s232
        %s234 = sand.u32 %s17, 1
        %s235 = sand.u32 %s17, 1
        %s236 = smul.addr %s235, 32
        %s237 = scalar_lea.vmem [#allocation2], %s236
        %s238 = sand.u32 %s17, 1
        %s239 = sand.u32 %s17, 1
        %s240 = smul.addr %s239, 32
        %s241 = scalar_lea.vmem [#allocation3], %s240
        %p242 = pneg %p40
        %p243 = pneg %p37
        %s244 = sand.u32 %s27, 1
        %s245 = sand.u32 %s27, 1
        %s246 = smul.addr %s245, 2
        %s247 = scalar_lea.vmem [#allocation5], %s246
        %p248 = pneg %p68
        %p249 = pneg %p65
        %s250 = sand.u32 %s55, 1
        %s251 = sand.u32 %s55, 1
        %s252 = smul.addr %s251, 2
        %s253 = scalar_lea.vmem [#allocation7], %s252
        %s254 = sand.u32 %s17, 1
        %s255 = sand.u32 %s17, 1
        %s256 = smul.addr %s255, 32
        %s257 = scalar_lea.vmem [#allocation8], %s256
        %s258 = sand.u32 %s17, 1
        %s259 = sand.u32 %s17, 1
        %s260 = smul.addr %s259, 32
        %s261 = scalar_lea.vmem [#allocation9], %s260
        %s262 = sand.u32 %s17, 1
        %s263 = sand.u32 %s17, 1
        %s264 = smul.addr %s263, 32
        %s265 = scalar_lea.vmem [#allocation10], %s264
        %s266 = sand.u32 %s17, 1
        %s267 = sand.u32 %s17, 1
        %s268 = smul.addr %s267, 32
        %s269 = scalar_lea.vmem [#allocation11], %s268
        %s270 = sshrl.u32 %s17, 3
        %s271 = sshrl.u32 %s17, 3
        %s272 = smov [#allocation12]
        %v273 = vld [vmem:[%s213] sm:$0xff]
        %274 = vst [vmem:[%s272] sm:$0xff] %v273
        %s275 = scalar_lea.vmem %s272, 8
        %s276 = scalar_lea.vmem %s213, 8 [#allocation0]
        %v277 = vld [vmem:[%s276] sm:$0xff]
        %278 = vst [vmem:[%s275] sm:$0xff] %v277
        %s279 = scalar_lea.vmem %s272, 16
        %s280 = scalar_lea.vmem %s213, 16 [#allocation0]
        %v281 = vld [vmem:[%s280] sm:$0xff]
        %282 = vst [vmem:[%s279] sm:$0xff] %v281
        %s283 = scalar_lea.vmem %s272, 24
        %s284 = scalar_lea.vmem %s213, 24 [#allocation0]
        %v285 = vld [vmem:[%s284] sm:$0xff]
        %286 = vst [vmem:[%s283] sm:$0xff] %v285
        %s287 = smov [#allocation13]
        %v288 = vld [vmem:[%s217] sm:$0xff]
        %289 = vst [vmem:[%s287] sm:$0xff] %v288
        %s290 = scalar_lea.vmem %s287, 8
        %s291 = scalar_lea.vmem %s217, 8 [#allocation1]
        %v292 = vld [vmem:[%s291] sm:$0xff]
        %293 = vst [vmem:[%s290] sm:$0xff] %v292
        %s294 = scalar_lea.vmem %s287, 16
        %s295 = scalar_lea.vmem %s217, 16 [#allocation1]
        %v296 = vld [vmem:[%s295] sm:$0xff]
        %297 = vst [vmem:[%s294] sm:$0xff] %v296
        %s298 = scalar_lea.vmem %s287, 24
        %s299 = scalar_lea.vmem %s217, 24 [#allocation1]
        %v300 = vld [vmem:[%s299] sm:$0xff]
        %301 = vst [vmem:[%s298] sm:$0xff] %v300
        %s302 = smov [#allocation14]
        %v303 = vld [vmem:[%s221] sm:$0xff]
        %304 = vst [vmem:[%s302] sm:$0xff] %v303
        %s305 = scalar_lea.vmem %s302, 8
        %s306 = scalar_lea.vmem %s221, 8 [#allocation2]
        %v307 = vld [vmem:[%s306] sm:$0xff]
        %308 = vst [vmem:[%s305] sm:$0xff] %v307
        %s309 = scalar_lea.vmem %s302, 16
        %s310 = scalar_lea.vmem %s221, 16 [#allocation2]
        %v311 = vld [vmem:[%s310] sm:$0xff]
        %312 = vst [vmem:[%s309] sm:$0xff] %v311
        %s313 = scalar_lea.vmem %s302, 24
        %s314 = scalar_lea.vmem %s221, 24 [#allocation2]
        %v315 = vld [vmem:[%s314] sm:$0xff]
        %316 = vst [vmem:[%s313] sm:$0xff] %v315
        %s317 = smov [#allocation15]
        %v318 = vld [vmem:[%s225] sm:$0xff]
        %319 = vst [vmem:[%s317] sm:$0xff] %v318
        %s320 = scalar_lea.vmem %s317, 8
        %s321 = scalar_lea.vmem %s225, 8 [#allocation3]
        %v322 = vld [vmem:[%s321] sm:$0xff]
        %323 = vst [vmem:[%s320] sm:$0xff] %v322
        %s324 = scalar_lea.vmem %s317, 16
        %s325 = scalar_lea.vmem %s225, 16 [#allocation3]
        %v326 = vld [vmem:[%s325] sm:$0xff]
        %327 = vst [vmem:[%s324] sm:$0xff] %v326
        %s328 = scalar_lea.vmem %s317, 24
        %s329 = scalar_lea.vmem %s225, 24 [#allocation3]
        %v330 = vld [vmem:[%s329] sm:$0xff]
        %331 = vst [vmem:[%s328] sm:$0xff] %v330
        %332 = vst [vmem:[%s257] sm:$0xff] 0.0
        %s333 = scalar_lea.vmem %s257, 8 [#allocation8]
        %334 = vst [vmem:[%s333] sm:$0xff] 0.0
        %s335 = scalar_lea.vmem %s257, 16 [#allocation8]
        %336 = vst [vmem:[%s335] sm:$0xff] 0.0
        %s337 = scalar_lea.vmem %s257, 24 [#allocation8]
        %338 = vst [vmem:[%s337] sm:$0xff] 0.0
        %339 = vst [vmem:[%s261] sm:$0xff] 0.0
        %s340 = scalar_lea.vmem %s261, 8 [#allocation9]
        %341 = vst [vmem:[%s340] sm:$0xff] 0.0
        %s342 = scalar_lea.vmem %s261, 16 [#allocation9]
        %343 = vst [vmem:[%s342] sm:$0xff] 0.0
        %s344 = scalar_lea.vmem %s261, 24 [#allocation9]
        %345 = vst [vmem:[%s344] sm:$0xff] 0.0
        %346 = vst [vmem:[%s265] sm:$0xff] 0.0
        %s347 = scalar_lea.vmem %s265, 8 [#allocation10]
        %348 = vst [vmem:[%s347] sm:$0xff] 0.0
        %s349 = scalar_lea.vmem %s265, 16 [#allocation10]
        %350 = vst [vmem:[%s349] sm:$0xff] 0.0
        %s351 = scalar_lea.vmem %s265, 24 [#allocation10]
        %352 = vst [vmem:[%s351] sm:$0xff] 0.0
        %353 = vst [vmem:[%s269] sm:$0xff] 0.0
        %s354 = scalar_lea.vmem %s269, 8 [#allocation11]
        %355 = vst [vmem:[%s354] sm:$0xff] 0.0
        %s356 = scalar_lea.vmem %s269, 16 [#allocation11]
        %357 = vst [vmem:[%s356] sm:$0xff] 0.0
        %s358 = scalar_lea.vmem %s269, 24 [#allocation11]
        %359 = vst [vmem:[%s358] sm:$0xff] 0.0
        %s360 = smov %s257
        %v361 = vlaneseq
        %v362 = vand.u32 %v361, 127
        %v363 = vmov %v362
        %v364 = vlaneseq
        %v365 = vshrl.u32 %v364, 7
        %v366 = vmov %v365
        %v367 = vld [vmem:[%s360] sm:$0xff]
        %vm370 = vcmp.eq.s32.totalorder %v366, %v363
        %v371 = vsel %vm370, 1.0, %v367
        %372 = vst [vmem:[%s360] sm:$0xff] %v371
        %s373 = scalar_lea.vmem %s360, 8
        %v374 = vld [vmem:[%s373] sm:$0xff]
        %v376 = vadd.s32 %v366, 8
        %vm377 = vcmp.eq.s32.totalorder %v376, %v363
        %v378 = vsel %vm377, 1.0, %v374
        %379 = vst [vmem:[%s373] sm:$0xff] %v378
        %s380 = scalar_lea.vmem %s360, 16
        %v381 = vld [vmem:[%s380] sm:$0xff]
        %v383 = vadd.s32 %v366, 16
        %vm384 = vcmp.eq.s32.totalorder %v383, %v363
        %v385 = vsel %vm384, 1.0, %v381
        %386 = vst [vmem:[%s380] sm:$0xff] %v385
        %s387 = scalar_lea.vmem %s360, 24
        %v388 = vld [vmem:[%s387] sm:$0xff]
        %v390 = vadd.s32 %v366, 24
        %vm391 = vcmp.eq.s32.totalorder %v390, %v363
        %v392 = vsel %vm391, 1.0, %v388
        %393 = vst [vmem:[%s387] sm:$0xff] %v392
        %s394 = smov %s269
        %v395 = vlaneseq
        %v396 = vand.u32 %v395, 127
        %v397 = vmov %v396
        %v398 = vlaneseq
        %v399 = vshrl.u32 %v398, 7
        %v400 = vmov %v399
        %v401 = vld [vmem:[%s394] sm:$0xff]
        %vm404 = vcmp.eq.s32.totalorder %v400, %v397
        %v405 = vsel %vm404, 1.0, %v401
        %406 = vst [vmem:[%s394] sm:$0xff] %v405
        %s407 = scalar_lea.vmem %s394, 8
        %v408 = vld [vmem:[%s407] sm:$0xff]
        %v410 = vadd.s32 %v400, 8
        %vm411 = vcmp.eq.s32.totalorder %v410, %v397
        %v412 = vsel %vm411, 1.0, %v408
        %413 = vst [vmem:[%s407] sm:$0xff] %v412
        %s414 = scalar_lea.vmem %s394, 16
        %v415 = vld [vmem:[%s414] sm:$0xff]
        %v417 = vadd.s32 %v400, 16
        %vm418 = vcmp.eq.s32.totalorder %v417, %v397
        %v419 = vsel %vm418, 1.0, %v415
        %420 = vst [vmem:[%s414] sm:$0xff] %v419
        %s421 = scalar_lea.vmem %s394, 24
        %v422 = vld [vmem:[%s421] sm:$0xff]
        %v424 = vadd.s32 %v400, 24
        %vm425 = vcmp.eq.s32.totalorder %v424, %v397
        %v426 = vsel %vm425, 1.0, %v422
        %427 = vst [vmem:[%s421] sm:$0xff] %v426
        // While loop
        $region97: #{custom-call.2} parent=95 // loop_pre_header
          _
        $region98: #{custom-call.2} parent=95 // loop_header
          %s429 = sphi 0, %s2079
          %v430 = vlaneseq
          %v431 = vand.u32 %v430, 127
          %v432 = vmov %v431
          %v433 = vlaneseq
          %v434 = vshrl.u32 %v433, 7
          %v435 = vmov %v434
          %s436 = smov [#allocation12]
          %v437 = vlaneseq
          %v438 = vand.u32 %v437, 127
          %vm439 = vcmp.ge.s32.totalorder %v438, 0
          %vm440 = vcmp.lt.s32.totalorder %v438, 32
          %vm441 = vmand %vm439, %vm440
          %v442 = vld [vmem:[%s436] sm:$0xff]
          %v443 = vsel %vm441, %v442, 0.0
          %v444 = vmul.f32 %v443, %v443
          %vm447 = vcmp.eq.s32.totalorder %v435, %v432
          %v448 = vsel %vm447, 0.0, %v444
          %s449 = scalar_lea.vmem %s436, 8
          %v450 = vld [vmem:[%s449] sm:$0xff]
          %v451 = vsel %vm441, %v450, 0.0
          %v452 = vmul.f32 %v451, %v451
          %v454 = vadd.s32 %v435, 8
          %vm455 = vcmp.eq.s32.totalorder %v454, %v432
          %v456 = vsel %vm455, 0.0, %v452
          %v457 = vadd.f32 %v448, %v456
          %v458 = vadd.f32 %v444, %v452
          %s459 = scalar_lea.vmem %s436, 16
          %v460 = vld [vmem:[%s459] sm:$0xff]
          %v461 = vsel %vm441, %v460, 0.0
          %v462 = vmul.f32 %v461, %v461
          %v464 = vadd.s32 %v435, 16
          %vm465 = vcmp.eq.s32.totalorder %v464, %v432
          %v466 = vsel %vm465, 0.0, %v462
          %v467 = vadd.f32 %v457, %v466
          %v468 = vadd.f32 %v458, %v462
          %s469 = scalar_lea.vmem %s436, 24
          %v470 = vld [vmem:[%s469] sm:$0xff]
          %v471 = vsel %vm441, %v470, 0.0
          %v472 = vmul.f32 %v471, %v471
          %v474 = vadd.s32 %v435, 24
          %vm475 = vcmp.eq.s32.totalorder %v474, %v432
          %v476 = vsel %vm475, 0.0, %v472
          %v477 = vadd.f32 %v467, %v476
          %v478 = vadd.f32 %v468, %v472
          %v479 = vlaneseq
          %v480 = vand.u32 %v479, 127
          %v481 = vmov %v480
          %v482 = vlaneseq
          %v483 = vshrl.u32 %v482, 7
          %v484 = vmov %v483
          %s485 = smov [#allocation13]
          %v486 = vlaneseq
          %v487 = vand.u32 %v486, 127
          %vm488 = vcmp.ge.s32.totalorder %v487, 0
          %vm489 = vcmp.lt.s32.totalorder %v487, 32
          %vm490 = vmand %vm488, %vm489
          %v491 = vld [vmem:[%s485] sm:$0xff]
          %v492 = vsel %vm490, %v491, 0.0
          %v493 = vmul.f32 %v492, %v492
          %v494 = vadd.f32 %v477, %v493
          %v495 = vadd.f32 %v478, %v493
          %s496 = scalar_lea.vmem %s485, 8
          %v497 = vld [vmem:[%s496] sm:$0xff]
          %v498 = vsel %vm490, %v497, 0.0
          %v499 = vmul.f32 %v498, %v498
          %v500 = vadd.f32 %v494, %v499
          %v501 = vadd.f32 %v495, %v499
          %s502 = scalar_lea.vmem %s485, 16
          %v503 = vld [vmem:[%s502] sm:$0xff]
          %v504 = vsel %vm490, %v503, 0.0
          %v505 = vmul.f32 %v504, %v504
          %v506 = vadd.f32 %v500, %v505
          %v507 = vadd.f32 %v501, %v505
          %s508 = scalar_lea.vmem %s485, 24
          %v509 = vld [vmem:[%s508] sm:$0xff]
          %v510 = vsel %vm490, %v509, 0.0
          %v511 = vmul.f32 %v510, %v510
          %v512 = vadd.f32 %v506, %v511
          %v513 = vadd.f32 %v507, %v511
          %v514 = vlaneseq
          %v515 = vand.u32 %v514, 127
          %v516 = vmov %v515
          %v517 = vlaneseq
          %v518 = vshrl.u32 %v517, 7
          %v519 = vmov %v518
          %s520 = smov [#allocation14]
          %v521 = vlaneseq
          %v522 = vand.u32 %v521, 127
          %vm523 = vcmp.ge.s32.totalorder %v522, 0
          %vm524 = vcmp.lt.s32.totalorder %v522, 32
          %vm525 = vmand %vm523, %vm524
          %v526 = vld [vmem:[%s520] sm:$0xff]
          %v527 = vsel %vm525, %v526, 0.0
          %v528 = vmul.f32 %v527, %v527
          %v529 = vadd.f32 %v512, %v528
          %v530 = vadd.f32 %v513, %v528
          %s531 = scalar_lea.vmem %s520, 8
          %v532 = vld [vmem:[%s531] sm:$0xff]
          %v533 = vsel %vm525, %v532, 0.0
          %v534 = vmul.f32 %v533, %v533
          %v535 = vadd.f32 %v529, %v534
          %v536 = vadd.f32 %v530, %v534
          %s537 = scalar_lea.vmem %s520, 16
          %v538 = vld [vmem:[%s537] sm:$0xff]
          %v539 = vsel %vm525, %v538, 0.0
          %v540 = vmul.f32 %v539, %v539
          %v541 = vadd.f32 %v535, %v540
          %v542 = vadd.f32 %v536, %v540
          %s543 = scalar_lea.vmem %s520, 24
          %v544 = vld [vmem:[%s543] sm:$0xff]
          %v545 = vsel %vm525, %v544, 0.0
          %v546 = vmul.f32 %v545, %v545
          %v547 = vadd.f32 %v541, %v546
          %v548 = vadd.f32 %v542, %v546
          %v549 = vlaneseq
          %v550 = vand.u32 %v549, 127
          %v551 = vmov %v550
          %v552 = vlaneseq
          %v553 = vshrl.u32 %v552, 7
          %v554 = vmov %v553
          %s555 = smov [#allocation15]
          %v556 = vlaneseq
          %v557 = vand.u32 %v556, 127
          %vm558 = vcmp.ge.s32.totalorder %v557, 0
          %vm559 = vcmp.lt.s32.totalorder %v557, 32
          %vm560 = vmand %vm558, %vm559
          %v561 = vld [vmem:[%s555] sm:$0xff]
          %v562 = vsel %vm560, %v561, 0.0
          %v563 = vmul.f32 %v562, %v562
          %vm566 = vcmp.eq.s32.totalorder %v554, %v551
          %v567 = vsel %vm566, 0.0, %v563
          %v568 = vadd.f32 %v547, %v567
          %v569 = vadd.f32 %v548, %v563
          %s570 = scalar_lea.vmem %s555, 8
          %v571 = vld [vmem:[%s570] sm:$0xff]
          %v572 = vsel %vm560, %v571, 0.0
          %v573 = vmul.f32 %v572, %v572
          %v575 = vadd.s32 %v554, 8
          %vm576 = vcmp.eq.s32.totalorder %v575, %v551
          %v577 = vsel %vm576, 0.0, %v573
          %v578 = vadd.f32 %v568, %v577
          %v579 = vadd.f32 %v569, %v573
          %s580 = scalar_lea.vmem %s555, 16
          %v581 = vld [vmem:[%s580] sm:$0xff]
          %v582 = vsel %vm560, %v581, 0.0
          %v583 = vmul.f32 %v582, %v582
          %v585 = vadd.s32 %v554, 16
          %vm586 = vcmp.eq.s32.totalorder %v585, %v551
          %v587 = vsel %vm586, 0.0, %v583
          %v588 = vadd.f32 %v578, %v587
          %v589 = vadd.f32 %v579, %v583
          %s590 = scalar_lea.vmem %s555, 24
          %v591 = vld [vmem:[%s590] sm:$0xff]
          %v592 = vsel %vm560, %v591, 0.0
          %v593 = vmul.f32 %v592, %v592
          %v595 = vadd.s32 %v554, 24
          %vm596 = vcmp.eq.s32.totalorder %v595, %v551
          %v597 = vsel %vm596, 0.0, %v593
          %v598 = vadd.f32 %v588, %v597
          %v599 = vadd.f32 %v589, %v593
          %600 = vadd.xlane.f32.xlu0 %v599
          %v601 = vpop.xlane.xlu0 %600
          %v602 = vrot.slane %v601, 4
          %v603 = vadd.f32 %v601, %v602
          %v604 = vrot.slane %v603, 2
          %v605 = vadd.f32 %v603, %v604
          %v606 = vrot.slane %v605, 1
          %v607 = vadd.f32 %v605, %v606
          %608 = vadd.xlane.f32.xlu0 %v598
          %v609 = vpop.xlane.xlu0 %608
          %v610 = vrot.slane %v609, 4
          %v611 = vadd.f32 %v609, %v610
          %v612 = vrot.slane %v611, 2
          %v613 = vadd.f32 %v611, %v612
          %v614 = vrot.slane %v613, 1
          %v615 = vadd.f32 %v613, %v614
          %s616 = vtos %v615
          %s617 = vtos %v607
          %s618 = smul.f32 1e-10, %s617
          %p619 = scmp.le.f32.partialorder %s616, %s618
          %p620 = scmp.ge.s32.totalorder %s429, 15
          %p621 = por %p619, %p620
        $region99: #{custom-call.2} parent=95 // loop_header_branch
          %2081 = sbr.rel (%p621) target = $region103
        $region100: #{custom-call.2} parent=95 // loop_body
          loop: start=0, step=1, limit=63
          $region104: #{custom-call.2} parent=100 // loop_pre_header
            _
          $region105: #{custom-call.2} parent=100 // loop_header
            %s623 = sphi 0, %s627
            %p624 = scmp.ge.s32.totalorder %s623, 63
          $region106: #{custom-call.2} parent=100 // loop_header_branch
            %626 = sbr.rel (%p624) target = $region110
          $region107: #{custom-call.2} parent=100 // loop_body
            #allocation16 [shape = 'f32[1024]{0}', space=vmem, size = 0x1000, scoped, tag = 'a_tl_diag vmem']
            #allocation17 [shape = 'f32[1024]{0}', space=vmem, size = 0x1000, scoped, tag = 'a_tr_diag vmem']
            #allocation18 [shape = 'f32[1024]{0}', space=vmem, size = 0x1000, scoped, tag = 'a_br_diag vmem']
            #allocation19 [shape = 'f32[1024]{0}', space=vmem, size = 0x1000, scoped, tag = 'rt1 vmem']
            #allocation20 [shape = 'f32[1024]{0}', space=vmem, size = 0x1000, scoped, tag = 'rt2 vmem']
            #allocation21 [shape = 'f32[1024]{0}', space=vmem, size = 0x1000, scoped, tag = 'c vmem']
            #allocation22 [shape = 'f32[1024]{0}', space=vmem, size = 0x1000, scoped, tag = 's vmem']
            #allocation23 [shape = 'f32[16384]{0}', space=vmem, size = 0x10000, scoped, tag = 'c broadcast']
            #allocation24 [shape = 'f32[16384]{0}', space=vmem, size = 0x10000, scoped, tag = 's broadcast']
            %s628 = smov [#allocation12]
            %s629 = smov [#allocation16]
            %v630 = vlaneseq
            %v631 = vand.u32 %v630, 127
            %v632 = vmov %v631
            %v633 = vlaneseq
            %v634 = vshrl.u32 %v633, 7
            %v635 = vmov %v634
            %v636 = vld [vmem:[%s628] sm:$0xff]
            %vm639 = vcmp.eq.s32.totalorder %v635, %v632
            %v640 = vsel %vm639, %v636, 0.0
            %s641 = scalar_lea.vmem %s628, 8
            %v642 = vld [vmem:[%s641] sm:$0xff]
            %v644 = vadd.s32 %v635, 8
            %vm645 = vcmp.eq.s32.totalorder %v644, %v632
            %v646 = vsel %vm645, %v642, %v640
            %s647 = scalar_lea.vmem %s628, 16
            %v648 = vld [vmem:[%s647] sm:$0xff]
            %v650 = vadd.s32 %v635, 16
            %vm651 = vcmp.eq.s32.totalorder %v650, %v632
            %v652 = vsel %vm651, %v648, %v646
            %s653 = scalar_lea.vmem %s628, 24
            %v654 = vld [vmem:[%s653] sm:$0xff]
            %v656 = vadd.s32 %v635, 24
            %vm657 = vcmp.eq.s32.totalorder %v656, %v632
            %v658 = vsel %vm657, %v654, %v652
            %v659 = vrot.slane %v658, 4
            %v660 = vadd.f32 %v658, %v659
            %v661 = vrot.slane %v660, 2
            %v662 = vadd.f32 %v660, %v661
            %v663 = vrot.slane %v662, 1
            %v664 = vadd.f32 %v662, %v663
            %665 = vst [vmem:[%s629] sm:$0x1] %v664
            %s666 = smov [#allocation13]
            %s667 = smov [#allocation17]
            %v668 = vlaneseq
            %v669 = vand.u32 %v668, 127
            %v670 = vmov %v669
            %v671 = vlaneseq
            %v672 = vshrl.u32 %v671, 7
            %v673 = vmov %v672
            %v674 = vld [vmem:[%s666] sm:$0xff]
            %vm677 = vcmp.eq.s32.totalorder %v673, %v670
            %v678 = vsel %vm677, %v674, 0.0
            %s679 = scalar_lea.vmem %s666, 8
            %v680 = vld [vmem:[%s679] sm:$0xff]
            %v682 = vadd.s32 %v673, 8
            %vm683 = vcmp.eq.s32.totalorder %v682, %v670
            %v684 = vsel %vm683, %v680, %v678
            %s685 = scalar_lea.vmem %s666, 16
            %v686 = vld [vmem:[%s685] sm:$0xff]
            %v688 = vadd.s32 %v673, 16
            %vm689 = vcmp.eq.s32.totalorder %v688, %v670
            %v690 = vsel %vm689, %v686, %v684
            %s691 = scalar_lea.vmem %s666, 24
            %v692 = vld [vmem:[%s691] sm:$0xff]
            %v694 = vadd.s32 %v673, 24
            %vm695 = vcmp.eq.s32.totalorder %v694, %v670
            %v696 = vsel %vm695, %v692, %v690
            %v697 = vrot.slane %v696, 4
            %v698 = vadd.f32 %v696, %v697
            %v699 = vrot.slane %v698, 2
            %v700 = vadd.f32 %v698, %v699
            %v701 = vrot.slane %v700, 1
            %v702 = vadd.f32 %v700, %v701
            %703 = vst [vmem:[%s667] sm:$0x1] %v702
            %s704 = smov [#allocation15]
            %s705 = smov [#allocation18]
            %v706 = vlaneseq
            %v707 = vand.u32 %v706, 127
            %v708 = vmov %v707
            %v709 = vlaneseq
            %v710 = vshrl.u32 %v709, 7
            %v711 = vmov %v710
            %v712 = vld [vmem:[%s704] sm:$0xff]
            %vm715 = vcmp.eq.s32.totalorder %v711, %v708
            %v716 = vsel %vm715, %v712, 0.0
            %s717 = scalar_lea.vmem %s704, 8
            %v718 = vld [vmem:[%s717] sm:$0xff]
            %v720 = vadd.s32 %v711, 8
            %vm721 = vcmp.eq.s32.totalorder %v720, %v708
            %v722 = vsel %vm721, %v718, %v716
            %s723 = scalar_lea.vmem %s704, 16
            %v724 = vld [vmem:[%s723] sm:$0xff]
            %v726 = vadd.s32 %v711, 16
            %vm727 = vcmp.eq.s32.totalorder %v726, %v708
            %v728 = vsel %vm727, %v724, %v722
            %s729 = scalar_lea.vmem %s704, 24
            %v730 = vld [vmem:[%s729] sm:$0xff]
            %v732 = vadd.s32 %v711, 24
            %vm733 = vcmp.eq.s32.totalorder %v732, %v708
            %v734 = vsel %vm733, %v730, %v728
            %v735 = vrot.slane %v734, 4
            %v736 = vadd.f32 %v734, %v735
            %v737 = vrot.slane %v736, 2
            %v738 = vadd.f32 %v736, %v737
            %v739 = vrot.slane %v738, 1
            %v740 = vadd.f32 %v738, %v739
            %741 = vst [vmem:[%s705] sm:$0x1] %v740
            %s742 = smov [#allocation21]
            %s743 = smov [#allocation22]
            %s744 = smov [#allocation16]
            %v745 = vld [vmem:[%s744] sm:$0xff]
            %s746 = smov [#allocation17]
            %v747 = vld [vmem:[%s746] sm:$0xff]
            %s748 = smov [#allocation18]
            %v749 = vld [vmem:[%s748] sm:$0xff]
            %v750 = vsub.f32 %v749, %v745
            %v751 = vmul.f32 2.0, %v747
            %v752 = vrcp.pop %v751
            %v753 = vmul.f32 %v751, %v752
            %v754 = vsub.f32 1.0, %v753
            %v755 = vmul.f32 %v752, %v754
            %v756 = vadd.f32 %v752, %v755
            %vm757 = vweird.f32 %v751
            %vm758 = vweird.f32 %v752
            %vm759 = vmor %vm757, %vm758
            %v760 = vsel %vm759, %v752, %v756
            %v761 = vand.u32 2147483647, %v751
            %vm762 = vcmp.eq.f32.partialorder %v761, 8.507059e+37
            %v763 = vand.u32 %v751, 2147483648
            %v764 = vor.u32 1.1754944e-38, %v763
            %v765 = vsel %vm762, %v764, %v760
            %v766 = vmul.f32 %v750, %v765
            %vm767 = vcmp.ge.f32.partialorder %v766, 0.0
            %v768 = vmul.f32 %v766, %v766
            %v769 = vadd.f32 1.0, %v768
            %v770 = vrsqrt.pop %v769
            %v771 = vmul.f32 %v770, %v769
            %v772 = vmul.f32 %v771, %v770
            %v773 = vmul.f32 0.5, %v772
            %v774 = vsub.f32 1.5, %v773
            %v775 = vmul.f32 %v770, %v774
            %v776 = vmul.f32 %v769, %v775
            %vm777 = vcmp.eq.f32.partialorder %v769, inf
            %v778 = vsel %vm777, %v769, %v776
            %vm779 = vcmp.eq.f32.partialorder %v769, 0.0
            %v780 = vand.u32 %v769, 2147483648
            %v781 = vsel %vm779, %v780, %v778
            %v782 = vxor.u32 %v781, 2147483648
            %v783 = vsel %vm767, %v781, %v782
            %v784 = vadd.f32 %v766, %v783
            %v785 = vrcp.pop %v784
            %v786 = vmul.f32 %v784, %v785
            %v787 = vsub.f32 1.0, %v786
            %v788 = vmul.f32 %v785, %v787
            %v789 = vadd.f32 %v785, %v788
            %vm790 = vweird.f32 %v784
            %vm791 = vweird.f32 %v785
            %vm792 = vmor %vm790, %vm791
            %v793 = vsel %vm792, %v785, %v789
            %v794 = vand.u32 2147483647, %v784
            %vm795 = vcmp.eq.f32.partialorder %v794, 8.507059e+37
            %v796 = vand.u32 %v784, 2147483648
            %v797 = vor.u32 1.1754944e-38, %v796
            %v798 = vsel %vm795, %v797, %v793
            %v799 = vand.u32 2147483647, %v745
            %v800 = vand.u32 2147483647, %v747
            %v801 = vand.u32 2147483647, %v749
            %v802 = vmin.f32 %v799, %v801
            %v803 = vmul.f32 1.1920929e-08, %v802
            %vm804 = vcmp.le.f32.partialorder %v800, %v803
            %v805 = vsel %vm804, 0.0, %v798
            %v806 = vmul.f32 %v805, %v805
            %v807 = vadd.f32 1.0, %v806
            %v808 = vrsqrt.pop %v807
            %v809 = vmul.f32 %v808, %v807
            %v810 = vmul.f32 %v809, %v808
            %v811 = vmul.f32 0.5, %v810
            %v812 = vsub.f32 1.5, %v811
            %v813 = vmul.f32 %v808, %v812
            %vm814 = vweird.f32 %v807
            %vm815 = vweird.f32 %v808
            %vm816 = vmor %vm814, %vm815
            %v817 = vsel %vm816, %v808, %v813
            %v818 = vmul.f32 %v805, %v817
            %v819 = vmul.f32 %v805, %v747
            %v820 = vsub.f32 %v745, %v819
            %v821 = vmul.f32 %v805, %v747
            %v822 = vadd.f32 %v749, %v821
            %s823 = smov [#allocation19]
            %824 = vst [vmem:[%s823] sm:$0xff] %v820
            %s825 = smov [#allocation20]
            %826 = vst [vmem:[%s825] sm:$0xff] %v822
            %s827 = smov %s742
            %828 = vst [vmem:[%s827] sm:$0xff] %v817
            %s829 = smov %s743
            %830 = vst [vmem:[%s829] sm:$0xff] %v818
            %s831 = smov [#allocation21]
            %v832 = vld [vmem:[%s831] ss:$0 sm:$0xff]
            %v833 = vlaneseq
            %v834 = vand.u32 %v833, 127
            %v835 = vmov %v834
            %v836 = vlaneseq
            %v837 = vshrl.u32 %v836, 7
            %v838 = vmov %v837
            %vm840 = vcmp.eq.s32.totalorder %v838, %v835
            %v841 = vsel %vm840, %v832, 0.0
            %842 = vadd.xlane.f32.xlu0 %v841
            %v843 = vpop.xlane.xlu0 %842
            %s844 = smov [#allocation23]
            %845 = vst [vmem:[%s844] sm:$0xff] %v843
            %s846 = smov [#allocation21]
            %v847 = vld [vmem:[%s846] ss:$0 sm:$0xff]
            %v848 = vlaneseq
            %v849 = vand.u32 %v848, 127
            %v850 = vmov %v849
            %v851 = vlaneseq
            %v852 = vshrl.u32 %v851, 7
            %v853 = vmov %v852
            %v854 = vadd.s32 %v853, 8
            %vm855 = vcmp.eq.s32.totalorder %v854, %v850
            %v856 = vsel %vm855, %v847, 0.0
            %857 = vadd.xlane.f32.xlu0 %v856
            %v858 = vpop.xlane.xlu0 %857
            %s859 = smov [#allocation23]
            %s860 = scalar_lea.vmem %s859, 8
            %861 = vst [vmem:[%s860] sm:$0xff] %v858
            %s862 = smov [#allocation21]
            %v863 = vld [vmem:[%s862] ss:$0 sm:$0xff]
            %v864 = vlaneseq
            %v865 = vand.u32 %v864, 127
            %v866 = vmov %v865
            %v867 = vlaneseq
            %v868 = vshrl.u32 %v867, 7
            %v869 = vmov %v868
            %v870 = vadd.s32 %v869, 16
            %vm871 = vcmp.eq.s32.totalorder %v870, %v866
            %v872 = vsel %vm871, %v863, 0.0
            %873 = vadd.xlane.f32.xlu0 %v872
            %v874 = vpop.xlane.xlu0 %873
            %s875 = smov [#allocation23]
            %s876 = scalar_lea.vmem %s875, 16
            %877 = vst [vmem:[%s876] sm:$0xff] %v874
            %s878 = smov [#allocation21]
            %v879 = vld [vmem:[%s878] ss:$0 sm:$0xff]
            %v880 = vlaneseq
            %v881 = vand.u32 %v880, 127
            %v882 = vmov %v881
            %v883 = vlaneseq
            %v884 = vshrl.u32 %v883, 7
            %v885 = vmov %v884
            %v886 = vadd.s32 %v885, 24
            %vm887 = vcmp.eq.s32.totalorder %v886, %v882
            %v888 = vsel %vm887, %v879, 0.0
            %889 = vadd.xlane.f32.xlu0 %v888
            %v890 = vpop.xlane.xlu0 %889
            %s891 = smov [#allocation23]
            %s892 = scalar_lea.vmem %s891, 24
            %893 = vst [vmem:[%s892] sm:$0xff] %v890
            %s894 = smov [#allocation22]
            %v895 = vld [vmem:[%s894] ss:$0 sm:$0xff]
            %v896 = vlaneseq
            %v897 = vand.u32 %v896, 127
            %v898 = vmov %v897
            %v899 = vlaneseq
            %v900 = vshrl.u32 %v899, 7
            %v901 = vmov %v900
            %vm903 = vcmp.eq.s32.totalorder %v901, %v898
            %v904 = vsel %vm903, %v895, 0.0
            %905 = vadd.xlane.f32.xlu0 %v904
            %v906 = vpop.xlane.xlu0 %905
            %s907 = smov [#allocation24]
            %908 = vst [vmem:[%s907] sm:$0xff] %v906
            %s909 = smov [#allocation22]
            %v910 = vld [vmem:[%s909] ss:$0 sm:$0xff]
            %v911 = vlaneseq
            %v912 = vand.u32 %v911, 127
            %v913 = vmov %v912
            %v914 = vlaneseq
            %v915 = vshrl.u32 %v914, 7
            %v916 = vmov %v915
            %v917 = vadd.s32 %v916, 8
            %vm918 = vcmp.eq.s32.totalorder %v917, %v913
            %v919 = vsel %vm918, %v910, 0.0
            %920 = vadd.xlane.f32.xlu0 %v919
            %v921 = vpop.xlane.xlu0 %920
            %s922 = smov [#allocation24]
            %s923 = scalar_lea.vmem %s922, 8
            %924 = vst [vmem:[%s923] sm:$0xff] %v921
            %s925 = smov [#allocation22]
            %v926 = vld [vmem:[%s925] ss:$0 sm:$0xff]
            %v927 = vlaneseq
            %v928 = vand.u32 %v927, 127
            %v929 = vmov %v928
            %v930 = vlaneseq
            %v931 = vshrl.u32 %v930, 7
            %v932 = vmov %v931
            %v933 = vadd.s32 %v932, 16
            %vm934 = vcmp.eq.s32.totalorder %v933, %v929
            %v935 = vsel %vm934, %v926, 0.0
            %936 = vadd.xlane.f32.xlu0 %v935
            %v937 = vpop.xlane.xlu0 %936
            %s938 = smov [#allocation24]
            %s939 = scalar_lea.vmem %s938, 16
            %940 = vst [vmem:[%s939] sm:$0xff] %v937
            %s941 = smov [#allocation22]
            %v942 = vld [vmem:[%s941] ss:$0 sm:$0xff]
            %v943 = vlaneseq
            %v944 = vand.u32 %v943, 127
            %v945 = vmov %v944
            %v946 = vlaneseq
            %v947 = vshrl.u32 %v946, 7
            %v948 = vmov %v947
            %v949 = vadd.s32 %v948, 24
            %vm950 = vcmp.eq.s32.totalorder %v949, %v945
            %v951 = vsel %vm950, %v942, 0.0
            %952 = vadd.xlane.f32.xlu0 %v951
            %v953 = vpop.xlane.xlu0 %952
            %s954 = smov [#allocation24]
            %s955 = scalar_lea.vmem %s954, 24
            %956 = vst [vmem:[%s955] sm:$0xff] %v953
            %s957 = smov [#allocation23]
            %v958 = vld [vmem:[%s957] sm:$0xff]
            %s959 = smov [#allocation24]
            %v960 = vld [vmem:[%s959] sm:$0xff]
            %s961 = smov [#allocation12]
            %s962 = smov [#allocation13]
            %s963 = smov [#allocation14]
            %s964 = smov [#allocation15]
            %v965 = vld [vmem:[%s961] sm:$0xff]
            %v966 = vld [vmem:[%s962] sm:$0xff]
            %v967 = vld [vmem:[%s963] sm:$0xff]
            %v968 = vld [vmem:[%s964] sm:$0xff]
            %v969 = vmul.f32 %v958, %v965
            %v970 = vmul.f32 %v960, %v967
            %v971 = vsub.f32 %v969, %v970
            %v972 = vmul.f32 %v958, %v966
            %v973 = vmul.f32 %v960, %v968
            %v974 = vsub.f32 %v972, %v973
            %v975 = vmul.f32 %v960, %v965
            %v976 = vmul.f32 %v958, %v967
            %v977 = vadd.f32 %v975, %v976
            %v978 = vmul.f32 %v960, %v966
            %v979 = vmul.f32 %v958, %v968
            %v980 = vadd.f32 %v978, %v979
            %981 = vst [vmem:[%s961] sm:$0xff] %v971
            %982 = vst [vmem:[%s962] sm:$0xff] %v974
            %983 = vst [vmem:[%s963] sm:$0xff] %v977
            %984 = vst [vmem:[%s964] sm:$0xff] %v980
            %s985 = smov [#allocation23]
            %s986 = scalar_lea.vmem %s985, 8
            %v987 = vld [vmem:[%s986] sm:$0xff]
            %s988 = smov [#allocation24]
            %s989 = scalar_lea.vmem %s988, 8
            %v990 = vld [vmem:[%s989] sm:$0xff]
            %s991 = smov [#allocation12]
            %s992 = scalar_lea.vmem %s991, 8
            %s993 = smov [#allocation13]
            %s994 = scalar_lea.vmem %s993, 8
            %s995 = smov [#allocation14]
            %s996 = scalar_lea.vmem %s995, 8
            %s997 = smov [#allocation15]
            %s998 = scalar_lea.vmem %s997, 8
            %v999 = vld [vmem:[%s992] sm:$0xff]
            %v1000 = vld [vmem:[%s994] sm:$0xff]
            %v1001 = vld [vmem:[%s996] sm:$0xff]
            %v1002 = vld [vmem:[%s998] sm:$0xff]
            %v1003 = vmul.f32 %v987, %v999
            %v1004 = vmul.f32 %v990, %v1001
            %v1005 = vsub.f32 %v1003, %v1004
            %v1006 = vmul.f32 %v987, %v1000
            %v1007 = vmul.f32 %v990, %v1002
            %v1008 = vsub.f32 %v1006, %v1007
            %v1009 = vmul.f32 %v990, %v999
            %v1010 = vmul.f32 %v987, %v1001
            %v1011 = vadd.f32 %v1009, %v1010
            %v1012 = vmul.f32 %v990, %v1000
            %v1013 = vmul.f32 %v987, %v1002
            %v1014 = vadd.f32 %v1012, %v1013
            %1015 = vst [vmem:[%s992] sm:$0xff] %v1005
            %1016 = vst [vmem:[%s994] sm:$0xff] %v1008
            %1017 = vst [vmem:[%s996] sm:$0xff] %v1011
            %1018 = vst [vmem:[%s998] sm:$0xff] %v1014
            %s1019 = smov [#allocation23]
            %s1020 = scalar_lea.vmem %s1019, 16
            %v1021 = vld [vmem:[%s1020] sm:$0xff]
            %s1022 = smov [#allocation24]
            %s1023 = scalar_lea.vmem %s1022, 16
            %v1024 = vld [vmem:[%s1023] sm:$0xff]
            %s1025 = smov [#allocation12]
            %s1026 = scalar_lea.vmem %s1025, 16
            %s1027 = smov [#allocation13]
            %s1028 = scalar_lea.vmem %s1027, 16
            %s1029 = smov [#allocation14]
            %s1030 = scalar_lea.vmem %s1029, 16
            %s1031 = smov [#allocation15]
            %s1032 = scalar_lea.vmem %s1031, 16
            %v1033 = vld [vmem:[%s1026] sm:$0xff]
            %v1034 = vld [vmem:[%s1028] sm:$0xff]
            %v1035 = vld [vmem:[%s1030] sm:$0xff]
            %v1036 = vld [vmem:[%s1032] sm:$0xff]
            %v1037 = vmul.f32 %v1021, %v1033
            %v1038 = vmul.f32 %v1024, %v1035
            %v1039 = vsub.f32 %v1037, %v1038
            %v1040 = vmul.f32 %v1021, %v1034
            %v1041 = vmul.f32 %v1024, %v1036
            %v1042 = vsub.f32 %v1040, %v1041
            %v1043 = vmul.f32 %v1024, %v1033
            %v1044 = vmul.f32 %v1021, %v1035
            %v1045 = vadd.f32 %v1043, %v1044
            %v1046 = vmul.f32 %v1024, %v1034
            %v1047 = vmul.f32 %v1021, %v1036
            %v1048 = vadd.f32 %v1046, %v1047
            %1049 = vst [vmem:[%s1026] sm:$0xff] %v1039
            %1050 = vst [vmem:[%s1028] sm:$0xff] %v1042
            %1051 = vst [vmem:[%s1030] sm:$0xff] %v1045
            %1052 = vst [vmem:[%s1032] sm:$0xff] %v1048
            %s1053 = smov [#allocation23]
            %s1054 = scalar_lea.vmem %s1053, 24
            %v1055 = vld [vmem:[%s1054] sm:$0xff]
            %s1056 = smov [#allocation24]
            %s1057 = scalar_lea.vmem %s1056, 24
            %v1058 = vld [vmem:[%s1057] sm:$0xff]
            %s1059 = smov [#allocation12]
            %s1060 = scalar_lea.vmem %s1059, 24
            %s1061 = smov [#allocation13]
            %s1062 = scalar_lea.vmem %s1061, 24
            %s1063 = smov [#allocation14]
            %s1064 = scalar_lea.vmem %s1063, 24
            %s1065 = smov [#allocation15]
            %s1066 = scalar_lea.vmem %s1065, 24
            %v1067 = vld [vmem:[%s1060] sm:$0xff]
            %v1068 = vld [vmem:[%s1062] sm:$0xff]
            %v1069 = vld [vmem:[%s1064] sm:$0xff]
            %v1070 = vld [vmem:[%s1066] sm:$0xff]
            %v1071 = vmul.f32 %v1055, %v1067
            %v1072 = vmul.f32 %v1058, %v1069
            %v1073 = vsub.f32 %v1071, %v1072
            %v1074 = vmul.f32 %v1055, %v1068
            %v1075 = vmul.f32 %v1058, %v1070
            %v1076 = vsub.f32 %v1074, %v1075
            %v1077 = vmul.f32 %v1058, %v1067
            %v1078 = vmul.f32 %v1055, %v1069
            %v1079 = vadd.f32 %v1077, %v1078
            %v1080 = vmul.f32 %v1058, %v1068
            %v1081 = vmul.f32 %v1055, %v1070
            %v1082 = vadd.f32 %v1080, %v1081
            %1083 = vst [vmem:[%s1060] sm:$0xff] %v1073
            %1084 = vst [vmem:[%s1062] sm:$0xff] %v1076
            %1085 = vst [vmem:[%s1064] sm:$0xff] %v1079
            %1086 = vst [vmem:[%s1066] sm:$0xff] %v1082
            %s1087 = smov [#allocation21]
            %v1088 = vld [vmem:[%s1087] ss:$0 sm:$0xff]
            %s1089 = smov [#allocation22]
            %v1090 = vld [vmem:[%s1089] ss:$0 sm:$0xff]
            %s1091 = smov [#allocation12]
            %s1092 = smov [#allocation13]
            %s1093 = smov [#allocation14]
            %s1094 = smov [#allocation15]
            %v1095 = vld [vmem:[%s1091] sm:$0xff]
            %v1096 = vld [vmem:[%s1092] sm:$0xff]
            %v1097 = vld [vmem:[%s1093] sm:$0xff]
            %v1098 = vld [vmem:[%s1094] sm:$0xff]
            %v1099 = vmul.f32 %v1088, %v1095
            %v1100 = vmul.f32 %v1090, %v1096
            %v1101 = vsub.f32 %v1099, %v1100
            %v1102 = vmul.f32 %v1090, %v1095
            %v1103 = vmul.f32 %v1088, %v1096
            %v1104 = vadd.f32 %v1102, %v1103
            %v1105 = vmul.f32 %v1088, %v1097
            %v1106 = vmul.f32 %v1090, %v1098
            %v1107 = vsub.f32 %v1105, %v1106
            %v1108 = vmul.f32 %v1090, %v1097
            %v1109 = vmul.f32 %v1088, %v1098
            %v1110 = vadd.f32 %v1108, %v1109
            %1111 = vst [vmem:[%s1091] sm:$0xff] %v1101
            %1112 = vst [vmem:[%s1092] sm:$0xff] %v1104
            %1113 = vst [vmem:[%s1093] sm:$0xff] %v1107
            %1114 = vst [vmem:[%s1094] sm:$0xff] %v1110
            %s1115 = smov [#allocation12]
            %s1116 = scalar_lea.vmem %s1115, 8
            %s1117 = smov [#allocation13]
            %s1118 = scalar_lea.vmem %s1117, 8
            %s1119 = smov [#allocation14]
            %s1120 = scalar_lea.vmem %s1119, 8
            %s1121 = smov [#allocation15]
            %s1122 = scalar_lea.vmem %s1121, 8
            %v1123 = vld [vmem:[%s1116] sm:$0xff]
            %v1124 = vld [vmem:[%s1118] sm:$0xff]
            %v1125 = vld [vmem:[%s1120] sm:$0xff]
            %v1126 = vld [vmem:[%s1122] sm:$0xff]
            %v1127 = vmul.f32 %v1088, %v1123
            %v1128 = vmul.f32 %v1090, %v1124
            %v1129 = vsub.f32 %v1127, %v1128
            %v1130 = vmul.f32 %v1090, %v1123
            %v1131 = vmul.f32 %v1088, %v1124
            %v1132 = vadd.f32 %v1130, %v1131
            %v1133 = vmul.f32 %v1088, %v1125
            %v1134 = vmul.f32 %v1090, %v1126
            %v1135 = vsub.f32 %v1133, %v1134
            %v1136 = vmul.f32 %v1090, %v1125
            %v1137 = vmul.f32 %v1088, %v1126
            %v1138 = vadd.f32 %v1136, %v1137
            %1139 = vst [vmem:[%s1116] sm:$0xff] %v1129
            %1140 = vst [vmem:[%s1118] sm:$0xff] %v1132
            %1141 = vst [vmem:[%s1120] sm:$0xff] %v1135
            %1142 = vst [vmem:[%s1122] sm:$0xff] %v1138
            %s1143 = smov [#allocation12]
            %s1144 = scalar_lea.vmem %s1143, 16
            %s1145 = smov [#allocation13]
            %s1146 = scalar_lea.vmem %s1145, 16
            %s1147 = smov [#allocation14]
            %s1148 = scalar_lea.vmem %s1147, 16
            %s1149 = smov [#allocation15]
            %s1150 = scalar_lea.vmem %s1149, 16
            %v1151 = vld [vmem:[%s1144] sm:$0xff]
            %v1152 = vld [vmem:[%s1146] sm:$0xff]
            %v1153 = vld [vmem:[%s1148] sm:$0xff]
            %v1154 = vld [vmem:[%s1150] sm:$0xff]
            %v1155 = vmul.f32 %v1088, %v1151
            %v1156 = vmul.f32 %v1090, %v1152
            %v1157 = vsub.f32 %v1155, %v1156
            %v1158 = vmul.f32 %v1090, %v1151
            %v1159 = vmul.f32 %v1088, %v1152
            %v1160 = vadd.f32 %v1158, %v1159
            %v1161 = vmul.f32 %v1088, %v1153
            %v1162 = vmul.f32 %v1090, %v1154
            %v1163 = vsub.f32 %v1161, %v1162
            %v1164 = vmul.f32 %v1090, %v1153
            %v1165 = vmul.f32 %v1088, %v1154
            %v1166 = vadd.f32 %v1164, %v1165
            %1167 = vst [vmem:[%s1144] sm:$0xff] %v1157
            %1168 = vst [vmem:[%s1146] sm:$0xff] %v1160
            %1169 = vst [vmem:[%s1148] sm:$0xff] %v1163
            %1170 = vst [vmem:[%s1150] sm:$0xff] %v1166
            %s1171 = smov [#allocation12]
            %s1172 = scalar_lea.vmem %s1171, 24
            %s1173 = smov [#allocation13]
            %s1174 = scalar_lea.vmem %s1173, 24
            %s1175 = smov [#allocation14]
            %s1176 = scalar_lea.vmem %s1175, 24
            %s1177 = smov [#allocation15]
            %s1178 = scalar_lea.vmem %s1177, 24
            %v1179 = vld [vmem:[%s1172] sm:$0xff]
            %v1180 = vld [vmem:[%s1174] sm:$0xff]
            %v1181 = vld [vmem:[%s1176] sm:$0xff]
            %v1182 = vld [vmem:[%s1178] sm:$0xff]
            %v1183 = vmul.f32 %v1088, %v1179
            %v1184 = vmul.f32 %v1090, %v1180
            %v1185 = vsub.f32 %v1183, %v1184
            %v1186 = vmul.f32 %v1090, %v1179
            %v1187 = vmul.f32 %v1088, %v1180
            %v1188 = vadd.f32 %v1186, %v1187
            %v1189 = vmul.f32 %v1088, %v1181
            %v1190 = vmul.f32 %v1090, %v1182
            %v1191 = vsub.f32 %v1189, %v1190
            %v1192 = vmul.f32 %v1090, %v1181
            %v1193 = vmul.f32 %v1088, %v1182
            %v1194 = vadd.f32 %v1192, %v1193
            %1195 = vst [vmem:[%s1172] sm:$0xff] %v1185
            %1196 = vst [vmem:[%s1174] sm:$0xff] %v1188
            %1197 = vst [vmem:[%s1176] sm:$0xff] %v1191
            %1198 = vst [vmem:[%s1178] sm:$0xff] %v1194
            %s1199 = smov [#allocation12]
            %s1200 = smov [#allocation19]
            %v1201 = vlaneseq
            %v1202 = vand.u32 %v1201, 127
            %v1203 = vmov %v1202
            %v1204 = vlaneseq
            %v1205 = vshrl.u32 %v1204, 7
            %v1206 = vmov %v1205
            %v1207 = vld [vmem:[%s1200] ss:$0 sm:$0xff]
            %v1208 = vld [vmem:[%s1199] sm:$0xff]
            %vm1211 = vcmp.eq.s32.totalorder %v1206, %v1203
            %v1212 = vsel %vm1211, %v1207, %v1208
            %1213 = vst [vmem:[%s1199] sm:$0xff] %v1212
            %v1214 = vld [vmem:[%s1200] ss:$0 sm:$0xff]
            %s1215 = scalar_lea.vmem %s1199, 8
            %v1216 = vld [vmem:[%s1215] sm:$0xff]
            %v1218 = vadd.s32 %v1206, 8
            %vm1219 = vcmp.eq.s32.totalorder %v1218, %v1203
            %v1220 = vsel %vm1219, %v1214, %v1216
            %1221 = vst [vmem:[%s1215] sm:$0xff] %v1220
            %v1222 = vld [vmem:[%s1200] ss:$0 sm:$0xff]
            %s1223 = scalar_lea.vmem %s1199, 16
            %v1224 = vld [vmem:[%s1223] sm:$0xff]
            %v1226 = vadd.s32 %v1206, 16
            %vm1227 = vcmp.eq.s32.totalorder %v1226, %v1203
            %v1228 = vsel %vm1227, %v1222, %v1224
            %1229 = vst [vmem:[%s1223] sm:$0xff] %v1228
            %v1230 = vld [vmem:[%s1200] ss:$0 sm:$0xff]
            %s1231 = scalar_lea.vmem %s1199, 24
            %v1232 = vld [vmem:[%s1231] sm:$0xff]
            %v1234 = vadd.s32 %v1206, 24
            %vm1235 = vcmp.eq.s32.totalorder %v1234, %v1203
            %v1236 = vsel %vm1235, %v1230, %v1232
            %1237 = vst [vmem:[%s1231] sm:$0xff] %v1236
            %s1238 = smov [#allocation13]
            %v1239 = vlaneseq
            %v1240 = vand.u32 %v1239, 127
            %v1241 = vmov %v1240
            %v1242 = vlaneseq
            %v1243 = vshrl.u32 %v1242, 7
            %v1244 = vmov %v1243
            %v1245 = vld [vmem:[%s1238] sm:$0xff]
            %vm1248 = vcmp.eq.s32.totalorder %v1244, %v1241
            %v1249 = vsel %vm1248, 0.0, %v1245
            %1250 = vst [vmem:[%s1238] sm:$0xff] %v1249
            %s1251 = scalar_lea.vmem %s1238, 8
            %v1252 = vld [vmem:[%s1251] sm:$0xff]
            %v1254 = vadd.s32 %v1244, 8
            %vm1255 = vcmp.eq.s32.totalorder %v1254, %v1241
            %v1256 = vsel %vm1255, 0.0, %v1252
            %1257 = vst [vmem:[%s1251] sm:$0xff] %v1256
            %s1258 = scalar_lea.vmem %s1238, 16
            %v1259 = vld [vmem:[%s1258] sm:$0xff]
            %v1261 = vadd.s32 %v1244, 16
            %vm1262 = vcmp.eq.s32.totalorder %v1261, %v1241
            %v1263 = vsel %vm1262, 0.0, %v1259
            %1264 = vst [vmem:[%s1258] sm:$0xff] %v1263
            %s1265 = scalar_lea.vmem %s1238, 24
            %v1266 = vld [vmem:[%s1265] sm:$0xff]
            %v1268 = vadd.s32 %v1244, 24
            %vm1269 = vcmp.eq.s32.totalorder %v1268, %v1241
            %v1270 = vsel %vm1269, 0.0, %v1266
            %1271 = vst [vmem:[%s1265] sm:$0xff] %v1270
            %s1272 = smov [#allocation14]
            %v1273 = vlaneseq
            %v1274 = vand.u32 %v1273, 127
            %v1275 = vmov %v1274
            %v1276 = vlaneseq
            %v1277 = vshrl.u32 %v1276, 7
            %v1278 = vmov %v1277
            %v1279 = vld [vmem:[%s1272] sm:$0xff]
            %vm1282 = vcmp.eq.s32.totalorder %v1278, %v1275
            %v1283 = vsel %vm1282, 0.0, %v1279
            %1284 = vst [vmem:[%s1272] sm:$0xff] %v1283
            %s1285 = scalar_lea.vmem %s1272, 8
            %v1286 = vld [vmem:[%s1285] sm:$0xff]
            %v1288 = vadd.s32 %v1278, 8
            %vm1289 = vcmp.eq.s32.totalorder %v1288, %v1275
            %v1290 = vsel %vm1289, 0.0, %v1286
            %1291 = vst [vmem:[%s1285] sm:$0xff] %v1290
            %s1292 = scalar_lea.vmem %s1272, 16
            %v1293 = vld [vmem:[%s1292] sm:$0xff]
            %v1295 = vadd.s32 %v1278, 16
            %vm1296 = vcmp.eq.s32.totalorder %v1295, %v1275
            %v1297 = vsel %vm1296, 0.0, %v1293
            %1298 = vst [vmem:[%s1292] sm:$0xff] %v1297
            %s1299 = scalar_lea.vmem %s1272, 24
            %v1300 = vld [vmem:[%s1299] sm:$0xff]
            %v1302 = vadd.s32 %v1278, 24
            %vm1303 = vcmp.eq.s32.totalorder %v1302, %v1275
            %v1304 = vsel %vm1303, 0.0, %v1300
            %1305 = vst [vmem:[%s1299] sm:$0xff] %v1304
            %s1306 = smov [#allocation15]
            %s1307 = smov [#allocation20]
            %v1308 = vlaneseq
            %v1309 = vand.u32 %v1308, 127
            %v1310 = vmov %v1309
            %v1311 = vlaneseq
            %v1312 = vshrl.u32 %v1311, 7
            %v1313 = vmov %v1312
            %v1314 = vld [vmem:[%s1307] ss:$0 sm:$0xff]
            %v1315 = vld [vmem:[%s1306] sm:$0xff]
            %vm1318 = vcmp.eq.s32.totalorder %v1313, %v1310
            %v1319 = vsel %vm1318, %v1314, %v1315
            %1320 = vst [vmem:[%s1306] sm:$0xff] %v1319
            %v1321 = vld [vmem:[%s1307] ss:$0 sm:$0xff]
            %s1322 = scalar_lea.vmem %s1306, 8
            %v1323 = vld [vmem:[%s1322] sm:$0xff]
            %v1325 = vadd.s32 %v1313, 8
            %vm1326 = vcmp.eq.s32.totalorder %v1325, %v1310
            %v1327 = vsel %vm1326, %v1321, %v1323
            %1328 = vst [vmem:[%s1322] sm:$0xff] %v1327
            %v1329 = vld [vmem:[%s1307] ss:$0 sm:$0xff]
            %s1330 = scalar_lea.vmem %s1306, 16
            %v1331 = vld [vmem:[%s1330] sm:$0xff]
            %v1333 = vadd.s32 %v1313, 16
            %vm1334 = vcmp.eq.s32.totalorder %v1333, %v1310
            %v1335 = vsel %vm1334, %v1329, %v1331
            %1336 = vst [vmem:[%s1330] sm:$0xff] %v1335
            %v1337 = vld [vmem:[%s1307] ss:$0 sm:$0xff]
            %s1338 = scalar_lea.vmem %s1306, 24
            %v1339 = vld [vmem:[%s1338] sm:$0xff]
            %v1341 = vadd.s32 %v1313, 24
            %vm1342 = vcmp.eq.s32.totalorder %v1341, %v1310
            %v1343 = vsel %vm1342, %v1337, %v1339
            %1344 = vst [vmem:[%s1338] sm:$0xff] %v1343
            %s1345 = smov [#allocation12]
            %s1346 = smov [#allocation13]
            %v1347 = vld [vmem:[%s1346] sm:$0xff]
            %1348 = vrot.lane.b32.xlu0 %v1347, 1
            %v1349 = vpop.permute.xlu0 %1348
            %v1350 = vld [vmem:[%s1345] sm:$0xff]
            %v1351 = vld [vmem:[%s1345] sm:$0xff]
            %1352 = vrot.lane.b32.xlu0 %v1351, 1
            %v1353 = vpop.permute.xlu0 %1352
            %v1354 = vlaneseq
            %v1355 = vand.u32 %v1354, 127
            %vm1356 = vcmp.eq.s32.totalorder %v1355, 0
            %v1357 = vsel %vm1356, %v1351, %v1353
            %v1358 = vlaneseq
            %v1359 = vand.u32 %v1358, 127
            %vm1360 = vcmp.eq.s32.totalorder %v1359, 1
            %v1361 = vsel %vm1360, %v1349, %v1357
            %v1362 = vlaneseq
            %v1363 = vand.u32 %v1362, 127
            %vm1364 = vcmp.ge.s32.totalorder %v1363, 0
            %vm1365 = vcmp.lt.s32.totalorder %v1363, 32
            %vm1366 = vmand %vm1364, %vm1365
            %v1367 = vsel %vm1366, %v1361, 0.0
            %v1368 = vld [vmem:[%s1346] sm:$0xff]
            %1369 = vrot.lane.b32.xlu0 %v1368, 127
            %v1370 = vpop.permute.xlu0 %1369
            %v1371 = vlaneseq
            %v1372 = vand.u32 %v1371, 127
            %vm1373 = vcmp.eq.s32.totalorder %v1372, 31
            %v1374 = vsel %vm1373, %v1350, %v1370
            %s1375 = smov [#allocation12]
            %s1376 = scalar_lea.vmem %s1375, 8
            %s1377 = smov [#allocation13]
            %s1378 = scalar_lea.vmem %s1377, 8
            %v1379 = vld [vmem:[%s1378] sm:$0xff]
            %1380 = vrot.lane.b32.xlu0 %v1379, 1
            %v1381 = vpop.permute.xlu0 %1380
            %v1382 = vld [vmem:[%s1376] sm:$0xff]
            %v1383 = vld [vmem:[%s1376] sm:$0xff]
            %1384 = vrot.lane.b32.xlu0 %v1383, 1
            %v1385 = vpop.permute.xlu0 %1384
            %v1386 = vlaneseq
            %v1387 = vand.u32 %v1386, 127
            %vm1388 = vcmp.eq.s32.totalorder %v1387, 0
            %v1389 = vsel %vm1388, %v1383, %v1385
            %v1390 = vlaneseq
            %v1391 = vand.u32 %v1390, 127
            %vm1392 = vcmp.eq.s32.totalorder %v1391, 1
            %v1393 = vsel %vm1392, %v1381, %v1389
            %v1394 = vlaneseq
            %v1395 = vand.u32 %v1394, 127
            %vm1396 = vcmp.ge.s32.totalorder %v1395, 0
            %vm1397 = vcmp.lt.s32.totalorder %v1395, 32
            %vm1398 = vmand %vm1396, %vm1397
            %v1399 = vsel %vm1398, %v1393, 0.0
            %v1400 = vld [vmem:[%s1378] sm:$0xff]
            %1401 = vrot.lane.b32.xlu0 %v1400, 127
            %v1402 = vpop.permute.xlu0 %1401
            %v1403 = vlaneseq
            %v1404 = vand.u32 %v1403, 127
            %vm1405 = vcmp.eq.s32.totalorder %v1404, 31
            %v1406 = vsel %vm1405, %v1382, %v1402
            %s1407 = smov [#allocation12]
            %s1408 = scalar_lea.vmem %s1407, 16
            %s1409 = smov [#allocation13]
            %s1410 = scalar_lea.vmem %s1409, 16
            %v1411 = vld [vmem:[%s1410] sm:$0xff]
            %1412 = vrot.lane.b32.xlu0 %v1411, 1
            %v1413 = vpop.permute.xlu0 %1412
            %v1414 = vld [vmem:[%s1408] sm:$0xff]
            %v1415 = vld [vmem:[%s1408] sm:$0xff]
            %1416 = vrot.lane.b32.xlu0 %v1415, 1
            %v1417 = vpop.permute.xlu0 %1416
            %v1418 = vlaneseq
            %v1419 = vand.u32 %v1418, 127
            %vm1420 = vcmp.eq.s32.totalorder %v1419, 0
            %v1421 = vsel %vm1420, %v1415, %v1417
            %v1422 = vlaneseq
            %v1423 = vand.u32 %v1422, 127
            %vm1424 = vcmp.eq.s32.totalorder %v1423, 1
            %v1425 = vsel %vm1424, %v1413, %v1421
            %v1426 = vlaneseq
            %v1427 = vand.u32 %v1426, 127
            %vm1428 = vcmp.ge.s32.totalorder %v1427, 0
            %vm1429 = vcmp.lt.s32.totalorder %v1427, 32
            %vm1430 = vmand %vm1428, %vm1429
            %v1431 = vsel %vm1430, %v1425, 0.0
            %v1432 = vld [vmem:[%s1410] sm:$0xff]
            %1433 = vrot.lane.b32.xlu0 %v1432, 127
            %v1434 = vpop.permute.xlu0 %1433
            %v1435 = vlaneseq
            %v1436 = vand.u32 %v1435, 127
            %vm1437 = vcmp.eq.s32.totalorder %v1436, 31
            %v1438 = vsel %vm1437, %v1414, %v1434
            %s1439 = smov [#allocation12]
            %s1440 = scalar_lea.vmem %s1439, 24
            %s1441 = smov [#allocation13]
            %s1442 = scalar_lea.vmem %s1441, 24
            %v1443 = vld [vmem:[%s1442] sm:$0xff]
            %1444 = vrot.lane.b32.xlu0 %v1443, 1
            %v1445 = vpop.permute.xlu0 %1444
            %v1446 = vld [vmem:[%s1440] sm:$0xff]
            %v1447 = vld [vmem:[%s1440] sm:$0xff]
            %1448 = vrot.lane.b32.xlu0 %v1447, 1
            %v1449 = vpop.permute.xlu0 %1448
            %v1450 = vlaneseq
            %v1451 = vand.u32 %v1450, 127
            %vm1452 = vcmp.eq.s32.totalorder %v1451, 0
            %v1453 = vsel %vm1452, %v1447, %v1449
            %v1454 = vlaneseq
            %v1455 = vand.u32 %v1454, 127
            %vm1456 = vcmp.eq.s32.totalorder %v1455, 1
            %v1457 = vsel %vm1456, %v1445, %v1453
            %v1458 = vlaneseq
            %v1459 = vand.u32 %v1458, 127
            %vm1460 = vcmp.ge.s32.totalorder %v1459, 0
            %vm1461 = vcmp.lt.s32.totalorder %v1459, 32
            %vm1462 = vmand %vm1460, %vm1461
            %v1463 = vsel %vm1462, %v1457, 0.0
            %v1464 = vld [vmem:[%s1442] sm:$0xff]
            %1465 = vrot.lane.b32.xlu0 %v1464, 127
            %v1466 = vpop.permute.xlu0 %1465
            %v1467 = vlaneseq
            %v1468 = vand.u32 %v1467, 127
            %vm1469 = vcmp.eq.s32.totalorder %v1468, 31
            %v1470 = vsel %vm1469, %v1446, %v1466
            %1471 = vst [vmem:[%s1345] sm:$0xff] %v1367
            %1472 = vst [vmem:[%s1346] sm:$0xff] %v1374
            %1473 = vst [vmem:[%s1376] sm:$0xff] %v1399
            %1474 = vst [vmem:[%s1378] sm:$0xff] %v1406
            %1475 = vst [vmem:[%s1408] sm:$0xff] %v1431
            %1476 = vst [vmem:[%s1410] sm:$0xff] %v1438
            %1477 = vst [vmem:[%s1440] sm:$0xff] %v1463
            %1478 = vst [vmem:[%s1442] sm:$0xff] %v1470
            %s1479 = smov [#allocation14]
            %s1480 = smov [#allocation15]
            %v1481 = vld [vmem:[%s1480] sm:$0xff]
            %1482 = vrot.lane.b32.xlu0 %v1481, 1
            %v1483 = vpop.permute.xlu0 %1482
            %v1484 = vld [vmem:[%s1479] sm:$0xff]
            %v1485 = vld [vmem:[%s1479] sm:$0xff]
            %1486 = vrot.lane.b32.xlu0 %v1485, 1
            %v1487 = vpop.permute.xlu0 %1486
            %v1488 = vlaneseq
            %v1489 = vand.u32 %v1488, 127
            %vm1490 = vcmp.eq.s32.totalorder %v1489, 0
            %v1491 = vsel %vm1490, %v1485, %v1487
            %v1492 = vlaneseq
            %v1493 = vand.u32 %v1492, 127
            %vm1494 = vcmp.eq.s32.totalorder %v1493, 1
            %v1495 = vsel %vm1494, %v1483, %v1491
            %v1496 = vlaneseq
            %v1497 = vand.u32 %v1496, 127
            %vm1498 = vcmp.ge.s32.totalorder %v1497, 0
            %vm1499 = vcmp.lt.s32.totalorder %v1497, 32
            %vm1500 = vmand %vm1498, %vm1499
            %v1501 = vsel %vm1500, %v1495, 0.0
            %v1502 = vld [vmem:[%s1480] sm:$0xff]
            %1503 = vrot.lane.b32.xlu0 %v1502, 127
            %v1504 = vpop.permute.xlu0 %1503
            %v1505 = vlaneseq
            %v1506 = vand.u32 %v1505, 127
            %vm1507 = vcmp.eq.s32.totalorder %v1506, 31
            %v1508 = vsel %vm1507, %v1484, %v1504
            %s1509 = smov [#allocation14]
            %s1510 = scalar_lea.vmem %s1509, 8
            %s1511 = smov [#allocation15]
            %s1512 = scalar_lea.vmem %s1511, 8
            %v1513 = vld [vmem:[%s1512] sm:$0xff]
            %1514 = vrot.lane.b32.xlu0 %v1513, 1
            %v1515 = vpop.permute.xlu0 %1514
            %v1516 = vld [vmem:[%s1510] sm:$0xff]
            %v1517 = vld [vmem:[%s1510] sm:$0xff]
            %1518 = vrot.lane.b32.xlu0 %v1517, 1
            %v1519 = vpop.permute.xlu0 %1518
            %v1520 = vlaneseq
            %v1521 = vand.u32 %v1520, 127
            %vm1522 = vcmp.eq.s32.totalorder %v1521, 0
            %v1523 = vsel %vm1522, %v1517, %v1519
            %v1524 = vlaneseq
            %v1525 = vand.u32 %v1524, 127
            %vm1526 = vcmp.eq.s32.totalorder %v1525, 1
            %v1527 = vsel %vm1526, %v1515, %v1523
            %v1528 = vlaneseq
            %v1529 = vand.u32 %v1528, 127
            %vm1530 = vcmp.ge.s32.totalorder %v1529, 0
            %vm1531 = vcmp.lt.s32.totalorder %v1529, 32
            %vm1532 = vmand %vm1530, %vm1531
            %v1533 = vsel %vm1532, %v1527, 0.0
            %v1534 = vld [vmem:[%s1512] sm:$0xff]
            %1535 = vrot.lane.b32.xlu0 %v1534, 127
            %v1536 = vpop.permute.xlu0 %1535
            %v1537 = vlaneseq
            %v1538 = vand.u32 %v1537, 127
            %vm1539 = vcmp.eq.s32.totalorder %v1538, 31
            %v1540 = vsel %vm1539, %v1516, %v1536
            %s1541 = smov [#allocation14]
            %s1542 = scalar_lea.vmem %s1541, 16
            %s1543 = smov [#allocation15]
            %s1544 = scalar_lea.vmem %s1543, 16
            %v1545 = vld [vmem:[%s1544] sm:$0xff]
            %1546 = vrot.lane.b32.xlu0 %v1545, 1
            %v1547 = vpop.permute.xlu0 %1546
            %v1548 = vld [vmem:[%s1542] sm:$0xff]
            %v1549 = vld [vmem:[%s1542] sm:$0xff]
            %1550 = vrot.lane.b32.xlu0 %v1549, 1
            %v1551 = vpop.permute.xlu0 %1550
            %v1552 = vlaneseq
            %v1553 = vand.u32 %v1552, 127
            %vm1554 = vcmp.eq.s32.totalorder %v1553, 0
            %v1555 = vsel %vm1554, %v1549, %v1551
            %v1556 = vlaneseq
            %v1557 = vand.u32 %v1556, 127
            %vm1558 = vcmp.eq.s32.totalorder %v1557, 1
            %v1559 = vsel %vm1558, %v1547, %v1555
            %v1560 = vlaneseq
            %v1561 = vand.u32 %v1560, 127
            %vm1562 = vcmp.ge.s32.totalorder %v1561, 0
            %vm1563 = vcmp.lt.s32.totalorder %v1561, 32
            %vm1564 = vmand %vm1562, %vm1563
            %v1565 = vsel %vm1564, %v1559, 0.0
            %v1566 = vld [vmem:[%s1544] sm:$0xff]
            %1567 = vrot.lane.b32.xlu0 %v1566, 127
            %v1568 = vpop.permute.xlu0 %1567
            %v1569 = vlaneseq
            %v1570 = vand.u32 %v1569, 127
            %vm1571 = vcmp.eq.s32.totalorder %v1570, 31
            %v1572 = vsel %vm1571, %v1548, %v1568
            %s1573 = smov [#allocation14]
            %s1574 = scalar_lea.vmem %s1573, 24
            %s1575 = smov [#allocation15]
            %s1576 = scalar_lea.vmem %s1575, 24
            %v1577 = vld [vmem:[%s1576] sm:$0xff]
            %1578 = vrot.lane.b32.xlu0 %v1577, 1
            %v1579 = vpop.permute.xlu0 %1578
            %v1580 = vld [vmem:[%s1574] sm:$0xff]
            %v1581 = vld [vmem:[%s1574] sm:$0xff]
            %1582 = vrot.lane.b32.xlu0 %v1581, 1
            %v1583 = vpop.permute.xlu0 %1582
            %v1584 = vlaneseq
            %v1585 = vand.u32 %v1584, 127
            %vm1586 = vcmp.eq.s32.totalorder %v1585, 0
            %v1587 = vsel %vm1586, %v1581, %v1583
            %v1588 = vlaneseq
            %v1589 = vand.u32 %v1588, 127
            %vm1590 = vcmp.eq.s32.totalorder %v1589, 1
            %v1591 = vsel %vm1590, %v1579, %v1587
            %v1592 = vlaneseq
            %v1593 = vand.u32 %v1592, 127
            %vm1594 = vcmp.ge.s32.totalorder %v1593, 0
            %vm1595 = vcmp.lt.s32.totalorder %v1593, 32
            %vm1596 = vmand %vm1594, %vm1595
            %v1597 = vsel %vm1596, %v1591, 0.0
            %v1598 = vld [vmem:[%s1576] sm:$0xff]
            %1599 = vrot.lane.b32.xlu0 %v1598, 127
            %v1600 = vpop.permute.xlu0 %1599
            %v1601 = vlaneseq
            %v1602 = vand.u32 %v1601, 127
            %vm1603 = vcmp.eq.s32.totalorder %v1602, 31
            %v1604 = vsel %vm1603, %v1580, %v1600
            %1605 = vst [vmem:[%s1479] sm:$0xff] %v1501
            %1606 = vst [vmem:[%s1480] sm:$0xff] %v1508
            %1607 = vst [vmem:[%s1510] sm:$0xff] %v1533
            %1608 = vst [vmem:[%s1512] sm:$0xff] %v1540
            %1609 = vst [vmem:[%s1542] sm:$0xff] %v1565
            %1610 = vst [vmem:[%s1544] sm:$0xff] %v1572
            %1611 = vst [vmem:[%s1574] sm:$0xff] %v1597
            %1612 = vst [vmem:[%s1576] sm:$0xff] %v1604
            %s1613 = smov [#allocation12]
            %s1614 = smov [#allocation14]
            %v1615 = vld [vmem:[%s1613] ss:$0 sm:$0xff]
            %s1617 = scalar_lea.vmem %s1613, 4294967295
            %v1618 = vld [vmem:[%s1617] sm:$0xfe]
            %v1619 = vlaneseq
            %v1620 = vshrl.u32 %v1619, 7
            %vm1621 = vcmp.eq.s32.totalorder %v1620, 0
            %v1622 = vsel %vm1621, %v1615, %v1618
            %s1623 = scalar_lea.vmem %s1613, 7
            %v1624 = vld [vmem:[%s1623] ss:$0 sm:$0xff]
            %1625 = vst [vmem:[%s1613] sm:$0xff] %v1622
            %s1626 = scalar_lea.vmem %s1613, 8
            %s1628 = scalar_lea.vmem %s1626, 4294967295
            %v1629 = vld [vmem:[%s1628] sm:$0xfe]
            %v1630 = vlaneseq
            %v1631 = vshrl.u32 %v1630, 7
            %vm1632 = vcmp.eq.s32.totalorder %v1631, 0
            %v1633 = vsel %vm1632, %v1624, %v1629
            %s1634 = scalar_lea.vmem %s1626, 7
            %v1635 = vld [vmem:[%s1634] ss:$0 sm:$0xff]
            %1636 = vst [vmem:[%s1626] sm:$0xff] %v1633
            %s1637 = scalar_lea.vmem %s1613, 16
            %s1639 = scalar_lea.vmem %s1637, 4294967295
            %v1640 = vld [vmem:[%s1639] sm:$0xfe]
            %v1641 = vlaneseq
            %v1642 = vshrl.u32 %v1641, 7
            %vm1643 = vcmp.eq.s32.totalorder %v1642, 0
            %v1644 = vsel %vm1643, %v1635, %v1640
            %s1645 = scalar_lea.vmem %s1637, 7
            %v1646 = vld [vmem:[%s1645] ss:$0 sm:$0xff]
            %1647 = vst [vmem:[%s1637] sm:$0xff] %v1644
            %s1648 = scalar_lea.vmem %s1613, 24
            %s1650 = scalar_lea.vmem %s1648, 4294967295
            %v1651 = vld [vmem:[%s1650] sm:$0xfe]
            %v1652 = vlaneseq
            %v1653 = vshrl.u32 %v1652, 7
            %vm1654 = vcmp.eq.s32.totalorder %v1653, 0
            %v1655 = vsel %vm1654, %v1646, %v1651
            %s1656 = scalar_lea.vmem %s1648, 7
            %v1657 = vld [vmem:[%s1656] ss:$0 sm:$0xff]
            %1658 = vst [vmem:[%s1648] sm:$0xff] %v1655
            %v1659 = vld [vmem:[%s1614] ss:$0 sm:$0xff]
            %s1660 = scalar_lea.vmem %s1613, 1
            %1661 = vst [vmem:[%s1660] sm:$0x1] %v1659
            %s1662 = scalar_lea.vmem %s1614, 24
            %s1663 = scalar_lea.vmem %s1662, 1
            %v1664 = vld [vmem:[%s1663] sm:$0x7f]
            %v1665 = vlaneseq
            %v1666 = vshrl.u32 %v1665, 7
            %vm1667 = vcmp.eq.s32.totalorder %v1666, 7
            %v1668 = vsel %vm1667, %v1657, %v1664
            %v1669 = vld [vmem:[%s1662] ss:$0 sm:$0xff]
            %1670 = vst [vmem:[%s1662] sm:$0xff] %v1668
            %s1671 = scalar_lea.vmem %s1614, 16
            %s1672 = scalar_lea.vmem %s1671, 1
            %v1673 = vld [vmem:[%s1672] sm:$0x7f]
            %v1674 = vlaneseq
            %v1675 = vshrl.u32 %v1674, 7
            %vm1676 = vcmp.eq.s32.totalorder %v1675, 7
            %v1677 = vsel %vm1676, %v1669, %v1673
            %v1678 = vld [vmem:[%s1671] ss:$0 sm:$0xff]
            %1679 = vst [vmem:[%s1671] sm:$0xff] %v1677
            %s1680 = scalar_lea.vmem %s1614, 8
            %s1681 = scalar_lea.vmem %s1680, 1
            %v1682 = vld [vmem:[%s1681] sm:$0x7f]
            %v1683 = vlaneseq
            %v1684 = vshrl.u32 %v1683, 7
            %vm1685 = vcmp.eq.s32.totalorder %v1684, 7
            %v1686 = vsel %vm1685, %v1678, %v1682
            %v1687 = vld [vmem:[%s1680] ss:$0 sm:$0xff]
            %1688 = vst [vmem:[%s1680] sm:$0xff] %v1686
            %s1689 = scalar_lea.vmem %s1614, 1
            %v1690 = vld [vmem:[%s1689] sm:$0x7f]
            %v1691 = vlaneseq
            %v1692 = vshrl.u32 %v1691, 7
            %vm1693 = vcmp.eq.s32.totalorder %v1692, 7
            %v1694 = vsel %vm1693, %v1687, %v1690
            %v1695 = vld [vmem:[%s1614] ss:$0 sm:$0xff]
            %1696 = vst [vmem:[%s1614] sm:$0xff] %v1694
            %s1697 = smov [#allocation13]
            %s1698 = smov [#allocation15]
            %v1699 = vld [vmem:[%s1697] ss:$0 sm:$0xff]
            %s1701 = scalar_lea.vmem %s1697, 4294967295
            %v1702 = vld [vmem:[%s1701] sm:$0xfe]
            %v1703 = vlaneseq
            %v1704 = vshrl.u32 %v1703, 7
            %vm1705 = vcmp.eq.s32.totalorder %v1704, 0
            %v1706 = vsel %vm1705, %v1699, %v1702
            %s1707 = scalar_lea.vmem %s1697, 7
            %v1708 = vld [vmem:[%s1707] ss:$0 sm:$0xff]
            %1709 = vst [vmem:[%s1697] sm:$0xff] %v1706
            %s1710 = scalar_lea.vmem %s1697, 8
            %s1712 = scalar_lea.vmem %s1710, 4294967295
            %v1713 = vld [vmem:[%s1712] sm:$0xfe]
            %v1714 = vlaneseq
            %v1715 = vshrl.u32 %v1714, 7
            %vm1716 = vcmp.eq.s32.totalorder %v1715, 0
            %v1717 = vsel %vm1716, %v1708, %v1713
            %s1718 = scalar_lea.vmem %s1710, 7
            %v1719 = vld [vmem:[%s1718] ss:$0 sm:$0xff]
            %1720 = vst [vmem:[%s1710] sm:$0xff] %v1717
            %s1721 = scalar_lea.vmem %s1697, 16
            %s1723 = scalar_lea.vmem %s1721, 4294967295
            %v1724 = vld [vmem:[%s1723] sm:$0xfe]
            %v1725 = vlaneseq
            %v1726 = vshrl.u32 %v1725, 7
            %vm1727 = vcmp.eq.s32.totalorder %v1726, 0
            %v1728 = vsel %vm1727, %v1719, %v1724
            %s1729 = scalar_lea.vmem %s1721, 7
            %v1730 = vld [vmem:[%s1729] ss:$0 sm:$0xff]
            %1731 = vst [vmem:[%s1721] sm:$0xff] %v1728
            %s1732 = scalar_lea.vmem %s1697, 24
            %s1734 = scalar_lea.vmem %s1732, 4294967295
            %v1735 = vld [vmem:[%s1734] sm:$0xfe]
            %v1736 = vlaneseq
            %v1737 = vshrl.u32 %v1736, 7
            %vm1738 = vcmp.eq.s32.totalorder %v1737, 0
            %v1739 = vsel %vm1738, %v1730, %v1735
            %s1740 = scalar_lea.vmem %s1732, 7
            %v1741 = vld [vmem:[%s1740] ss:$0 sm:$0xff]
            %1742 = vst [vmem:[%s1732] sm:$0xff] %v1739
            %v1743 = vld [vmem:[%s1698] ss:$0 sm:$0xff]
            %s1744 = scalar_lea.vmem %s1697, 1
            %1745 = vst [vmem:[%s1744] sm:$0x1] %v1743
            %s1746 = scalar_lea.vmem %s1698, 24
            %s1747 = scalar_lea.vmem %s1746, 1
            %v1748 = vld [vmem:[%s1747] sm:$0x7f]
            %v1749 = vlaneseq
            %v1750 = vshrl.u32 %v1749, 7
            %vm1751 = vcmp.eq.s32.totalorder %v1750, 7
            %v1752 = vsel %vm1751, %v1741, %v1748
            %v1753 = vld [vmem:[%s1746] ss:$0 sm:$0xff]
            %1754 = vst [vmem:[%s1746] sm:$0xff] %v1752
            %s1755 = scalar_lea.vmem %s1698, 16
            %s1756 = scalar_lea.vmem %s1755, 1
            %v1757 = vld [vmem:[%s1756] sm:$0x7f]
            %v1758 = vlaneseq
            %v1759 = vshrl.u32 %v1758, 7
            %vm1760 = vcmp.eq.s32.totalorder %v1759, 7
            %v1761 = vsel %vm1760, %v1753, %v1757
            %v1762 = vld [vmem:[%s1755] ss:$0 sm:$0xff]
            %1763 = vst [vmem:[%s1755] sm:$0xff] %v1761
            %s1764 = scalar_lea.vmem %s1698, 8
            %s1765 = scalar_lea.vmem %s1764, 1
            %v1766 = vld [vmem:[%s1765] sm:$0x7f]
            %v1767 = vlaneseq
            %v1768 = vshrl.u32 %v1767, 7
            %vm1769 = vcmp.eq.s32.totalorder %v1768, 7
            %v1770 = vsel %vm1769, %v1762, %v1766
            %v1771 = vld [vmem:[%s1764] ss:$0 sm:$0xff]
            %1772 = vst [vmem:[%s1764] sm:$0xff] %v1770
            %s1773 = scalar_lea.vmem %s1698, 1
            %v1774 = vld [vmem:[%s1773] sm:$0x7f]
            %v1775 = vlaneseq
            %v1776 = vshrl.u32 %v1775, 7
            %vm1777 = vcmp.eq.s32.totalorder %v1776, 7
            %v1778 = vsel %vm1777, %v1771, %v1774
            %v1779 = vld [vmem:[%s1698] ss:$0 sm:$0xff]
            %1780 = vst [vmem:[%s1698] sm:$0xff] %v1778
            %s1781 = smov [#allocation23]
            %v1782 = vld [vmem:[%s1781] sm:$0xff]
            %s1783 = smov [#allocation24]
            %v1784 = vld [vmem:[%s1783] sm:$0xff]
            %s1785 = smov %s257
            %s1786 = smov %s261
            %s1787 = smov %s265
            %s1788 = smov %s269
            %v1789 = vld [vmem:[%s1785] sm:$0xff]
            %v1790 = vld [vmem:[%s1786] sm:$0xff]
            %v1791 = vld [vmem:[%s1787] sm:$0xff]
            %v1792 = vld [vmem:[%s1788] sm:$0xff]
            %v1793 = vmul.f32 %v1782, %v1789
            %v1794 = vmul.f32 %v1784, %v1791
            %v1795 = vsub.f32 %v1793, %v1794
            %v1796 = vmul.f32 %v1782, %v1790
            %v1797 = vmul.f32 %v1784, %v1792
            %v1798 = vsub.f32 %v1796, %v1797
            %v1799 = vmul.f32 %v1784, %v1789
            %v1800 = vmul.f32 %v1782, %v1791
            %v1801 = vadd.f32 %v1799, %v1800
            %v1802 = vmul.f32 %v1784, %v1790
            %v1803 = vmul.f32 %v1782, %v1792
            %v1804 = vadd.f32 %v1802, %v1803
            %1805 = vst [vmem:[%s1785] sm:$0xff] %v1795
            %1806 = vst [vmem:[%s1786] sm:$0xff] %v1798
            %1807 = vst [vmem:[%s1787] sm:$0xff] %v1801
            %1808 = vst [vmem:[%s1788] sm:$0xff] %v1804
            %s1809 = smov [#allocation23]
            %s1810 = scalar_lea.vmem %s1809, 8
            %v1811 = vld [vmem:[%s1810] sm:$0xff]
            %s1812 = smov [#allocation24]
            %s1813 = scalar_lea.vmem %s1812, 8
            %v1814 = vld [vmem:[%s1813] sm:$0xff]
            %s1815 = smov %s257
            %s1816 = scalar_lea.vmem %s1815, 8
            %s1817 = smov %s261
            %s1818 = scalar_lea.vmem %s1817, 8
            %s1819 = smov %s265
            %s1820 = scalar_lea.vmem %s1819, 8
            %s1821 = smov %s269
            %s1822 = scalar_lea.vmem %s1821, 8
            %v1823 = vld [vmem:[%s1816] sm:$0xff]
            %v1824 = vld [vmem:[%s1818] sm:$0xff]
            %v1825 = vld [vmem:[%s1820] sm:$0xff]
            %v1826 = vld [vmem:[%s1822] sm:$0xff]
            %v1827 = vmul.f32 %v1811, %v1823
            %v1828 = vmul.f32 %v1814, %v1825
            %v1829 = vsub.f32 %v1827, %v1828
            %v1830 = vmul.f32 %v1811, %v1824
            %v1831 = vmul.f32 %v1814, %v1826
            %v1832 = vsub.f32 %v1830, %v1831
            %v1833 = vmul.f32 %v1814, %v1823
            %v1834 = vmul.f32 %v1811, %v1825
            %v1835 = vadd.f32 %v1833, %v1834
            %v1836 = vmul.f32 %v1814, %v1824
            %v1837 = vmul.f32 %v1811, %v1826
            %v1838 = vadd.f32 %v1836, %v1837
            %1839 = vst [vmem:[%s1816] sm:$0xff] %v1829
            %1840 = vst [vmem:[%s1818] sm:$0xff] %v1832
            %1841 = vst [vmem:[%s1820] sm:$0xff] %v1835
            %1842 = vst [vmem:[%s1822] sm:$0xff] %v1838
            %s1843 = smov [#allocation23]
            %s1844 = scalar_lea.vmem %s1843, 16
            %v1845 = vld [vmem:[%s1844] sm:$0xff]
            %s1846 = smov [#allocation24]
            %s1847 = scalar_lea.vmem %s1846, 16
            %v1848 = vld [vmem:[%s1847] sm:$0xff]
            %s1849 = smov %s257
            %s1850 = scalar_lea.vmem %s1849, 16
            %s1851 = smov %s261
            %s1852 = scalar_lea.vmem %s1851, 16
            %s1853 = smov %s265
            %s1854 = scalar_lea.vmem %s1853, 16
            %s1855 = smov %s269
            %s1856 = scalar_lea.vmem %s1855, 16
            %v1857 = vld [vmem:[%s1850] sm:$0xff]
            %v1858 = vld [vmem:[%s1852] sm:$0xff]
            %v1859 = vld [vmem:[%s1854] sm:$0xff]
            %v1860 = vld [vmem:[%s1856] sm:$0xff]
            %v1861 = vmul.f32 %v1845, %v1857
            %v1862 = vmul.f32 %v1848, %v1859
            %v1863 = vsub.f32 %v1861, %v1862
            %v1864 = vmul.f32 %v1845, %v1858
            %v1865 = vmul.f32 %v1848, %v1860
            %v1866 = vsub.f32 %v1864, %v1865
            %v1867 = vmul.f32 %v1848, %v1857
            %v1868 = vmul.f32 %v1845, %v1859
            %v1869 = vadd.f32 %v1867, %v1868
            %v1870 = vmul.f32 %v1848, %v1858
            %v1871 = vmul.f32 %v1845, %v1860
            %v1872 = vadd.f32 %v1870, %v1871
            %1873 = vst [vmem:[%s1850] sm:$0xff] %v1863
            %1874 = vst [vmem:[%s1852] sm:$0xff] %v1866
            %1875 = vst [vmem:[%s1854] sm:$0xff] %v1869
            %1876 = vst [vmem:[%s1856] sm:$0xff] %v1872
            %s1877 = smov [#allocation23]
            %s1878 = scalar_lea.vmem %s1877, 24
            %v1879 = vld [vmem:[%s1878] sm:$0xff]
            %s1880 = smov [#allocation24]
            %s1881 = scalar_lea.vmem %s1880, 24
            %v1882 = vld [vmem:[%s1881] sm:$0xff]
            %s1883 = smov %s257
            %s1884 = scalar_lea.vmem %s1883, 24
            %s1885 = smov %s261
            %s1886 = scalar_lea.vmem %s1885, 24
            %s1887 = smov %s265
            %s1888 = scalar_lea.vmem %s1887, 24
            %s1889 = smov %s269
            %s1890 = scalar_lea.vmem %s1889, 24
            %v1891 = vld [vmem:[%s1884] sm:$0xff]
            %v1892 = vld [vmem:[%s1886] sm:$0xff]
            %v1893 = vld [vmem:[%s1888] sm:$0xff]
            %v1894 = vld [vmem:[%s1890] sm:$0xff]
            %v1895 = vmul.f32 %v1879, %v1891
            %v1896 = vmul.f32 %v1882, %v1893
            %v1897 = vsub.f32 %v1895, %v1896
            %v1898 = vmul.f32 %v1879, %v1892
            %v1899 = vmul.f32 %v1882, %v1894
            %v1900 = vsub.f32 %v1898, %v1899
            %v1901 = vmul.f32 %v1882, %v1891
            %v1902 = vmul.f32 %v1879, %v1893
            %v1903 = vadd.f32 %v1901, %v1902
            %v1904 = vmul.f32 %v1882, %v1892
            %v1905 = vmul.f32 %v1879, %v1894
            %v1906 = vadd.f32 %v1904, %v1905
            %1907 = vst [vmem:[%s1884] sm:$0xff] %v1897
            %1908 = vst [vmem:[%s1886] sm:$0xff] %v1900
            %1909 = vst [vmem:[%s1888] sm:$0xff] %v1903
            %1910 = vst [vmem:[%s1890] sm:$0xff] %v1906
            %s1911 = smov %s257
            %s1912 = smov %s265
            %v1913 = vld [vmem:[%s1911] ss:$0 sm:$0xff]
            %s1915 = scalar_lea.vmem %s1911, 4294967295
            %v1916 = vld [vmem:[%s1915] sm:$0xfe]
            %v1917 = vlaneseq
            %v1918 = vshrl.u32 %v1917, 7
            %vm1919 = vcmp.eq.s32.totalorder %v1918, 0
            %v1920 = vsel %vm1919, %v1913, %v1916
            %s1921 = scalar_lea.vmem %s1911, 7
            %v1922 = vld [vmem:[%s1921] ss:$0 sm:$0xff]
            %1923 = vst [vmem:[%s1911] sm:$0xff] %v1920
            %s1924 = scalar_lea.vmem %s1911, 8
            %s1926 = scalar_lea.vmem %s1924, 4294967295
            %v1927 = vld [vmem:[%s1926] sm:$0xfe]
            %v1928 = vlaneseq
            %v1929 = vshrl.u32 %v1928, 7
            %vm1930 = vcmp.eq.s32.totalorder %v1929, 0
            %v1931 = vsel %vm1930, %v1922, %v1927
            %s1932 = scalar_lea.vmem %s1924, 7
            %v1933 = vld [vmem:[%s1932] ss:$0 sm:$0xff]
            %1934 = vst [vmem:[%s1924] sm:$0xff] %v1931
            %s1935 = scalar_lea.vmem %s1911, 16
            %s1937 = scalar_lea.vmem %s1935, 4294967295
            %v1938 = vld [vmem:[%s1937] sm:$0xfe]
            %v1939 = vlaneseq
            %v1940 = vshrl.u32 %v1939, 7
            %vm1941 = vcmp.eq.s32.totalorder %v1940, 0
            %v1942 = vsel %vm1941, %v1933, %v1938
            %s1943 = scalar_lea.vmem %s1935, 7
            %v1944 = vld [vmem:[%s1943] ss:$0 sm:$0xff]
            %1945 = vst [vmem:[%s1935] sm:$0xff] %v1942
            %s1946 = scalar_lea.vmem %s1911, 24
            %s1948 = scalar_lea.vmem %s1946, 4294967295
            %v1949 = vld [vmem:[%s1948] sm:$0xfe]
            %v1950 = vlaneseq
            %v1951 = vshrl.u32 %v1950, 7
            %vm1952 = vcmp.eq.s32.totalorder %v1951, 0
            %v1953 = vsel %vm1952, %v1944, %v1949
            %s1954 = scalar_lea.vmem %s1946, 7
            %v1955 = vld [vmem:[%s1954] ss:$0 sm:$0xff]
            %1956 = vst [vmem:[%s1946] sm:$0xff] %v1953
            %v1957 = vld [vmem:[%s1912] ss:$0 sm:$0xff]
            %s1958 = scalar_lea.vmem %s1911, 1
            %1959 = vst [vmem:[%s1958] sm:$0x1] %v1957
            %s1960 = scalar_lea.vmem %s1912, 24
            %s1961 = scalar_lea.vmem %s1960, 1
            %v1962 = vld [vmem:[%s1961] sm:$0x7f]
            %v1963 = vlaneseq
            %v1964 = vshrl.u32 %v1963, 7
            %vm1965 = vcmp.eq.s32.totalorder %v1964, 7
            %v1966 = vsel %vm1965, %v1955, %v1962
            %v1967 = vld [vmem:[%s1960] ss:$0 sm:$0xff]
            %1968 = vst [vmem:[%s1960] sm:$0xff] %v1966
            %s1969 = scalar_lea.vmem %s1912, 16
            %s1970 = scalar_lea.vmem %s1969, 1
            %v1971 = vld [vmem:[%s1970] sm:$0x7f]
            %v1972 = vlaneseq
            %v1973 = vshrl.u32 %v1972, 7
            %vm1974 = vcmp.eq.s32.totalorder %v1973, 7
            %v1975 = vsel %vm1974, %v1967, %v1971
            %v1976 = vld [vmem:[%s1969] ss:$0 sm:$0xff]
            %1977 = vst [vmem:[%s1969] sm:$0xff] %v1975
            %s1978 = scalar_lea.vmem %s1912, 8
            %s1979 = scalar_lea.vmem %s1978, 1
            %v1980 = vld [vmem:[%s1979] sm:$0x7f]
            %v1981 = vlaneseq
            %v1982 = vshrl.u32 %v1981, 7
            %vm1983 = vcmp.eq.s32.totalorder %v1982, 7
            %v1984 = vsel %vm1983, %v1976, %v1980
            %v1985 = vld [vmem:[%s1978] ss:$0 sm:$0xff]
            %1986 = vst [vmem:[%s1978] sm:$0xff] %v1984
            %s1987 = scalar_lea.vmem %s1912, 1
            %v1988 = vld [vmem:[%s1987] sm:$0x7f]
            %v1989 = vlaneseq
            %v1990 = vshrl.u32 %v1989, 7
            %vm1991 = vcmp.eq.s32.totalorder %v1990, 7
            %v1992 = vsel %vm1991, %v1985, %v1988
            %v1993 = vld [vmem:[%s1912] ss:$0 sm:$0xff]
            %1994 = vst [vmem:[%s1912] sm:$0xff] %v1992
            %s1995 = smov %s261
            %s1996 = smov %s269
            %v1997 = vld [vmem:[%s1995] ss:$0 sm:$0xff]
            %s1999 = scalar_lea.vmem %s1995, 4294967295
            %v2000 = vld [vmem:[%s1999] sm:$0xfe]
            %v2001 = vlaneseq
            %v2002 = vshrl.u32 %v2001, 7
            %vm2003 = vcmp.eq.s32.totalorder %v2002, 0
            %v2004 = vsel %vm2003, %v1997, %v2000
            %s2005 = scalar_lea.vmem %s1995, 7
            %v2006 = vld [vmem:[%s2005] ss:$0 sm:$0xff]
            %2007 = vst [vmem:[%s1995] sm:$0xff] %v2004
            %s2008 = scalar_lea.vmem %s1995, 8
            %s2010 = scalar_lea.vmem %s2008, 4294967295
            %v2011 = vld [vmem:[%s2010] sm:$0xfe]
            %v2012 = vlaneseq
            %v2013 = vshrl.u32 %v2012, 7
            %vm2014 = vcmp.eq.s32.totalorder %v2013, 0
            %v2015 = vsel %vm2014, %v2006, %v2011
            %s2016 = scalar_lea.vmem %s2008, 7
            %v2017 = vld [vmem:[%s2016] ss:$0 sm:$0xff]
            %2018 = vst [vmem:[%s2008] sm:$0xff] %v2015
            %s2019 = scalar_lea.vmem %s1995, 16
            %s2021 = scalar_lea.vmem %s2019, 4294967295
            %v2022 = vld [vmem:[%s2021] sm:$0xfe]
            %v2023 = vlaneseq
            %v2024 = vshrl.u32 %v2023, 7
            %vm2025 = vcmp.eq.s32.totalorder %v2024, 0
            %v2026 = vsel %vm2025, %v2017, %v2022
            %s2027 = scalar_lea.vmem %s2019, 7
            %v2028 = vld [vmem:[%s2027] ss:$0 sm:$0xff]
            %2029 = vst [vmem:[%s2019] sm:$0xff] %v2026
            %s2030 = scalar_lea.vmem %s1995, 24
            %s2032 = scalar_lea.vmem %s2030, 4294967295
            %v2033 = vld [vmem:[%s2032] sm:$0xfe]
            %v2034 = vlaneseq
            %v2035 = vshrl.u32 %v2034, 7
            %vm2036 = vcmp.eq.s32.totalorder %v2035, 0
            %v2037 = vsel %vm2036, %v2028, %v2033
            %s2038 = scalar_lea.vmem %s2030, 7
            %v2039 = vld [vmem:[%s2038] ss:$0 sm:$0xff]
            %2040 = vst [vmem:[%s2030] sm:$0xff] %v2037
            %v2041 = vld [vmem:[%s1996] ss:$0 sm:$0xff]
            %s2042 = scalar_lea.vmem %s1995, 1
            %2043 = vst [vmem:[%s2042] sm:$0x1] %v2041
            %s2044 = scalar_lea.vmem %s1996, 24
            %s2045 = scalar_lea.vmem %s2044, 1
            %v2046 = vld [vmem:[%s2045] sm:$0x7f]
            %v2047 = vlaneseq
            %v2048 = vshrl.u32 %v2047, 7
            %vm2049 = vcmp.eq.s32.totalorder %v2048, 7
            %v2050 = vsel %vm2049, %v2039, %v2046
            %v2051 = vld [vmem:[%s2044] ss:$0 sm:$0xff]
            %2052 = vst [vmem:[%s2044] sm:$0xff] %v2050
            %s2053 = scalar_lea.vmem %s1996, 16
            %s2054 = scalar_lea.vmem %s2053, 1
            %v2055 = vld [vmem:[%s2054] sm:$0x7f]
            %v2056 = vlaneseq
            %v2057 = vshrl.u32 %v2056, 7
            %vm2058 = vcmp.eq.s32.totalorder %v2057, 7
            %v2059 = vsel %vm2058, %v2051, %v2055
            %v2060 = vld [vmem:[%s2053] ss:$0 sm:$0xff]
            %2061 = vst [vmem:[%s2053] sm:$0xff] %v2059
            %s2062 = scalar_lea.vmem %s1996, 8
            %s2063 = scalar_lea.vmem %s2062, 1
            %v2064 = vld [vmem:[%s2063] sm:$0x7f]
            %v2065 = vlaneseq
            %v2066 = vshrl.u32 %v2065, 7
            %vm2067 = vcmp.eq.s32.totalorder %v2066, 7
            %v2068 = vsel %vm2067, %v2060, %v2064
            %v2069 = vld [vmem:[%s2062] ss:$0 sm:$0xff]
            %2070 = vst [vmem:[%s2062] sm:$0xff] %v2068
            %s2071 = scalar_lea.vmem %s1996, 1
            %v2072 = vld [vmem:[%s2071] sm:$0x7f]
            %v2073 = vlaneseq
            %v2074 = vshrl.u32 %v2073, 7
            %vm2075 = vcmp.eq.s32.totalorder %v2074, 7
            %v2076 = vsel %vm2075, %v2069, %v2072
            %v2077 = vld [vmem:[%s1996] ss:$0 sm:$0xff]
            %2078 = vst [vmem:[%s1996] sm:$0xff] %v2076
          $region108: #{custom-call.2} parent=100 // loop_footer
            %s627 = sadd.s32 1, %s623
          $region109: #{custom-call.2} parent=100 // loop_footer_branch
            %622 = sbr.rel target = $region105
          $region110: #{custom-call.2} parent=100 // loop_exit
            _
          %s2079 = sadd.s32 %s429, 1
        $region101: #{custom-call.2} parent=95 // loop_footer
          _
        $region102: #{custom-call.2} parent=95 // loop_footer_branch
          %428 = sbr.rel target = $region98
        $region103: #{custom-call.2} parent=95 // loop_exit
          _
        %s2082 = sand.u32 %s17, 7
        %s2083 = scalar_lea.vmem [#allocation4], %s2082
        %s2084 = sand.u32 %s17, 7
        %s2085 = scalar_lea.vmem [#allocation6], %s2084
        %s2086 = smov [#allocation12]
        %s2087 = smov %s2083
        %v2088 = vlaneseq
        %v2089 = vand.u32 %v2088, 127
        %v2090 = vmov %v2089
        %v2091 = vlaneseq
        %v2092 = vshrl.u32 %v2091, 7
        %v2093 = vmov %v2092
        %v2094 = vld [vmem:[%s2086] sm:$0xff]
        %vm2097 = vcmp.eq.s32.totalorder %v2093, %v2090
        %v2098 = vsel %vm2097, %v2094, 0.0
        %s2099 = scalar_lea.vmem %s2086, 8
        %v2100 = vld [vmem:[%s2099] sm:$0xff]
        %v2102 = vadd.s32 %v2093, 8
        %vm2103 = vcmp.eq.s32.totalorder %v2102, %v2090
        %v2104 = vsel %vm2103, %v2100, %v2098
        %s2105 = scalar_lea.vmem %s2086, 16
        %v2106 = vld [vmem:[%s2105] sm:$0xff]
        %v2108 = vadd.s32 %v2093, 16
        %vm2109 = vcmp.eq.s32.totalorder %v2108, %v2090
        %v2110 = vsel %vm2109, %v2106, %v2104
        %s2111 = scalar_lea.vmem %s2086, 24
        %v2112 = vld [vmem:[%s2111] sm:$0xff]
        %v2114 = vadd.s32 %v2093, 24
        %vm2115 = vcmp.eq.s32.totalorder %v2114, %v2090
        %v2116 = vsel %vm2115, %v2112, %v2110
        %v2117 = vrot.slane %v2116, 4
        %v2118 = vadd.f32 %v2116, %v2117
        %v2119 = vrot.slane %v2118, 2
        %v2120 = vadd.f32 %v2118, %v2119
        %v2121 = vrot.slane %v2120, 1
        %v2122 = vadd.f32 %v2120, %v2121
        %2123 = vst [vmem:[%s2087] sm:$0x1] %v2122
        %s2124 = smov [#allocation15]
        %s2125 = smov %s2085
        %v2126 = vlaneseq
        %v2127 = vand.u32 %v2126, 127
        %v2128 = vmov %v2127
        %v2129 = vlaneseq
        %v2130 = vshrl.u32 %v2129, 7
        %v2131 = vmov %v2130
        %v2132 = vld [vmem:[%s2124] sm:$0xff]
        %vm2135 = vcmp.eq.s32.totalorder %v2131, %v2128
        %v2136 = vsel %vm2135, %v2132, 0.0
        %s2137 = scalar_lea.vmem %s2124, 8
        %v2138 = vld [vmem:[%s2137] sm:$0xff]
        %v2140 = vadd.s32 %v2131, 8
        %vm2141 = vcmp.eq.s32.totalorder %v2140, %v2128
        %v2142 = vsel %vm2141, %v2138, %v2136
        %s2143 = scalar_lea.vmem %s2124, 16
        %v2144 = vld [vmem:[%s2143] sm:$0xff]
        %v2146 = vadd.s32 %v2131, 16
        %vm2147 = vcmp.eq.s32.totalorder %v2146, %v2128
        %v2148 = vsel %vm2147, %v2144, %v2142
        %s2149 = scalar_lea.vmem %s2124, 24
        %v2150 = vld [vmem:[%s2149] sm:$0xff]
        %v2152 = vadd.s32 %v2131, 24
        %vm2153 = vcmp.eq.s32.totalorder %v2152, %v2128
        %v2154 = vsel %vm2153, %v2150, %v2148
        %v2155 = vrot.slane %v2154, 4
        %v2156 = vadd.f32 %v2154, %v2155
        %v2157 = vrot.slane %v2156, 2
        %v2158 = vadd.f32 %v2156, %v2157
        %v2159 = vrot.slane %v2158, 1
        %v2160 = vadd.f32 %v2158, %v2159
        %2161 = vst [vmem:[%s2125] sm:$0x1] %v2160
        %s2163 = ssub.s32 4, 1
        %v2164 = vld [vmem:[#allocation4] sm:%s2163]
        %s2166 = ssub.s32 4, 1
        %2167 = vst [vmem:[%s247] sm:%s2166] %v2164
        %s2169 = ssub.s32 4, 1
        %v2170 = vld [vmem:[#allocation6] sm:%s2169]
        %s2172 = ssub.s32 4, 1
        %2173 = vst [vmem:[%s253] sm:%s2172] %v2170
        %s2174 = sand.u32 %s27, 1
        %s2175 = sand.u32 %s27, 1
        %s2176 = smul.addr %s2175, 2
        %s2177 = scalar_lea.vmem [#allocation5], %s2176
        %s2178 = sand.u32 %s55, 1
        %s2179 = sand.u32 %s55, 1
        %s2180 = smul.addr %s2179, 2
        %s2181 = scalar_lea.vmem [#allocation7], %s2180
        %s2182 = sand.u32 %s17, 1
        %s2183 = sand.u32 %s17, 1
        %s2184 = smul.addr %s2183, 32
        %s2185 = scalar_lea.vmem [#allocation8], %s2184
        %s2186 = sand.u32 %s17, 1
        %s2187 = sand.u32 %s17, 1
        %s2188 = smul.addr %s2187, 32
        %s2189 = scalar_lea.vmem [#allocation9], %s2188
        %s2190 = sand.u32 %s17, 1
        %s2191 = sand.u32 %s17, 1
        %s2192 = smul.addr %s2191, 32
        %s2193 = scalar_lea.vmem [#allocation10], %s2192
        %s2194 = sand.u32 %s17, 1
        %s2195 = sand.u32 %s17, 1
        %s2196 = smul.addr %s2195, 32
        %s2197 = scalar_lea.vmem [#allocation11], %s2196
        // Predicated region
        $region111: #{custom-call.2} parent=95 // pred_check
          %p2198 = pneg %p37
        $region112: #{custom-call.2} parent=95 // pred_check_branch
          %2200 = sbr.rel (%p2198) target = $region114
        $region113: #{custom-call.2} parent=95 // pred_region
          %s2201 = sshrl.u32 %s17, 3
          %s2202 = smul.addr %s2201, 2
          %s2203 = scalar_lea.vmem %s4, %s2202
          // Predicated region
          $region115: #{custom-call.2} parent=113 // pred_check
            _
          $region116: #{custom-call.2} parent=113 // pred_check_branch
            %2205 = sbr.rel (0) target = $region118
          $region117: #{custom-call.2} parent=113 // pred_region
            // Predicated region
            $region119: #{custom-call.2} parent=117 // pred_check
              _
            $region120: #{custom-call.2} parent=117 // pred_check_branch
              %2207 = sbr.rel target = $region122
            $region121: #{custom-call.2} parent=117 // pred_region
              // Predicated region
              $region134: #{custom-call.2} parent=121 // pred_check
                _
              $region135: #{custom-call.2} parent=121 // pred_check_branch
                %2223 = sbr.rel (0) target = $region137
              $region136: #{custom-call.2} parent=121 // pred_region
                %s2225 = ssub.s32 4, 1
                loop: start=0, step=1, limit=1
                $region138: #{custom-call.2} parent=136 // loop_pre_header
                  _
                $region139: #{custom-call.2} parent=136 // loop_header
                  %s2227 = sphi 0, %s2231
                  %p2228 = scmp.ge.s32.totalorder %s2227, 1
                  %s2232 = sphi %s2177, %s2177
                  %s2233 = sphi %s2203, %s2203
                $region140: #{custom-call.2} parent=136 // loop_header_branch
                  %2230 = sbr.rel (%p2228) target = $region144
                $region141: #{custom-call.2} parent=136 // loop_body
                  %v2234 = vld [vmem:[%s2232] sm:%s2225]
                  %2235 = vst [vmem:[%s2233] sm:%s2225] %v2234
                $region142: #{custom-call.2} parent=136 // loop_footer
                  %s2231 = sadd.s32 1, %s2227
                $region143: #{custom-call.2} parent=136 // loop_footer_branch
                  %2226 = sbr.rel target = $region139
                $region144: #{custom-call.2} parent=136 // loop_exit
                  _
              $region137: #{custom-call.2} parent=121 // pred_fallthru
                _
            $region122: #{custom-call.2} parent=117 // pred_fallthru
              _
            // Predicated region
            $region123: #{custom-call.2} parent=117 // pred_check
              _
            $region124: #{custom-call.2} parent=117 // pred_check_branch
              %2209 = sbr.rel (0) target = $region126
            $region125: #{custom-call.2} parent=117 // pred_region
              %s2211 = ssub.s32 4, 1
              loop: start=0, step=1, limit=1
              $region127: #{custom-call.2} parent=125 // loop_pre_header
                _
              $region128: #{custom-call.2} parent=125 // loop_header
                %s2213 = sphi 0, %s2217
                %p2214 = scmp.ge.s32.totalorder %s2213, 1
                %s2218 = sphi %s2177, %s2177
                %s2219 = sphi %s2203, %s2203
              $region129: #{custom-call.2} parent=125 // loop_header_branch
                %2216 = sbr.rel (%p2214) target = $region133
              $region130: #{custom-call.2} parent=125 // loop_body
                %v2220 = vld [vmem:[%s2218] sm:%s2211]
                %2221 = vst [vmem:[%s2219] sm:%s2211] %v2220
              $region131: #{custom-call.2} parent=125 // loop_footer
                %s2217 = sadd.s32 1, %s2213
              $region132: #{custom-call.2} parent=125 // loop_footer_branch
                %2212 = sbr.rel target = $region128
              $region133: #{custom-call.2} parent=125 // loop_exit
                _
            $region126: #{custom-call.2} parent=117 // pred_fallthru
              _
          $region118: #{custom-call.2} parent=113 // pred_fallthru
            _
          %2236 = vnop
        $region114: #{custom-call.2} parent=95 // pred_fallthru
          _
        // Predicated region
        $region145: #{custom-call.2} parent=95 // pred_check
          %p2237 = pneg %p65
        $region146: #{custom-call.2} parent=95 // pred_check_branch
          %2239 = sbr.rel (%p2237) target = $region148
        $region147: #{custom-call.2} parent=95 // pred_region
          %s2240 = sshrl.u32 %s17, 3
          %s2241 = smul.addr %s2240, 2
          %s2242 = scalar_lea.vmem %s5, %s2241
          // Predicated region
          $region149: #{custom-call.2} parent=147 // pred_check
            _
          $region150: #{custom-call.2} parent=147 // pred_check_branch
            %2244 = sbr.rel (0) target = $region152
          $region151: #{custom-call.2} parent=147 // pred_region
            // Predicated region
            $region153: #{custom-call.2} parent=151 // pred_check
              _
            $region154: #{custom-call.2} parent=151 // pred_check_branch
              %2246 = sbr.rel target = $region156
            $region155: #{custom-call.2} parent=151 // pred_region
              // Predicated region
              $region168: #{custom-call.2} parent=155 // pred_check
                _
              $region169: #{custom-call.2} parent=155 // pred_check_branch
                %2262 = sbr.rel (0) target = $region171
              $region170: #{custom-call.2} parent=155 // pred_region
                %s2264 = ssub.s32 4, 1
                loop: start=0, step=1, limit=1
                $region172: #{custom-call.2} parent=170 // loop_pre_header
                  _
                $region173: #{custom-call.2} parent=170 // loop_header
                  %s2266 = sphi 0, %s2270
                  %p2267 = scmp.ge.s32.totalorder %s2266, 1
                  %s2271 = sphi %s2181, %s2181
                  %s2272 = sphi %s2242, %s2242
                $region174: #{custom-call.2} parent=170 // loop_header_branch
                  %2269 = sbr.rel (%p2267) target = $region178
                $region175: #{custom-call.2} parent=170 // loop_body
                  %v2273 = vld [vmem:[%s2271] sm:%s2264]
                  %2274 = vst [vmem:[%s2272] sm:%s2264] %v2273
                $region176: #{custom-call.2} parent=170 // loop_footer
                  %s2270 = sadd.s32 1, %s2266
                $region177: #{custom-call.2} parent=170 // loop_footer_branch
                  %2265 = sbr.rel target = $region173
                $region178: #{custom-call.2} parent=170 // loop_exit
                  _
              $region171: #{custom-call.2} parent=155 // pred_fallthru
                _
            $region156: #{custom-call.2} parent=151 // pred_fallthru
              _
            // Predicated region
            $region157: #{custom-call.2} parent=151 // pred_check
              _
            $region158: #{custom-call.2} parent=151 // pred_check_branch
              %2248 = sbr.rel (0) target = $region160
            $region159: #{custom-call.2} parent=151 // pred_region
              %s2250 = ssub.s32 4, 1
              loop: start=0, step=1, limit=1
              $region161: #{custom-call.2} parent=159 // loop_pre_header
                _
              $region162: #{custom-call.2} parent=159 // loop_header
                %s2252 = sphi 0, %s2256
                %p2253 = scmp.ge.s32.totalorder %s2252, 1
                %s2257 = sphi %s2181, %s2181
                %s2258 = sphi %s2242, %s2242
              $region163: #{custom-call.2} parent=159 // loop_header_branch
                %2255 = sbr.rel (%p2253) target = $region167
              $region164: #{custom-call.2} parent=159 // loop_body
                %v2259 = vld [vmem:[%s2257] sm:%s2250]
                %2260 = vst [vmem:[%s2258] sm:%s2250] %v2259
              $region165: #{custom-call.2} parent=159 // loop_footer
                %s2256 = sadd.s32 1, %s2252
              $region166: #{custom-call.2} parent=159 // loop_footer_branch
                %2251 = sbr.rel target = $region162
              $region167: #{custom-call.2} parent=159 // loop_exit
                _
            $region160: #{custom-call.2} parent=151 // pred_fallthru
              _
          $region152: #{custom-call.2} parent=147 // pred_fallthru
            _
          %2275 = vnop
        $region148: #{custom-call.2} parent=95 // pred_fallthru
          _
        %s2276 = smul.addr %s17, 32
        %s2277 = scalar_lea.vmem %s6, %s2276
        // Predicated region
        $region179: #{custom-call.2} parent=95 // pred_check
          _
        $region180: #{custom-call.2} parent=95 // pred_check_branch
          %2279 = sbr.rel (0) target = $region182
        $region181: #{custom-call.2} parent=95 // pred_region
          // Predicated region
          $region183: #{custom-call.2} parent=181 // pred_check
            _
          $region184: #{custom-call.2} parent=181 // pred_check_branch
            %2281 = sbr.rel (0) target = $region186
          $region185: #{custom-call.2} parent=181 // pred_region
            loop: start=0, step=1, limit=1
            $region187: #{custom-call.2} parent=185 // loop_pre_header
              _
            $region188: #{custom-call.2} parent=185 // loop_header
              %s2283 = sphi 0, %s2287
              %p2284 = scmp.ge.s32.totalorder %s2283, 1
              %s2288 = sphi %s2185, %s2185
              %s2289 = sphi %s2277, %s2277
            $region189: #{custom-call.2} parent=185 // loop_header_branch
              %2286 = sbr.rel (%p2284) target = $region193
            $region190: #{custom-call.2} parent=185 // loop_body
              %v2290 = vld [vmem:[%s2288] sm:$0xff]
              %2291 = vst [vmem:[%s2289] sm:$0xff] %v2290
              %v2292 = vld [vmem:[%s2288 + $0x8] sm:$0xff]
              %2293 = vst [vmem:[%s2289 + $0x8] sm:$0xff] %v2292
              %v2294 = vld [vmem:[%s2288 + $0x10] sm:$0xff]
              %2295 = vst [vmem:[%s2289 + $0x10] sm:$0xff] %v2294
              %v2296 = vld [vmem:[%s2288 + $0x18] sm:$0xff]
              %2297 = vst [vmem:[%s2289 + $0x18] sm:$0xff] %v2296
            $region191: #{custom-call.2} parent=185 // loop_footer
              %s2287 = sadd.s32 1, %s2283
            $region192: #{custom-call.2} parent=185 // loop_footer_branch
              %2282 = sbr.rel target = $region188
            $region193: #{custom-call.2} parent=185 // loop_exit
              _
          $region186: #{custom-call.2} parent=181 // pred_fallthru
            _
          // Predicated region
          $region194: #{custom-call.2} parent=181 // pred_check
            _
          $region195: #{custom-call.2} parent=181 // pred_check_branch
            %2299 = sbr.rel target = $region197
          $region196: #{custom-call.2} parent=181 // pred_region
            _
          $region197: #{custom-call.2} parent=181 // pred_fallthru
            _
        $region182: #{custom-call.2} parent=95 // pred_fallthru
          _
        %2300 = vnop
        %s2301 = smul.addr %s17, 32
        %s2302 = scalar_lea.vmem %s7, %s2301
        // Predicated region
        $region198: #{custom-call.2} parent=95 // pred_check
          _
        $region199: #{custom-call.2} parent=95 // pred_check_branch
          %2304 = sbr.rel (0) target = $region201
        $region200: #{custom-call.2} parent=95 // pred_region
          // Predicated region
          $region202: #{custom-call.2} parent=200 // pred_check
            _
          $region203: #{custom-call.2} parent=200 // pred_check_branch
            %2306 = sbr.rel (0) target = $region205
          $region204: #{custom-call.2} parent=200 // pred_region
            loop: start=0, step=1, limit=1
            $region206: #{custom-call.2} parent=204 // loop_pre_header
              _
            $region207: #{custom-call.2} parent=204 // loop_header
              %s2308 = sphi 0, %s2312
              %p2309 = scmp.ge.s32.totalorder %s2308, 1
              %s2313 = sphi %s2189, %s2189
              %s2314 = sphi %s2302, %s2302
            $region208: #{custom-call.2} parent=204 // loop_header_branch
              %2311 = sbr.rel (%p2309) target = $region212
            $region209: #{custom-call.2} parent=204 // loop_body
              %v2315 = vld [vmem:[%s2313] sm:$0xff]
              %2316 = vst [vmem:[%s2314] sm:$0xff] %v2315
              %v2317 = vld [vmem:[%s2313 + $0x8] sm:$0xff]
              %2318 = vst [vmem:[%s2314 + $0x8] sm:$0xff] %v2317
              %v2319 = vld [vmem:[%s2313 + $0x10] sm:$0xff]
              %2320 = vst [vmem:[%s2314 + $0x10] sm:$0xff] %v2319
              %v2321 = vld [vmem:[%s2313 + $0x18] sm:$0xff]
              %2322 = vst [vmem:[%s2314 + $0x18] sm:$0xff] %v2321
            $region210: #{custom-call.2} parent=204 // loop_footer
              %s2312 = sadd.s32 1, %s2308
            $region211: #{custom-call.2} parent=204 // loop_footer_branch
              %2307 = sbr.rel target = $region207
            $region212: #{custom-call.2} parent=204 // loop_exit
              _
          $region205: #{custom-call.2} parent=200 // pred_fallthru
            _
          // Predicated region
          $region213: #{custom-call.2} parent=200 // pred_check
            _
          $region214: #{custom-call.2} parent=200 // pred_check_branch
            %2324 = sbr.rel target = $region216
          $region215: #{custom-call.2} parent=200 // pred_region
            _
          $region216: #{custom-call.2} parent=200 // pred_fallthru
            _
        $region201: #{custom-call.2} parent=95 // pred_fallthru
          _
        %2325 = vnop
        %s2326 = smul.addr %s17, 32
        %s2327 = scalar_lea.vmem %s8, %s2326
        // Predicated region
        $region217: #{custom-call.2} parent=95 // pred_check
          _
        $region218: #{custom-call.2} parent=95 // pred_check_branch
          %2329 = sbr.rel (0) target = $region220
        $region219: #{custom-call.2} parent=95 // pred_region
          // Predicated region
          $region221: #{custom-call.2} parent=219 // pred_check
            _
          $region222: #{custom-call.2} parent=219 // pred_check_branch
            %2331 = sbr.rel (0) target = $region224
          $region223: #{custom-call.2} parent=219 // pred_region
            loop: start=0, step=1, limit=1
            $region225: #{custom-call.2} parent=223 // loop_pre_header
              _
            $region226: #{custom-call.2} parent=223 // loop_header
              %s2333 = sphi 0, %s2337
              %p2334 = scmp.ge.s32.totalorder %s2333, 1
              %s2338 = sphi %s2193, %s2193
              %s2339 = sphi %s2327, %s2327
            $region227: #{custom-call.2} parent=223 // loop_header_branch
              %2336 = sbr.rel (%p2334) target = $region231
            $region228: #{custom-call.2} parent=223 // loop_body
              %v2340 = vld [vmem:[%s2338] sm:$0xff]
              %2341 = vst [vmem:[%s2339] sm:$0xff] %v2340
              %v2342 = vld [vmem:[%s2338 + $0x8] sm:$0xff]
              %2343 = vst [vmem:[%s2339 + $0x8] sm:$0xff] %v2342
              %v2344 = vld [vmem:[%s2338 + $0x10] sm:$0xff]
              %2345 = vst [vmem:[%s2339 + $0x10] sm:$0xff] %v2344
              %v2346 = vld [vmem:[%s2338 + $0x18] sm:$0xff]
              %2347 = vst [vmem:[%s2339 + $0x18] sm:$0xff] %v2346
            $region229: #{custom-call.2} parent=223 // loop_footer
              %s2337 = sadd.s32 1, %s2333
            $region230: #{custom-call.2} parent=223 // loop_footer_branch
              %2332 = sbr.rel target = $region226
            $region231: #{custom-call.2} parent=223 // loop_exit
              _
          $region224: #{custom-call.2} parent=219 // pred_fallthru
            _
          // Predicated region
          $region232: #{custom-call.2} parent=219 // pred_check
            _
          $region233: #{custom-call.2} parent=219 // pred_check_branch
            %2349 = sbr.rel target = $region235
          $region234: #{custom-call.2} parent=219 // pred_region
            _
          $region235: #{custom-call.2} parent=219 // pred_fallthru
            _
        $region220: #{custom-call.2} parent=95 // pred_fallthru
          _
        %2350 = vnop
        %s2351 = smul.addr %s17, 32
        %s2352 = scalar_lea.vmem %s9, %s2351
        // Predicated region
        $region236: #{custom-call.2} parent=95 // pred_check
          _
        $region237: #{custom-call.2} parent=95 // pred_check_branch
          %2354 = sbr.rel (0) target = $region239
        $region238: #{custom-call.2} parent=95 // pred_region
          // Predicated region
          $region240: #{custom-call.2} parent=238 // pred_check
            _
          $region241: #{custom-call.2} parent=238 // pred_check_branch
            %2356 = sbr.rel (0) target = $region243
          $region242: #{custom-call.2} parent=238 // pred_region
            loop: start=0, step=1, limit=1
            $region244: #{custom-call.2} parent=242 // loop_pre_header
              _
            $region245: #{custom-call.2} parent=242 // loop_header
              %s2358 = sphi 0, %s2362
              %p2359 = scmp.ge.s32.totalorder %s2358, 1
              %s2363 = sphi %s2197, %s2197
              %s2364 = sphi %s2352, %s2352
            $region246: #{custom-call.2} parent=242 // loop_header_branch
              %2361 = sbr.rel (%p2359) target = $region250
            $region247: #{custom-call.2} parent=242 // loop_body
              %v2365 = vld [vmem:[%s2363] sm:$0xff]
              %2366 = vst [vmem:[%s2364] sm:$0xff] %v2365
              %v2367 = vld [vmem:[%s2363 + $0x8] sm:$0xff]
              %2368 = vst [vmem:[%s2364 + $0x8] sm:$0xff] %v2367
              %v2369 = vld [vmem:[%s2363 + $0x10] sm:$0xff]
              %2370 = vst [vmem:[%s2364 + $0x10] sm:$0xff] %v2369
              %v2371 = vld [vmem:[%s2363 + $0x18] sm:$0xff]
              %2372 = vst [vmem:[%s2364 + $0x18] sm:$0xff] %v2371
            $region248: #{custom-call.2} parent=242 // loop_footer
              %s2362 = sadd.s32 1, %s2358
            $region249: #{custom-call.2} parent=242 // loop_footer_branch
              %2357 = sbr.rel target = $region245
            $region250: #{custom-call.2} parent=242 // loop_exit
              _
          $region243: #{custom-call.2} parent=238 // pred_fallthru
            _
          // Predicated region
          $region251: #{custom-call.2} parent=238 // pred_check
            _
          $region252: #{custom-call.2} parent=238 // pred_check_branch
            %2374 = sbr.rel target = $region254
          $region253: #{custom-call.2} parent=238 // pred_region
            _
          $region254: #{custom-call.2} parent=238 // pred_fallthru
            _
        $region239: #{custom-call.2} parent=95 // pred_fallthru
          _
        %2375 = vnop
      $region96: #{custom-call.2} parent=5 // pred_fallthru
        _
      %p2376 = scmp.le.s32.totalorder 2, %s12
      // Predicated region
      $region255: #{custom-call.2} parent=5 // pred_check
        %p2377 = pneg %p2376
      $region256: #{custom-call.2} parent=5 // pred_check_branch
        %2379 = sbr.rel (%p2377) target = $region258
      $region257: #{custom-call.2} parent=5 // pred_region
        %s2380 = ssub.s32 %s12, 2
        // Predicated region
        $region259: #{custom-call.2} parent=257 // pred_check
          %p2381 = pneg %p43
        $region260: #{custom-call.2} parent=257 // pred_check_branch
          %2383 = sbr.rel (%p2381) target = $region262
        $region261: #{custom-call.2} parent=257 // pred_region
          %s2384 = sand.u32 %s28, 1
          %s2385 = sand.u32 %s28, 1
          %s2386 = smul.addr %s2385, 2
          %s2387 = scalar_lea.vmem [#allocation5], %s2386
        $region262: #{custom-call.2} parent=257 // pred_fallthru
          _
        // Predicated region
        $region263: #{custom-call.2} parent=257 // pred_check
          %p2388 = pneg %p71
        $region264: #{custom-call.2} parent=257 // pred_check_branch
          %2390 = sbr.rel (%p2388) target = $region266
        $region265: #{custom-call.2} parent=257 // pred_region
          %s2391 = sand.u32 %s56, 1
          %s2392 = sand.u32 %s56, 1
          %s2393 = smul.addr %s2392, 2
          %s2394 = scalar_lea.vmem [#allocation7], %s2393
        $region266: #{custom-call.2} parent=257 // pred_fallthru
          _
        %s2395 = sand.u32 %s18, 1
        %s2396 = sand.u32 %s18, 1
        %s2397 = smul.addr %s2396, 32
        %s2398 = scalar_lea.vmem [#allocation8], %s2397
        %s2399 = sand.u32 %s18, 1
        %s2400 = sand.u32 %s18, 1
        %s2401 = smul.addr %s2400, 32
        %s2402 = scalar_lea.vmem [#allocation9], %s2401
        %s2403 = sand.u32 %s18, 1
        %s2404 = sand.u32 %s18, 1
        %s2405 = smul.addr %s2404, 32
        %s2406 = scalar_lea.vmem [#allocation10], %s2405
        %s2407 = sand.u32 %s18, 1
        %s2408 = sand.u32 %s18, 1
        %s2409 = smul.addr %s2408, 32
        %s2410 = scalar_lea.vmem [#allocation11], %s2409
      $region258: #{custom-call.2} parent=5 // pred_fallthru
        _
    $region6: #{custom-call.2} parent=1 // loop_footer
      %s16 = sadd.s32 1, %s12
    $region7: #{custom-call.2} parent=1 // loop_footer_branch
      %11 = sbr.rel target = $region3
    $region8: #{custom-call.2} parent=1 // loop_exit
      _

// kernel: mutual_information_gradient_estimator.3
$region0: #{mutual_information_gradient_estimator.3}
  #allocation0 [shape = 'u32[]', space=smem, size = 0x4, offset = 0x4, fixed_abs, tag = 'smem constant byte address 0x4 - core index']
  #allocation1 [shape = 'u32[72,128]{1,0:T(1,128)}', space=vmem, size = 0x9000, scoped, tag = 'internal scratch']
  %s0 = inlined_call_operand.vmem [shape: f32[64,64], index: 0, kind: input, shape index: {}]
  %s1 = inlined_call_operand.vmem [shape: f32[64,64], index: 1, kind: input, shape index: {}]
  %s2 = inlined_call_operand.vmem [shape: f32[64,64], index: 2, kind: input, shape index: {}]
  %s3 = inlined_call_operand.vmem [shape: f32[64,64], index: 3, kind: input, shape index: {}]
  %s4 = inlined_call_operand.vmem [shape: f32[64,64], index: 4, kind: input, shape index: {}]
  %s5 = inlined_call_operand.vmem [shape: f32[2,64,64], index: 5, kind: input, shape index: {}]
  %s6 = inlined_call_operand.vmem [shape: f32[2,64,1], index: 6, kind: input, shape index: {}]
  %s7 = inlined_call_operand.vmem [shape: f32[8,128], index: 7, kind: output, shape index: {}]
  %s8 = sld [smem:[#allocation0]]
  $region38: #{mutual_information_gradient_estimator.3} parent=0
    _
  %s10 = ssub.s32 1, %s8
  %s11 = scalar_select 0, %s10, %s8
  // Predicated region
  $region2: #{mutual_information_gradient_estimator.3} parent=0 // pred_check
    _
  $region3: #{mutual_information_gradient_estimator.3} parent=0 // pred_check_branch
    %13 = sbr.rel (0) target = $region5
  $region4: #{mutual_information_gradient_estimator.3} parent=0 // pred_region
    _
  $region5: #{mutual_information_gradient_estimator.3} parent=0 // pred_fallthru
    _
  // Predicated region
  $region6: #{mutual_information_gradient_estimator.3} parent=0 // pred_check
    _
  $region7: #{mutual_information_gradient_estimator.3} parent=0 // pred_check_branch
    %15 = sbr.rel (0) target = $region9
  $region8: #{mutual_information_gradient_estimator.3} parent=0 // pred_region
    _
  $region9: #{mutual_information_gradient_estimator.3} parent=0 // pred_fallthru
    _
  // Predicated region
  $region10: #{mutual_information_gradient_estimator.3} parent=0 // pred_check
    _
  $region11: #{mutual_information_gradient_estimator.3} parent=0 // pred_check_branch
    %17 = sbr.rel (0) target = $region13
  $region12: #{mutual_information_gradient_estimator.3} parent=0 // pred_region
    _
  $region13: #{mutual_information_gradient_estimator.3} parent=0 // pred_fallthru
    _
  // Predicated region
  $region14: #{mutual_information_gradient_estimator.3} parent=0 // pred_check
    _
  $region15: #{mutual_information_gradient_estimator.3} parent=0 // pred_check_branch
    %19 = sbr.rel (0) target = $region17
  $region16: #{mutual_information_gradient_estimator.3} parent=0 // pred_region
    _
  $region17: #{mutual_information_gradient_estimator.3} parent=0 // pred_fallthru
    _
  // Predicated region
  $region18: #{mutual_information_gradient_estimator.3} parent=0 // pred_check
    _
  $region19: #{mutual_information_gradient_estimator.3} parent=0 // pred_check_branch
    %21 = sbr.rel (0) target = $region21
  $region20: #{mutual_information_gradient_estimator.3} parent=0 // pred_region
    _
  $region21: #{mutual_information_gradient_estimator.3} parent=0 // pred_fallthru
    _
  // Predicated region
  $region22: #{mutual_information_gradient_estimator.3} parent=0 // pred_check
    _
  $region23: #{mutual_information_gradient_estimator.3} parent=0 // pred_check_branch
    %23 = sbr.rel (0) target = $region25
  $region24: #{mutual_information_gradient_estimator.3} parent=0 // pred_region
    _
  $region25: #{mutual_information_gradient_estimator.3} parent=0 // pred_fallthru
    _
  // Predicated region
  $region26: #{mutual_information_gradient_estimator.3} parent=0 // pred_check
    _
  $region27: #{mutual_information_gradient_estimator.3} parent=0 // pred_check_branch
    %25 = sbr.rel (0) target = $region29
  $region28: #{mutual_information_gradient_estimator.3} parent=0 // pred_region
    _
  $region29: #{mutual_information_gradient_estimator.3} parent=0 // pred_fallthru
    _
  %v26 = vld [vmem:[%s0] sm:$0xff]
  %v27 = vld [vmem:[%s0 + $0x8] sm:$0xff]
  %v28 = vld [vmem:[%s0 + $0x10] sm:$0xff]
  %v29 = vld [vmem:[%s0 + $0x18] sm:$0xff]
  %v30 = vld [vmem:[%s0 + $0x20] sm:$0xff]
  %v31 = vld [vmem:[%s0 + $0x28] sm:$0xff]
  %v32 = vld [vmem:[%s0 + $0x30] sm:$0xff]
  %v33 = vld [vmem:[%s0 + $0x38] sm:$0xff]
  %v34 = vld [vmem:[%s1] sm:$0xff]
  %v35 = vld [vmem:[%s1 + $0x8] sm:$0xff]
  %v36 = vld [vmem:[%s1 + $0x10] sm:$0xff]
  %v37 = vld [vmem:[%s1 + $0x18] sm:$0xff]
  %v38 = vld [vmem:[%s1 + $0x20] sm:$0xff]
  %v39 = vld [vmem:[%s1 + $0x28] sm:$0xff]
  %v40 = vld [vmem:[%s1 + $0x30] sm:$0xff]
  %v41 = vld [vmem:[%s1 + $0x38] sm:$0xff]
  %v42 = vld [vmem:[%s5] sm:$0xff]
  %v43 = vld [vmem:[%s5 + $0x8] sm:$0xff]
  %v44 = vld [vmem:[%s5 + $0x10] sm:$0xff]
  %v45 = vld [vmem:[%s5 + $0x18] sm:$0xff]
  %v46 = vld [vmem:[%s5 + $0x20] sm:$0xff]
  %v47 = vld [vmem:[%s5 + $0x28] sm:$0xff]
  %v48 = vld [vmem:[%s5 + $0x30] sm:$0xff]
  %v49 = vld [vmem:[%s5 + $0x38] sm:$0xff]
  %s50 = scalar_lea.vmem %s5, 64
  %v51 = vld [vmem:[%s50] sm:$0xff]
  %v52 = vld [vmem:[%s50 + $0x8] sm:$0xff]
  %v53 = vld [vmem:[%s50 + $0x10] sm:$0xff]
  %v54 = vld [vmem:[%s50 + $0x18] sm:$0xff]
  %v55 = vld [vmem:[%s50 + $0x20] sm:$0xff]
  %v56 = vld [vmem:[%s50 + $0x28] sm:$0xff]
  %v57 = vld [vmem:[%s50 + $0x30] sm:$0xff]
  %v58 = vld [vmem:[%s50 + $0x38] sm:$0xff]
  %v59 = vld [vmem:[%s6] sm:$0xff]
  %v60 = vld [vmem:[%s6 + $0x8] sm:$0xff]
  %v61 = vld [vmem:[%s6 + $0x10] sm:$0xff]
  %v62 = vld [vmem:[%s6 + $0x18] sm:$0xff]
  %v63 = vld [vmem:[%s6 + $0x20] sm:$0xff]
  %v64 = vld [vmem:[%s6 + $0x28] sm:$0xff]
  %v65 = vld [vmem:[%s6 + $0x30] sm:$0xff]
  %v66 = vld [vmem:[%s6 + $0x38] sm:$0xff]
  %s67 = scalar_lea.vmem %s6, 64
  %v68 = vld [vmem:[%s67] sm:$0xff]
  %v69 = vld [vmem:[%s67 + $0x8] sm:$0xff]
  %v70 = vld [vmem:[%s67 + $0x10] sm:$0xff]
  %v71 = vld [vmem:[%s67 + $0x18] sm:$0xff]
  %v72 = vld [vmem:[%s67 + $0x20] sm:$0xff]
  %v73 = vld [vmem:[%s67 + $0x28] sm:$0xff]
  %v74 = vld [vmem:[%s67 + $0x30] sm:$0xff]
  %v75 = vld [vmem:[%s67 + $0x38] sm:$0xff]
  %76 = vxpose.xlu0.b32.start [1/16] %v42, 128
  %77 = vxpose.xlu0.b32.cont [2/16] %v43, 128
  %78 = vxpose.xlu0.b32.cont [3/16] %v44, 128
  %79 = vxpose.xlu0.b32.cont [4/16] %v45, 128
  %80 = vxpose.xlu0.b32.cont [5/16] %v46, 128
  %81 = vxpose.xlu0.b32.cont [6/16] %v47, 128
  %82 = vxpose.xlu0.b32.cont [7/16] %v48, 128
  %83 = vxpose.xlu0.b32.cont [8/16] %v49, 128
  %84 = vxpose.xlu0.b32.cont [9/16] 0.0, 128
  %85 = vxpose.xlu0.b32.cont [10/16] 0.0, 128
  %86 = vxpose.xlu0.b32.cont [11/16] 0.0, 128
  %87 = vxpose.xlu0.b32.cont [12/16] 0.0, 128
  %88 = vxpose.xlu0.b32.cont [13/16] 0.0, 128
  %89 = vxpose.xlu0.b32.cont [14/16] 0.0, 128
  %90 = vxpose.xlu0.b32.cont [15/16] 0.0, 128
  %91 = vxpose.xlu0.b32.end [16/16] 0.0, 128
  %v92 = vpop.trf.xlu0
  %v93 = vpop.trf.xlu0
  %v94 = vpop.trf.xlu0
  %v95 = vpop.trf.xlu0
  %v96 = vpop.trf.xlu0
  %v97 = vpop.trf.xlu0
  %v98 = vpop.trf.xlu0
  %v99 = vpop.trf.xlu0
  %v100 = vpop.trf.xlu0
  %v101 = vpop.trf.xlu0
  %v102 = vpop.trf.xlu0
  %v103 = vpop.trf.xlu0
  %v104 = vpop.trf.xlu0
  %v105 = vpop.trf.xlu0
  %v106 = vpop.trf.xlu0
  %v107 = vpop.trf.xlu0
  %vm108 = vcmask 523264
  %v110 = vsel %vm108, %v92, 0
  %v113 = vsel %vm108, %v93, 0
  %v116 = vsel %vm108, %v94, 0
  %v119 = vsel %vm108, %v95, 0
  %v122 = vsel %vm108, %v96, 0
  %v125 = vsel %vm108, %v97, 0
  %v128 = vsel %vm108, %v98, 0
  %v131 = vsel %vm108, %v99, 0
  %133 = vmatpush.msra.mxu0 0.0
  %134 = vmatpush.msra.mxu0 0.0
  %135 = vmatpush.msra.mxu0 0.0
  %136 = vmatpush.msra.mxu0 0.0
  %137 = vmatpush.msra.mxu0 0.0
  %138 = vmatpush.msra.mxu0 0.0
  %139 = vmatpush.msra.mxu0 0.0
  %140 = vmatpush.msra.mxu0 0.0
  %141 = vmatpush.msra.mxu0 %v33
  %142 = vmatpush.msra.mxu0 %v32
  %143 = vmatpush.msra.mxu0 %v31
  %144 = vmatpush.msra.mxu0 %v30
  %145 = vmatpush.msra.mxu0 %v29
  %146 = vmatpush.msra.mxu0 %v28
  %147 = vmatpush.msra.mxu0 %v27
  %148 = vmatpush.msra.mxu0 %v26
  %149 = vmatmul.f32.gmra.mxu0 %v110
  %v150 = vpop.f32.mrf.mxu0
  %v151 = vadd.f32 0.0, %v150
  %152 = vmatmul.f32.gmra.mxu0 %v113
  %v153 = vpop.f32.mrf.mxu0
  %v154 = vadd.f32 0.0, %v153
  %155 = vmatmul.f32.gmra.mxu0 %v116
  %v156 = vpop.f32.mrf.mxu0
  %v157 = vadd.f32 0.0, %v156
  %158 = vmatmul.f32.gmra.mxu0 %v119
  %v159 = vpop.f32.mrf.mxu0
  %v160 = vadd.f32 0.0, %v159
  %161 = vmatmul.f32.gmra.mxu0 %v122
  %v162 = vpop.f32.mrf.mxu0
  %v163 = vadd.f32 0.0, %v162
  %164 = vmatmul.f32.gmra.mxu0 %v125
  %v165 = vpop.f32.mrf.mxu0
  %v166 = vadd.f32 0.0, %v165
  %167 = vmatmul.f32.gmra.mxu0 %v128
  %v168 = vpop.f32.mrf.mxu0
  %v169 = vadd.f32 0.0, %v168
  %170 = vmatmul.f32.gmra.mxu0 %v131
  %v171 = vpop.f32.mrf.mxu0
  %v172 = vadd.f32 0.0, %v171
  %173 = vdwg.mxu0
  %v174 = vld [vmem:[%s2] sm:$0xff]
  %v175 = vld [vmem:[%s2 + $0x8] sm:$0xff]
  %v176 = vld [vmem:[%s2 + $0x10] sm:$0xff]
  %v177 = vld [vmem:[%s2 + $0x18] sm:$0xff]
  %v178 = vld [vmem:[%s2 + $0x20] sm:$0xff]
  %v179 = vld [vmem:[%s2 + $0x28] sm:$0xff]
  %v180 = vld [vmem:[%s2 + $0x30] sm:$0xff]
  %v181 = vld [vmem:[%s2 + $0x38] sm:$0xff]
  %182 = vmatpush.msra.mxu0 0.0
  %183 = vmatpush.msra.mxu0 0.0
  %184 = vmatpush.msra.mxu0 0.0
  %185 = vmatpush.msra.mxu0 0.0
  %186 = vmatpush.msra.mxu0 0.0
  %187 = vmatpush.msra.mxu0 0.0
  %188 = vmatpush.msra.mxu0 0.0
  %189 = vmatpush.msra.mxu0 0.0
  %190 = vmatpush.msra.mxu0 %v181
  %191 = vmatpush.msra.mxu0 %v180
  %192 = vmatpush.msra.mxu0 %v179
  %193 = vmatpush.msra.mxu0 %v178
  %194 = vmatpush.msra.mxu0 %v177
  %195 = vmatpush.msra.mxu0 %v176
  %196 = vmatpush.msra.mxu0 %v175
  %197 = vmatpush.msra.mxu0 %v174
  %198 = vmatmul.f32.gmra.mxu0 %v110
  %v199 = vpop.f32.mrf.mxu0
  %v200 = vadd.f32 0.0, %v199
  %201 = vmatmul.f32.gmra.mxu0 %v113
  %v202 = vpop.f32.mrf.mxu0
  %v203 = vadd.f32 0.0, %v202
  %204 = vmatmul.f32.gmra.mxu0 %v116
  %v205 = vpop.f32.mrf.mxu0
  %v206 = vadd.f32 0.0, %v205
  %207 = vmatmul.f32.gmra.mxu0 %v119
  %v208 = vpop.f32.mrf.mxu0
  %v209 = vadd.f32 0.0, %v208
  %210 = vmatmul.f32.gmra.mxu0 %v122
  %v211 = vpop.f32.mrf.mxu0
  %v212 = vadd.f32 0.0, %v211
  %213 = vmatmul.f32.gmra.mxu0 %v125
  %v214 = vpop.f32.mrf.mxu0
  %v215 = vadd.f32 0.0, %v214
  %216 = vmatmul.f32.gmra.mxu0 %v128
  %v217 = vpop.f32.mrf.mxu0
  %v218 = vadd.f32 0.0, %v217
  %219 = vmatmul.f32.gmra.mxu0 %v131
  %v220 = vpop.f32.mrf.mxu0
  %v221 = vadd.f32 0.0, %v220
  %222 = vdwg.mxu0
  %v223 = vmul.f32 %v151, %v200
  %v224 = vmul.f32 %v154, %v203
  %v225 = vmul.f32 %v157, %v206
  %v226 = vmul.f32 %v160, %v209
  %v227 = vmul.f32 %v163, %v212
  %v228 = vmul.f32 %v166, %v215
  %v229 = vmul.f32 %v169, %v218
  %v230 = vmul.f32 %v172, %v221
  %v231 = vsel %vm108, %v223, 0.0
  %232 = vadd.xlane.f32.xlu0 %v231
  %v233 = vpop.xlane.xlu0 %232
  %v234 = vsel %vm108, %v224, 0.0
  %235 = vadd.xlane.f32.xlu0 %v234
  %v236 = vpop.xlane.xlu0 %235
  %v237 = vsel %vm108, %v225, 0.0
  %238 = vadd.xlane.f32.xlu0 %v237
  %v239 = vpop.xlane.xlu0 %238
  %v240 = vsel %vm108, %v226, 0.0
  %241 = vadd.xlane.f32.xlu0 %v240
  %v242 = vpop.xlane.xlu0 %241
  %v243 = vsel %vm108, %v227, 0.0
  %244 = vadd.xlane.f32.xlu0 %v243
  %v245 = vpop.xlane.xlu0 %244
  %v246 = vsel %vm108, %v228, 0.0
  %247 = vadd.xlane.f32.xlu0 %v246
  %v248 = vpop.xlane.xlu0 %247
  %v249 = vsel %vm108, %v229, 0.0
  %250 = vadd.xlane.f32.xlu0 %v249
  %v251 = vpop.xlane.xlu0 %250
  %v252 = vsel %vm108, %v230, 0.0
  %253 = vadd.xlane.f32.xlu0 %v252
  %v254 = vpop.xlane.xlu0 %253
  %255 = vmatpush.msra.mxu0 0.0
  %256 = vmatpush.msra.mxu0 0.0
  %257 = vmatpush.msra.mxu0 0.0
  %258 = vmatpush.msra.mxu0 0.0
  %259 = vmatpush.msra.mxu0 0.0
  %260 = vmatpush.msra.mxu0 0.0
  %261 = vmatpush.msra.mxu0 0.0
  %262 = vmatpush.msra.mxu0 0.0
  %263 = vmatpush.msra.mxu0 %v41
  %264 = vmatpush.msra.mxu0 %v40
  %265 = vmatpush.msra.mxu0 %v39
  %266 = vmatpush.msra.mxu0 %v38
  %267 = vmatpush.msra.mxu0 %v37
  %268 = vmatpush.msra.mxu0 %v36
  %269 = vmatpush.msra.mxu0 %v35
  %270 = vmatpush.msra.mxu0 %v34
  %271 = vmatmul.f32.gmra.mxu0 %v110
  %v272 = vpop.f32.mrf.mxu0
  %v273 = vadd.f32 0.0, %v272
  %274 = vmatmul.f32.gmra.mxu0 %v113
  %v275 = vpop.f32.mrf.mxu0
  %v276 = vadd.f32 0.0, %v275
  %277 = vmatmul.f32.gmra.mxu0 %v116
  %v278 = vpop.f32.mrf.mxu0
  %v279 = vadd.f32 0.0, %v278
  %280 = vmatmul.f32.gmra.mxu0 %v119
  %v281 = vpop.f32.mrf.mxu0
  %v282 = vadd.f32 0.0, %v281
  %283 = vmatmul.f32.gmra.mxu0 %v122
  %v284 = vpop.f32.mrf.mxu0
  %v285 = vadd.f32 0.0, %v284
  %286 = vmatmul.f32.gmra.mxu0 %v125
  %v287 = vpop.f32.mrf.mxu0
  %v288 = vadd.f32 0.0, %v287
  %289 = vmatmul.f32.gmra.mxu0 %v128
  %v290 = vpop.f32.mrf.mxu0
  %v291 = vadd.f32 0.0, %v290
  %292 = vmatmul.f32.gmra.mxu0 %v131
  %v293 = vpop.f32.mrf.mxu0
  %v294 = vadd.f32 0.0, %v293
  %295 = vdwg.mxu0
  %v296 = vld [vmem:[%s3] sm:$0xff]
  %v297 = vld [vmem:[%s3 + $0x8] sm:$0xff]
  %v298 = vld [vmem:[%s3 + $0x10] sm:$0xff]
  %v299 = vld [vmem:[%s3 + $0x18] sm:$0xff]
  %v300 = vld [vmem:[%s3 + $0x20] sm:$0xff]
  %v301 = vld [vmem:[%s3 + $0x28] sm:$0xff]
  %v302 = vld [vmem:[%s3 + $0x30] sm:$0xff]
  %v303 = vld [vmem:[%s3 + $0x38] sm:$0xff]
  %304 = vmatpush.msra.mxu0 0.0
  %305 = vmatpush.msra.mxu0 0.0
  %306 = vmatpush.msra.mxu0 0.0
  %307 = vmatpush.msra.mxu0 0.0
  %308 = vmatpush.msra.mxu0 0.0
  %309 = vmatpush.msra.mxu0 0.0
  %310 = vmatpush.msra.mxu0 0.0
  %311 = vmatpush.msra.mxu0 0.0
  %312 = vmatpush.msra.mxu0 %v303
  %313 = vmatpush.msra.mxu0 %v302
  %314 = vmatpush.msra.mxu0 %v301
  %315 = vmatpush.msra.mxu0 %v300
  %316 = vmatpush.msra.mxu0 %v299
  %317 = vmatpush.msra.mxu0 %v298
  %318 = vmatpush.msra.mxu0 %v297
  %319 = vmatpush.msra.mxu0 %v296
  %320 = vmatmul.f32.gmra.mxu0 %v110
  %v321 = vpop.f32.mrf.mxu0
  %v322 = vadd.f32 0.0, %v321
  %323 = vmatmul.f32.gmra.mxu0 %v113
  %v324 = vpop.f32.mrf.mxu0
  %v325 = vadd.f32 0.0, %v324
  %326 = vmatmul.f32.gmra.mxu0 %v116
  %v327 = vpop.f32.mrf.mxu0
  %v328 = vadd.f32 0.0, %v327
  %329 = vmatmul.f32.gmra.mxu0 %v119
  %v330 = vpop.f32.mrf.mxu0
  %v331 = vadd.f32 0.0, %v330
  %332 = vmatmul.f32.gmra.mxu0 %v122
  %v333 = vpop.f32.mrf.mxu0
  %v334 = vadd.f32 0.0, %v333
  %335 = vmatmul.f32.gmra.mxu0 %v125
  %v336 = vpop.f32.mrf.mxu0
  %v337 = vadd.f32 0.0, %v336
  %338 = vmatmul.f32.gmra.mxu0 %v128
  %v339 = vpop.f32.mrf.mxu0
  %v340 = vadd.f32 0.0, %v339
  %341 = vmatmul.f32.gmra.mxu0 %v131
  %v342 = vpop.f32.mrf.mxu0
  %v343 = vadd.f32 0.0, %v342
  %344 = vdwg.mxu0
  %v345 = vmul.f32 %v273, %v322
  %v346 = vmul.f32 %v276, %v325
  %v347 = vmul.f32 %v279, %v328
  %v348 = vmul.f32 %v282, %v331
  %v349 = vmul.f32 %v285, %v334
  %v350 = vmul.f32 %v288, %v337
  %v351 = vmul.f32 %v291, %v340
  %v352 = vmul.f32 %v294, %v343
  %v353 = vsel %vm108, %v345, 0.0
  %354 = vadd.xlane.f32.xlu0 %v353
  %v355 = vpop.xlane.xlu0 %354
  %v356 = vsel %vm108, %v346, 0.0
  %357 = vadd.xlane.f32.xlu0 %v356
  %v358 = vpop.xlane.xlu0 %357
  %v359 = vsel %vm108, %v347, 0.0
  %360 = vadd.xlane.f32.xlu0 %v359
  %v361 = vpop.xlane.xlu0 %360
  %v362 = vsel %vm108, %v348, 0.0
  %363 = vadd.xlane.f32.xlu0 %v362
  %v364 = vpop.xlane.xlu0 %363
  %v365 = vsel %vm108, %v349, 0.0
  %366 = vadd.xlane.f32.xlu0 %v365
  %v367 = vpop.xlane.xlu0 %366
  %v368 = vsel %vm108, %v350, 0.0
  %369 = vadd.xlane.f32.xlu0 %v368
  %v370 = vpop.xlane.xlu0 %369
  %v371 = vsel %vm108, %v351, 0.0
  %372 = vadd.xlane.f32.xlu0 %v371
  %v373 = vpop.xlane.xlu0 %372
  %v374 = vsel %vm108, %v352, 0.0
  %375 = vadd.xlane.f32.xlu0 %v374
  %v376 = vpop.xlane.xlu0 %375
  %v377 = vadd.f32 %v233, %v355
  %v378 = vadd.f32 %v236, %v358
  %v379 = vadd.f32 %v239, %v361
  %v380 = vadd.f32 %v242, %v364
  %v381 = vadd.f32 %v245, %v367
  %v382 = vadd.f32 %v248, %v370
  %v383 = vadd.f32 %v251, %v373
  %v384 = vadd.f32 %v254, %v376
  %385 = vxpose.xlu0.b32.start [1/16] %v51, 128
  %386 = vxpose.xlu0.b32.cont [2/16] %v52, 128
  %387 = vxpose.xlu0.b32.cont [3/16] %v53, 128
  %388 = vxpose.xlu0.b32.cont [4/16] %v54, 128
  %389 = vxpose.xlu0.b32.cont [5/16] %v55, 128
  %390 = vxpose.xlu0.b32.cont [6/16] %v56, 128
  %391 = vxpose.xlu0.b32.cont [7/16] %v57, 128
  %392 = vxpose.xlu0.b32.cont [8/16] %v58, 128
  %393 = vxpose.xlu0.b32.cont [9/16] 0.0, 128
  %394 = vxpose.xlu0.b32.cont [10/16] 0.0, 128
  %395 = vxpose.xlu0.b32.cont [11/16] 0.0, 128
  %396 = vxpose.xlu0.b32.cont [12/16] 0.0, 128
  %397 = vxpose.xlu0.b32.cont [13/16] 0.0, 128
  %398 = vxpose.xlu0.b32.cont [14/16] 0.0, 128
  %399 = vxpose.xlu0.b32.cont [15/16] 0.0, 128
  %400 = vxpose.xlu0.b32.end [16/16] 0.0, 128
  %v401 = vpop.trf.xlu0
  %v402 = vpop.trf.xlu0
  %v403 = vpop.trf.xlu0
  %v404 = vpop.trf.xlu0
  %v405 = vpop.trf.xlu0
  %v406 = vpop.trf.xlu0
  %v407 = vpop.trf.xlu0
  %v408 = vpop.trf.xlu0
  %v409 = vpop.trf.xlu0
  %v410 = vpop.trf.xlu0
  %v411 = vpop.trf.xlu0
  %v412 = vpop.trf.xlu0
  %v413 = vpop.trf.xlu0
  %v414 = vpop.trf.xlu0
  %v415 = vpop.trf.xlu0
  %v416 = vpop.trf.xlu0
  %v418 = vsel %vm108, %v401, 0
  %v421 = vsel %vm108, %v402, 0
  %v424 = vsel %vm108, %v403, 0
  %v427 = vsel %vm108, %v404, 0
  %v430 = vsel %vm108, %v405, 0
  %v433 = vsel %vm108, %v406, 0
  %v436 = vsel %vm108, %v407, 0
  %v439 = vsel %vm108, %v408, 0
  %441 = vmatpush.msra.mxu0 0.0
  %442 = vmatpush.msra.mxu0 0.0
  %443 = vmatpush.msra.mxu0 0.0
  %444 = vmatpush.msra.mxu0 0.0
  %445 = vmatpush.msra.mxu0 0.0
  %446 = vmatpush.msra.mxu0 0.0
  %447 = vmatpush.msra.mxu0 0.0
  %448 = vmatpush.msra.mxu0 0.0
  %449 = vmatpush.msra.mxu0 %v41
  %450 = vmatpush.msra.mxu0 %v40
  %451 = vmatpush.msra.mxu0 %v39
  %452 = vmatpush.msra.mxu0 %v38
  %453 = vmatpush.msra.mxu0 %v37
  %454 = vmatpush.msra.mxu0 %v36
  %455 = vmatpush.msra.mxu0 %v35
  %456 = vmatpush.msra.mxu0 %v34
  %457 = vmatmul.f32.gmra.mxu0 %v418
  %v458 = vpop.f32.mrf.mxu0
  %v459 = vadd.f32 0.0, %v458
  %460 = vmatmul.f32.gmra.mxu0 %v421
  %v461 = vpop.f32.mrf.mxu0
  %v462 = vadd.f32 0.0, %v461
  %463 = vmatmul.f32.gmra.mxu0 %v424
  %v464 = vpop.f32.mrf.mxu0
  %v465 = vadd.f32 0.0, %v464
  %466 = vmatmul.f32.gmra.mxu0 %v427
  %v467 = vpop.f32.mrf.mxu0
  %v468 = vadd.f32 0.0, %v467
  %469 = vmatmul.f32.gmra.mxu0 %v430
  %v470 = vpop.f32.mrf.mxu0
  %v471 = vadd.f32 0.0, %v470
  %472 = vmatmul.f32.gmra.mxu0 %v433
  %v473 = vpop.f32.mrf.mxu0
  %v474 = vadd.f32 0.0, %v473
  %475 = vmatmul.f32.gmra.mxu0 %v436
  %v476 = vpop.f32.mrf.mxu0
  %v477 = vadd.f32 0.0, %v476
  %478 = vmatmul.f32.gmra.mxu0 %v439
  %v479 = vpop.f32.mrf.mxu0
  %v480 = vadd.f32 0.0, %v479
  %481 = vdwg.mxu0
  %v482 = vld [vmem:[%s4] sm:$0xff]
  %v483 = vld [vmem:[%s4 + $0x8] sm:$0xff]
  %v484 = vld [vmem:[%s4 + $0x10] sm:$0xff]
  %v485 = vld [vmem:[%s4 + $0x18] sm:$0xff]
  %v486 = vld [vmem:[%s4 + $0x20] sm:$0xff]
  %v487 = vld [vmem:[%s4 + $0x28] sm:$0xff]
  %v488 = vld [vmem:[%s4 + $0x30] sm:$0xff]
  %v489 = vld [vmem:[%s4 + $0x38] sm:$0xff]
  %490 = vmatpush.msra.mxu0 0.0
  %491 = vmatpush.msra.mxu0 0.0
  %492 = vmatpush.msra.mxu0 0.0
  %493 = vmatpush.msra.mxu0 0.0
  %494 = vmatpush.msra.mxu0 0.0
  %495 = vmatpush.msra.mxu0 0.0
  %496 = vmatpush.msra.mxu0 0.0
  %497 = vmatpush.msra.mxu0 0.0
  %498 = vmatpush.msra.mxu0 %v489
  %499 = vmatpush.msra.mxu0 %v488
  %500 = vmatpush.msra.mxu0 %v487
  %501 = vmatpush.msra.mxu0 %v486
  %502 = vmatpush.msra.mxu0 %v485
  %503 = vmatpush.msra.mxu0 %v484
  %504 = vmatpush.msra.mxu0 %v483
  %505 = vmatpush.msra.mxu0 %v482
  %506 = vmatmul.f32.gmra.mxu0 %v418
  %v507 = vpop.f32.mrf.mxu0
  %v508 = vadd.f32 0.0, %v507
  %509 = vmatmul.f32.gmra.mxu0 %v421
  %v510 = vpop.f32.mrf.mxu0
  %v511 = vadd.f32 0.0, %v510
  %512 = vmatmul.f32.gmra.mxu0 %v424
  %v513 = vpop.f32.mrf.mxu0
  %v514 = vadd.f32 0.0, %v513
  %515 = vmatmul.f32.gmra.mxu0 %v427
  %v516 = vpop.f32.mrf.mxu0
  %v517 = vadd.f32 0.0, %v516
  %518 = vmatmul.f32.gmra.mxu0 %v430
  %v519 = vpop.f32.mrf.mxu0
  %v520 = vadd.f32 0.0, %v519
  %521 = vmatmul.f32.gmra.mxu0 %v433
  %v522 = vpop.f32.mrf.mxu0
  %v523 = vadd.f32 0.0, %v522
  %524 = vmatmul.f32.gmra.mxu0 %v436
  %v525 = vpop.f32.mrf.mxu0
  %v526 = vadd.f32 0.0, %v525
  %527 = vmatmul.f32.gmra.mxu0 %v439
  %v528 = vpop.f32.mrf.mxu0
  %v529 = vadd.f32 0.0, %v528
  %530 = vdwg.mxu0
  %v531 = vmul.f32 %v459, %v508
  %v532 = vmul.f32 %v462, %v511
  %v533 = vmul.f32 %v465, %v514
  %v534 = vmul.f32 %v468, %v517
  %v535 = vmul.f32 %v471, %v520
  %v536 = vmul.f32 %v474, %v523
  %v537 = vmul.f32 %v477, %v526
  %v538 = vmul.f32 %v480, %v529
  %v539 = vsel %vm108, %v531, 0.0
  %540 = vadd.xlane.f32.xlu0 %v539
  %v541 = vpop.xlane.xlu0 %540
  %v542 = vsel %vm108, %v532, 0.0
  %543 = vadd.xlane.f32.xlu0 %v542
  %v544 = vpop.xlane.xlu0 %543
  %v545 = vsel %vm108, %v533, 0.0
  %546 = vadd.xlane.f32.xlu0 %v545
  %v547 = vpop.xlane.xlu0 %546
  %v548 = vsel %vm108, %v534, 0.0
  %549 = vadd.xlane.f32.xlu0 %v548
  %v550 = vpop.xlane.xlu0 %549
  %v551 = vsel %vm108, %v535, 0.0
  %552 = vadd.xlane.f32.xlu0 %v551
  %v553 = vpop.xlane.xlu0 %552
  %v554 = vsel %vm108, %v536, 0.0
  %555 = vadd.xlane.f32.xlu0 %v554
  %v556 = vpop.xlane.xlu0 %555
  %v557 = vsel %vm108, %v537, 0.0
  %558 = vadd.xlane.f32.xlu0 %v557
  %v559 = vpop.xlane.xlu0 %558
  %v560 = vsel %vm108, %v538, 0.0
  %561 = vadd.xlane.f32.xlu0 %v560
  %v562 = vpop.xlane.xlu0 %561
  %v563 = vrcp.pop %v59
  %v564 = vmul.f32 %v59, %v563
  %v565 = vsub.f32 1.0, %v564
  %v566 = vmul.f32 %v563, %v565
  %v567 = vadd.f32 %v563, %v566
  %vm568 = vweird.f32 %v59
  %vm569 = vweird.f32 %v563
  %vm570 = vmor %vm568, %vm569
  %v571 = vsel %vm570, %v563, %v567
  %v572 = vand.u32 2147483647, %v59
  %vm573 = vcmp.eq.f32.partialorder %v572, 8.507059e+37
  %v574 = vand.u32 %v59, 2147483648
  %v575 = vor.u32 1.1754944e-38, %v574
  %v576 = vsel %vm573, %v575, %v571
  %v577 = vmul.f32 %v377, %v576
  %v578 = vrcp.pop %v60
  %v579 = vmul.f32 %v60, %v578
  %v580 = vsub.f32 1.0, %v579
  %v581 = vmul.f32 %v578, %v580
  %v582 = vadd.f32 %v578, %v581
  %vm583 = vweird.f32 %v60
  %vm584 = vweird.f32 %v578
  %vm585 = vmor %vm583, %vm584
  %v586 = vsel %vm585, %v578, %v582
  %v587 = vand.u32 2147483647, %v60
  %vm588 = vcmp.eq.f32.partialorder %v587, 8.507059e+37
  %v589 = vand.u32 %v60, 2147483648
  %v590 = vor.u32 1.1754944e-38, %v589
  %v591 = vsel %vm588, %v590, %v586
  %v592 = vmul.f32 %v378, %v591
  %v593 = vrcp.pop %v61
  %v594 = vmul.f32 %v61, %v593
  %v595 = vsub.f32 1.0, %v594
  %v596 = vmul.f32 %v593, %v595
  %v597 = vadd.f32 %v593, %v596
  %vm598 = vweird.f32 %v61
  %vm599 = vweird.f32 %v593
  %vm600 = vmor %vm598, %vm599
  %v601 = vsel %vm600, %v593, %v597
  %v602 = vand.u32 2147483647, %v61
  %vm603 = vcmp.eq.f32.partialorder %v602, 8.507059e+37
  %v604 = vand.u32 %v61, 2147483648
  %v605 = vor.u32 1.1754944e-38, %v604
  %v606 = vsel %vm603, %v605, %v601
  %v607 = vmul.f32 %v379, %v606
  %v608 = vrcp.pop %v62
  %v609 = vmul.f32 %v62, %v608
  %v610 = vsub.f32 1.0, %v609
  %v611 = vmul.f32 %v608, %v610
  %v612 = vadd.f32 %v608, %v611
  %vm613 = vweird.f32 %v62
  %vm614 = vweird.f32 %v608
  %vm615 = vmor %vm613, %vm614
  %v616 = vsel %vm615, %v608, %v612
  %v617 = vand.u32 2147483647, %v62
  %vm618 = vcmp.eq.f32.partialorder %v617, 8.507059e+37
  %v619 = vand.u32 %v62, 2147483648
  %v620 = vor.u32 1.1754944e-38, %v619
  %v621 = vsel %vm618, %v620, %v616
  %v622 = vmul.f32 %v380, %v621
  %v623 = vrcp.pop %v63
  %v624 = vmul.f32 %v63, %v623
  %v625 = vsub.f32 1.0, %v624
  %v626 = vmul.f32 %v623, %v625
  %v627 = vadd.f32 %v623, %v626
  %vm628 = vweird.f32 %v63
  %vm629 = vweird.f32 %v623
  %vm630 = vmor %vm628, %vm629
  %v631 = vsel %vm630, %v623, %v627
  %v632 = vand.u32 2147483647, %v63
  %vm633 = vcmp.eq.f32.partialorder %v632, 8.507059e+37
  %v634 = vand.u32 %v63, 2147483648
  %v635 = vor.u32 1.1754944e-38, %v634
  %v636 = vsel %vm633, %v635, %v631
  %v637 = vmul.f32 %v381, %v636
  %v638 = vrcp.pop %v64
  %v639 = vmul.f32 %v64, %v638
  %v640 = vsub.f32 1.0, %v639
  %v641 = vmul.f32 %v638, %v640
  %v642 = vadd.f32 %v638, %v641
  %vm643 = vweird.f32 %v64
  %vm644 = vweird.f32 %v638
  %vm645 = vmor %vm643, %vm644
  %v646 = vsel %vm645, %v638, %v642
  %v647 = vand.u32 2147483647, %v64
  %vm648 = vcmp.eq.f32.partialorder %v647, 8.507059e+37
  %v649 = vand.u32 %v64, 2147483648
  %v650 = vor.u32 1.1754944e-38, %v649
  %v651 = vsel %vm648, %v650, %v646
  %v652 = vmul.f32 %v382, %v651
  %v653 = vrcp.pop %v65
  %v654 = vmul.f32 %v65, %v653
  %v655 = vsub.f32 1.0, %v654
  %v656 = vmul.f32 %v653, %v655
  %v657 = vadd.f32 %v653, %v656
  %vm658 = vweird.f32 %v65
  %vm659 = vweird.f32 %v653
  %vm660 = vmor %vm658, %vm659
  %v661 = vsel %vm660, %v653, %v657
  %v662 = vand.u32 2147483647, %v65
  %vm663 = vcmp.eq.f32.partialorder %v662, 8.507059e+37
  %v664 = vand.u32 %v65, 2147483648
  %v665 = vor.u32 1.1754944e-38, %v664
  %v666 = vsel %vm663, %v665, %v661
  %v667 = vmul.f32 %v383, %v666
  %v668 = vrcp.pop %v66
  %v669 = vmul.f32 %v66, %v668
  %v670 = vsub.f32 1.0, %v669
  %v671 = vmul.f32 %v668, %v670
  %v672 = vadd.f32 %v668, %v671
  %vm673 = vweird.f32 %v66
  %vm674 = vweird.f32 %v668
  %vm675 = vmor %vm673, %vm674
  %v676 = vsel %vm675, %v668, %v672
  %v677 = vand.u32 2147483647, %v66
  %vm678 = vcmp.eq.f32.partialorder %v677, 8.507059e+37
  %v679 = vand.u32 %v66, 2147483648
  %v680 = vor.u32 1.1754944e-38, %v679
  %v681 = vsel %vm678, %v680, %v676
  %v682 = vmul.f32 %v384, %v681
  %vm683 = vcmask 7168
  %v684 = vsel %vm683, %v577, 0.0
  %v685 = vsel %vm683, %v592, 0.0
  %v686 = vadd.f32 %v684, %v685
  %v687 = vsel %vm683, %v607, 0.0
  %v688 = vadd.f32 %v686, %v687
  %v689 = vsel %vm683, %v622, 0.0
  %v690 = vadd.f32 %v688, %v689
  %v691 = vsel %vm683, %v637, 0.0
  %v692 = vadd.f32 %v690, %v691
  %v693 = vsel %vm683, %v652, 0.0
  %v694 = vadd.f32 %v692, %v693
  %v695 = vsel %vm683, %v667, 0.0
  %v696 = vadd.f32 %v694, %v695
  %v697 = vsel %vm683, %v682, 0.0
  %v698 = vadd.f32 %v696, %v697
  %699 = vadd.xlane.f32.xlu0 %v698
  %v700 = vpop.xlane.xlu0 %699
  %v701 = vrot.slane %v700, 4
  %v702 = vadd.f32 %v700, %v701
  %v703 = vrot.slane %v702, 2
  %v704 = vadd.f32 %v702, %v703
  %v705 = vrot.slane %v704, 1
  %v706 = vadd.f32 %v704, %v705
  %s707 = vtos %v706
  %s708 = ssub.f32 0.0, %s707
  %v709 = vrcp.pop %v68
  %v710 = vmul.f32 %v68, %v709
  %v711 = vsub.f32 1.0, %v710
  %v712 = vmul.f32 %v709, %v711
  %v713 = vadd.f32 %v709, %v712
  %vm714 = vweird.f32 %v68
  %vm715 = vweird.f32 %v709
  %vm716 = vmor %vm714, %vm715
  %v717 = vsel %vm716, %v709, %v713
  %v718 = vand.u32 2147483647, %v68
  %vm719 = vcmp.eq.f32.partialorder %v718, 8.507059e+37
  %v720 = vand.u32 %v68, 2147483648
  %v721 = vor.u32 1.1754944e-38, %v720
  %v722 = vsel %vm719, %v721, %v717
  %v723 = vmul.f32 %v541, %v722
  %v724 = vrcp.pop %v69
  %v725 = vmul.f32 %v69, %v724
  %v726 = vsub.f32 1.0, %v725
  %v727 = vmul.f32 %v724, %v726
  %v728 = vadd.f32 %v724, %v727
  %vm729 = vweird.f32 %v69
  %vm730 = vweird.f32 %v724
  %vm731 = vmor %vm729, %vm730
  %v732 = vsel %vm731, %v724, %v728
  %v733 = vand.u32 2147483647, %v69
  %vm734 = vcmp.eq.f32.partialorder %v733, 8.507059e+37
  %v735 = vand.u32 %v69, 2147483648
  %v736 = vor.u32 1.1754944e-38, %v735
  %v737 = vsel %vm734, %v736, %v732
  %v738 = vmul.f32 %v544, %v737
  %v739 = vrcp.pop %v70
  %v740 = vmul.f32 %v70, %v739
  %v741 = vsub.f32 1.0, %v740
  %v742 = vmul.f32 %v739, %v741
  %v743 = vadd.f32 %v739, %v742
  %vm744 = vweird.f32 %v70
  %vm745 = vweird.f32 %v739
  %vm746 = vmor %vm744, %vm745
  %v747 = vsel %vm746, %v739, %v743
  %v748 = vand.u32 2147483647, %v70
  %vm749 = vcmp.eq.f32.partialorder %v748, 8.507059e+37
  %v750 = vand.u32 %v70, 2147483648
  %v751 = vor.u32 1.1754944e-38, %v750
  %v752 = vsel %vm749, %v751, %v747
  %v753 = vmul.f32 %v547, %v752
  %v754 = vrcp.pop %v71
  %v755 = vmul.f32 %v71, %v754
  %v756 = vsub.f32 1.0, %v755
  %v757 = vmul.f32 %v754, %v756
  %v758 = vadd.f32 %v754, %v757
  %vm759 = vweird.f32 %v71
  %vm760 = vweird.f32 %v754
  %vm761 = vmor %vm759, %vm760
  %v762 = vsel %vm761, %v754, %v758
  %v763 = vand.u32 2147483647, %v71
  %vm764 = vcmp.eq.f32.partialorder %v763, 8.507059e+37
  %v765 = vand.u32 %v71, 2147483648
  %v766 = vor.u32 1.1754944e-38, %v765
  %v767 = vsel %vm764, %v766, %v762
  %v768 = vmul.f32 %v550, %v767
  %v769 = vrcp.pop %v72
  %v770 = vmul.f32 %v72, %v769
  %v771 = vsub.f32 1.0, %v770
  %v772 = vmul.f32 %v769, %v771
  %v773 = vadd.f32 %v769, %v772
  %vm774 = vweird.f32 %v72
  %vm775 = vweird.f32 %v769
  %vm776 = vmor %vm774, %vm775
  %v777 = vsel %vm776, %v769, %v773
  %v778 = vand.u32 2147483647, %v72
  %vm779 = vcmp.eq.f32.partialorder %v778, 8.507059e+37
  %v780 = vand.u32 %v72, 2147483648
  %v781 = vor.u32 1.1754944e-38, %v780
  %v782 = vsel %vm779, %v781, %v777
  %v783 = vmul.f32 %v553, %v782
  %v784 = vrcp.pop %v73
  %v785 = vmul.f32 %v73, %v784
  %v786 = vsub.f32 1.0, %v785
  %v787 = vmul.f32 %v784, %v786
  %v788 = vadd.f32 %v784, %v787
  %vm789 = vweird.f32 %v73
  %vm790 = vweird.f32 %v784
  %vm791 = vmor %vm789, %vm790
  %v792 = vsel %vm791, %v784, %v788
  %v793 = vand.u32 2147483647, %v73
  %vm794 = vcmp.eq.f32.partialorder %v793, 8.507059e+37
  %v795 = vand.u32 %v73, 2147483648
  %v796 = vor.u32 1.1754944e-38, %v795
  %v797 = vsel %vm794, %v796, %v792
  %v798 = vmul.f32 %v556, %v797
  %v799 = vrcp.pop %v74
  %v800 = vmul.f32 %v74, %v799
  %v801 = vsub.f32 1.0, %v800
  %v802 = vmul.f32 %v799, %v801
  %v803 = vadd.f32 %v799, %v802
  %vm804 = vweird.f32 %v74
  %vm805 = vweird.f32 %v799
  %vm806 = vmor %vm804, %vm805
  %v807 = vsel %vm806, %v799, %v803
  %v808 = vand.u32 2147483647, %v74
  %vm809 = vcmp.eq.f32.partialorder %v808, 8.507059e+37
  %v810 = vand.u32 %v74, 2147483648
  %v811 = vor.u32 1.1754944e-38, %v810
  %v812 = vsel %vm809, %v811, %v807
  %v813 = vmul.f32 %v559, %v812
  %v814 = vrcp.pop %v75
  %v815 = vmul.f32 %v75, %v814
  %v816 = vsub.f32 1.0, %v815
  %v817 = vmul.f32 %v814, %v816
  %v818 = vadd.f32 %v814, %v817
  %vm819 = vweird.f32 %v75
  %vm820 = vweird.f32 %v814
  %vm821 = vmor %vm819, %vm820
  %v822 = vsel %vm821, %v814, %v818
  %v823 = vand.u32 2147483647, %v75
  %vm824 = vcmp.eq.f32.partialorder %v823, 8.507059e+37
  %v825 = vand.u32 %v75, 2147483648
  %v826 = vor.u32 1.1754944e-38, %v825
  %v827 = vsel %vm824, %v826, %v822
  %v828 = vmul.f32 %v562, %v827
  %v829 = vsel %vm683, %v723, 0.0
  %v830 = vsel %vm683, %v738, 0.0
  %v831 = vadd.f32 %v829, %v830
  %v832 = vsel %vm683, %v753, 0.0
  %v833 = vadd.f32 %v831, %v832
  %v834 = vsel %vm683, %v768, 0.0
  %v835 = vadd.f32 %v833, %v834
  %v836 = vsel %vm683, %v783, 0.0
  %v837 = vadd.f32 %v835, %v836
  %v838 = vsel %vm683, %v798, 0.0
  %v839 = vadd.f32 %v837, %v838
  %v840 = vsel %vm683, %v813, 0.0
  %v841 = vadd.f32 %v839, %v840
  %v842 = vsel %vm683, %v828, 0.0
  %v843 = vadd.f32 %v841, %v842
  %844 = vadd.xlane.f32.xlu0 %v843
  %v845 = vpop.xlane.xlu0 %844
  %v846 = vrot.slane %v845, 4
  %v847 = vadd.f32 %v845, %v846
  %v848 = vrot.slane %v847, 2
  %v849 = vadd.f32 %v847, %v848
  %v850 = vrot.slane %v849, 1
  %v851 = vadd.f32 %v849, %v850
  %s852 = vtos %v851
  %s853 = ssub.f32 0.0, %s852
  %s854 = ssub.f32 %s708, %s853
  %v855 = vstv %s854
  %856 = vst [vmem:[%s7] sm:$0xff] %v855
  // Predicated region
  $region30: #{mutual_information_gradient_estimator.3} parent=0 // pred_check
    _
  $region31: #{mutual_information_gradient_estimator.3} parent=0 // pred_check_branch
    %858 = sbr.rel (0) target = $region33
  $region32: #{mutual_information_gradient_estimator.3} parent=0 // pred_region
    _
  $region33: #{mutual_information_gradient_estimator.3} parent=0 // pred_fallthru
    _
  // Predicated region
  $region34: #{mutual_information_gradient_estimator.3} parent=0 // pred_check
    _
  $region35: #{mutual_information_gradient_estimator.3} parent=0 // pred_check_branch
    %860 = sbr.rel (0) target = $region37
  $region36: #{mutual_information_gradient_estimator.3} parent=0 // pred_region
    _
  $region37: #{mutual_information_gradient_estimator.3} parent=0 // pred_fallthru
    _

// kernel: mutual_information_gradient_estimator.2
$region0: #{mutual_information_gradient_estimator.2}
  #allocation0 [shape = 'u32[]', space=smem, size = 0x4, offset = 0x4, fixed_abs, tag = 'smem constant byte address 0x4 - core index']
  #allocation1 [shape = 'u32[72,128]{1,0:T(1,128)}', space=vmem, size = 0x9000, scoped, tag = 'internal scratch']
  %s0 = inlined_call_operand.hbm [shape: f32[64,64], index: 0, kind: input, shape index: {}]
  %s1 = inlined_call_operand.hbm [shape: f32[64,64], index: 1, kind: input, shape index: {}]
  %s2 = inlined_call_operand.vmem [shape: f32[2,64,64], index: 2, kind: output, shape index: {0}]
  %s3 = inlined_call_operand.vmem [shape: f32[64,64], index: 3, kind: output, shape index: {1}]
  %s4 = inlined_call_operand.vmem [shape: f32[64,64], index: 4, kind: output, shape index: {2}]
  %s5 = inlined_call_operand.vmem [shape: f32[64,64], index: 5, kind: output, shape index: {3}]
  %6 = xla_tuple %s2, %s3, %s4, %s5
  %s7 = sld [smem:[#allocation0]]
  $region50: #{mutual_information_gradient_estimator.2} parent=0
    _
  %s9 = ssub.s32 1, %s7
  %s10 = scalar_select 0, %s9, %s7
  $region1: #{mutual_information_gradient_estimator.2} parent=0
    #allocation2 [shape = 'u8[32768]{0}', space=vmem, size = 0x8000, scoped, tag = 'input window, operand 0, single buffered']
    #allocation3 [shape = 's32[1]{0}', space=sflag, size = 0x4, scoped, tag = 'scoped memory for mutual_information_gradient_estimator.2']
    #allocation4 [shape = 'u8[32768]{0}', space=vmem, size = 0x8000, scoped, tag = 'input window, operand 1, single buffered']
    #allocation5 [shape = 's32[1]{0}', space=sflag, size = 0x4, scoped, tag = 'scoped memory for mutual_information_gradient_estimator.2']
    %11 = vsyncpa [#allocation3], 0
    %12 = vsyncpa [#allocation5], 0
    // Predicated region
    $region2: #{mutual_information_gradient_estimator.2} parent=1 // pred_check
      _
    $region3: #{mutual_information_gradient_estimator.2} parent=1 // pred_check_branch
      %14 = sbr.rel (0) target = $region5
    $region4: #{mutual_information_gradient_estimator.2} parent=1 // pred_region
      %16 = vsyncadd [#allocation3], 0
      %s17 = sshll.u32 %s0, 4
      %s18 = int_to_ptr.hbm [resolvable:$true] %s17
      %s19 = sshll.u32 [#allocation2], 4
      %s20 = int_to_ptr.vmem [resolvable:$true] %s19
      %25 = dma.hbm_to_vmem [thread:$0]  %s18, 1024, %s20, [#allocation3], 128, 128, 8
    $region5: #{mutual_information_gradient_estimator.2} parent=1 // pred_fallthru
      _
    // Predicated region
    $region6: #{mutual_information_gradient_estimator.2} parent=1 // pred_check
      _
    $region7: #{mutual_information_gradient_estimator.2} parent=1 // pred_check_branch
      %27 = sbr.rel (0) target = $region9
    $region8: #{mutual_information_gradient_estimator.2} parent=1 // pred_region
      %29 = vsyncadd [#allocation5], 0
      %s30 = sshll.u32 %s1, 4
      %s31 = int_to_ptr.hbm [resolvable:$true] %s30
      %s32 = sshll.u32 [#allocation4], 4
      %s33 = int_to_ptr.vmem [resolvable:$true] %s32
      %38 = dma.hbm_to_vmem [thread:$0]  %s31, 1024, %s33, [#allocation5], 128, 128, 8
    $region9: #{mutual_information_gradient_estimator.2} parent=1 // pred_fallthru
      _
    // Predicated region
    $region10: #{mutual_information_gradient_estimator.2} parent=1 // pred_check
      _
    $region11: #{mutual_information_gradient_estimator.2} parent=1 // pred_check_branch
      %40 = sbr.rel (0) target = $region13
    $region12: #{mutual_information_gradient_estimator.2} parent=1 // pred_region
      %42 = dma.done [#allocation3], 1024
    $region13: #{mutual_information_gradient_estimator.2} parent=1 // pred_fallthru
      _
    // Predicated region
    $region14: #{mutual_information_gradient_estimator.2} parent=1 // pred_check
      _
    $region15: #{mutual_information_gradient_estimator.2} parent=1 // pred_check_branch
      %44 = sbr.rel (0) target = $region17
    $region16: #{mutual_information_gradient_estimator.2} parent=1 // pred_region
      %46 = dma.done [#allocation5], 1024
    $region17: #{mutual_information_gradient_estimator.2} parent=1 // pred_fallthru
      _
    %v47 = vld [vmem:[#allocation2] sm:$0xff]
    %v48 = vld [vmem:[#allocation2 + $0x8] sm:$0xff]
    %v49 = vld [vmem:[#allocation2 + $0x10] sm:$0xff]
    %v50 = vld [vmem:[#allocation2 + $0x18] sm:$0xff]
    %v51 = vld [vmem:[#allocation2 + $0x20] sm:$0xff]
    %v52 = vld [vmem:[#allocation2 + $0x28] sm:$0xff]
    %v53 = vld [vmem:[#allocation2 + $0x30] sm:$0xff]
    %v54 = vld [vmem:[#allocation2 + $0x38] sm:$0xff]
    %v55 = vld [vmem:[#allocation4] sm:$0xff]
    %v56 = vld [vmem:[#allocation4 + $0x8] sm:$0xff]
    %v57 = vld [vmem:[#allocation4 + $0x10] sm:$0xff]
    %v58 = vld [vmem:[#allocation4 + $0x18] sm:$0xff]
    %v59 = vld [vmem:[#allocation4 + $0x20] sm:$0xff]
    %v60 = vld [vmem:[#allocation4 + $0x28] sm:$0xff]
    %v61 = vld [vmem:[#allocation4 + $0x30] sm:$0xff]
    %v62 = vld [vmem:[#allocation4 + $0x38] sm:$0xff]
    %vm63 = vcmask 523264
    %v65 = vsel %vm63, %v47, 0
    %v68 = vsel %vm63, %v48, 0
    %v71 = vsel %vm63, %v49, 0
    %v74 = vsel %vm63, %v50, 0
    %v77 = vsel %vm63, %v51, 0
    %v80 = vsel %vm63, %v52, 0
    %v83 = vsel %vm63, %v53, 0
    %v86 = vsel %vm63, %v54, 0
    %88 = vmatpush.xpose.msra.mxu0 0.0
    %89 = vmatpush.xpose.msra.mxu0 0.0
    %90 = vmatpush.xpose.msra.mxu0 0.0
    %91 = vmatpush.xpose.msra.mxu0 0.0
    %92 = vmatpush.xpose.msra.mxu0 0.0
    %93 = vmatpush.xpose.msra.mxu0 0.0
    %94 = vmatpush.xpose.msra.mxu0 0.0
    %95 = vmatpush.xpose.msra.mxu0 0.0
    %96 = vmatpush.xpose.msra.mxu0 %v86
    %97 = vmatpush.xpose.msra.mxu0 %v83
    %98 = vmatpush.xpose.msra.mxu0 %v80
    %99 = vmatpush.xpose.msra.mxu0 %v77
    %100 = vmatpush.xpose.msra.mxu0 %v74
    %101 = vmatpush.xpose.msra.mxu0 %v71
    %102 = vmatpush.xpose.msra.mxu0 %v68
    %103 = vmatpush.xpose.msra.mxu0 %v65
    %104 = vmatmul.f32.gmra.mxu0 %v65
    %v105 = vpop.f32.mrf.mxu0
    %v106 = vadd.f32 0.0, %v105
    %107 = vmatmul.f32.gmra.mxu0 %v68
    %v108 = vpop.f32.mrf.mxu0
    %v109 = vadd.f32 0.0, %v108
    %110 = vmatmul.f32.gmra.mxu0 %v71
    %v111 = vpop.f32.mrf.mxu0
    %v112 = vadd.f32 0.0, %v111
    %113 = vmatmul.f32.gmra.mxu0 %v74
    %v114 = vpop.f32.mrf.mxu0
    %v115 = vadd.f32 0.0, %v114
    %116 = vmatmul.f32.gmra.mxu0 %v77
    %v117 = vpop.f32.mrf.mxu0
    %v118 = vadd.f32 0.0, %v117
    %119 = vmatmul.f32.gmra.mxu0 %v80
    %v120 = vpop.f32.mrf.mxu0
    %v121 = vadd.f32 0.0, %v120
    %122 = vmatmul.f32.gmra.mxu0 %v83
    %v123 = vpop.f32.mrf.mxu0
    %v124 = vadd.f32 0.0, %v123
    %125 = vmatmul.f32.gmra.mxu0 %v86
    %v126 = vpop.f32.mrf.mxu0
    %v127 = vadd.f32 0.0, %v126
    %128 = vdwg.mxu0
    %v130 = vsel %vm63, %v55, 0
    %v133 = vsel %vm63, %v56, 0
    %v136 = vsel %vm63, %v57, 0
    %v139 = vsel %vm63, %v58, 0
    %v142 = vsel %vm63, %v59, 0
    %v145 = vsel %vm63, %v60, 0
    %v148 = vsel %vm63, %v61, 0
    %v151 = vsel %vm63, %v62, 0
    %153 = vmatpush.xpose.msra.mxu0 0.0
    %154 = vmatpush.xpose.msra.mxu0 0.0
    %155 = vmatpush.xpose.msra.mxu0 0.0
    %156 = vmatpush.xpose.msra.mxu0 0.0
    %157 = vmatpush.xpose.msra.mxu0 0.0
    %158 = vmatpush.xpose.msra.mxu0 0.0
    %159 = vmatpush.xpose.msra.mxu0 0.0
    %160 = vmatpush.xpose.msra.mxu0 0.0
    %161 = vmatpush.xpose.msra.mxu0 %v151
    %162 = vmatpush.xpose.msra.mxu0 %v148
    %163 = vmatpush.xpose.msra.mxu0 %v145
    %164 = vmatpush.xpose.msra.mxu0 %v142
    %165 = vmatpush.xpose.msra.mxu0 %v139
    %166 = vmatpush.xpose.msra.mxu0 %v136
    %167 = vmatpush.xpose.msra.mxu0 %v133
    %168 = vmatpush.xpose.msra.mxu0 %v130
    %169 = vmatmul.f32.gmra.mxu0 %v130
    %v170 = vpop.f32.mrf.mxu0
    %v171 = vadd.f32 0.0, %v170
    %172 = vmatmul.f32.gmra.mxu0 %v133
    %v173 = vpop.f32.mrf.mxu0
    %v174 = vadd.f32 0.0, %v173
    %175 = vmatmul.f32.gmra.mxu0 %v136
    %v176 = vpop.f32.mrf.mxu0
    %v177 = vadd.f32 0.0, %v176
    %178 = vmatmul.f32.gmra.mxu0 %v139
    %v179 = vpop.f32.mrf.mxu0
    %v180 = vadd.f32 0.0, %v179
    %181 = vmatmul.f32.gmra.mxu0 %v142
    %v182 = vpop.f32.mrf.mxu0
    %v183 = vadd.f32 0.0, %v182
    %184 = vmatmul.f32.gmra.mxu0 %v145
    %v185 = vpop.f32.mrf.mxu0
    %v186 = vadd.f32 0.0, %v185
    %187 = vmatmul.f32.gmra.mxu0 %v148
    %v188 = vpop.f32.mrf.mxu0
    %v189 = vadd.f32 0.0, %v188
    %190 = vmatmul.f32.gmra.mxu0 %v151
    %v191 = vpop.f32.mrf.mxu0
    %v192 = vadd.f32 0.0, %v191
    %193 = vdwg.mxu0
    %v194 = vmul.f32 %v47, %v47
    %v195 = vmul.f32 %v48, %v48
    %v196 = vmul.f32 %v49, %v49
    %v197 = vmul.f32 %v50, %v50
    %v198 = vmul.f32 %v51, %v51
    %v199 = vmul.f32 %v52, %v52
    %v200 = vmul.f32 %v53, %v53
    %v201 = vmul.f32 %v54, %v54
    %v202 = vsel %vm63, %v194, 0.0
    %203 = vadd.xlane.f32.xlu0 %v202
    %v204 = vpop.xlane.xlu0 %203
    %v205 = vsel %vm63, %v195, 0.0
    %206 = vadd.xlane.f32.xlu0 %v205
    %v207 = vpop.xlane.xlu0 %206
    %v208 = vsel %vm63, %v196, 0.0
    %209 = vadd.xlane.f32.xlu0 %v208
    %v210 = vpop.xlane.xlu0 %209
    %v211 = vsel %vm63, %v197, 0.0
    %212 = vadd.xlane.f32.xlu0 %v211
    %v213 = vpop.xlane.xlu0 %212
    %v214 = vsel %vm63, %v198, 0.0
    %215 = vadd.xlane.f32.xlu0 %v214
    %v216 = vpop.xlane.xlu0 %215
    %v217 = vsel %vm63, %v199, 0.0
    %218 = vadd.xlane.f32.xlu0 %v217
    %v219 = vpop.xlane.xlu0 %218
    %v220 = vsel %vm63, %v200, 0.0
    %221 = vadd.xlane.f32.xlu0 %v220
    %v222 = vpop.xlane.xlu0 %221
    %v223 = vsel %vm63, %v201, 0.0
    %224 = vadd.xlane.f32.xlu0 %v223
    %v225 = vpop.xlane.xlu0 %224
    %v226 = vmul.f32 %v55, %v55
    %v227 = vmul.f32 %v56, %v56
    %v228 = vmul.f32 %v57, %v57
    %v229 = vmul.f32 %v58, %v58
    %v230 = vmul.f32 %v59, %v59
    %v231 = vmul.f32 %v60, %v60
    %v232 = vmul.f32 %v61, %v61
    %v233 = vmul.f32 %v62, %v62
    %v234 = vsel %vm63, %v226, 0.0
    %235 = vadd.xlane.f32.xlu0 %v234
    %v236 = vpop.xlane.xlu0 %235
    %v237 = vsel %vm63, %v227, 0.0
    %238 = vadd.xlane.f32.xlu0 %v237
    %v239 = vpop.xlane.xlu0 %238
    %v240 = vsel %vm63, %v228, 0.0
    %241 = vadd.xlane.f32.xlu0 %v240
    %v242 = vpop.xlane.xlu0 %241
    %v243 = vsel %vm63, %v229, 0.0
    %244 = vadd.xlane.f32.xlu0 %v243
    %v245 = vpop.xlane.xlu0 %244
    %v246 = vsel %vm63, %v230, 0.0
    %247 = vadd.xlane.f32.xlu0 %v246
    %v248 = vpop.xlane.xlu0 %247
    %v249 = vsel %vm63, %v231, 0.0
    %250 = vadd.xlane.f32.xlu0 %v249
    %v251 = vpop.xlane.xlu0 %250
    %v252 = vsel %vm63, %v232, 0.0
    %253 = vadd.xlane.f32.xlu0 %v252
    %v254 = vpop.xlane.xlu0 %253
    %v255 = vsel %vm63, %v233, 0.0
    %256 = vadd.xlane.f32.xlu0 %v255
    %v257 = vpop.xlane.xlu0 %256
    %258 = vxpose.xlu0.b32.start [1/16] %v236, 128
    %259 = vxpose.xlu0.b32.cont [2/16] %v239, 128
    %260 = vxpose.xlu0.b32.cont [3/16] %v242, 128
    %261 = vxpose.xlu0.b32.cont [4/16] %v245, 128
    %262 = vxpose.xlu0.b32.cont [5/16] %v248, 128
    %263 = vxpose.xlu0.b32.cont [6/16] %v251, 128
    %264 = vxpose.xlu0.b32.cont [7/16] %v254, 128
    %265 = vxpose.xlu0.b32.cont [8/16] %v257, 128
    %266 = vxpose.xlu0.b32.cont [9/16] 0.0, 128
    %267 = vxpose.xlu0.b32.cont [10/16] 0.0, 128
    %268 = vxpose.xlu0.b32.cont [11/16] 0.0, 128
    %269 = vxpose.xlu0.b32.cont [12/16] 0.0, 128
    %270 = vxpose.xlu0.b32.cont [13/16] 0.0, 128
    %271 = vxpose.xlu0.b32.cont [14/16] 0.0, 128
    %272 = vxpose.xlu0.b32.cont [15/16] 0.0, 128
    %273 = vxpose.xlu0.b32.end [16/16] 0.0, 128
    %v274 = vpop.trf.xlu0
    %v275 = vpop.trf.xlu0
    %v276 = vpop.trf.xlu0
    %v277 = vpop.trf.xlu0
    %v278 = vpop.trf.xlu0
    %v279 = vpop.trf.xlu0
    %v280 = vpop.trf.xlu0
    %v281 = vpop.trf.xlu0
    %v282 = vpop.trf.xlu0
    %v283 = vpop.trf.xlu0
    %v284 = vpop.trf.xlu0
    %v285 = vpop.trf.xlu0
    %v286 = vpop.trf.xlu0
    %v287 = vpop.trf.xlu0
    %v288 = vpop.trf.xlu0
    %v289 = vpop.trf.xlu0
    %v290 = vperm.slane %v274, 0
    %v291 = vadd.f32 %v236, %v290
    %v292 = vadd.f32 %v239, %v290
    %v293 = vadd.f32 %v242, %v290
    %v294 = vadd.f32 %v245, %v290
    %v295 = vadd.f32 %v248, %v290
    %v296 = vadd.f32 %v251, %v290
    %v297 = vadd.f32 %v254, %v290
    %v298 = vadd.f32 %v257, %v290
    %v299 = vmul.f32 %v171, 2.0
    %v300 = vmul.f32 %v174, 2.0
    %v301 = vmul.f32 %v177, 2.0
    %v302 = vmul.f32 %v180, 2.0
    %v303 = vmul.f32 %v183, 2.0
    %v304 = vmul.f32 %v186, 2.0
    %v305 = vmul.f32 %v189, 2.0
    %v306 = vmul.f32 %v192, 2.0
    %v307 = vsub.f32 %v291, %v299
    %v308 = vsub.f32 %v292, %v300
    %v309 = vsub.f32 %v293, %v301
    %v310 = vsub.f32 %v294, %v302
    %v311 = vsub.f32 %v295, %v303
    %v312 = vsub.f32 %v296, %v304
    %v313 = vsub.f32 %v297, %v305
    %v314 = vsub.f32 %v298, %v306
    %v315 = vmax.f32 %v307, 0.0
    %v316 = vmax.f32 %v308, 0.0
    %v317 = vmax.f32 %v309, 0.0
    %v318 = vmax.f32 %v310, 0.0
    %v319 = vmax.f32 %v311, 0.0
    %v320 = vmax.f32 %v312, 0.0
    %v321 = vmax.f32 %v313, 0.0
    %v322 = vmax.f32 %v314, 0.0
    %323 = vxpose.xlu0.b32.start [1/16] %v204, 128
    %324 = vxpose.xlu0.b32.cont [2/16] %v207, 128
    %325 = vxpose.xlu0.b32.cont [3/16] %v210, 128
    %326 = vxpose.xlu0.b32.cont [4/16] %v213, 128
    %327 = vxpose.xlu0.b32.cont [5/16] %v216, 128
    %328 = vxpose.xlu0.b32.cont [6/16] %v219, 128
    %329 = vxpose.xlu0.b32.cont [7/16] %v222, 128
    %330 = vxpose.xlu0.b32.cont [8/16] %v225, 128
    %331 = vxpose.xlu0.b32.cont [9/16] 0.0, 128
    %332 = vxpose.xlu0.b32.cont [10/16] 0.0, 128
    %333 = vxpose.xlu0.b32.cont [11/16] 0.0, 128
    %334 = vxpose.xlu0.b32.cont [12/16] 0.0, 128
    %335 = vxpose.xlu0.b32.cont [13/16] 0.0, 128
    %336 = vxpose.xlu0.b32.cont [14/16] 0.0, 128
    %337 = vxpose.xlu0.b32.cont [15/16] 0.0, 128
    %338 = vxpose.xlu0.b32.end [16/16] 0.0, 128
    %v339 = vpop.trf.xlu0
    %v340 = vpop.trf.xlu0
    %v341 = vpop.trf.xlu0
    %v342 = vpop.trf.xlu0
    %v343 = vpop.trf.xlu0
    %v344 = vpop.trf.xlu0
    %v345 = vpop.trf.xlu0
    %v346 = vpop.trf.xlu0
    %v347 = vpop.trf.xlu0
    %v348 = vpop.trf.xlu0
    %v349 = vpop.trf.xlu0
    %v350 = vpop.trf.xlu0
    %v351 = vpop.trf.xlu0
    %v352 = vpop.trf.xlu0
    %v353 = vpop.trf.xlu0
    %v354 = vpop.trf.xlu0
    %v355 = vperm.slane %v339, 0
    %v356 = vadd.f32 %v204, %v355
    %v357 = vadd.f32 %v207, %v355
    %v358 = vadd.f32 %v210, %v355
    %v359 = vadd.f32 %v213, %v355
    %v360 = vadd.f32 %v216, %v355
    %v361 = vadd.f32 %v219, %v355
    %v362 = vadd.f32 %v222, %v355
    %v363 = vadd.f32 %v225, %v355
    %v364 = vmul.f32 %v106, 2.0
    %v365 = vmul.f32 %v109, 2.0
    %v366 = vmul.f32 %v112, 2.0
    %v367 = vmul.f32 %v115, 2.0
    %v368 = vmul.f32 %v118, 2.0
    %v369 = vmul.f32 %v121, 2.0
    %v370 = vmul.f32 %v124, 2.0
    %v371 = vmul.f32 %v127, 2.0
    %v372 = vsub.f32 %v356, %v364
    %v373 = vsub.f32 %v357, %v365
    %v374 = vsub.f32 %v358, %v366
    %v375 = vsub.f32 %v359, %v367
    %v376 = vsub.f32 %v360, %v368
    %v377 = vsub.f32 %v361, %v369
    %v378 = vsub.f32 %v362, %v370
    %v379 = vsub.f32 %v363, %v371
    %v380 = vmax.f32 %v372, 0.0
    %v381 = vmax.f32 %v373, 0.0
    %v382 = vmax.f32 %v374, 0.0
    %v383 = vmax.f32 %v375, 0.0
    %v384 = vmax.f32 %v376, 0.0
    %v385 = vmax.f32 %v377, 0.0
    %v386 = vmax.f32 %v378, 0.0
    %v387 = vmax.f32 %v379, 0.0
    %v388 = vadd.f32 %v380, %v315
    %v389 = vadd.f32 %v381, %v316
    %v390 = vadd.f32 %v382, %v317
    %v391 = vadd.f32 %v383, %v318
    %v392 = vadd.f32 %v384, %v319
    %v393 = vadd.f32 %v385, %v320
    %v394 = vadd.f32 %v386, %v321
    %v395 = vadd.f32 %v387, %v322
    %vm404 = vcmp.ge.s32.totalorder %v388, 1073741824
    %vm405 = vcmp.ge.s32.totalorder %v389, 1073741824
    %vm406 = vcmp.ge.s32.totalorder %v390, 1073741824
    %vm407 = vcmp.ge.s32.totalorder %v391, 1073741824
    %vm408 = vcmp.ge.s32.totalorder %v392, 1073741824
    %vm409 = vcmp.ge.s32.totalorder %v393, 1073741824
    %vm410 = vcmp.ge.s32.totalorder %v394, 1073741824
    %vm411 = vcmp.ge.s32.totalorder %v395, 1073741824
    %v412 = vsel %vm404, 1, 0
    %v413 = vsel %vm405, 1, 0
    %v414 = vsel %vm406, 1, 0
    %v415 = vsel %vm407, 1, 0
    %v416 = vsel %vm408, 1, 0
    %v417 = vsel %vm409, 1, 0
    %v418 = vsel %vm410, 1, 0
    %v419 = vsel %vm411, 1, 0
    %v420 = vsel %vm63, %v412, 0
    %v421 = vsel %vm63, %v413, 0
    %v422 = vsel %vm63, %v414, 0
    %v423 = vsel %vm63, %v415, 0
    %v424 = vsel %vm63, %v416, 0
    %v425 = vadd.s32 %v420, %v424
    %v426 = vsel %vm63, %v417, 0
    %v427 = vadd.s32 %v421, %v426
    %v428 = vsel %vm63, %v418, 0
    %v429 = vadd.s32 %v422, %v428
    %v430 = vsel %vm63, %v419, 0
    %v431 = vadd.s32 %v423, %v430
    %v432 = vadd.s32 %v425, %v427
    %v433 = vadd.s32 %v429, %v431
    %v434 = vadd.s32 %v432, %v433
    %v435 = vand.u32 %v434, 65535
    %v436 = vshrl.u32 %v434, 16
    %v437 = vcvt.s32.f32 %v435
    %v438 = vcvt.s32.f32 %v436
    %439 = vadd.xlane.f32.xlu0 %v437
    %v440 = vpop.xlane.xlu0 %439
    %441 = vadd.xlane.f32.xlu0 %v438
    %v442 = vpop.xlane.xlu0 %441
    %v443 = vcvt.f32.s32 %v440
    %v444 = vcvt.f32.s32 %v442
    %v445 = vshll.u32 %v444, 16
    %v446 = vadd.s32 %v445, %v443
    %v447 = vrot.slane %v446, 4
    %v448 = vadd.s32 %v446, %v447
    %v449 = vrot.slane %v448, 2
    %v450 = vadd.s32 %v448, %v449
    %v451 = vrot.slane %v450, 1
    %v452 = vadd.s32 %v450, %v451
    %s453 = vtos %v452
    %p454 = scmp.ge.s32.totalorder %s453, 2048
    %s455 = scalar_select %p454, 1073741824, 0
    %s456 = sor.u32 %s455, 536870912
    %v457 = vstv %s456
    %vm458 = vcmp.ge.s32.totalorder %v388, %v457
    %vm459 = vcmp.ge.s32.totalorder %v389, %v457
    %vm460 = vcmp.ge.s32.totalorder %v390, %v457
    %vm461 = vcmp.ge.s32.totalorder %v391, %v457
    %vm462 = vcmp.ge.s32.totalorder %v392, %v457
    %vm463 = vcmp.ge.s32.totalorder %v393, %v457
    %vm464 = vcmp.ge.s32.totalorder %v394, %v457
    %vm465 = vcmp.ge.s32.totalorder %v395, %v457
    %v466 = vsel %vm458, 1, 0
    %v467 = vsel %vm459, 1, 0
    %v468 = vsel %vm460, 1, 0
    %v469 = vsel %vm461, 1, 0
    %v470 = vsel %vm462, 1, 0
    %v471 = vsel %vm463, 1, 0
    %v472 = vsel %vm464, 1, 0
    %v473 = vsel %vm465, 1, 0
    %v474 = vsel %vm63, %v466, 0
    %v475 = vsel %vm63, %v467, 0
    %v476 = vsel %vm63, %v468, 0
    %v477 = vsel %vm63, %v469, 0
    %v478 = vsel %vm63, %v470, 0
    %v479 = vadd.s32 %v474, %v478
    %v480 = vsel %vm63, %v471, 0
    %v481 = vadd.s32 %v475, %v480
    %v482 = vsel %vm63, %v472, 0
    %v483 = vadd.s32 %v476, %v482
    %v484 = vsel %vm63, %v473, 0
    %v485 = vadd.s32 %v477, %v484
    %v486 = vadd.s32 %v479, %v481
    %v487 = vadd.s32 %v483, %v485
    %v488 = vadd.s32 %v486, %v487
    %v489 = vand.u32 %v488, 65535
    %v490 = vshrl.u32 %v488, 16
    %v491 = vcvt.s32.f32 %v489
    %v492 = vcvt.s32.f32 %v490
    %493 = vadd.xlane.f32.xlu0 %v491
    %v494 = vpop.xlane.xlu0 %493
    %495 = vadd.xlane.f32.xlu0 %v492
    %v496 = vpop.xlane.xlu0 %495
    %v497 = vcvt.f32.s32 %v494
    %v498 = vcvt.f32.s32 %v496
    %v499 = vshll.u32 %v498, 16
    %v500 = vadd.s32 %v499, %v497
    %v501 = vrot.slane %v500, 4
    %v502 = vadd.s32 %v500, %v501
    %v503 = vrot.slane %v502, 2
    %v504 = vadd.s32 %v502, %v503
    %v505 = vrot.slane %v504, 1
    %v506 = vadd.s32 %v504, %v505
    %s507 = vtos %v506
    %p508 = scmp.ge.s32.totalorder %s507, 2048
    %s509 = scalar_select %p508, %s456, %s455
    %s510 = sor.u32 %s509, 268435456
    %v511 = vstv %s510
    %vm512 = vcmp.ge.s32.totalorder %v388, %v511
    %vm513 = vcmp.ge.s32.totalorder %v389, %v511
    %vm514 = vcmp.ge.s32.totalorder %v390, %v511
    %vm515 = vcmp.ge.s32.totalorder %v391, %v511
    %vm516 = vcmp.ge.s32.totalorder %v392, %v511
    %vm517 = vcmp.ge.s32.totalorder %v393, %v511
    %vm518 = vcmp.ge.s32.totalorder %v394, %v511
    %vm519 = vcmp.ge.s32.totalorder %v395, %v511
    %v520 = vsel %vm512, 1, 0
    %v521 = vsel %vm513, 1, 0
    %v522 = vsel %vm514, 1, 0
    %v523 = vsel %vm515, 1, 0
    %v524 = vsel %vm516, 1, 0
    %v525 = vsel %vm517, 1, 0
    %v526 = vsel %vm518, 1, 0
    %v527 = vsel %vm519, 1, 0
    %v528 = vsel %vm63, %v520, 0
    %v529 = vsel %vm63, %v521, 0
    %v530 = vsel %vm63, %v522, 0
    %v531 = vsel %vm63, %v523, 0
    %v532 = vsel %vm63, %v524, 0
    %v533 = vadd.s32 %v528, %v532
    %v534 = vsel %vm63, %v525, 0
    %v535 = vadd.s32 %v529, %v534
    %v536 = vsel %vm63, %v526, 0
    %v537 = vadd.s32 %v530, %v536
    %v538 = vsel %vm63, %v527, 0
    %v539 = vadd.s32 %v531, %v538
    %v540 = vadd.s32 %v533, %v535
    %v541 = vadd.s32 %v537, %v539
    %v542 = vadd.s32 %v540, %v541
    %v543 = vand.u32 %v542, 65535
    %v544 = vshrl.u32 %v542, 16
    %v545 = vcvt.s32.f32 %v543
    %v546 = vcvt.s32.f32 %v544
    %547 = vadd.xlane.f32.xlu0 %v545
    %v548 = vpop.xlane.xlu0 %547
    %549 = vadd.xlane.f32.xlu0 %v546
    %v550 = vpop.xlane.xlu0 %549
    %v551 = vcvt.f32.s32 %v548
    %v552 = vcvt.f32.s32 %v550
    %v553 = vshll.u32 %v552, 16
    %v554 = vadd.s32 %v553, %v551
    %v555 = vrot.slane %v554, 4
    %v556 = vadd.s32 %v554, %v555
    %v557 = vrot.slane %v556, 2
    %v558 = vadd.s32 %v556, %v557
    %v559 = vrot.slane %v558, 1
    %v560 = vadd.s32 %v558, %v559
    %s561 = vtos %v560
    %p562 = scmp.ge.s32.totalorder %s561, 2048
    %s563 = scalar_select %p562, %s510, %s509
    %s564 = sor.u32 %s563, 134217728
    %v565 = vstv %s564
    %vm566 = vcmp.ge.s32.totalorder %v388, %v565
    %vm567 = vcmp.ge.s32.totalorder %v389, %v565
    %vm568 = vcmp.ge.s32.totalorder %v390, %v565
    %vm569 = vcmp.ge.s32.totalorder %v391, %v565
    %vm570 = vcmp.ge.s32.totalorder %v392, %v565
    %vm571 = vcmp.ge.s32.totalorder %v393, %v565
    %vm572 = vcmp.ge.s32.totalorder %v394, %v565
    %vm573 = vcmp.ge.s32.totalorder %v395, %v565
    %v574 = vsel %vm566, 1, 0
    %v575 = vsel %vm567, 1, 0
    %v576 = vsel %vm568, 1, 0
    %v577 = vsel %vm569, 1, 0
    %v578 = vsel %vm570, 1, 0
    %v579 = vsel %vm571, 1, 0
    %v580 = vsel %vm572, 1, 0
    %v581 = vsel %vm573, 1, 0
    %v582 = vsel %vm63, %v574, 0
    %v583 = vsel %vm63, %v575, 0
    %v584 = vsel %vm63, %v576, 0
    %v585 = vsel %vm63, %v577, 0
    %v586 = vsel %vm63, %v578, 0
    %v587 = vadd.s32 %v582, %v586
    %v588 = vsel %vm63, %v579, 0
    %v589 = vadd.s32 %v583, %v588
    %v590 = vsel %vm63, %v580, 0
    %v591 = vadd.s32 %v584, %v590
    %v592 = vsel %vm63, %v581, 0
    %v593 = vadd.s32 %v585, %v592
    %v594 = vadd.s32 %v587, %v589
    %v595 = vadd.s32 %v591, %v593
    %v596 = vadd.s32 %v594, %v595
    %v597 = vand.u32 %v596, 65535
    %v598 = vshrl.u32 %v596, 16
    %v599 = vcvt.s32.f32 %v597
    %v600 = vcvt.s32.f32 %v598
    %601 = vadd.xlane.f32.xlu0 %v599
    %v602 = vpop.xlane.xlu0 %601
    %603 = vadd.xlane.f32.xlu0 %v600
    %v604 = vpop.xlane.xlu0 %603
    %v605 = vcvt.f32.s32 %v602
    %v606 = vcvt.f32.s32 %v604
    %v607 = vshll.u32 %v606, 16
    %v608 = vadd.s32 %v607, %v605
    %v609 = vrot.slane %v608, 4
    %v610 = vadd.s32 %v608, %v609
    %v611 = vrot.slane %v610, 2
    %v612 = vadd.s32 %v610, %v611
    %v613 = vrot.slane %v612, 1
    %v614 = vadd.s32 %v612, %v613
    %s615 = vtos %v614
    %p616 = scmp.ge.s32.totalorder %s615, 2048
    %s617 = scalar_select %p616, %s564, %s563
    %s618 = sor.u32 %s617, 67108864
    %v619 = vstv %s618
    %vm620 = vcmp.ge.s32.totalorder %v388, %v619
    %vm621 = vcmp.ge.s32.totalorder %v389, %v619
    %vm622 = vcmp.ge.s32.totalorder %v390, %v619
    %vm623 = vcmp.ge.s32.totalorder %v391, %v619
    %vm624 = vcmp.ge.s32.totalorder %v392, %v619
    %vm625 = vcmp.ge.s32.totalorder %v393, %v619
    %vm626 = vcmp.ge.s32.totalorder %v394, %v619
    %vm627 = vcmp.ge.s32.totalorder %v395, %v619
    %v628 = vsel %vm620, 1, 0
    %v629 = vsel %vm621, 1, 0
    %v630 = vsel %vm622, 1, 0
    %v631 = vsel %vm623, 1, 0
    %v632 = vsel %vm624, 1, 0
    %v633 = vsel %vm625, 1, 0
    %v634 = vsel %vm626, 1, 0
    %v635 = vsel %vm627, 1, 0
    %v636 = vsel %vm63, %v628, 0
    %v637 = vsel %vm63, %v629, 0
    %v638 = vsel %vm63, %v630, 0
    %v639 = vsel %vm63, %v631, 0
    %v640 = vsel %vm63, %v632, 0
    %v641 = vadd.s32 %v636, %v640
    %v642 = vsel %vm63, %v633, 0
    %v643 = vadd.s32 %v637, %v642
    %v644 = vsel %vm63, %v634, 0
    %v645 = vadd.s32 %v638, %v644
    %v646 = vsel %vm63, %v635, 0
    %v647 = vadd.s32 %v639, %v646
    %v648 = vadd.s32 %v641, %v643
    %v649 = vadd.s32 %v645, %v647
    %v650 = vadd.s32 %v648, %v649
    %v651 = vand.u32 %v650, 65535
    %v652 = vshrl.u32 %v650, 16
    %v653 = vcvt.s32.f32 %v651
    %v654 = vcvt.s32.f32 %v652
    %655 = vadd.xlane.f32.xlu0 %v653
    %v656 = vpop.xlane.xlu0 %655
    %657 = vadd.xlane.f32.xlu0 %v654
    %v658 = vpop.xlane.xlu0 %657
    %v659 = vcvt.f32.s32 %v656
    %v660 = vcvt.f32.s32 %v658
    %v661 = vshll.u32 %v660, 16
    %v662 = vadd.s32 %v661, %v659
    %v663 = vrot.slane %v662, 4
    %v664 = vadd.s32 %v662, %v663
    %v665 = vrot.slane %v664, 2
    %v666 = vadd.s32 %v664, %v665
    %v667 = vrot.slane %v666, 1
    %v668 = vadd.s32 %v666, %v667
    %s669 = vtos %v668
    %p670 = scmp.ge.s32.totalorder %s669, 2048
    %s671 = scalar_select %p670, %s618, %s617
    %s672 = sor.u32 %s671, 33554432
    %v673 = vstv %s672
    %vm674 = vcmp.ge.s32.totalorder %v388, %v673
    %vm675 = vcmp.ge.s32.totalorder %v389, %v673
    %vm676 = vcmp.ge.s32.totalorder %v390, %v673
    %vm677 = vcmp.ge.s32.totalorder %v391, %v673
    %vm678 = vcmp.ge.s32.totalorder %v392, %v673
    %vm679 = vcmp.ge.s32.totalorder %v393, %v673
    %vm680 = vcmp.ge.s32.totalorder %v394, %v673
    %vm681 = vcmp.ge.s32.totalorder %v395, %v673
    %v682 = vsel %vm674, 1, 0
    %v683 = vsel %vm675, 1, 0
    %v684 = vsel %vm676, 1, 0
    %v685 = vsel %vm677, 1, 0
    %v686 = vsel %vm678, 1, 0
    %v687 = vsel %vm679, 1, 0
    %v688 = vsel %vm680, 1, 0
    %v689 = vsel %vm681, 1, 0
    %v690 = vsel %vm63, %v682, 0
    %v691 = vsel %vm63, %v683, 0
    %v692 = vsel %vm63, %v684, 0
    %v693 = vsel %vm63, %v685, 0
    %v694 = vsel %vm63, %v686, 0
    %v695 = vadd.s32 %v690, %v694
    %v696 = vsel %vm63, %v687, 0
    %v697 = vadd.s32 %v691, %v696
    %v698 = vsel %vm63, %v688, 0
    %v699 = vadd.s32 %v692, %v698
    %v700 = vsel %vm63, %v689, 0
    %v701 = vadd.s32 %v693, %v700
    %v702 = vadd.s32 %v695, %v697
    %v703 = vadd.s32 %v699, %v701
    %v704 = vadd.s32 %v702, %v703
    %v705 = vand.u32 %v704, 65535
    %v706 = vshrl.u32 %v704, 16
    %v707 = vcvt.s32.f32 %v705
    %v708 = vcvt.s32.f32 %v706
    %709 = vadd.xlane.f32.xlu0 %v707
    %v710 = vpop.xlane.xlu0 %709
    %711 = vadd.xlane.f32.xlu0 %v708
    %v712 = vpop.xlane.xlu0 %711
    %v713 = vcvt.f32.s32 %v710
    %v714 = vcvt.f32.s32 %v712
    %v715 = vshll.u32 %v714, 16
    %v716 = vadd.s32 %v715, %v713
    %v717 = vrot.slane %v716, 4
    %v718 = vadd.s32 %v716, %v717
    %v719 = vrot.slane %v718, 2
    %v720 = vadd.s32 %v718, %v719
    %v721 = vrot.slane %v720, 1
    %v722 = vadd.s32 %v720, %v721
    %s723 = vtos %v722
    %p724 = scmp.ge.s32.totalorder %s723, 2048
    %s725 = scalar_select %p724, %s672, %s671
    %s726 = sor.u32 %s725, 16777216
    %v727 = vstv %s726
    %vm728 = vcmp.ge.s32.totalorder %v388, %v727
    %vm729 = vcmp.ge.s32.totalorder %v389, %v727
    %vm730 = vcmp.ge.s32.totalorder %v390, %v727
    %vm731 = vcmp.ge.s32.totalorder %v391, %v727
    %vm732 = vcmp.ge.s32.totalorder %v392, %v727
    %vm733 = vcmp.ge.s32.totalorder %v393, %v727
    %vm734 = vcmp.ge.s32.totalorder %v394, %v727
    %vm735 = vcmp.ge.s32.totalorder %v395, %v727
    %v736 = vsel %vm728, 1, 0
    %v737 = vsel %vm729, 1, 0
    %v738 = vsel %vm730, 1, 0
    %v739 = vsel %vm731, 1, 0
    %v740 = vsel %vm732, 1, 0
    %v741 = vsel %vm733, 1, 0
    %v742 = vsel %vm734, 1, 0
    %v743 = vsel %vm735, 1, 0
    %v744 = vsel %vm63, %v736, 0
    %v745 = vsel %vm63, %v737, 0
    %v746 = vsel %vm63, %v738, 0
    %v747 = vsel %vm63, %v739, 0
    %v748 = vsel %vm63, %v740, 0
    %v749 = vadd.s32 %v744, %v748
    %v750 = vsel %vm63, %v741, 0
    %v751 = vadd.s32 %v745, %v750
    %v752 = vsel %vm63, %v742, 0
    %v753 = vadd.s32 %v746, %v752
    %v754 = vsel %vm63, %v743, 0
    %v755 = vadd.s32 %v747, %v754
    %v756 = vadd.s32 %v749, %v751
    %v757 = vadd.s32 %v753, %v755
    %v758 = vadd.s32 %v756, %v757
    %v759 = vand.u32 %v758, 65535
    %v760 = vshrl.u32 %v758, 16
    %v761 = vcvt.s32.f32 %v759
    %v762 = vcvt.s32.f32 %v760
    %763 = vadd.xlane.f32.xlu0 %v761
    %v764 = vpop.xlane.xlu0 %763
    %765 = vadd.xlane.f32.xlu0 %v762
    %v766 = vpop.xlane.xlu0 %765
    %v767 = vcvt.f32.s32 %v764
    %v768 = vcvt.f32.s32 %v766
    %v769 = vshll.u32 %v768, 16
    %v770 = vadd.s32 %v769, %v767
    %v771 = vrot.slane %v770, 4
    %v772 = vadd.s32 %v770, %v771
    %v773 = vrot.slane %v772, 2
    %v774 = vadd.s32 %v772, %v773
    %v775 = vrot.slane %v774, 1
    %v776 = vadd.s32 %v774, %v775
    %s777 = vtos %v776
    %p778 = scmp.ge.s32.totalorder %s777, 2048
    %s779 = scalar_select %p778, %s726, %s725
    %s780 = sor.u32 %s779, 8388608
    %v781 = vstv %s780
    %vm782 = vcmp.ge.s32.totalorder %v388, %v781
    %vm783 = vcmp.ge.s32.totalorder %v389, %v781
    %vm784 = vcmp.ge.s32.totalorder %v390, %v781
    %vm785 = vcmp.ge.s32.totalorder %v391, %v781
    %vm786 = vcmp.ge.s32.totalorder %v392, %v781
    %vm787 = vcmp.ge.s32.totalorder %v393, %v781
    %vm788 = vcmp.ge.s32.totalorder %v394, %v781
    %vm789 = vcmp.ge.s32.totalorder %v395, %v781
    %v790 = vsel %vm782, 1, 0
    %v791 = vsel %vm783, 1, 0
    %v792 = vsel %vm784, 1, 0
    %v793 = vsel %vm785, 1, 0
    %v794 = vsel %vm786, 1, 0
    %v795 = vsel %vm787, 1, 0
    %v796 = vsel %vm788, 1, 0
    %v797 = vsel %vm789, 1, 0
    %v798 = vsel %vm63, %v790, 0
    %v799 = vsel %vm63, %v791, 0
    %v800 = vsel %vm63, %v792, 0
    %v801 = vsel %vm63, %v793, 0
    %v802 = vsel %vm63, %v794, 0
    %v803 = vadd.s32 %v798, %v802
    %v804 = vsel %vm63, %v795, 0
    %v805 = vadd.s32 %v799, %v804
    %v806 = vsel %vm63, %v796, 0
    %v807 = vadd.s32 %v800, %v806
    %v808 = vsel %vm63, %v797, 0
    %v809 = vadd.s32 %v801, %v808
    %v810 = vadd.s32 %v803, %v805
    %v811 = vadd.s32 %v807, %v809
    %v812 = vadd.s32 %v810, %v811
    %v813 = vand.u32 %v812, 65535
    %v814 = vshrl.u32 %v812, 16
    %v815 = vcvt.s32.f32 %v813
    %v816 = vcvt.s32.f32 %v814
    %817 = vadd.xlane.f32.xlu0 %v815
    %v818 = vpop.xlane.xlu0 %817
    %819 = vadd.xlane.f32.xlu0 %v816
    %v820 = vpop.xlane.xlu0 %819
    %v821 = vcvt.f32.s32 %v818
    %v822 = vcvt.f32.s32 %v820
    %v823 = vshll.u32 %v822, 16
    %v824 = vadd.s32 %v823, %v821
    %v825 = vrot.slane %v824, 4
    %v826 = vadd.s32 %v824, %v825
    %v827 = vrot.slane %v826, 2
    %v828 = vadd.s32 %v826, %v827
    %v829 = vrot.slane %v828, 1
    %v830 = vadd.s32 %v828, %v829
    %s831 = vtos %v830
    %p832 = scmp.ge.s32.totalorder %s831, 2048
    %s833 = scalar_select %p832, %s780, %s779
    %s834 = sor.u32 %s833, 4194304
    %v835 = vstv %s834
    %vm836 = vcmp.ge.s32.totalorder %v388, %v835
    %vm837 = vcmp.ge.s32.totalorder %v389, %v835
    %vm838 = vcmp.ge.s32.totalorder %v390, %v835
    %vm839 = vcmp.ge.s32.totalorder %v391, %v835
    %vm840 = vcmp.ge.s32.totalorder %v392, %v835
    %vm841 = vcmp.ge.s32.totalorder %v393, %v835
    %vm842 = vcmp.ge.s32.totalorder %v394, %v835
    %vm843 = vcmp.ge.s32.totalorder %v395, %v835
    %v844 = vsel %vm836, 1, 0
    %v845 = vsel %vm837, 1, 0
    %v846 = vsel %vm838, 1, 0
    %v847 = vsel %vm839, 1, 0
    %v848 = vsel %vm840, 1, 0
    %v849 = vsel %vm841, 1, 0
    %v850 = vsel %vm842, 1, 0
    %v851 = vsel %vm843, 1, 0
    %v852 = vsel %vm63, %v844, 0
    %v853 = vsel %vm63, %v845, 0
    %v854 = vsel %vm63, %v846, 0
    %v855 = vsel %vm63, %v847, 0
    %v856 = vsel %vm63, %v848, 0
    %v857 = vadd.s32 %v852, %v856
    %v858 = vsel %vm63, %v849, 0
    %v859 = vadd.s32 %v853, %v858
    %v860 = vsel %vm63, %v850, 0
    %v861 = vadd.s32 %v854, %v860
    %v862 = vsel %vm63, %v851, 0
    %v863 = vadd.s32 %v855, %v862
    %v864 = vadd.s32 %v857, %v859
    %v865 = vadd.s32 %v861, %v863
    %v866 = vadd.s32 %v864, %v865
    %v867 = vand.u32 %v866, 65535
    %v868 = vshrl.u32 %v866, 16
    %v869 = vcvt.s32.f32 %v867
    %v870 = vcvt.s32.f32 %v868
    %871 = vadd.xlane.f32.xlu0 %v869
    %v872 = vpop.xlane.xlu0 %871
    %873 = vadd.xlane.f32.xlu0 %v870
    %v874 = vpop.xlane.xlu0 %873
    %v875 = vcvt.f32.s32 %v872
    %v876 = vcvt.f32.s32 %v874
    %v877 = vshll.u32 %v876, 16
    %v878 = vadd.s32 %v877, %v875
    %v879 = vrot.slane %v878, 4
    %v880 = vadd.s32 %v878, %v879
    %v881 = vrot.slane %v880, 2
    %v882 = vadd.s32 %v880, %v881
    %v883 = vrot.slane %v882, 1
    %v884 = vadd.s32 %v882, %v883
    %s885 = vtos %v884
    %p886 = scmp.ge.s32.totalorder %s885, 2048
    %s887 = scalar_select %p886, %s834, %s833
    %s888 = sor.u32 %s887, 2097152
    %v889 = vstv %s888
    %vm890 = vcmp.ge.s32.totalorder %v388, %v889
    %vm891 = vcmp.ge.s32.totalorder %v389, %v889
    %vm892 = vcmp.ge.s32.totalorder %v390, %v889
    %vm893 = vcmp.ge.s32.totalorder %v391, %v889
    %vm894 = vcmp.ge.s32.totalorder %v392, %v889
    %vm895 = vcmp.ge.s32.totalorder %v393, %v889
    %vm896 = vcmp.ge.s32.totalorder %v394, %v889
    %vm897 = vcmp.ge.s32.totalorder %v395, %v889
    %v898 = vsel %vm890, 1, 0
    %v899 = vsel %vm891, 1, 0
    %v900 = vsel %vm892, 1, 0
    %v901 = vsel %vm893, 1, 0
    %v902 = vsel %vm894, 1, 0
    %v903 = vsel %vm895, 1, 0
    %v904 = vsel %vm896, 1, 0
    %v905 = vsel %vm897, 1, 0
    %v906 = vsel %vm63, %v898, 0
    %v907 = vsel %vm63, %v899, 0
    %v908 = vsel %vm63, %v900, 0
    %v909 = vsel %vm63, %v901, 0
    %v910 = vsel %vm63, %v902, 0
    %v911 = vadd.s32 %v906, %v910
    %v912 = vsel %vm63, %v903, 0
    %v913 = vadd.s32 %v907, %v912
    %v914 = vsel %vm63, %v904, 0
    %v915 = vadd.s32 %v908, %v914
    %v916 = vsel %vm63, %v905, 0
    %v917 = vadd.s32 %v909, %v916
    %v918 = vadd.s32 %v911, %v913
    %v919 = vadd.s32 %v915, %v917
    %v920 = vadd.s32 %v918, %v919
    %v921 = vand.u32 %v920, 65535
    %v922 = vshrl.u32 %v920, 16
    %v923 = vcvt.s32.f32 %v921
    %v924 = vcvt.s32.f32 %v922
    %925 = vadd.xlane.f32.xlu0 %v923
    %v926 = vpop.xlane.xlu0 %925
    %927 = vadd.xlane.f32.xlu0 %v924
    %v928 = vpop.xlane.xlu0 %927
    %v929 = vcvt.f32.s32 %v926
    %v930 = vcvt.f32.s32 %v928
    %v931 = vshll.u32 %v930, 16
    %v932 = vadd.s32 %v931, %v929
    %v933 = vrot.slane %v932, 4
    %v934 = vadd.s32 %v932, %v933
    %v935 = vrot.slane %v934, 2
    %v936 = vadd.s32 %v934, %v935
    %v937 = vrot.slane %v936, 1
    %v938 = vadd.s32 %v936, %v937
    %s939 = vtos %v938
    %p940 = scmp.ge.s32.totalorder %s939, 2048
    %s941 = scalar_select %p940, %s888, %s887
    %s942 = sor.u32 %s941, 1048576
    %v943 = vstv %s942
    %vm944 = vcmp.ge.s32.totalorder %v388, %v943
    %vm945 = vcmp.ge.s32.totalorder %v389, %v943
    %vm946 = vcmp.ge.s32.totalorder %v390, %v943
    %vm947 = vcmp.ge.s32.totalorder %v391, %v943
    %vm948 = vcmp.ge.s32.totalorder %v392, %v943
    %vm949 = vcmp.ge.s32.totalorder %v393, %v943
    %vm950 = vcmp.ge.s32.totalorder %v394, %v943
    %vm951 = vcmp.ge.s32.totalorder %v395, %v943
    %v952 = vsel %vm944, 1, 0
    %v953 = vsel %vm945, 1, 0
    %v954 = vsel %vm946, 1, 0
    %v955 = vsel %vm947, 1, 0
    %v956 = vsel %vm948, 1, 0
    %v957 = vsel %vm949, 1, 0
    %v958 = vsel %vm950, 1, 0
    %v959 = vsel %vm951, 1, 0
    %v960 = vsel %vm63, %v952, 0
    %v961 = vsel %vm63, %v953, 0
    %v962 = vsel %vm63, %v954, 0
    %v963 = vsel %vm63, %v955, 0
    %v964 = vsel %vm63, %v956, 0
    %v965 = vadd.s32 %v960, %v964
    %v966 = vsel %vm63, %v957, 0
    %v967 = vadd.s32 %v961, %v966
    %v968 = vsel %vm63, %v958, 0
    %v969 = vadd.s32 %v962, %v968
    %v970 = vsel %vm63, %v959, 0
    %v971 = vadd.s32 %v963, %v970
    %v972 = vadd.s32 %v965, %v967
    %v973 = vadd.s32 %v969, %v971
    %v974 = vadd.s32 %v972, %v973
    %v975 = vand.u32 %v974, 65535
    %v976 = vshrl.u32 %v974, 16
    %v977 = vcvt.s32.f32 %v975
    %v978 = vcvt.s32.f32 %v976
    %979 = vadd.xlane.f32.xlu0 %v977
    %v980 = vpop.xlane.xlu0 %979
    %981 = vadd.xlane.f32.xlu0 %v978
    %v982 = vpop.xlane.xlu0 %981
    %v983 = vcvt.f32.s32 %v980
    %v984 = vcvt.f32.s32 %v982
    %v985 = vshll.u32 %v984, 16
    %v986 = vadd.s32 %v985, %v983
    %v987 = vrot.slane %v986, 4
    %v988 = vadd.s32 %v986, %v987
    %v989 = vrot.slane %v988, 2
    %v990 = vadd.s32 %v988, %v989
    %v991 = vrot.slane %v990, 1
    %v992 = vadd.s32 %v990, %v991
    %s993 = vtos %v992
    %p994 = scmp.ge.s32.totalorder %s993, 2048
    %s995 = scalar_select %p994, %s942, %s941
    %s996 = sor.u32 %s995, 524288
    %v997 = vstv %s996
    %vm998 = vcmp.ge.s32.totalorder %v388, %v997
    %vm999 = vcmp.ge.s32.totalorder %v389, %v997
    %vm1000 = vcmp.ge.s32.totalorder %v390, %v997
    %vm1001 = vcmp.ge.s32.totalorder %v391, %v997
    %vm1002 = vcmp.ge.s32.totalorder %v392, %v997
    %vm1003 = vcmp.ge.s32.totalorder %v393, %v997
    %vm1004 = vcmp.ge.s32.totalorder %v394, %v997
    %vm1005 = vcmp.ge.s32.totalorder %v395, %v997
    %v1006 = vsel %vm998, 1, 0
    %v1007 = vsel %vm999, 1, 0
    %v1008 = vsel %vm1000, 1, 0
    %v1009 = vsel %vm1001, 1, 0
    %v1010 = vsel %vm1002, 1, 0
    %v1011 = vsel %vm1003, 1, 0
    %v1012 = vsel %vm1004, 1, 0
    %v1013 = vsel %vm1005, 1, 0
    %v1014 = vsel %vm63, %v1006, 0
    %v1015 = vsel %vm63, %v1007, 0
    %v1016 = vsel %vm63, %v1008, 0
    %v1017 = vsel %vm63, %v1009, 0
    %v1018 = vsel %vm63, %v1010, 0
    %v1019 = vadd.s32 %v1014, %v1018
    %v1020 = vsel %vm63, %v1011, 0
    %v1021 = vadd.s32 %v1015, %v1020
    %v1022 = vsel %vm63, %v1012, 0
    %v1023 = vadd.s32 %v1016, %v1022
    %v1024 = vsel %vm63, %v1013, 0
    %v1025 = vadd.s32 %v1017, %v1024
    %v1026 = vadd.s32 %v1019, %v1021
    %v1027 = vadd.s32 %v1023, %v1025
    %v1028 = vadd.s32 %v1026, %v1027
    %v1029 = vand.u32 %v1028, 65535
    %v1030 = vshrl.u32 %v1028, 16
    %v1031 = vcvt.s32.f32 %v1029
    %v1032 = vcvt.s32.f32 %v1030
    %1033 = vadd.xlane.f32.xlu0 %v1031
    %v1034 = vpop.xlane.xlu0 %1033
    %1035 = vadd.xlane.f32.xlu0 %v1032
    %v1036 = vpop.xlane.xlu0 %1035
    %v1037 = vcvt.f32.s32 %v1034
    %v1038 = vcvt.f32.s32 %v1036
    %v1039 = vshll.u32 %v1038, 16
    %v1040 = vadd.s32 %v1039, %v1037
    %v1041 = vrot.slane %v1040, 4
    %v1042 = vadd.s32 %v1040, %v1041
    %v1043 = vrot.slane %v1042, 2
    %v1044 = vadd.s32 %v1042, %v1043
    %v1045 = vrot.slane %v1044, 1
    %v1046 = vadd.s32 %v1044, %v1045
    %s1047 = vtos %v1046
    %p1048 = scmp.ge.s32.totalorder %s1047, 2048
    %s1049 = scalar_select %p1048, %s996, %s995
    %s1050 = sor.u32 %s1049, 262144
    %v1051 = vstv %s1050
    %vm1052 = vcmp.ge.s32.totalorder %v388, %v1051
    %vm1053 = vcmp.ge.s32.totalorder %v389, %v1051
    %vm1054 = vcmp.ge.s32.totalorder %v390, %v1051
    %vm1055 = vcmp.ge.s32.totalorder %v391, %v1051
    %vm1056 = vcmp.ge.s32.totalorder %v392, %v1051
    %vm1057 = vcmp.ge.s32.totalorder %v393, %v1051
    %vm1058 = vcmp.ge.s32.totalorder %v394, %v1051
    %vm1059 = vcmp.ge.s32.totalorder %v395, %v1051
    %v1060 = vsel %vm1052, 1, 0
    %v1061 = vsel %vm1053, 1, 0
    %v1062 = vsel %vm1054, 1, 0
    %v1063 = vsel %vm1055, 1, 0
    %v1064 = vsel %vm1056, 1, 0
    %v1065 = vsel %vm1057, 1, 0
    %v1066 = vsel %vm1058, 1, 0
    %v1067 = vsel %vm1059, 1, 0
    %v1068 = vsel %vm63, %v1060, 0
    %v1069 = vsel %vm63, %v1061, 0
    %v1070 = vsel %vm63, %v1062, 0
    %v1071 = vsel %vm63, %v1063, 0
    %v1072 = vsel %vm63, %v1064, 0
    %v1073 = vadd.s32 %v1068, %v1072
    %v1074 = vsel %vm63, %v1065, 0
    %v1075 = vadd.s32 %v1069, %v1074
    %v1076 = vsel %vm63, %v1066, 0
    %v1077 = vadd.s32 %v1070, %v1076
    %v1078 = vsel %vm63, %v1067, 0
    %v1079 = vadd.s32 %v1071, %v1078
    %v1080 = vadd.s32 %v1073, %v1075
    %v1081 = vadd.s32 %v1077, %v1079
    %v1082 = vadd.s32 %v1080, %v1081
    %v1083 = vand.u32 %v1082, 65535
    %v1084 = vshrl.u32 %v1082, 16
    %v1085 = vcvt.s32.f32 %v1083
    %v1086 = vcvt.s32.f32 %v1084
    %1087 = vadd.xlane.f32.xlu0 %v1085
    %v1088 = vpop.xlane.xlu0 %1087
    %1089 = vadd.xlane.f32.xlu0 %v1086
    %v1090 = vpop.xlane.xlu0 %1089
    %v1091 = vcvt.f32.s32 %v1088
    %v1092 = vcvt.f32.s32 %v1090
    %v1093 = vshll.u32 %v1092, 16
    %v1094 = vadd.s32 %v1093, %v1091
    %v1095 = vrot.slane %v1094, 4
    %v1096 = vadd.s32 %v1094, %v1095
    %v1097 = vrot.slane %v1096, 2
    %v1098 = vadd.s32 %v1096, %v1097
    %v1099 = vrot.slane %v1098, 1
    %v1100 = vadd.s32 %v1098, %v1099
    %s1101 = vtos %v1100
    %p1102 = scmp.ge.s32.totalorder %s1101, 2048
    %s1103 = scalar_select %p1102, %s1050, %s1049
    %s1104 = sor.u32 %s1103, 131072
    %v1105 = vstv %s1104
    %vm1106 = vcmp.ge.s32.totalorder %v388, %v1105
    %vm1107 = vcmp.ge.s32.totalorder %v389, %v1105
    %vm1108 = vcmp.ge.s32.totalorder %v390, %v1105
    %vm1109 = vcmp.ge.s32.totalorder %v391, %v1105
    %vm1110 = vcmp.ge.s32.totalorder %v392, %v1105
    %vm1111 = vcmp.ge.s32.totalorder %v393, %v1105
    %vm1112 = vcmp.ge.s32.totalorder %v394, %v1105
    %vm1113 = vcmp.ge.s32.totalorder %v395, %v1105
    %v1114 = vsel %vm1106, 1, 0
    %v1115 = vsel %vm1107, 1, 0
    %v1116 = vsel %vm1108, 1, 0
    %v1117 = vsel %vm1109, 1, 0
    %v1118 = vsel %vm1110, 1, 0
    %v1119 = vsel %vm1111, 1, 0
    %v1120 = vsel %vm1112, 1, 0
    %v1121 = vsel %vm1113, 1, 0
    %v1122 = vsel %vm63, %v1114, 0
    %v1123 = vsel %vm63, %v1115, 0
    %v1124 = vsel %vm63, %v1116, 0
    %v1125 = vsel %vm63, %v1117, 0
    %v1126 = vsel %vm63, %v1118, 0
    %v1127 = vadd.s32 %v1122, %v1126
    %v1128 = vsel %vm63, %v1119, 0
    %v1129 = vadd.s32 %v1123, %v1128
    %v1130 = vsel %vm63, %v1120, 0
    %v1131 = vadd.s32 %v1124, %v1130
    %v1132 = vsel %vm63, %v1121, 0
    %v1133 = vadd.s32 %v1125, %v1132
    %v1134 = vadd.s32 %v1127, %v1129
    %v1135 = vadd.s32 %v1131, %v1133
    %v1136 = vadd.s32 %v1134, %v1135
    %v1137 = vand.u32 %v1136, 65535
    %v1138 = vshrl.u32 %v1136, 16
    %v1139 = vcvt.s32.f32 %v1137
    %v1140 = vcvt.s32.f32 %v1138
    %1141 = vadd.xlane.f32.xlu0 %v1139
    %v1142 = vpop.xlane.xlu0 %1141
    %1143 = vadd.xlane.f32.xlu0 %v1140
    %v1144 = vpop.xlane.xlu0 %1143
    %v1145 = vcvt.f32.s32 %v1142
    %v1146 = vcvt.f32.s32 %v1144
    %v1147 = vshll.u32 %v1146, 16
    %v1148 = vadd.s32 %v1147, %v1145
    %v1149 = vrot.slane %v1148, 4
    %v1150 = vadd.s32 %v1148, %v1149
    %v1151 = vrot.slane %v1150, 2
    %v1152 = vadd.s32 %v1150, %v1151
    %v1153 = vrot.slane %v1152, 1
    %v1154 = vadd.s32 %v1152, %v1153
    %s1155 = vtos %v1154
    %p1156 = scmp.ge.s32.totalorder %s1155, 2048
    %s1157 = scalar_select %p1156, %s1104, %s1103
    %s1158 = sor.u32 %s1157, 65536
    %v1159 = vstv %s1158
    %vm1160 = vcmp.ge.s32.totalorder %v388, %v1159
    %vm1161 = vcmp.ge.s32.totalorder %v389, %v1159
    %vm1162 = vcmp.ge.s32.totalorder %v390, %v1159
    %vm1163 = vcmp.ge.s32.totalorder %v391, %v1159
    %vm1164 = vcmp.ge.s32.totalorder %v392, %v1159
    %vm1165 = vcmp.ge.s32.totalorder %v393, %v1159
    %vm1166 = vcmp.ge.s32.totalorder %v394, %v1159
    %vm1167 = vcmp.ge.s32.totalorder %v395, %v1159
    %v1168 = vsel %vm1160, 1, 0
    %v1169 = vsel %vm1161, 1, 0
    %v1170 = vsel %vm1162, 1, 0
    %v1171 = vsel %vm1163, 1, 0
    %v1172 = vsel %vm1164, 1, 0
    %v1173 = vsel %vm1165, 1, 0
    %v1174 = vsel %vm1166, 1, 0
    %v1175 = vsel %vm1167, 1, 0
    %v1176 = vsel %vm63, %v1168, 0
    %v1177 = vsel %vm63, %v1169, 0
    %v1178 = vsel %vm63, %v1170, 0
    %v1179 = vsel %vm63, %v1171, 0
    %v1180 = vsel %vm63, %v1172, 0
    %v1181 = vadd.s32 %v1176, %v1180
    %v1182 = vsel %vm63, %v1173, 0
    %v1183 = vadd.s32 %v1177, %v1182
    %v1184 = vsel %vm63, %v1174, 0
    %v1185 = vadd.s32 %v1178, %v1184
    %v1186 = vsel %vm63, %v1175, 0
    %v1187 = vadd.s32 %v1179, %v1186
    %v1188 = vadd.s32 %v1181, %v1183
    %v1189 = vadd.s32 %v1185, %v1187
    %v1190 = vadd.s32 %v1188, %v1189
    %v1191 = vand.u32 %v1190, 65535
    %v1192 = vshrl.u32 %v1190, 16
    %v1193 = vcvt.s32.f32 %v1191
    %v1194 = vcvt.s32.f32 %v1192
    %1195 = vadd.xlane.f32.xlu0 %v1193
    %v1196 = vpop.xlane.xlu0 %1195
    %1197 = vadd.xlane.f32.xlu0 %v1194
    %v1198 = vpop.xlane.xlu0 %1197
    %v1199 = vcvt.f32.s32 %v1196
    %v1200 = vcvt.f32.s32 %v1198
    %v1201 = vshll.u32 %v1200, 16
    %v1202 = vadd.s32 %v1201, %v1199
    %v1203 = vrot.slane %v1202, 4
    %v1204 = vadd.s32 %v1202, %v1203
    %v1205 = vrot.slane %v1204, 2
    %v1206 = vadd.s32 %v1204, %v1205
    %v1207 = vrot.slane %v1206, 1
    %v1208 = vadd.s32 %v1206, %v1207
    %s1209 = vtos %v1208
    %p1210 = scmp.ge.s32.totalorder %s1209, 2048
    %s1211 = scalar_select %p1210, %s1158, %s1157
    %s1212 = sor.u32 %s1211, 32768
    %v1213 = vstv %s1212
    %vm1214 = vcmp.ge.s32.totalorder %v388, %v1213
    %vm1215 = vcmp.ge.s32.totalorder %v389, %v1213
    %vm1216 = vcmp.ge.s32.totalorder %v390, %v1213
    %vm1217 = vcmp.ge.s32.totalorder %v391, %v1213
    %vm1218 = vcmp.ge.s32.totalorder %v392, %v1213
    %vm1219 = vcmp.ge.s32.totalorder %v393, %v1213
    %vm1220 = vcmp.ge.s32.totalorder %v394, %v1213
    %vm1221 = vcmp.ge.s32.totalorder %v395, %v1213
    %v1222 = vsel %vm1214, 1, 0
    %v1223 = vsel %vm1215, 1, 0
    %v1224 = vsel %vm1216, 1, 0
    %v1225 = vsel %vm1217, 1, 0
    %v1226 = vsel %vm1218, 1, 0
    %v1227 = vsel %vm1219, 1, 0
    %v1228 = vsel %vm1220, 1, 0
    %v1229 = vsel %vm1221, 1, 0
    %v1230 = vsel %vm63, %v1222, 0
    %v1231 = vsel %vm63, %v1223, 0
    %v1232 = vsel %vm63, %v1224, 0
    %v1233 = vsel %vm63, %v1225, 0
    %v1234 = vsel %vm63, %v1226, 0
    %v1235 = vadd.s32 %v1230, %v1234
    %v1236 = vsel %vm63, %v1227, 0
    %v1237 = vadd.s32 %v1231, %v1236
    %v1238 = vsel %vm63, %v1228, 0
    %v1239 = vadd.s32 %v1232, %v1238
    %v1240 = vsel %vm63, %v1229, 0
    %v1241 = vadd.s32 %v1233, %v1240
    %v1242 = vadd.s32 %v1235, %v1237
    %v1243 = vadd.s32 %v1239, %v1241
    %v1244 = vadd.s32 %v1242, %v1243
    %v1245 = vand.u32 %v1244, 65535
    %v1246 = vshrl.u32 %v1244, 16
    %v1247 = vcvt.s32.f32 %v1245
    %v1248 = vcvt.s32.f32 %v1246
    %1249 = vadd.xlane.f32.xlu0 %v1247
    %v1250 = vpop.xlane.xlu0 %1249
    %1251 = vadd.xlane.f32.xlu0 %v1248
    %v1252 = vpop.xlane.xlu0 %1251
    %v1253 = vcvt.f32.s32 %v1250
    %v1254 = vcvt.f32.s32 %v1252
    %v1255 = vshll.u32 %v1254, 16
    %v1256 = vadd.s32 %v1255, %v1253
    %v1257 = vrot.slane %v1256, 4
    %v1258 = vadd.s32 %v1256, %v1257
    %v1259 = vrot.slane %v1258, 2
    %v1260 = vadd.s32 %v1258, %v1259
    %v1261 = vrot.slane %v1260, 1
    %v1262 = vadd.s32 %v1260, %v1261
    %s1263 = vtos %v1262
    %p1264 = scmp.ge.s32.totalorder %s1263, 2048
    %s1265 = scalar_select %p1264, %s1212, %s1211
    %s1266 = sor.u32 %s1265, 16384
    %v1267 = vstv %s1266
    %vm1268 = vcmp.ge.s32.totalorder %v388, %v1267
    %vm1269 = vcmp.ge.s32.totalorder %v389, %v1267
    %vm1270 = vcmp.ge.s32.totalorder %v390, %v1267
    %vm1271 = vcmp.ge.s32.totalorder %v391, %v1267
    %vm1272 = vcmp.ge.s32.totalorder %v392, %v1267
    %vm1273 = vcmp.ge.s32.totalorder %v393, %v1267
    %vm1274 = vcmp.ge.s32.totalorder %v394, %v1267
    %vm1275 = vcmp.ge.s32.totalorder %v395, %v1267
    %v1276 = vsel %vm1268, 1, 0
    %v1277 = vsel %vm1269, 1, 0
    %v1278 = vsel %vm1270, 1, 0
    %v1279 = vsel %vm1271, 1, 0
    %v1280 = vsel %vm1272, 1, 0
    %v1281 = vsel %vm1273, 1, 0
    %v1282 = vsel %vm1274, 1, 0
    %v1283 = vsel %vm1275, 1, 0
    %v1284 = vsel %vm63, %v1276, 0
    %v1285 = vsel %vm63, %v1277, 0
    %v1286 = vsel %vm63, %v1278, 0
    %v1287 = vsel %vm63, %v1279, 0
    %v1288 = vsel %vm63, %v1280, 0
    %v1289 = vadd.s32 %v1284, %v1288
    %v1290 = vsel %vm63, %v1281, 0
    %v1291 = vadd.s32 %v1285, %v1290
    %v1292 = vsel %vm63, %v1282, 0
    %v1293 = vadd.s32 %v1286, %v1292
    %v1294 = vsel %vm63, %v1283, 0
    %v1295 = vadd.s32 %v1287, %v1294
    %v1296 = vadd.s32 %v1289, %v1291
    %v1297 = vadd.s32 %v1293, %v1295
    %v1298 = vadd.s32 %v1296, %v1297
    %v1299 = vand.u32 %v1298, 65535
    %v1300 = vshrl.u32 %v1298, 16
    %v1301 = vcvt.s32.f32 %v1299
    %v1302 = vcvt.s32.f32 %v1300
    %1303 = vadd.xlane.f32.xlu0 %v1301
    %v1304 = vpop.xlane.xlu0 %1303
    %1305 = vadd.xlane.f32.xlu0 %v1302
    %v1306 = vpop.xlane.xlu0 %1305
    %v1307 = vcvt.f32.s32 %v1304
    %v1308 = vcvt.f32.s32 %v1306
    %v1309 = vshll.u32 %v1308, 16
    %v1310 = vadd.s32 %v1309, %v1307
    %v1311 = vrot.slane %v1310, 4
    %v1312 = vadd.s32 %v1310, %v1311
    %v1313 = vrot.slane %v1312, 2
    %v1314 = vadd.s32 %v1312, %v1313
    %v1315 = vrot.slane %v1314, 1
    %v1316 = vadd.s32 %v1314, %v1315
    %s1317 = vtos %v1316
    %p1318 = scmp.ge.s32.totalorder %s1317, 2048
    %s1319 = scalar_select %p1318, %s1266, %s1265
    %s1320 = sor.u32 %s1319, 8192
    %v1321 = vstv %s1320
    %vm1322 = vcmp.ge.s32.totalorder %v388, %v1321
    %vm1323 = vcmp.ge.s32.totalorder %v389, %v1321
    %vm1324 = vcmp.ge.s32.totalorder %v390, %v1321
    %vm1325 = vcmp.ge.s32.totalorder %v391, %v1321
    %vm1326 = vcmp.ge.s32.totalorder %v392, %v1321
    %vm1327 = vcmp.ge.s32.totalorder %v393, %v1321
    %vm1328 = vcmp.ge.s32.totalorder %v394, %v1321
    %vm1329 = vcmp.ge.s32.totalorder %v395, %v1321
    %v1330 = vsel %vm1322, 1, 0
    %v1331 = vsel %vm1323, 1, 0
    %v1332 = vsel %vm1324, 1, 0
    %v1333 = vsel %vm1325, 1, 0
    %v1334 = vsel %vm1326, 1, 0
    %v1335 = vsel %vm1327, 1, 0
    %v1336 = vsel %vm1328, 1, 0
    %v1337 = vsel %vm1329, 1, 0
    %v1338 = vsel %vm63, %v1330, 0
    %v1339 = vsel %vm63, %v1331, 0
    %v1340 = vsel %vm63, %v1332, 0
    %v1341 = vsel %vm63, %v1333, 0
    %v1342 = vsel %vm63, %v1334, 0
    %v1343 = vadd.s32 %v1338, %v1342
    %v1344 = vsel %vm63, %v1335, 0
    %v1345 = vadd.s32 %v1339, %v1344
    %v1346 = vsel %vm63, %v1336, 0
    %v1347 = vadd.s32 %v1340, %v1346
    %v1348 = vsel %vm63, %v1337, 0
    %v1349 = vadd.s32 %v1341, %v1348
    %v1350 = vadd.s32 %v1343, %v1345
    %v1351 = vadd.s32 %v1347, %v1349
    %v1352 = vadd.s32 %v1350, %v1351
    %v1353 = vand.u32 %v1352, 65535
    %v1354 = vshrl.u32 %v1352, 16
    %v1355 = vcvt.s32.f32 %v1353
    %v1356 = vcvt.s32.f32 %v1354
    %1357 = vadd.xlane.f32.xlu0 %v1355
    %v1358 = vpop.xlane.xlu0 %1357
    %1359 = vadd.xlane.f32.xlu0 %v1356
    %v1360 = vpop.xlane.xlu0 %1359
    %v1361 = vcvt.f32.s32 %v1358
    %v1362 = vcvt.f32.s32 %v1360
    %v1363 = vshll.u32 %v1362, 16
    %v1364 = vadd.s32 %v1363, %v1361
    %v1365 = vrot.slane %v1364, 4
    %v1366 = vadd.s32 %v1364, %v1365
    %v1367 = vrot.slane %v1366, 2
    %v1368 = vadd.s32 %v1366, %v1367
    %v1369 = vrot.slane %v1368, 1
    %v1370 = vadd.s32 %v1368, %v1369
    %s1371 = vtos %v1370
    %p1372 = scmp.ge.s32.totalorder %s1371, 2048
    %s1373 = scalar_select %p1372, %s1320, %s1319
    %s1374 = sor.u32 %s1373, 4096
    %v1375 = vstv %s1374
    %vm1376 = vcmp.ge.s32.totalorder %v388, %v1375
    %vm1377 = vcmp.ge.s32.totalorder %v389, %v1375
    %vm1378 = vcmp.ge.s32.totalorder %v390, %v1375
    %vm1379 = vcmp.ge.s32.totalorder %v391, %v1375
    %vm1380 = vcmp.ge.s32.totalorder %v392, %v1375
    %vm1381 = vcmp.ge.s32.totalorder %v393, %v1375
    %vm1382 = vcmp.ge.s32.totalorder %v394, %v1375
    %vm1383 = vcmp.ge.s32.totalorder %v395, %v1375
    %v1384 = vsel %vm1376, 1, 0
    %v1385 = vsel %vm1377, 1, 0
    %v1386 = vsel %vm1378, 1, 0
    %v1387 = vsel %vm1379, 1, 0
    %v1388 = vsel %vm1380, 1, 0
    %v1389 = vsel %vm1381, 1, 0
    %v1390 = vsel %vm1382, 1, 0
    %v1391 = vsel %vm1383, 1, 0
    %v1392 = vsel %vm63, %v1384, 0
    %v1393 = vsel %vm63, %v1385, 0
    %v1394 = vsel %vm63, %v1386, 0
    %v1395 = vsel %vm63, %v1387, 0
    %v1396 = vsel %vm63, %v1388, 0
    %v1397 = vadd.s32 %v1392, %v1396
    %v1398 = vsel %vm63, %v1389, 0
    %v1399 = vadd.s32 %v1393, %v1398
    %v1400 = vsel %vm63, %v1390, 0
    %v1401 = vadd.s32 %v1394, %v1400
    %v1402 = vsel %vm63, %v1391, 0
    %v1403 = vadd.s32 %v1395, %v1402
    %v1404 = vadd.s32 %v1397, %v1399
    %v1405 = vadd.s32 %v1401, %v1403
    %v1406 = vadd.s32 %v1404, %v1405
    %v1407 = vand.u32 %v1406, 65535
    %v1408 = vshrl.u32 %v1406, 16
    %v1409 = vcvt.s32.f32 %v1407
    %v1410 = vcvt.s32.f32 %v1408
    %1411 = vadd.xlane.f32.xlu0 %v1409
    %v1412 = vpop.xlane.xlu0 %1411
    %1413 = vadd.xlane.f32.xlu0 %v1410
    %v1414 = vpop.xlane.xlu0 %1413
    %v1415 = vcvt.f32.s32 %v1412
    %v1416 = vcvt.f32.s32 %v1414
    %v1417 = vshll.u32 %v1416, 16
    %v1418 = vadd.s32 %v1417, %v1415
    %v1419 = vrot.slane %v1418, 4
    %v1420 = vadd.s32 %v1418, %v1419
    %v1421 = vrot.slane %v1420, 2
    %v1422 = vadd.s32 %v1420, %v1421
    %v1423 = vrot.slane %v1422, 1
    %v1424 = vadd.s32 %v1422, %v1423
    %s1425 = vtos %v1424
    %p1426 = scmp.ge.s32.totalorder %s1425, 2048
    %s1427 = scalar_select %p1426, %s1374, %s1373
    %s1428 = sor.u32 %s1427, 2048
    %v1429 = vstv %s1428
    %vm1430 = vcmp.ge.s32.totalorder %v388, %v1429
    %vm1431 = vcmp.ge.s32.totalorder %v389, %v1429
    %vm1432 = vcmp.ge.s32.totalorder %v390, %v1429
    %vm1433 = vcmp.ge.s32.totalorder %v391, %v1429
    %vm1434 = vcmp.ge.s32.totalorder %v392, %v1429
    %vm1435 = vcmp.ge.s32.totalorder %v393, %v1429
    %vm1436 = vcmp.ge.s32.totalorder %v394, %v1429
    %vm1437 = vcmp.ge.s32.totalorder %v395, %v1429
    %v1438 = vsel %vm1430, 1, 0
    %v1439 = vsel %vm1431, 1, 0
    %v1440 = vsel %vm1432, 1, 0
    %v1441 = vsel %vm1433, 1, 0
    %v1442 = vsel %vm1434, 1, 0
    %v1443 = vsel %vm1435, 1, 0
    %v1444 = vsel %vm1436, 1, 0
    %v1445 = vsel %vm1437, 1, 0
    %v1446 = vsel %vm63, %v1438, 0
    %v1447 = vsel %vm63, %v1439, 0
    %v1448 = vsel %vm63, %v1440, 0
    %v1449 = vsel %vm63, %v1441, 0
    %v1450 = vsel %vm63, %v1442, 0
    %v1451 = vadd.s32 %v1446, %v1450
    %v1452 = vsel %vm63, %v1443, 0
    %v1453 = vadd.s32 %v1447, %v1452
    %v1454 = vsel %vm63, %v1444, 0
    %v1455 = vadd.s32 %v1448, %v1454
    %v1456 = vsel %vm63, %v1445, 0
    %v1457 = vadd.s32 %v1449, %v1456
    %v1458 = vadd.s32 %v1451, %v1453
    %v1459 = vadd.s32 %v1455, %v1457
    %v1460 = vadd.s32 %v1458, %v1459
    %v1461 = vand.u32 %v1460, 65535
    %v1462 = vshrl.u32 %v1460, 16
    %v1463 = vcvt.s32.f32 %v1461
    %v1464 = vcvt.s32.f32 %v1462
    %1465 = vadd.xlane.f32.xlu0 %v1463
    %v1466 = vpop.xlane.xlu0 %1465
    %1467 = vadd.xlane.f32.xlu0 %v1464
    %v1468 = vpop.xlane.xlu0 %1467
    %v1469 = vcvt.f32.s32 %v1466
    %v1470 = vcvt.f32.s32 %v1468
    %v1471 = vshll.u32 %v1470, 16
    %v1472 = vadd.s32 %v1471, %v1469
    %v1473 = vrot.slane %v1472, 4
    %v1474 = vadd.s32 %v1472, %v1473
    %v1475 = vrot.slane %v1474, 2
    %v1476 = vadd.s32 %v1474, %v1475
    %v1477 = vrot.slane %v1476, 1
    %v1478 = vadd.s32 %v1476, %v1477
    %s1479 = vtos %v1478
    %p1480 = scmp.ge.s32.totalorder %s1479, 2048
    %s1481 = scalar_select %p1480, %s1428, %s1427
    %s1482 = sor.u32 %s1481, 1024
    %v1483 = vstv %s1482
    %vm1484 = vcmp.ge.s32.totalorder %v388, %v1483
    %vm1485 = vcmp.ge.s32.totalorder %v389, %v1483
    %vm1486 = vcmp.ge.s32.totalorder %v390, %v1483
    %vm1487 = vcmp.ge.s32.totalorder %v391, %v1483
    %vm1488 = vcmp.ge.s32.totalorder %v392, %v1483
    %vm1489 = vcmp.ge.s32.totalorder %v393, %v1483
    %vm1490 = vcmp.ge.s32.totalorder %v394, %v1483
    %vm1491 = vcmp.ge.s32.totalorder %v395, %v1483
    %v1492 = vsel %vm1484, 1, 0
    %v1493 = vsel %vm1485, 1, 0
    %v1494 = vsel %vm1486, 1, 0
    %v1495 = vsel %vm1487, 1, 0
    %v1496 = vsel %vm1488, 1, 0
    %v1497 = vsel %vm1489, 1, 0
    %v1498 = vsel %vm1490, 1, 0
    %v1499 = vsel %vm1491, 1, 0
    %v1500 = vsel %vm63, %v1492, 0
    %v1501 = vsel %vm63, %v1493, 0
    %v1502 = vsel %vm63, %v1494, 0
    %v1503 = vsel %vm63, %v1495, 0
    %v1504 = vsel %vm63, %v1496, 0
    %v1505 = vadd.s32 %v1500, %v1504
    %v1506 = vsel %vm63, %v1497, 0
    %v1507 = vadd.s32 %v1501, %v1506
    %v1508 = vsel %vm63, %v1498, 0
    %v1509 = vadd.s32 %v1502, %v1508
    %v1510 = vsel %vm63, %v1499, 0
    %v1511 = vadd.s32 %v1503, %v1510
    %v1512 = vadd.s32 %v1505, %v1507
    %v1513 = vadd.s32 %v1509, %v1511
    %v1514 = vadd.s32 %v1512, %v1513
    %v1515 = vand.u32 %v1514, 65535
    %v1516 = vshrl.u32 %v1514, 16
    %v1517 = vcvt.s32.f32 %v1515
    %v1518 = vcvt.s32.f32 %v1516
    %1519 = vadd.xlane.f32.xlu0 %v1517
    %v1520 = vpop.xlane.xlu0 %1519
    %1521 = vadd.xlane.f32.xlu0 %v1518
    %v1522 = vpop.xlane.xlu0 %1521
    %v1523 = vcvt.f32.s32 %v1520
    %v1524 = vcvt.f32.s32 %v1522
    %v1525 = vshll.u32 %v1524, 16
    %v1526 = vadd.s32 %v1525, %v1523
    %v1527 = vrot.slane %v1526, 4
    %v1528 = vadd.s32 %v1526, %v1527
    %v1529 = vrot.slane %v1528, 2
    %v1530 = vadd.s32 %v1528, %v1529
    %v1531 = vrot.slane %v1530, 1
    %v1532 = vadd.s32 %v1530, %v1531
    %s1533 = vtos %v1532
    %p1534 = scmp.ge.s32.totalorder %s1533, 2048
    %s1535 = scalar_select %p1534, %s1482, %s1481
    %s1536 = sor.u32 %s1535, 512
    %v1537 = vstv %s1536
    %vm1538 = vcmp.ge.s32.totalorder %v388, %v1537
    %vm1539 = vcmp.ge.s32.totalorder %v389, %v1537
    %vm1540 = vcmp.ge.s32.totalorder %v390, %v1537
    %vm1541 = vcmp.ge.s32.totalorder %v391, %v1537
    %vm1542 = vcmp.ge.s32.totalorder %v392, %v1537
    %vm1543 = vcmp.ge.s32.totalorder %v393, %v1537
    %vm1544 = vcmp.ge.s32.totalorder %v394, %v1537
    %vm1545 = vcmp.ge.s32.totalorder %v395, %v1537
    %v1546 = vsel %vm1538, 1, 0
    %v1547 = vsel %vm1539, 1, 0
    %v1548 = vsel %vm1540, 1, 0
    %v1549 = vsel %vm1541, 1, 0
    %v1550 = vsel %vm1542, 1, 0
    %v1551 = vsel %vm1543, 1, 0
    %v1552 = vsel %vm1544, 1, 0
    %v1553 = vsel %vm1545, 1, 0
    %v1554 = vsel %vm63, %v1546, 0
    %v1555 = vsel %vm63, %v1547, 0
    %v1556 = vsel %vm63, %v1548, 0
    %v1557 = vsel %vm63, %v1549, 0
    %v1558 = vsel %vm63, %v1550, 0
    %v1559 = vadd.s32 %v1554, %v1558
    %v1560 = vsel %vm63, %v1551, 0
    %v1561 = vadd.s32 %v1555, %v1560
    %v1562 = vsel %vm63, %v1552, 0
    %v1563 = vadd.s32 %v1556, %v1562
    %v1564 = vsel %vm63, %v1553, 0
    %v1565 = vadd.s32 %v1557, %v1564
    %v1566 = vadd.s32 %v1559, %v1561
    %v1567 = vadd.s32 %v1563, %v1565
    %v1568 = vadd.s32 %v1566, %v1567
    %v1569 = vand.u32 %v1568, 65535
    %v1570 = vshrl.u32 %v1568, 16
    %v1571 = vcvt.s32.f32 %v1569
    %v1572 = vcvt.s32.f32 %v1570
    %1573 = vadd.xlane.f32.xlu0 %v1571
    %v1574 = vpop.xlane.xlu0 %1573
    %1575 = vadd.xlane.f32.xlu0 %v1572
    %v1576 = vpop.xlane.xlu0 %1575
    %v1577 = vcvt.f32.s32 %v1574
    %v1578 = vcvt.f32.s32 %v1576
    %v1579 = vshll.u32 %v1578, 16
    %v1580 = vadd.s32 %v1579, %v1577
    %v1581 = vrot.slane %v1580, 4
    %v1582 = vadd.s32 %v1580, %v1581
    %v1583 = vrot.slane %v1582, 2
    %v1584 = vadd.s32 %v1582, %v1583
    %v1585 = vrot.slane %v1584, 1
    %v1586 = vadd.s32 %v1584, %v1585
    %s1587 = vtos %v1586
    %p1588 = scmp.ge.s32.totalorder %s1587, 2048
    %s1589 = scalar_select %p1588, %s1536, %s1535
    %s1590 = sor.u32 %s1589, 256
    %v1591 = vstv %s1590
    %vm1592 = vcmp.ge.s32.totalorder %v388, %v1591
    %vm1593 = vcmp.ge.s32.totalorder %v389, %v1591
    %vm1594 = vcmp.ge.s32.totalorder %v390, %v1591
    %vm1595 = vcmp.ge.s32.totalorder %v391, %v1591
    %vm1596 = vcmp.ge.s32.totalorder %v392, %v1591
    %vm1597 = vcmp.ge.s32.totalorder %v393, %v1591
    %vm1598 = vcmp.ge.s32.totalorder %v394, %v1591
    %vm1599 = vcmp.ge.s32.totalorder %v395, %v1591
    %v1600 = vsel %vm1592, 1, 0
    %v1601 = vsel %vm1593, 1, 0
    %v1602 = vsel %vm1594, 1, 0
    %v1603 = vsel %vm1595, 1, 0
    %v1604 = vsel %vm1596, 1, 0
    %v1605 = vsel %vm1597, 1, 0
    %v1606 = vsel %vm1598, 1, 0
    %v1607 = vsel %vm1599, 1, 0
    %v1608 = vsel %vm63, %v1600, 0
    %v1609 = vsel %vm63, %v1601, 0
    %v1610 = vsel %vm63, %v1602, 0
    %v1611 = vsel %vm63, %v1603, 0
    %v1612 = vsel %vm63, %v1604, 0
    %v1613 = vadd.s32 %v1608, %v1612
    %v1614 = vsel %vm63, %v1605, 0
    %v1615 = vadd.s32 %v1609, %v1614
    %v1616 = vsel %vm63, %v1606, 0
    %v1617 = vadd.s32 %v1610, %v1616
    %v1618 = vsel %vm63, %v1607, 0
    %v1619 = vadd.s32 %v1611, %v1618
    %v1620 = vadd.s32 %v1613, %v1615
    %v1621 = vadd.s32 %v1617, %v1619
    %v1622 = vadd.s32 %v1620, %v1621
    %v1623 = vand.u32 %v1622, 65535
    %v1624 = vshrl.u32 %v1622, 16
    %v1625 = vcvt.s32.f32 %v1623
    %v1626 = vcvt.s32.f32 %v1624
    %1627 = vadd.xlane.f32.xlu0 %v1625
    %v1628 = vpop.xlane.xlu0 %1627
    %1629 = vadd.xlane.f32.xlu0 %v1626
    %v1630 = vpop.xlane.xlu0 %1629
    %v1631 = vcvt.f32.s32 %v1628
    %v1632 = vcvt.f32.s32 %v1630
    %v1633 = vshll.u32 %v1632, 16
    %v1634 = vadd.s32 %v1633, %v1631
    %v1635 = vrot.slane %v1634, 4
    %v1636 = vadd.s32 %v1634, %v1635
    %v1637 = vrot.slane %v1636, 2
    %v1638 = vadd.s32 %v1636, %v1637
    %v1639 = vrot.slane %v1638, 1
    %v1640 = vadd.s32 %v1638, %v1639
    %s1641 = vtos %v1640
    %p1642 = scmp.ge.s32.totalorder %s1641, 2048
    %s1643 = scalar_select %p1642, %s1590, %s1589
    %s1644 = sor.u32 %s1643, 128
    %v1645 = vstv %s1644
    %vm1646 = vcmp.ge.s32.totalorder %v388, %v1645
    %vm1647 = vcmp.ge.s32.totalorder %v389, %v1645
    %vm1648 = vcmp.ge.s32.totalorder %v390, %v1645
    %vm1649 = vcmp.ge.s32.totalorder %v391, %v1645
    %vm1650 = vcmp.ge.s32.totalorder %v392, %v1645
    %vm1651 = vcmp.ge.s32.totalorder %v393, %v1645
    %vm1652 = vcmp.ge.s32.totalorder %v394, %v1645
    %vm1653 = vcmp.ge.s32.totalorder %v395, %v1645
    %v1654 = vsel %vm1646, 1, 0
    %v1655 = vsel %vm1647, 1, 0
    %v1656 = vsel %vm1648, 1, 0
    %v1657 = vsel %vm1649, 1, 0
    %v1658 = vsel %vm1650, 1, 0
    %v1659 = vsel %vm1651, 1, 0
    %v1660 = vsel %vm1652, 1, 0
    %v1661 = vsel %vm1653, 1, 0
    %v1662 = vsel %vm63, %v1654, 0
    %v1663 = vsel %vm63, %v1655, 0
    %v1664 = vsel %vm63, %v1656, 0
    %v1665 = vsel %vm63, %v1657, 0
    %v1666 = vsel %vm63, %v1658, 0
    %v1667 = vadd.s32 %v1662, %v1666
    %v1668 = vsel %vm63, %v1659, 0
    %v1669 = vadd.s32 %v1663, %v1668
    %v1670 = vsel %vm63, %v1660, 0
    %v1671 = vadd.s32 %v1664, %v1670
    %v1672 = vsel %vm63, %v1661, 0
    %v1673 = vadd.s32 %v1665, %v1672
    %v1674 = vadd.s32 %v1667, %v1669
    %v1675 = vadd.s32 %v1671, %v1673
    %v1676 = vadd.s32 %v1674, %v1675
    %v1677 = vand.u32 %v1676, 65535
    %v1678 = vshrl.u32 %v1676, 16
    %v1679 = vcvt.s32.f32 %v1677
    %v1680 = vcvt.s32.f32 %v1678
    %1681 = vadd.xlane.f32.xlu0 %v1679
    %v1682 = vpop.xlane.xlu0 %1681
    %1683 = vadd.xlane.f32.xlu0 %v1680
    %v1684 = vpop.xlane.xlu0 %1683
    %v1685 = vcvt.f32.s32 %v1682
    %v1686 = vcvt.f32.s32 %v1684
    %v1687 = vshll.u32 %v1686, 16
    %v1688 = vadd.s32 %v1687, %v1685
    %v1689 = vrot.slane %v1688, 4
    %v1690 = vadd.s32 %v1688, %v1689
    %v1691 = vrot.slane %v1690, 2
    %v1692 = vadd.s32 %v1690, %v1691
    %v1693 = vrot.slane %v1692, 1
    %v1694 = vadd.s32 %v1692, %v1693
    %s1695 = vtos %v1694
    %p1696 = scmp.ge.s32.totalorder %s1695, 2048
    %s1697 = scalar_select %p1696, %s1644, %s1643
    %s1698 = sor.u32 %s1697, 64
    %v1699 = vstv %s1698
    %vm1700 = vcmp.ge.s32.totalorder %v388, %v1699
    %vm1701 = vcmp.ge.s32.totalorder %v389, %v1699
    %vm1702 = vcmp.ge.s32.totalorder %v390, %v1699
    %vm1703 = vcmp.ge.s32.totalorder %v391, %v1699
    %vm1704 = vcmp.ge.s32.totalorder %v392, %v1699
    %vm1705 = vcmp.ge.s32.totalorder %v393, %v1699
    %vm1706 = vcmp.ge.s32.totalorder %v394, %v1699
    %vm1707 = vcmp.ge.s32.totalorder %v395, %v1699
    %v1708 = vsel %vm1700, 1, 0
    %v1709 = vsel %vm1701, 1, 0
    %v1710 = vsel %vm1702, 1, 0
    %v1711 = vsel %vm1703, 1, 0
    %v1712 = vsel %vm1704, 1, 0
    %v1713 = vsel %vm1705, 1, 0
    %v1714 = vsel %vm1706, 1, 0
    %v1715 = vsel %vm1707, 1, 0
    %v1716 = vsel %vm63, %v1708, 0
    %v1717 = vsel %vm63, %v1709, 0
    %v1718 = vsel %vm63, %v1710, 0
    %v1719 = vsel %vm63, %v1711, 0
    %v1720 = vsel %vm63, %v1712, 0
    %v1721 = vadd.s32 %v1716, %v1720
    %v1722 = vsel %vm63, %v1713, 0
    %v1723 = vadd.s32 %v1717, %v1722
    %v1724 = vsel %vm63, %v1714, 0
    %v1725 = vadd.s32 %v1718, %v1724
    %v1726 = vsel %vm63, %v1715, 0
    %v1727 = vadd.s32 %v1719, %v1726
    %v1728 = vadd.s32 %v1721, %v1723
    %v1729 = vadd.s32 %v1725, %v1727
    %v1730 = vadd.s32 %v1728, %v1729
    %v1731 = vand.u32 %v1730, 65535
    %v1732 = vshrl.u32 %v1730, 16
    %v1733 = vcvt.s32.f32 %v1731
    %v1734 = vcvt.s32.f32 %v1732
    %1735 = vadd.xlane.f32.xlu0 %v1733
    %v1736 = vpop.xlane.xlu0 %1735
    %1737 = vadd.xlane.f32.xlu0 %v1734
    %v1738 = vpop.xlane.xlu0 %1737
    %v1739 = vcvt.f32.s32 %v1736
    %v1740 = vcvt.f32.s32 %v1738
    %v1741 = vshll.u32 %v1740, 16
    %v1742 = vadd.s32 %v1741, %v1739
    %v1743 = vrot.slane %v1742, 4
    %v1744 = vadd.s32 %v1742, %v1743
    %v1745 = vrot.slane %v1744, 2
    %v1746 = vadd.s32 %v1744, %v1745
    %v1747 = vrot.slane %v1746, 1
    %v1748 = vadd.s32 %v1746, %v1747
    %s1749 = vtos %v1748
    %p1750 = scmp.ge.s32.totalorder %s1749, 2048
    %s1751 = scalar_select %p1750, %s1698, %s1697
    %s1752 = sor.u32 %s1751, 32
    %v1753 = vstv %s1752
    %vm1754 = vcmp.ge.s32.totalorder %v388, %v1753
    %vm1755 = vcmp.ge.s32.totalorder %v389, %v1753
    %vm1756 = vcmp.ge.s32.totalorder %v390, %v1753
    %vm1757 = vcmp.ge.s32.totalorder %v391, %v1753
    %vm1758 = vcmp.ge.s32.totalorder %v392, %v1753
    %vm1759 = vcmp.ge.s32.totalorder %v393, %v1753
    %vm1760 = vcmp.ge.s32.totalorder %v394, %v1753
    %vm1761 = vcmp.ge.s32.totalorder %v395, %v1753
    %v1762 = vsel %vm1754, 1, 0
    %v1763 = vsel %vm1755, 1, 0
    %v1764 = vsel %vm1756, 1, 0
    %v1765 = vsel %vm1757, 1, 0
    %v1766 = vsel %vm1758, 1, 0
    %v1767 = vsel %vm1759, 1, 0
    %v1768 = vsel %vm1760, 1, 0
    %v1769 = vsel %vm1761, 1, 0
    %v1770 = vsel %vm63, %v1762, 0
    %v1771 = vsel %vm63, %v1763, 0
    %v1772 = vsel %vm63, %v1764, 0
    %v1773 = vsel %vm63, %v1765, 0
    %v1774 = vsel %vm63, %v1766, 0
    %v1775 = vadd.s32 %v1770, %v1774
    %v1776 = vsel %vm63, %v1767, 0
    %v1777 = vadd.s32 %v1771, %v1776
    %v1778 = vsel %vm63, %v1768, 0
    %v1779 = vadd.s32 %v1772, %v1778
    %v1780 = vsel %vm63, %v1769, 0
    %v1781 = vadd.s32 %v1773, %v1780
    %v1782 = vadd.s32 %v1775, %v1777
    %v1783 = vadd.s32 %v1779, %v1781
    %v1784 = vadd.s32 %v1782, %v1783
    %v1785 = vand.u32 %v1784, 65535
    %v1786 = vshrl.u32 %v1784, 16
    %v1787 = vcvt.s32.f32 %v1785
    %v1788 = vcvt.s32.f32 %v1786
    %1789 = vadd.xlane.f32.xlu0 %v1787
    %v1790 = vpop.xlane.xlu0 %1789
    %1791 = vadd.xlane.f32.xlu0 %v1788
    %v1792 = vpop.xlane.xlu0 %1791
    %v1793 = vcvt.f32.s32 %v1790
    %v1794 = vcvt.f32.s32 %v1792
    %v1795 = vshll.u32 %v1794, 16
    %v1796 = vadd.s32 %v1795, %v1793
    %v1797 = vrot.slane %v1796, 4
    %v1798 = vadd.s32 %v1796, %v1797
    %v1799 = vrot.slane %v1798, 2
    %v1800 = vadd.s32 %v1798, %v1799
    %v1801 = vrot.slane %v1800, 1
    %v1802 = vadd.s32 %v1800, %v1801
    %s1803 = vtos %v1802
    %p1804 = scmp.ge.s32.totalorder %s1803, 2048
    %s1805 = scalar_select %p1804, %s1752, %s1751
    %s1806 = sor.u32 %s1805, 16
    %v1807 = vstv %s1806
    %vm1808 = vcmp.ge.s32.totalorder %v388, %v1807
    %vm1809 = vcmp.ge.s32.totalorder %v389, %v1807
    %vm1810 = vcmp.ge.s32.totalorder %v390, %v1807
    %vm1811 = vcmp.ge.s32.totalorder %v391, %v1807
    %vm1812 = vcmp.ge.s32.totalorder %v392, %v1807
    %vm1813 = vcmp.ge.s32.totalorder %v393, %v1807
    %vm1814 = vcmp.ge.s32.totalorder %v394, %v1807
    %vm1815 = vcmp.ge.s32.totalorder %v395, %v1807
    %v1816 = vsel %vm1808, 1, 0
    %v1817 = vsel %vm1809, 1, 0
    %v1818 = vsel %vm1810, 1, 0
    %v1819 = vsel %vm1811, 1, 0
    %v1820 = vsel %vm1812, 1, 0
    %v1821 = vsel %vm1813, 1, 0
    %v1822 = vsel %vm1814, 1, 0
    %v1823 = vsel %vm1815, 1, 0
    %v1824 = vsel %vm63, %v1816, 0
    %v1825 = vsel %vm63, %v1817, 0
    %v1826 = vsel %vm63, %v1818, 0
    %v1827 = vsel %vm63, %v1819, 0
    %v1828 = vsel %vm63, %v1820, 0
    %v1829 = vadd.s32 %v1824, %v1828
    %v1830 = vsel %vm63, %v1821, 0
    %v1831 = vadd.s32 %v1825, %v1830
    %v1832 = vsel %vm63, %v1822, 0
    %v1833 = vadd.s32 %v1826, %v1832
    %v1834 = vsel %vm63, %v1823, 0
    %v1835 = vadd.s32 %v1827, %v1834
    %v1836 = vadd.s32 %v1829, %v1831
    %v1837 = vadd.s32 %v1833, %v1835
    %v1838 = vadd.s32 %v1836, %v1837
    %v1839 = vand.u32 %v1838, 65535
    %v1840 = vshrl.u32 %v1838, 16
    %v1841 = vcvt.s32.f32 %v1839
    %v1842 = vcvt.s32.f32 %v1840
    %1843 = vadd.xlane.f32.xlu0 %v1841
    %v1844 = vpop.xlane.xlu0 %1843
    %1845 = vadd.xlane.f32.xlu0 %v1842
    %v1846 = vpop.xlane.xlu0 %1845
    %v1847 = vcvt.f32.s32 %v1844
    %v1848 = vcvt.f32.s32 %v1846
    %v1849 = vshll.u32 %v1848, 16
    %v1850 = vadd.s32 %v1849, %v1847
    %v1851 = vrot.slane %v1850, 4
    %v1852 = vadd.s32 %v1850, %v1851
    %v1853 = vrot.slane %v1852, 2
    %v1854 = vadd.s32 %v1852, %v1853
    %v1855 = vrot.slane %v1854, 1
    %v1856 = vadd.s32 %v1854, %v1855
    %s1857 = vtos %v1856
    %p1858 = scmp.ge.s32.totalorder %s1857, 2048
    %s1859 = scalar_select %p1858, %s1806, %s1805
    %s1860 = sor.u32 %s1859, 8
    %v1861 = vstv %s1860
    %vm1862 = vcmp.ge.s32.totalorder %v388, %v1861
    %vm1863 = vcmp.ge.s32.totalorder %v389, %v1861
    %vm1864 = vcmp.ge.s32.totalorder %v390, %v1861
    %vm1865 = vcmp.ge.s32.totalorder %v391, %v1861
    %vm1866 = vcmp.ge.s32.totalorder %v392, %v1861
    %vm1867 = vcmp.ge.s32.totalorder %v393, %v1861
    %vm1868 = vcmp.ge.s32.totalorder %v394, %v1861
    %vm1869 = vcmp.ge.s32.totalorder %v395, %v1861
    %v1870 = vsel %vm1862, 1, 0
    %v1871 = vsel %vm1863, 1, 0
    %v1872 = vsel %vm1864, 1, 0
    %v1873 = vsel %vm1865, 1, 0
    %v1874 = vsel %vm1866, 1, 0
    %v1875 = vsel %vm1867, 1, 0
    %v1876 = vsel %vm1868, 1, 0
    %v1877 = vsel %vm1869, 1, 0
    %v1878 = vsel %vm63, %v1870, 0
    %v1879 = vsel %vm63, %v1871, 0
    %v1880 = vsel %vm63, %v1872, 0
    %v1881 = vsel %vm63, %v1873, 0
    %v1882 = vsel %vm63, %v1874, 0
    %v1883 = vadd.s32 %v1878, %v1882
    %v1884 = vsel %vm63, %v1875, 0
    %v1885 = vadd.s32 %v1879, %v1884
    %v1886 = vsel %vm63, %v1876, 0
    %v1887 = vadd.s32 %v1880, %v1886
    %v1888 = vsel %vm63, %v1877, 0
    %v1889 = vadd.s32 %v1881, %v1888
    %v1890 = vadd.s32 %v1883, %v1885
    %v1891 = vadd.s32 %v1887, %v1889
    %v1892 = vadd.s32 %v1890, %v1891
    %v1893 = vand.u32 %v1892, 65535
    %v1894 = vshrl.u32 %v1892, 16
    %v1895 = vcvt.s32.f32 %v1893
    %v1896 = vcvt.s32.f32 %v1894
    %1897 = vadd.xlane.f32.xlu0 %v1895
    %v1898 = vpop.xlane.xlu0 %1897
    %1899 = vadd.xlane.f32.xlu0 %v1896
    %v1900 = vpop.xlane.xlu0 %1899
    %v1901 = vcvt.f32.s32 %v1898
    %v1902 = vcvt.f32.s32 %v1900
    %v1903 = vshll.u32 %v1902, 16
    %v1904 = vadd.s32 %v1903, %v1901
    %v1905 = vrot.slane %v1904, 4
    %v1906 = vadd.s32 %v1904, %v1905
    %v1907 = vrot.slane %v1906, 2
    %v1908 = vadd.s32 %v1906, %v1907
    %v1909 = vrot.slane %v1908, 1
    %v1910 = vadd.s32 %v1908, %v1909
    %s1911 = vtos %v1910
    %p1912 = scmp.ge.s32.totalorder %s1911, 2048
    %s1913 = scalar_select %p1912, %s1860, %s1859
    %s1914 = sor.u32 %s1913, 4
    %v1915 = vstv %s1914
    %vm1916 = vcmp.ge.s32.totalorder %v388, %v1915
    %vm1917 = vcmp.ge.s32.totalorder %v389, %v1915
    %vm1918 = vcmp.ge.s32.totalorder %v390, %v1915
    %vm1919 = vcmp.ge.s32.totalorder %v391, %v1915
    %vm1920 = vcmp.ge.s32.totalorder %v392, %v1915
    %vm1921 = vcmp.ge.s32.totalorder %v393, %v1915
    %vm1922 = vcmp.ge.s32.totalorder %v394, %v1915
    %vm1923 = vcmp.ge.s32.totalorder %v395, %v1915
    %v1924 = vsel %vm1916, 1, 0
    %v1925 = vsel %vm1917, 1, 0
    %v1926 = vsel %vm1918, 1, 0
    %v1927 = vsel %vm1919, 1, 0
    %v1928 = vsel %vm1920, 1, 0
    %v1929 = vsel %vm1921, 1, 0
    %v1930 = vsel %vm1922, 1, 0
    %v1931 = vsel %vm1923, 1, 0
    %v1932 = vsel %vm63, %v1924, 0
    %v1933 = vsel %vm63, %v1925, 0
    %v1934 = vsel %vm63, %v1926, 0
    %v1935 = vsel %vm63, %v1927, 0
    %v1936 = vsel %vm63, %v1928, 0
    %v1937 = vadd.s32 %v1932, %v1936
    %v1938 = vsel %vm63, %v1929, 0
    %v1939 = vadd.s32 %v1933, %v1938
    %v1940 = vsel %vm63, %v1930, 0
    %v1941 = vadd.s32 %v1934, %v1940
    %v1942 = vsel %vm63, %v1931, 0
    %v1943 = vadd.s32 %v1935, %v1942
    %v1944 = vadd.s32 %v1937, %v1939
    %v1945 = vadd.s32 %v1941, %v1943
    %v1946 = vadd.s32 %v1944, %v1945
    %v1947 = vand.u32 %v1946, 65535
    %v1948 = vshrl.u32 %v1946, 16
    %v1949 = vcvt.s32.f32 %v1947
    %v1950 = vcvt.s32.f32 %v1948
    %1951 = vadd.xlane.f32.xlu0 %v1949
    %v1952 = vpop.xlane.xlu0 %1951
    %1953 = vadd.xlane.f32.xlu0 %v1950
    %v1954 = vpop.xlane.xlu0 %1953
    %v1955 = vcvt.f32.s32 %v1952
    %v1956 = vcvt.f32.s32 %v1954
    %v1957 = vshll.u32 %v1956, 16
    %v1958 = vadd.s32 %v1957, %v1955
    %v1959 = vrot.slane %v1958, 4
    %v1960 = vadd.s32 %v1958, %v1959
    %v1961 = vrot.slane %v1960, 2
    %v1962 = vadd.s32 %v1960, %v1961
    %v1963 = vrot.slane %v1962, 1
    %v1964 = vadd.s32 %v1962, %v1963
    %s1965 = vtos %v1964
    %p1966 = scmp.ge.s32.totalorder %s1965, 2048
    %s1967 = scalar_select %p1966, %s1914, %s1913
    %s1968 = sor.u32 %s1967, 2
    %v1969 = vstv %s1968
    %vm1970 = vcmp.ge.s32.totalorder %v388, %v1969
    %vm1971 = vcmp.ge.s32.totalorder %v389, %v1969
    %vm1972 = vcmp.ge.s32.totalorder %v390, %v1969
    %vm1973 = vcmp.ge.s32.totalorder %v391, %v1969
    %vm1974 = vcmp.ge.s32.totalorder %v392, %v1969
    %vm1975 = vcmp.ge.s32.totalorder %v393, %v1969
    %vm1976 = vcmp.ge.s32.totalorder %v394, %v1969
    %vm1977 = vcmp.ge.s32.totalorder %v395, %v1969
    %v1978 = vsel %vm1970, 1, 0
    %v1979 = vsel %vm1971, 1, 0
    %v1980 = vsel %vm1972, 1, 0
    %v1981 = vsel %vm1973, 1, 0
    %v1982 = vsel %vm1974, 1, 0
    %v1983 = vsel %vm1975, 1, 0
    %v1984 = vsel %vm1976, 1, 0
    %v1985 = vsel %vm1977, 1, 0
    %v1986 = vsel %vm63, %v1978, 0
    %v1987 = vsel %vm63, %v1979, 0
    %v1988 = vsel %vm63, %v1980, 0
    %v1989 = vsel %vm63, %v1981, 0
    %v1990 = vsel %vm63, %v1982, 0
    %v1991 = vadd.s32 %v1986, %v1990
    %v1992 = vsel %vm63, %v1983, 0
    %v1993 = vadd.s32 %v1987, %v1992
    %v1994 = vsel %vm63, %v1984, 0
    %v1995 = vadd.s32 %v1988, %v1994
    %v1996 = vsel %vm63, %v1985, 0
    %v1997 = vadd.s32 %v1989, %v1996
    %v1998 = vadd.s32 %v1991, %v1993
    %v1999 = vadd.s32 %v1995, %v1997
    %v2000 = vadd.s32 %v1998, %v1999
    %v2001 = vand.u32 %v2000, 65535
    %v2002 = vshrl.u32 %v2000, 16
    %v2003 = vcvt.s32.f32 %v2001
    %v2004 = vcvt.s32.f32 %v2002
    %2005 = vadd.xlane.f32.xlu0 %v2003
    %v2006 = vpop.xlane.xlu0 %2005
    %2007 = vadd.xlane.f32.xlu0 %v2004
    %v2008 = vpop.xlane.xlu0 %2007
    %v2009 = vcvt.f32.s32 %v2006
    %v2010 = vcvt.f32.s32 %v2008
    %v2011 = vshll.u32 %v2010, 16
    %v2012 = vadd.s32 %v2011, %v2009
    %v2013 = vrot.slane %v2012, 4
    %v2014 = vadd.s32 %v2012, %v2013
    %v2015 = vrot.slane %v2014, 2
    %v2016 = vadd.s32 %v2014, %v2015
    %v2017 = vrot.slane %v2016, 1
    %v2018 = vadd.s32 %v2016, %v2017
    %s2019 = vtos %v2018
    %p2020 = scmp.ge.s32.totalorder %s2019, 2048
    %s2021 = scalar_select %p2020, %s1968, %s1967
    %s2022 = sor.u32 %s2021, 1
    %v2023 = vstv %s2022
    %vm2024 = vcmp.ge.s32.totalorder %v388, %v2023
    %vm2025 = vcmp.ge.s32.totalorder %v389, %v2023
    %vm2026 = vcmp.ge.s32.totalorder %v390, %v2023
    %vm2027 = vcmp.ge.s32.totalorder %v391, %v2023
    %vm2028 = vcmp.ge.s32.totalorder %v392, %v2023
    %vm2029 = vcmp.ge.s32.totalorder %v393, %v2023
    %vm2030 = vcmp.ge.s32.totalorder %v394, %v2023
    %vm2031 = vcmp.ge.s32.totalorder %v395, %v2023
    %v2032 = vsel %vm2024, 1, 0
    %v2033 = vsel %vm2025, 1, 0
    %v2034 = vsel %vm2026, 1, 0
    %v2035 = vsel %vm2027, 1, 0
    %v2036 = vsel %vm2028, 1, 0
    %v2037 = vsel %vm2029, 1, 0
    %v2038 = vsel %vm2030, 1, 0
    %v2039 = vsel %vm2031, 1, 0
    %v2040 = vsel %vm63, %v2032, 0
    %v2041 = vsel %vm63, %v2033, 0
    %v2042 = vsel %vm63, %v2034, 0
    %v2043 = vsel %vm63, %v2035, 0
    %v2044 = vsel %vm63, %v2036, 0
    %v2045 = vadd.s32 %v2040, %v2044
    %v2046 = vsel %vm63, %v2037, 0
    %v2047 = vadd.s32 %v2041, %v2046
    %v2048 = vsel %vm63, %v2038, 0
    %v2049 = vadd.s32 %v2042, %v2048
    %v2050 = vsel %vm63, %v2039, 0
    %v2051 = vadd.s32 %v2043, %v2050
    %v2052 = vadd.s32 %v2045, %v2047
    %v2053 = vadd.s32 %v2049, %v2051
    %v2054 = vadd.s32 %v2052, %v2053
    %v2055 = vand.u32 %v2054, 65535
    %v2056 = vshrl.u32 %v2054, 16
    %v2057 = vcvt.s32.f32 %v2055
    %v2058 = vcvt.s32.f32 %v2056
    %2059 = vadd.xlane.f32.xlu0 %v2057
    %v2060 = vpop.xlane.xlu0 %2059
    %2061 = vadd.xlane.f32.xlu0 %v2058
    %v2062 = vpop.xlane.xlu0 %2061
    %v2063 = vcvt.f32.s32 %v2060
    %v2064 = vcvt.f32.s32 %v2062
    %v2065 = vshll.u32 %v2064, 16
    %v2066 = vadd.s32 %v2065, %v2063
    %v2067 = vrot.slane %v2066, 4
    %v2068 = vadd.s32 %v2066, %v2067
    %v2069 = vrot.slane %v2068, 2
    %v2070 = vadd.s32 %v2068, %v2069
    %v2071 = vrot.slane %v2070, 1
    %v2072 = vadd.s32 %v2070, %v2071
    %s2073 = vtos %v2072
    %p2074 = scmp.ge.s32.totalorder %s2073, 2048
    %s2075 = scalar_select %p2074, %s2022, %s2021
    %v2076 = vstv %s2075
    %vm2077 = vcmp.eq.s32.totalorder %v388, %v2076
    %vm2078 = vcmp.eq.s32.totalorder %v389, %v2076
    %vm2079 = vcmp.eq.s32.totalorder %v390, %v2076
    %vm2080 = vcmp.eq.s32.totalorder %v391, %v2076
    %vm2081 = vcmp.eq.s32.totalorder %v392, %v2076
    %vm2082 = vcmp.eq.s32.totalorder %v393, %v2076
    %vm2083 = vcmp.eq.s32.totalorder %v394, %v2076
    %vm2084 = vcmp.eq.s32.totalorder %v395, %v2076
    %v2085 = vsel %vm2077, %v388, 0.0
    %v2086 = vsel %vm2078, %v389, 0.0
    %v2087 = vsel %vm2079, %v390, 0.0
    %v2088 = vsel %vm2080, %v391, 0.0
    %v2089 = vsel %vm2081, %v392, 0.0
    %v2090 = vsel %vm2082, %v393, 0.0
    %v2091 = vsel %vm2083, %v394, 0.0
    %v2092 = vsel %vm2084, %v395, 0.0
    %v2093 = vsel %vm63, %v2085, -inf
    %v2094 = vsel %vm63, %v2086, -inf
    %v2095 = vsel %vm63, %v2087, -inf
    %v2096 = vsel %vm63, %v2088, -inf
    %v2097 = vsel %vm63, %v2089, -inf
    %v2098 = vmax.f32 %v2093, %v2097
    %v2099 = vsel %vm63, %v2090, -inf
    %v2100 = vmax.f32 %v2094, %v2099
    %v2101 = vsel %vm63, %v2091, -inf
    %v2102 = vmax.f32 %v2095, %v2101
    %v2103 = vsel %vm63, %v2092, -inf
    %v2104 = vmax.f32 %v2096, %v2103
    %v2105 = vmax.f32 %v2098, %v2100
    %v2106 = vmax.f32 %v2102, %v2104
    %v2107 = vmax.f32 %v2105, %v2106
    %2108 = vmax.xlane.f32.xlu0 %v2107
    %v2109 = vpop.xlane.xlu0 %2108
    %v2110 = vrot.slane %v2109, 4
    %v2111 = vmax.f32 %v2109, %v2110
    %v2112 = vrot.slane %v2111, 2
    %v2113 = vmax.f32 %v2111, %v2112
    %v2114 = vrot.slane %v2113, 1
    %v2115 = vmax.f32 %v2113, %v2114
    %s2116 = vtos %v2115
    %vm2125 = vcmp.ge.s32.totalorder %v315, 1073741824
    %vm2126 = vcmp.ge.s32.totalorder %v316, 1073741824
    %vm2127 = vcmp.ge.s32.totalorder %v317, 1073741824
    %vm2128 = vcmp.ge.s32.totalorder %v318, 1073741824
    %vm2129 = vcmp.ge.s32.totalorder %v319, 1073741824
    %vm2130 = vcmp.ge.s32.totalorder %v320, 1073741824
    %vm2131 = vcmp.ge.s32.totalorder %v321, 1073741824
    %vm2132 = vcmp.ge.s32.totalorder %v322, 1073741824
    %v2133 = vsel %vm2125, 1, 0
    %v2134 = vsel %vm2126, 1, 0
    %v2135 = vsel %vm2127, 1, 0
    %v2136 = vsel %vm2128, 1, 0
    %v2137 = vsel %vm2129, 1, 0
    %v2138 = vsel %vm2130, 1, 0
    %v2139 = vsel %vm2131, 1, 0
    %v2140 = vsel %vm2132, 1, 0
    %v2141 = vsel %vm63, %v2133, 0
    %v2142 = vsel %vm63, %v2134, 0
    %v2143 = vsel %vm63, %v2135, 0
    %v2144 = vsel %vm63, %v2136, 0
    %v2145 = vsel %vm63, %v2137, 0
    %v2146 = vadd.s32 %v2141, %v2145
    %v2147 = vsel %vm63, %v2138, 0
    %v2148 = vadd.s32 %v2142, %v2147
    %v2149 = vsel %vm63, %v2139, 0
    %v2150 = vadd.s32 %v2143, %v2149
    %v2151 = vsel %vm63, %v2140, 0
    %v2152 = vadd.s32 %v2144, %v2151
    %v2153 = vadd.s32 %v2146, %v2148
    %v2154 = vadd.s32 %v2150, %v2152
    %v2155 = vadd.s32 %v2153, %v2154
    %v2156 = vand.u32 %v2155, 65535
    %v2157 = vshrl.u32 %v2155, 16
    %v2158 = vcvt.s32.f32 %v2156
    %v2159 = vcvt.s32.f32 %v2157
    %2160 = vadd.xlane.f32.xlu0 %v2158
    %v2161 = vpop.xlane.xlu0 %2160
    %2162 = vadd.xlane.f32.xlu0 %v2159
    %v2163 = vpop.xlane.xlu0 %2162
    %v2164 = vcvt.f32.s32 %v2161
    %v2165 = vcvt.f32.s32 %v2163
    %v2166 = vshll.u32 %v2165, 16
    %v2167 = vadd.s32 %v2166, %v2164
    %v2168 = vrot.slane %v2167, 4
    %v2169 = vadd.s32 %v2167, %v2168
    %v2170 = vrot.slane %v2169, 2
    %v2171 = vadd.s32 %v2169, %v2170
    %v2172 = vrot.slane %v2171, 1
    %v2173 = vadd.s32 %v2171, %v2172
    %s2174 = vtos %v2173
    %p2175 = scmp.ge.s32.totalorder %s2174, 2048
    %s2176 = scalar_select %p2175, 1073741824, 0
    %s2177 = sor.u32 %s2176, 536870912
    %v2178 = vstv %s2177
    %vm2179 = vcmp.ge.s32.totalorder %v315, %v2178
    %vm2180 = vcmp.ge.s32.totalorder %v316, %v2178
    %vm2181 = vcmp.ge.s32.totalorder %v317, %v2178
    %vm2182 = vcmp.ge.s32.totalorder %v318, %v2178
    %vm2183 = vcmp.ge.s32.totalorder %v319, %v2178
    %vm2184 = vcmp.ge.s32.totalorder %v320, %v2178
    %vm2185 = vcmp.ge.s32.totalorder %v321, %v2178
    %vm2186 = vcmp.ge.s32.totalorder %v322, %v2178
    %v2187 = vsel %vm2179, 1, 0
    %v2188 = vsel %vm2180, 1, 0
    %v2189 = vsel %vm2181, 1, 0
    %v2190 = vsel %vm2182, 1, 0
    %v2191 = vsel %vm2183, 1, 0
    %v2192 = vsel %vm2184, 1, 0
    %v2193 = vsel %vm2185, 1, 0
    %v2194 = vsel %vm2186, 1, 0
    %v2195 = vsel %vm63, %v2187, 0
    %v2196 = vsel %vm63, %v2188, 0
    %v2197 = vsel %vm63, %v2189, 0
    %v2198 = vsel %vm63, %v2190, 0
    %v2199 = vsel %vm63, %v2191, 0
    %v2200 = vadd.s32 %v2195, %v2199
    %v2201 = vsel %vm63, %v2192, 0
    %v2202 = vadd.s32 %v2196, %v2201
    %v2203 = vsel %vm63, %v2193, 0
    %v2204 = vadd.s32 %v2197, %v2203
    %v2205 = vsel %vm63, %v2194, 0
    %v2206 = vadd.s32 %v2198, %v2205
    %v2207 = vadd.s32 %v2200, %v2202
    %v2208 = vadd.s32 %v2204, %v2206
    %v2209 = vadd.s32 %v2207, %v2208
    %v2210 = vand.u32 %v2209, 65535
    %v2211 = vshrl.u32 %v2209, 16
    %v2212 = vcvt.s32.f32 %v2210
    %v2213 = vcvt.s32.f32 %v2211
    %2214 = vadd.xlane.f32.xlu0 %v2212
    %v2215 = vpop.xlane.xlu0 %2214
    %2216 = vadd.xlane.f32.xlu0 %v2213
    %v2217 = vpop.xlane.xlu0 %2216
    %v2218 = vcvt.f32.s32 %v2215
    %v2219 = vcvt.f32.s32 %v2217
    %v2220 = vshll.u32 %v2219, 16
    %v2221 = vadd.s32 %v2220, %v2218
    %v2222 = vrot.slane %v2221, 4
    %v2223 = vadd.s32 %v2221, %v2222
    %v2224 = vrot.slane %v2223, 2
    %v2225 = vadd.s32 %v2223, %v2224
    %v2226 = vrot.slane %v2225, 1
    %v2227 = vadd.s32 %v2225, %v2226
    %s2228 = vtos %v2227
    %p2229 = scmp.ge.s32.totalorder %s2228, 2048
    %s2230 = scalar_select %p2229, %s2177, %s2176
    %s2231 = sor.u32 %s2230, 268435456
    %v2232 = vstv %s2231
    %vm2233 = vcmp.ge.s32.totalorder %v315, %v2232
    %vm2234 = vcmp.ge.s32.totalorder %v316, %v2232
    %vm2235 = vcmp.ge.s32.totalorder %v317, %v2232
    %vm2236 = vcmp.ge.s32.totalorder %v318, %v2232
    %vm2237 = vcmp.ge.s32.totalorder %v319, %v2232
    %vm2238 = vcmp.ge.s32.totalorder %v320, %v2232
    %vm2239 = vcmp.ge.s32.totalorder %v321, %v2232
    %vm2240 = vcmp.ge.s32.totalorder %v322, %v2232
    %v2241 = vsel %vm2233, 1, 0
    %v2242 = vsel %vm2234, 1, 0
    %v2243 = vsel %vm2235, 1, 0
    %v2244 = vsel %vm2236, 1, 0
    %v2245 = vsel %vm2237, 1, 0
    %v2246 = vsel %vm2238, 1, 0
    %v2247 = vsel %vm2239, 1, 0
    %v2248 = vsel %vm2240, 1, 0
    %v2249 = vsel %vm63, %v2241, 0
    %v2250 = vsel %vm63, %v2242, 0
    %v2251 = vsel %vm63, %v2243, 0
    %v2252 = vsel %vm63, %v2244, 0
    %v2253 = vsel %vm63, %v2245, 0
    %v2254 = vadd.s32 %v2249, %v2253
    %v2255 = vsel %vm63, %v2246, 0
    %v2256 = vadd.s32 %v2250, %v2255
    %v2257 = vsel %vm63, %v2247, 0
    %v2258 = vadd.s32 %v2251, %v2257
    %v2259 = vsel %vm63, %v2248, 0
    %v2260 = vadd.s32 %v2252, %v2259
    %v2261 = vadd.s32 %v2254, %v2256
    %v2262 = vadd.s32 %v2258, %v2260
    %v2263 = vadd.s32 %v2261, %v2262
    %v2264 = vand.u32 %v2263, 65535
    %v2265 = vshrl.u32 %v2263, 16
    %v2266 = vcvt.s32.f32 %v2264
    %v2267 = vcvt.s32.f32 %v2265
    %2268 = vadd.xlane.f32.xlu0 %v2266
    %v2269 = vpop.xlane.xlu0 %2268
    %2270 = vadd.xlane.f32.xlu0 %v2267
    %v2271 = vpop.xlane.xlu0 %2270
    %v2272 = vcvt.f32.s32 %v2269
    %v2273 = vcvt.f32.s32 %v2271
    %v2274 = vshll.u32 %v2273, 16
    %v2275 = vadd.s32 %v2274, %v2272
    %v2276 = vrot.slane %v2275, 4
    %v2277 = vadd.s32 %v2275, %v2276
    %v2278 = vrot.slane %v2277, 2
    %v2279 = vadd.s32 %v2277, %v2278
    %v2280 = vrot.slane %v2279, 1
    %v2281 = vadd.s32 %v2279, %v2280
    %s2282 = vtos %v2281
    %p2283 = scmp.ge.s32.totalorder %s2282, 2048
    %s2284 = scalar_select %p2283, %s2231, %s2230
    %s2285 = sor.u32 %s2284, 134217728
    %v2286 = vstv %s2285
    %vm2287 = vcmp.ge.s32.totalorder %v315, %v2286
    %vm2288 = vcmp.ge.s32.totalorder %v316, %v2286
    %vm2289 = vcmp.ge.s32.totalorder %v317, %v2286
    %vm2290 = vcmp.ge.s32.totalorder %v318, %v2286
    %vm2291 = vcmp.ge.s32.totalorder %v319, %v2286
    %vm2292 = vcmp.ge.s32.totalorder %v320, %v2286
    %vm2293 = vcmp.ge.s32.totalorder %v321, %v2286
    %vm2294 = vcmp.ge.s32.totalorder %v322, %v2286
    %v2295 = vsel %vm2287, 1, 0
    %v2296 = vsel %vm2288, 1, 0
    %v2297 = vsel %vm2289, 1, 0
    %v2298 = vsel %vm2290, 1, 0
    %v2299 = vsel %vm2291, 1, 0
    %v2300 = vsel %vm2292, 1, 0
    %v2301 = vsel %vm2293, 1, 0
    %v2302 = vsel %vm2294, 1, 0
    %v2303 = vsel %vm63, %v2295, 0
    %v2304 = vsel %vm63, %v2296, 0
    %v2305 = vsel %vm63, %v2297, 0
    %v2306 = vsel %vm63, %v2298, 0
    %v2307 = vsel %vm63, %v2299, 0
    %v2308 = vadd.s32 %v2303, %v2307
    %v2309 = vsel %vm63, %v2300, 0
    %v2310 = vadd.s32 %v2304, %v2309
    %v2311 = vsel %vm63, %v2301, 0
    %v2312 = vadd.s32 %v2305, %v2311
    %v2313 = vsel %vm63, %v2302, 0
    %v2314 = vadd.s32 %v2306, %v2313
    %v2315 = vadd.s32 %v2308, %v2310
    %v2316 = vadd.s32 %v2312, %v2314
    %v2317 = vadd.s32 %v2315, %v2316
    %v2318 = vand.u32 %v2317, 65535
    %v2319 = vshrl.u32 %v2317, 16
    %v2320 = vcvt.s32.f32 %v2318
    %v2321 = vcvt.s32.f32 %v2319
    %2322 = vadd.xlane.f32.xlu0 %v2320
    %v2323 = vpop.xlane.xlu0 %2322
    %2324 = vadd.xlane.f32.xlu0 %v2321
    %v2325 = vpop.xlane.xlu0 %2324
    %v2326 = vcvt.f32.s32 %v2323
    %v2327 = vcvt.f32.s32 %v2325
    %v2328 = vshll.u32 %v2327, 16
    %v2329 = vadd.s32 %v2328, %v2326
    %v2330 = vrot.slane %v2329, 4
    %v2331 = vadd.s32 %v2329, %v2330
    %v2332 = vrot.slane %v2331, 2
    %v2333 = vadd.s32 %v2331, %v2332
    %v2334 = vrot.slane %v2333, 1
    %v2335 = vadd.s32 %v2333, %v2334
    %s2336 = vtos %v2335
    %p2337 = scmp.ge.s32.totalorder %s2336, 2048
    %s2338 = scalar_select %p2337, %s2285, %s2284
    %s2339 = sor.u32 %s2338, 67108864
    %v2340 = vstv %s2339
    %vm2341 = vcmp.ge.s32.totalorder %v315, %v2340
    %vm2342 = vcmp.ge.s32.totalorder %v316, %v2340
    %vm2343 = vcmp.ge.s32.totalorder %v317, %v2340
    %vm2344 = vcmp.ge.s32.totalorder %v318, %v2340
    %vm2345 = vcmp.ge.s32.totalorder %v319, %v2340
    %vm2346 = vcmp.ge.s32.totalorder %v320, %v2340
    %vm2347 = vcmp.ge.s32.totalorder %v321, %v2340
    %vm2348 = vcmp.ge.s32.totalorder %v322, %v2340
    %v2349 = vsel %vm2341, 1, 0
    %v2350 = vsel %vm2342, 1, 0
    %v2351 = vsel %vm2343, 1, 0
    %v2352 = vsel %vm2344, 1, 0
    %v2353 = vsel %vm2345, 1, 0
    %v2354 = vsel %vm2346, 1, 0
    %v2355 = vsel %vm2347, 1, 0
    %v2356 = vsel %vm2348, 1, 0
    %v2357 = vsel %vm63, %v2349, 0
    %v2358 = vsel %vm63, %v2350, 0
    %v2359 = vsel %vm63, %v2351, 0
    %v2360 = vsel %vm63, %v2352, 0
    %v2361 = vsel %vm63, %v2353, 0
    %v2362 = vadd.s32 %v2357, %v2361
    %v2363 = vsel %vm63, %v2354, 0
    %v2364 = vadd.s32 %v2358, %v2363
    %v2365 = vsel %vm63, %v2355, 0
    %v2366 = vadd.s32 %v2359, %v2365
    %v2367 = vsel %vm63, %v2356, 0
    %v2368 = vadd.s32 %v2360, %v2367
    %v2369 = vadd.s32 %v2362, %v2364
    %v2370 = vadd.s32 %v2366, %v2368
    %v2371 = vadd.s32 %v2369, %v2370
    %v2372 = vand.u32 %v2371, 65535
    %v2373 = vshrl.u32 %v2371, 16
    %v2374 = vcvt.s32.f32 %v2372
    %v2375 = vcvt.s32.f32 %v2373
    %2376 = vadd.xlane.f32.xlu0 %v2374
    %v2377 = vpop.xlane.xlu0 %2376
    %2378 = vadd.xlane.f32.xlu0 %v2375
    %v2379 = vpop.xlane.xlu0 %2378
    %v2380 = vcvt.f32.s32 %v2377
    %v2381 = vcvt.f32.s32 %v2379
    %v2382 = vshll.u32 %v2381, 16
    %v2383 = vadd.s32 %v2382, %v2380
    %v2384 = vrot.slane %v2383, 4
    %v2385 = vadd.s32 %v2383, %v2384
    %v2386 = vrot.slane %v2385, 2
    %v2387 = vadd.s32 %v2385, %v2386
    %v2388 = vrot.slane %v2387, 1
    %v2389 = vadd.s32 %v2387, %v2388
    %s2390 = vtos %v2389
    %p2391 = scmp.ge.s32.totalorder %s2390, 2048
    %s2392 = scalar_select %p2391, %s2339, %s2338
    %s2393 = sor.u32 %s2392, 33554432
    %v2394 = vstv %s2393
    %vm2395 = vcmp.ge.s32.totalorder %v315, %v2394
    %vm2396 = vcmp.ge.s32.totalorder %v316, %v2394
    %vm2397 = vcmp.ge.s32.totalorder %v317, %v2394
    %vm2398 = vcmp.ge.s32.totalorder %v318, %v2394
    %vm2399 = vcmp.ge.s32.totalorder %v319, %v2394
    %vm2400 = vcmp.ge.s32.totalorder %v320, %v2394
    %vm2401 = vcmp.ge.s32.totalorder %v321, %v2394
    %vm2402 = vcmp.ge.s32.totalorder %v322, %v2394
    %v2403 = vsel %vm2395, 1, 0
    %v2404 = vsel %vm2396, 1, 0
    %v2405 = vsel %vm2397, 1, 0
    %v2406 = vsel %vm2398, 1, 0
    %v2407 = vsel %vm2399, 1, 0
    %v2408 = vsel %vm2400, 1, 0
    %v2409 = vsel %vm2401, 1, 0
    %v2410 = vsel %vm2402, 1, 0
    %v2411 = vsel %vm63, %v2403, 0
    %v2412 = vsel %vm63, %v2404, 0
    %v2413 = vsel %vm63, %v2405, 0
    %v2414 = vsel %vm63, %v2406, 0
    %v2415 = vsel %vm63, %v2407, 0
    %v2416 = vadd.s32 %v2411, %v2415
    %v2417 = vsel %vm63, %v2408, 0
    %v2418 = vadd.s32 %v2412, %v2417
    %v2419 = vsel %vm63, %v2409, 0
    %v2420 = vadd.s32 %v2413, %v2419
    %v2421 = vsel %vm63, %v2410, 0
    %v2422 = vadd.s32 %v2414, %v2421
    %v2423 = vadd.s32 %v2416, %v2418
    %v2424 = vadd.s32 %v2420, %v2422
    %v2425 = vadd.s32 %v2423, %v2424
    %v2426 = vand.u32 %v2425, 65535
    %v2427 = vshrl.u32 %v2425, 16
    %v2428 = vcvt.s32.f32 %v2426
    %v2429 = vcvt.s32.f32 %v2427
    %2430 = vadd.xlane.f32.xlu0 %v2428
    %v2431 = vpop.xlane.xlu0 %2430
    %2432 = vadd.xlane.f32.xlu0 %v2429
    %v2433 = vpop.xlane.xlu0 %2432
    %v2434 = vcvt.f32.s32 %v2431
    %v2435 = vcvt.f32.s32 %v2433
    %v2436 = vshll.u32 %v2435, 16
    %v2437 = vadd.s32 %v2436, %v2434
    %v2438 = vrot.slane %v2437, 4
    %v2439 = vadd.s32 %v2437, %v2438
    %v2440 = vrot.slane %v2439, 2
    %v2441 = vadd.s32 %v2439, %v2440
    %v2442 = vrot.slane %v2441, 1
    %v2443 = vadd.s32 %v2441, %v2442
    %s2444 = vtos %v2443
    %p2445 = scmp.ge.s32.totalorder %s2444, 2048
    %s2446 = scalar_select %p2445, %s2393, %s2392
    %s2447 = sor.u32 %s2446, 16777216
    %v2448 = vstv %s2447
    %vm2449 = vcmp.ge.s32.totalorder %v315, %v2448
    %vm2450 = vcmp.ge.s32.totalorder %v316, %v2448
    %vm2451 = vcmp.ge.s32.totalorder %v317, %v2448
    %vm2452 = vcmp.ge.s32.totalorder %v318, %v2448
    %vm2453 = vcmp.ge.s32.totalorder %v319, %v2448
    %vm2454 = vcmp.ge.s32.totalorder %v320, %v2448
    %vm2455 = vcmp.ge.s32.totalorder %v321, %v2448
    %vm2456 = vcmp.ge.s32.totalorder %v322, %v2448
    %v2457 = vsel %vm2449, 1, 0
    %v2458 = vsel %vm2450, 1, 0
    %v2459 = vsel %vm2451, 1, 0
    %v2460 = vsel %vm2452, 1, 0
    %v2461 = vsel %vm2453, 1, 0
    %v2462 = vsel %vm2454, 1, 0
    %v2463 = vsel %vm2455, 1, 0
    %v2464 = vsel %vm2456, 1, 0
    %v2465 = vsel %vm63, %v2457, 0
    %v2466 = vsel %vm63, %v2458, 0
    %v2467 = vsel %vm63, %v2459, 0
    %v2468 = vsel %vm63, %v2460, 0
    %v2469 = vsel %vm63, %v2461, 0
    %v2470 = vadd.s32 %v2465, %v2469
    %v2471 = vsel %vm63, %v2462, 0
    %v2472 = vadd.s32 %v2466, %v2471
    %v2473 = vsel %vm63, %v2463, 0
    %v2474 = vadd.s32 %v2467, %v2473
    %v2475 = vsel %vm63, %v2464, 0
    %v2476 = vadd.s32 %v2468, %v2475
    %v2477 = vadd.s32 %v2470, %v2472
    %v2478 = vadd.s32 %v2474, %v2476
    %v2479 = vadd.s32 %v2477, %v2478
    %v2480 = vand.u32 %v2479, 65535
    %v2481 = vshrl.u32 %v2479, 16
    %v2482 = vcvt.s32.f32 %v2480
    %v2483 = vcvt.s32.f32 %v2481
    %2484 = vadd.xlane.f32.xlu0 %v2482
    %v2485 = vpop.xlane.xlu0 %2484
    %2486 = vadd.xlane.f32.xlu0 %v2483
    %v2487 = vpop.xlane.xlu0 %2486
    %v2488 = vcvt.f32.s32 %v2485
    %v2489 = vcvt.f32.s32 %v2487
    %v2490 = vshll.u32 %v2489, 16
    %v2491 = vadd.s32 %v2490, %v2488
    %v2492 = vrot.slane %v2491, 4
    %v2493 = vadd.s32 %v2491, %v2492
    %v2494 = vrot.slane %v2493, 2
    %v2495 = vadd.s32 %v2493, %v2494
    %v2496 = vrot.slane %v2495, 1
    %v2497 = vadd.s32 %v2495, %v2496
    %s2498 = vtos %v2497
    %p2499 = scmp.ge.s32.totalorder %s2498, 2048
    %s2500 = scalar_select %p2499, %s2447, %s2446
    %s2501 = sor.u32 %s2500, 8388608
    %v2502 = vstv %s2501
    %vm2503 = vcmp.ge.s32.totalorder %v315, %v2502
    %vm2504 = vcmp.ge.s32.totalorder %v316, %v2502
    %vm2505 = vcmp.ge.s32.totalorder %v317, %v2502
    %vm2506 = vcmp.ge.s32.totalorder %v318, %v2502
    %vm2507 = vcmp.ge.s32.totalorder %v319, %v2502
    %vm2508 = vcmp.ge.s32.totalorder %v320, %v2502
    %vm2509 = vcmp.ge.s32.totalorder %v321, %v2502
    %vm2510 = vcmp.ge.s32.totalorder %v322, %v2502
    %v2511 = vsel %vm2503, 1, 0
    %v2512 = vsel %vm2504, 1, 0
    %v2513 = vsel %vm2505, 1, 0
    %v2514 = vsel %vm2506, 1, 0
    %v2515 = vsel %vm2507, 1, 0
    %v2516 = vsel %vm2508, 1, 0
    %v2517 = vsel %vm2509, 1, 0
    %v2518 = vsel %vm2510, 1, 0
    %v2519 = vsel %vm63, %v2511, 0
    %v2520 = vsel %vm63, %v2512, 0
    %v2521 = vsel %vm63, %v2513, 0
    %v2522 = vsel %vm63, %v2514, 0
    %v2523 = vsel %vm63, %v2515, 0
    %v2524 = vadd.s32 %v2519, %v2523
    %v2525 = vsel %vm63, %v2516, 0
    %v2526 = vadd.s32 %v2520, %v2525
    %v2527 = vsel %vm63, %v2517, 0
    %v2528 = vadd.s32 %v2521, %v2527
    %v2529 = vsel %vm63, %v2518, 0
    %v2530 = vadd.s32 %v2522, %v2529
    %v2531 = vadd.s32 %v2524, %v2526
    %v2532 = vadd.s32 %v2528, %v2530
    %v2533 = vadd.s32 %v2531, %v2532
    %v2534 = vand.u32 %v2533, 65535
    %v2535 = vshrl.u32 %v2533, 16
    %v2536 = vcvt.s32.f32 %v2534
    %v2537 = vcvt.s32.f32 %v2535
    %2538 = vadd.xlane.f32.xlu0 %v2536
    %v2539 = vpop.xlane.xlu0 %2538
    %2540 = vadd.xlane.f32.xlu0 %v2537
    %v2541 = vpop.xlane.xlu0 %2540
    %v2542 = vcvt.f32.s32 %v2539
    %v2543 = vcvt.f32.s32 %v2541
    %v2544 = vshll.u32 %v2543, 16
    %v2545 = vadd.s32 %v2544, %v2542
    %v2546 = vrot.slane %v2545, 4
    %v2547 = vadd.s32 %v2545, %v2546
    %v2548 = vrot.slane %v2547, 2
    %v2549 = vadd.s32 %v2547, %v2548
    %v2550 = vrot.slane %v2549, 1
    %v2551 = vadd.s32 %v2549, %v2550
    %s2552 = vtos %v2551
    %p2553 = scmp.ge.s32.totalorder %s2552, 2048
    %s2554 = scalar_select %p2553, %s2501, %s2500
    %s2555 = sor.u32 %s2554, 4194304
    %v2556 = vstv %s2555
    %vm2557 = vcmp.ge.s32.totalorder %v315, %v2556
    %vm2558 = vcmp.ge.s32.totalorder %v316, %v2556
    %vm2559 = vcmp.ge.s32.totalorder %v317, %v2556
    %vm2560 = vcmp.ge.s32.totalorder %v318, %v2556
    %vm2561 = vcmp.ge.s32.totalorder %v319, %v2556
    %vm2562 = vcmp.ge.s32.totalorder %v320, %v2556
    %vm2563 = vcmp.ge.s32.totalorder %v321, %v2556
    %vm2564 = vcmp.ge.s32.totalorder %v322, %v2556
    %v2565 = vsel %vm2557, 1, 0
    %v2566 = vsel %vm2558, 1, 0
    %v2567 = vsel %vm2559, 1, 0
    %v2568 = vsel %vm2560, 1, 0
    %v2569 = vsel %vm2561, 1, 0
    %v2570 = vsel %vm2562, 1, 0
    %v2571 = vsel %vm2563, 1, 0
    %v2572 = vsel %vm2564, 1, 0
    %v2573 = vsel %vm63, %v2565, 0
    %v2574 = vsel %vm63, %v2566, 0
    %v2575 = vsel %vm63, %v2567, 0
    %v2576 = vsel %vm63, %v2568, 0
    %v2577 = vsel %vm63, %v2569, 0
    %v2578 = vadd.s32 %v2573, %v2577
    %v2579 = vsel %vm63, %v2570, 0
    %v2580 = vadd.s32 %v2574, %v2579
    %v2581 = vsel %vm63, %v2571, 0
    %v2582 = vadd.s32 %v2575, %v2581
    %v2583 = vsel %vm63, %v2572, 0
    %v2584 = vadd.s32 %v2576, %v2583
    %v2585 = vadd.s32 %v2578, %v2580
    %v2586 = vadd.s32 %v2582, %v2584
    %v2587 = vadd.s32 %v2585, %v2586
    %v2588 = vand.u32 %v2587, 65535
    %v2589 = vshrl.u32 %v2587, 16
    %v2590 = vcvt.s32.f32 %v2588
    %v2591 = vcvt.s32.f32 %v2589
    %2592 = vadd.xlane.f32.xlu0 %v2590
    %v2593 = vpop.xlane.xlu0 %2592
    %2594 = vadd.xlane.f32.xlu0 %v2591
    %v2595 = vpop.xlane.xlu0 %2594
    %v2596 = vcvt.f32.s32 %v2593
    %v2597 = vcvt.f32.s32 %v2595
    %v2598 = vshll.u32 %v2597, 16
    %v2599 = vadd.s32 %v2598, %v2596
    %v2600 = vrot.slane %v2599, 4
    %v2601 = vadd.s32 %v2599, %v2600
    %v2602 = vrot.slane %v2601, 2
    %v2603 = vadd.s32 %v2601, %v2602
    %v2604 = vrot.slane %v2603, 1
    %v2605 = vadd.s32 %v2603, %v2604
    %s2606 = vtos %v2605
    %p2607 = scmp.ge.s32.totalorder %s2606, 2048
    %s2608 = scalar_select %p2607, %s2555, %s2554
    %s2609 = sor.u32 %s2608, 2097152
    %v2610 = vstv %s2609
    %vm2611 = vcmp.ge.s32.totalorder %v315, %v2610
    %vm2612 = vcmp.ge.s32.totalorder %v316, %v2610
    %vm2613 = vcmp.ge.s32.totalorder %v317, %v2610
    %vm2614 = vcmp.ge.s32.totalorder %v318, %v2610
    %vm2615 = vcmp.ge.s32.totalorder %v319, %v2610
    %vm2616 = vcmp.ge.s32.totalorder %v320, %v2610
    %vm2617 = vcmp.ge.s32.totalorder %v321, %v2610
    %vm2618 = vcmp.ge.s32.totalorder %v322, %v2610
    %v2619 = vsel %vm2611, 1, 0
    %v2620 = vsel %vm2612, 1, 0
    %v2621 = vsel %vm2613, 1, 0
    %v2622 = vsel %vm2614, 1, 0
    %v2623 = vsel %vm2615, 1, 0
    %v2624 = vsel %vm2616, 1, 0
    %v2625 = vsel %vm2617, 1, 0
    %v2626 = vsel %vm2618, 1, 0
    %v2627 = vsel %vm63, %v2619, 0
    %v2628 = vsel %vm63, %v2620, 0
    %v2629 = vsel %vm63, %v2621, 0
    %v2630 = vsel %vm63, %v2622, 0
    %v2631 = vsel %vm63, %v2623, 0
    %v2632 = vadd.s32 %v2627, %v2631
    %v2633 = vsel %vm63, %v2624, 0
    %v2634 = vadd.s32 %v2628, %v2633
    %v2635 = vsel %vm63, %v2625, 0
    %v2636 = vadd.s32 %v2629, %v2635
    %v2637 = vsel %vm63, %v2626, 0
    %v2638 = vadd.s32 %v2630, %v2637
    %v2639 = vadd.s32 %v2632, %v2634
    %v2640 = vadd.s32 %v2636, %v2638
    %v2641 = vadd.s32 %v2639, %v2640
    %v2642 = vand.u32 %v2641, 65535
    %v2643 = vshrl.u32 %v2641, 16
    %v2644 = vcvt.s32.f32 %v2642
    %v2645 = vcvt.s32.f32 %v2643
    %2646 = vadd.xlane.f32.xlu0 %v2644
    %v2647 = vpop.xlane.xlu0 %2646
    %2648 = vadd.xlane.f32.xlu0 %v2645
    %v2649 = vpop.xlane.xlu0 %2648
    %v2650 = vcvt.f32.s32 %v2647
    %v2651 = vcvt.f32.s32 %v2649
    %v2652 = vshll.u32 %v2651, 16
    %v2653 = vadd.s32 %v2652, %v2650
    %v2654 = vrot.slane %v2653, 4
    %v2655 = vadd.s32 %v2653, %v2654
    %v2656 = vrot.slane %v2655, 2
    %v2657 = vadd.s32 %v2655, %v2656
    %v2658 = vrot.slane %v2657, 1
    %v2659 = vadd.s32 %v2657, %v2658
    %s2660 = vtos %v2659
    %p2661 = scmp.ge.s32.totalorder %s2660, 2048
    %s2662 = scalar_select %p2661, %s2609, %s2608
    %s2663 = sor.u32 %s2662, 1048576
    %v2664 = vstv %s2663
    %vm2665 = vcmp.ge.s32.totalorder %v315, %v2664
    %vm2666 = vcmp.ge.s32.totalorder %v316, %v2664
    %vm2667 = vcmp.ge.s32.totalorder %v317, %v2664
    %vm2668 = vcmp.ge.s32.totalorder %v318, %v2664
    %vm2669 = vcmp.ge.s32.totalorder %v319, %v2664
    %vm2670 = vcmp.ge.s32.totalorder %v320, %v2664
    %vm2671 = vcmp.ge.s32.totalorder %v321, %v2664
    %vm2672 = vcmp.ge.s32.totalorder %v322, %v2664
    %v2673 = vsel %vm2665, 1, 0
    %v2674 = vsel %vm2666, 1, 0
    %v2675 = vsel %vm2667, 1, 0
    %v2676 = vsel %vm2668, 1, 0
    %v2677 = vsel %vm2669, 1, 0
    %v2678 = vsel %vm2670, 1, 0
    %v2679 = vsel %vm2671, 1, 0
    %v2680 = vsel %vm2672, 1, 0
    %v2681 = vsel %vm63, %v2673, 0
    %v2682 = vsel %vm63, %v2674, 0
    %v2683 = vsel %vm63, %v2675, 0
    %v2684 = vsel %vm63, %v2676, 0
    %v2685 = vsel %vm63, %v2677, 0
    %v2686 = vadd.s32 %v2681, %v2685
    %v2687 = vsel %vm63, %v2678, 0
    %v2688 = vadd.s32 %v2682, %v2687
    %v2689 = vsel %vm63, %v2679, 0
    %v2690 = vadd.s32 %v2683, %v2689
    %v2691 = vsel %vm63, %v2680, 0
    %v2692 = vadd.s32 %v2684, %v2691
    %v2693 = vadd.s32 %v2686, %v2688
    %v2694 = vadd.s32 %v2690, %v2692
    %v2695 = vadd.s32 %v2693, %v2694
    %v2696 = vand.u32 %v2695, 65535
    %v2697 = vshrl.u32 %v2695, 16
    %v2698 = vcvt.s32.f32 %v2696
    %v2699 = vcvt.s32.f32 %v2697
    %2700 = vadd.xlane.f32.xlu0 %v2698
    %v2701 = vpop.xlane.xlu0 %2700
    %2702 = vadd.xlane.f32.xlu0 %v2699
    %v2703 = vpop.xlane.xlu0 %2702
    %v2704 = vcvt.f32.s32 %v2701
    %v2705 = vcvt.f32.s32 %v2703
    %v2706 = vshll.u32 %v2705, 16
    %v2707 = vadd.s32 %v2706, %v2704
    %v2708 = vrot.slane %v2707, 4
    %v2709 = vadd.s32 %v2707, %v2708
    %v2710 = vrot.slane %v2709, 2
    %v2711 = vadd.s32 %v2709, %v2710
    %v2712 = vrot.slane %v2711, 1
    %v2713 = vadd.s32 %v2711, %v2712
    %s2714 = vtos %v2713
    %p2715 = scmp.ge.s32.totalorder %s2714, 2048
    %s2716 = scalar_select %p2715, %s2663, %s2662
    %s2717 = sor.u32 %s2716, 524288
    %v2718 = vstv %s2717
    %vm2719 = vcmp.ge.s32.totalorder %v315, %v2718
    %vm2720 = vcmp.ge.s32.totalorder %v316, %v2718
    %vm2721 = vcmp.ge.s32.totalorder %v317, %v2718
    %vm2722 = vcmp.ge.s32.totalorder %v318, %v2718
    %vm2723 = vcmp.ge.s32.totalorder %v319, %v2718
    %vm2724 = vcmp.ge.s32.totalorder %v320, %v2718
    %vm2725 = vcmp.ge.s32.totalorder %v321, %v2718
    %vm2726 = vcmp.ge.s32.totalorder %v322, %v2718
    %v2727 = vsel %vm2719, 1, 0
    %v2728 = vsel %vm2720, 1, 0
    %v2729 = vsel %vm2721, 1, 0
    %v2730 = vsel %vm2722, 1, 0
    %v2731 = vsel %vm2723, 1, 0
    %v2732 = vsel %vm2724, 1, 0
    %v2733 = vsel %vm2725, 1, 0
    %v2734 = vsel %vm2726, 1, 0
    %v2735 = vsel %vm63, %v2727, 0
    %v2736 = vsel %vm63, %v2728, 0
    %v2737 = vsel %vm63, %v2729, 0
    %v2738 = vsel %vm63, %v2730, 0
    %v2739 = vsel %vm63, %v2731, 0
    %v2740 = vadd.s32 %v2735, %v2739
    %v2741 = vsel %vm63, %v2732, 0
    %v2742 = vadd.s32 %v2736, %v2741
    %v2743 = vsel %vm63, %v2733, 0
    %v2744 = vadd.s32 %v2737, %v2743
    %v2745 = vsel %vm63, %v2734, 0
    %v2746 = vadd.s32 %v2738, %v2745
    %v2747 = vadd.s32 %v2740, %v2742
    %v2748 = vadd.s32 %v2744, %v2746
    %v2749 = vadd.s32 %v2747, %v2748
    %v2750 = vand.u32 %v2749, 65535
    %v2751 = vshrl.u32 %v2749, 16
    %v2752 = vcvt.s32.f32 %v2750
    %v2753 = vcvt.s32.f32 %v2751
    %2754 = vadd.xlane.f32.xlu0 %v2752
    %v2755 = vpop.xlane.xlu0 %2754
    %2756 = vadd.xlane.f32.xlu0 %v2753
    %v2757 = vpop.xlane.xlu0 %2756
    %v2758 = vcvt.f32.s32 %v2755
    %v2759 = vcvt.f32.s32 %v2757
    %v2760 = vshll.u32 %v2759, 16
    %v2761 = vadd.s32 %v2760, %v2758
    %v2762 = vrot.slane %v2761, 4
    %v2763 = vadd.s32 %v2761, %v2762
    %v2764 = vrot.slane %v2763, 2
    %v2765 = vadd.s32 %v2763, %v2764
    %v2766 = vrot.slane %v2765, 1
    %v2767 = vadd.s32 %v2765, %v2766
    %s2768 = vtos %v2767
    %p2769 = scmp.ge.s32.totalorder %s2768, 2048
    %s2770 = scalar_select %p2769, %s2717, %s2716
    %s2771 = sor.u32 %s2770, 262144
    %v2772 = vstv %s2771
    %vm2773 = vcmp.ge.s32.totalorder %v315, %v2772
    %vm2774 = vcmp.ge.s32.totalorder %v316, %v2772
    %vm2775 = vcmp.ge.s32.totalorder %v317, %v2772
    %vm2776 = vcmp.ge.s32.totalorder %v318, %v2772
    %vm2777 = vcmp.ge.s32.totalorder %v319, %v2772
    %vm2778 = vcmp.ge.s32.totalorder %v320, %v2772
    %vm2779 = vcmp.ge.s32.totalorder %v321, %v2772
    %vm2780 = vcmp.ge.s32.totalorder %v322, %v2772
    %v2781 = vsel %vm2773, 1, 0
    %v2782 = vsel %vm2774, 1, 0
    %v2783 = vsel %vm2775, 1, 0
    %v2784 = vsel %vm2776, 1, 0
    %v2785 = vsel %vm2777, 1, 0
    %v2786 = vsel %vm2778, 1, 0
    %v2787 = vsel %vm2779, 1, 0
    %v2788 = vsel %vm2780, 1, 0
    %v2789 = vsel %vm63, %v2781, 0
    %v2790 = vsel %vm63, %v2782, 0
    %v2791 = vsel %vm63, %v2783, 0
    %v2792 = vsel %vm63, %v2784, 0
    %v2793 = vsel %vm63, %v2785, 0
    %v2794 = vadd.s32 %v2789, %v2793
    %v2795 = vsel %vm63, %v2786, 0
    %v2796 = vadd.s32 %v2790, %v2795
    %v2797 = vsel %vm63, %v2787, 0
    %v2798 = vadd.s32 %v2791, %v2797
    %v2799 = vsel %vm63, %v2788, 0
    %v2800 = vadd.s32 %v2792, %v2799
    %v2801 = vadd.s32 %v2794, %v2796
    %v2802 = vadd.s32 %v2798, %v2800
    %v2803 = vadd.s32 %v2801, %v2802
    %v2804 = vand.u32 %v2803, 65535
    %v2805 = vshrl.u32 %v2803, 16
    %v2806 = vcvt.s32.f32 %v2804
    %v2807 = vcvt.s32.f32 %v2805
    %2808 = vadd.xlane.f32.xlu0 %v2806
    %v2809 = vpop.xlane.xlu0 %2808
    %2810 = vadd.xlane.f32.xlu0 %v2807
    %v2811 = vpop.xlane.xlu0 %2810
    %v2812 = vcvt.f32.s32 %v2809
    %v2813 = vcvt.f32.s32 %v2811
    %v2814 = vshll.u32 %v2813, 16
    %v2815 = vadd.s32 %v2814, %v2812
    %v2816 = vrot.slane %v2815, 4
    %v2817 = vadd.s32 %v2815, %v2816
    %v2818 = vrot.slane %v2817, 2
    %v2819 = vadd.s32 %v2817, %v2818
    %v2820 = vrot.slane %v2819, 1
    %v2821 = vadd.s32 %v2819, %v2820
    %s2822 = vtos %v2821
    %p2823 = scmp.ge.s32.totalorder %s2822, 2048
    %s2824 = scalar_select %p2823, %s2771, %s2770
    %s2825 = sor.u32 %s2824, 131072
    %v2826 = vstv %s2825
    %vm2827 = vcmp.ge.s32.totalorder %v315, %v2826
    %vm2828 = vcmp.ge.s32.totalorder %v316, %v2826
    %vm2829 = vcmp.ge.s32.totalorder %v317, %v2826
    %vm2830 = vcmp.ge.s32.totalorder %v318, %v2826
    %vm2831 = vcmp.ge.s32.totalorder %v319, %v2826
    %vm2832 = vcmp.ge.s32.totalorder %v320, %v2826
    %vm2833 = vcmp.ge.s32.totalorder %v321, %v2826
    %vm2834 = vcmp.ge.s32.totalorder %v322, %v2826
    %v2835 = vsel %vm2827, 1, 0
    %v2836 = vsel %vm2828, 1, 0
    %v2837 = vsel %vm2829, 1, 0
    %v2838 = vsel %vm2830, 1, 0
    %v2839 = vsel %vm2831, 1, 0
    %v2840 = vsel %vm2832, 1, 0
    %v2841 = vsel %vm2833, 1, 0
    %v2842 = vsel %vm2834, 1, 0
    %v2843 = vsel %vm63, %v2835, 0
    %v2844 = vsel %vm63, %v2836, 0
    %v2845 = vsel %vm63, %v2837, 0
    %v2846 = vsel %vm63, %v2838, 0
    %v2847 = vsel %vm63, %v2839, 0
    %v2848 = vadd.s32 %v2843, %v2847
    %v2849 = vsel %vm63, %v2840, 0
    %v2850 = vadd.s32 %v2844, %v2849
    %v2851 = vsel %vm63, %v2841, 0
    %v2852 = vadd.s32 %v2845, %v2851
    %v2853 = vsel %vm63, %v2842, 0
    %v2854 = vadd.s32 %v2846, %v2853
    %v2855 = vadd.s32 %v2848, %v2850
    %v2856 = vadd.s32 %v2852, %v2854
    %v2857 = vadd.s32 %v2855, %v2856
    %v2858 = vand.u32 %v2857, 65535
    %v2859 = vshrl.u32 %v2857, 16
    %v2860 = vcvt.s32.f32 %v2858
    %v2861 = vcvt.s32.f32 %v2859
    %2862 = vadd.xlane.f32.xlu0 %v2860
    %v2863 = vpop.xlane.xlu0 %2862
    %2864 = vadd.xlane.f32.xlu0 %v2861
    %v2865 = vpop.xlane.xlu0 %2864
    %v2866 = vcvt.f32.s32 %v2863
    %v2867 = vcvt.f32.s32 %v2865
    %v2868 = vshll.u32 %v2867, 16
    %v2869 = vadd.s32 %v2868, %v2866
    %v2870 = vrot.slane %v2869, 4
    %v2871 = vadd.s32 %v2869, %v2870
    %v2872 = vrot.slane %v2871, 2
    %v2873 = vadd.s32 %v2871, %v2872
    %v2874 = vrot.slane %v2873, 1
    %v2875 = vadd.s32 %v2873, %v2874
    %s2876 = vtos %v2875
    %p2877 = scmp.ge.s32.totalorder %s2876, 2048
    %s2878 = scalar_select %p2877, %s2825, %s2824
    %s2879 = sor.u32 %s2878, 65536
    %v2880 = vstv %s2879
    %vm2881 = vcmp.ge.s32.totalorder %v315, %v2880
    %vm2882 = vcmp.ge.s32.totalorder %v316, %v2880
    %vm2883 = vcmp.ge.s32.totalorder %v317, %v2880
    %vm2884 = vcmp.ge.s32.totalorder %v318, %v2880
    %vm2885 = vcmp.ge.s32.totalorder %v319, %v2880
    %vm2886 = vcmp.ge.s32.totalorder %v320, %v2880
    %vm2887 = vcmp.ge.s32.totalorder %v321, %v2880
    %vm2888 = vcmp.ge.s32.totalorder %v322, %v2880
    %v2889 = vsel %vm2881, 1, 0
    %v2890 = vsel %vm2882, 1, 0
    %v2891 = vsel %vm2883, 1, 0
    %v2892 = vsel %vm2884, 1, 0
    %v2893 = vsel %vm2885, 1, 0
    %v2894 = vsel %vm2886, 1, 0
    %v2895 = vsel %vm2887, 1, 0
    %v2896 = vsel %vm2888, 1, 0
    %v2897 = vsel %vm63, %v2889, 0
    %v2898 = vsel %vm63, %v2890, 0
    %v2899 = vsel %vm63, %v2891, 0
    %v2900 = vsel %vm63, %v2892, 0
    %v2901 = vsel %vm63, %v2893, 0
    %v2902 = vadd.s32 %v2897, %v2901
    %v2903 = vsel %vm63, %v2894, 0
    %v2904 = vadd.s32 %v2898, %v2903
    %v2905 = vsel %vm63, %v2895, 0
    %v2906 = vadd.s32 %v2899, %v2905
    %v2907 = vsel %vm63, %v2896, 0
    %v2908 = vadd.s32 %v2900, %v2907
    %v2909 = vadd.s32 %v2902, %v2904
    %v2910 = vadd.s32 %v2906, %v2908
    %v2911 = vadd.s32 %v2909, %v2910
    %v2912 = vand.u32 %v2911, 65535
    %v2913 = vshrl.u32 %v2911, 16
    %v2914 = vcvt.s32.f32 %v2912
    %v2915 = vcvt.s32.f32 %v2913
    %2916 = vadd.xlane.f32.xlu0 %v2914
    %v2917 = vpop.xlane.xlu0 %2916
    %2918 = vadd.xlane.f32.xlu0 %v2915
    %v2919 = vpop.xlane.xlu0 %2918
    %v2920 = vcvt.f32.s32 %v2917
    %v2921 = vcvt.f32.s32 %v2919
    %v2922 = vshll.u32 %v2921, 16
    %v2923 = vadd.s32 %v2922, %v2920
    %v2924 = vrot.slane %v2923, 4
    %v2925 = vadd.s32 %v2923, %v2924
    %v2926 = vrot.slane %v2925, 2
    %v2927 = vadd.s32 %v2925, %v2926
    %v2928 = vrot.slane %v2927, 1
    %v2929 = vadd.s32 %v2927, %v2928
    %s2930 = vtos %v2929
    %p2931 = scmp.ge.s32.totalorder %s2930, 2048
    %s2932 = scalar_select %p2931, %s2879, %s2878
    %s2933 = sor.u32 %s2932, 32768
    %v2934 = vstv %s2933
    %vm2935 = vcmp.ge.s32.totalorder %v315, %v2934
    %vm2936 = vcmp.ge.s32.totalorder %v316, %v2934
    %vm2937 = vcmp.ge.s32.totalorder %v317, %v2934
    %vm2938 = vcmp.ge.s32.totalorder %v318, %v2934
    %vm2939 = vcmp.ge.s32.totalorder %v319, %v2934
    %vm2940 = vcmp.ge.s32.totalorder %v320, %v2934
    %vm2941 = vcmp.ge.s32.totalorder %v321, %v2934
    %vm2942 = vcmp.ge.s32.totalorder %v322, %v2934
    %v2943 = vsel %vm2935, 1, 0
    %v2944 = vsel %vm2936, 1, 0
    %v2945 = vsel %vm2937, 1, 0
    %v2946 = vsel %vm2938, 1, 0
    %v2947 = vsel %vm2939, 1, 0
    %v2948 = vsel %vm2940, 1, 0
    %v2949 = vsel %vm2941, 1, 0
    %v2950 = vsel %vm2942, 1, 0
    %v2951 = vsel %vm63, %v2943, 0
    %v2952 = vsel %vm63, %v2944, 0
    %v2953 = vsel %vm63, %v2945, 0
    %v2954 = vsel %vm63, %v2946, 0
    %v2955 = vsel %vm63, %v2947, 0
    %v2956 = vadd.s32 %v2951, %v2955
    %v2957 = vsel %vm63, %v2948, 0
    %v2958 = vadd.s32 %v2952, %v2957
    %v2959 = vsel %vm63, %v2949, 0
    %v2960 = vadd.s32 %v2953, %v2959
    %v2961 = vsel %vm63, %v2950, 0
    %v2962 = vadd.s32 %v2954, %v2961
    %v2963 = vadd.s32 %v2956, %v2958
    %v2964 = vadd.s32 %v2960, %v2962
    %v2965 = vadd.s32 %v2963, %v2964
    %v2966 = vand.u32 %v2965, 65535
    %v2967 = vshrl.u32 %v2965, 16
    %v2968 = vcvt.s32.f32 %v2966
    %v2969 = vcvt.s32.f32 %v2967
    %2970 = vadd.xlane.f32.xlu0 %v2968
    %v2971 = vpop.xlane.xlu0 %2970
    %2972 = vadd.xlane.f32.xlu0 %v2969
    %v2973 = vpop.xlane.xlu0 %2972
    %v2974 = vcvt.f32.s32 %v2971
    %v2975 = vcvt.f32.s32 %v2973
    %v2976 = vshll.u32 %v2975, 16
    %v2977 = vadd.s32 %v2976, %v2974
    %v2978 = vrot.slane %v2977, 4
    %v2979 = vadd.s32 %v2977, %v2978
    %v2980 = vrot.slane %v2979, 2
    %v2981 = vadd.s32 %v2979, %v2980
    %v2982 = vrot.slane %v2981, 1
    %v2983 = vadd.s32 %v2981, %v2982
    %s2984 = vtos %v2983
    %p2985 = scmp.ge.s32.totalorder %s2984, 2048
    %s2986 = scalar_select %p2985, %s2933, %s2932
    %s2987 = sor.u32 %s2986, 16384
    %v2988 = vstv %s2987
    %vm2989 = vcmp.ge.s32.totalorder %v315, %v2988
    %vm2990 = vcmp.ge.s32.totalorder %v316, %v2988
    %vm2991 = vcmp.ge.s32.totalorder %v317, %v2988
    %vm2992 = vcmp.ge.s32.totalorder %v318, %v2988
    %vm2993 = vcmp.ge.s32.totalorder %v319, %v2988
    %vm2994 = vcmp.ge.s32.totalorder %v320, %v2988
    %vm2995 = vcmp.ge.s32.totalorder %v321, %v2988
    %vm2996 = vcmp.ge.s32.totalorder %v322, %v2988
    %v2997 = vsel %vm2989, 1, 0
    %v2998 = vsel %vm2990, 1, 0
    %v2999 = vsel %vm2991, 1, 0
    %v3000 = vsel %vm2992, 1, 0
    %v3001 = vsel %vm2993, 1, 0
    %v3002 = vsel %vm2994, 1, 0
    %v3003 = vsel %vm2995, 1, 0
    %v3004 = vsel %vm2996, 1, 0
    %v3005 = vsel %vm63, %v2997, 0
    %v3006 = vsel %vm63, %v2998, 0
    %v3007 = vsel %vm63, %v2999, 0
    %v3008 = vsel %vm63, %v3000, 0
    %v3009 = vsel %vm63, %v3001, 0
    %v3010 = vadd.s32 %v3005, %v3009
    %v3011 = vsel %vm63, %v3002, 0
    %v3012 = vadd.s32 %v3006, %v3011
    %v3013 = vsel %vm63, %v3003, 0
    %v3014 = vadd.s32 %v3007, %v3013
    %v3015 = vsel %vm63, %v3004, 0
    %v3016 = vadd.s32 %v3008, %v3015
    %v3017 = vadd.s32 %v3010, %v3012
    %v3018 = vadd.s32 %v3014, %v3016
    %v3019 = vadd.s32 %v3017, %v3018
    %v3020 = vand.u32 %v3019, 65535
    %v3021 = vshrl.u32 %v3019, 16
    %v3022 = vcvt.s32.f32 %v3020
    %v3023 = vcvt.s32.f32 %v3021
    %3024 = vadd.xlane.f32.xlu0 %v3022
    %v3025 = vpop.xlane.xlu0 %3024
    %3026 = vadd.xlane.f32.xlu0 %v3023
    %v3027 = vpop.xlane.xlu0 %3026
    %v3028 = vcvt.f32.s32 %v3025
    %v3029 = vcvt.f32.s32 %v3027
    %v3030 = vshll.u32 %v3029, 16
    %v3031 = vadd.s32 %v3030, %v3028
    %v3032 = vrot.slane %v3031, 4
    %v3033 = vadd.s32 %v3031, %v3032
    %v3034 = vrot.slane %v3033, 2
    %v3035 = vadd.s32 %v3033, %v3034
    %v3036 = vrot.slane %v3035, 1
    %v3037 = vadd.s32 %v3035, %v3036
    %s3038 = vtos %v3037
    %p3039 = scmp.ge.s32.totalorder %s3038, 2048
    %s3040 = scalar_select %p3039, %s2987, %s2986
    %s3041 = sor.u32 %s3040, 8192
    %v3042 = vstv %s3041
    %vm3043 = vcmp.ge.s32.totalorder %v315, %v3042
    %vm3044 = vcmp.ge.s32.totalorder %v316, %v3042
    %vm3045 = vcmp.ge.s32.totalorder %v317, %v3042
    %vm3046 = vcmp.ge.s32.totalorder %v318, %v3042
    %vm3047 = vcmp.ge.s32.totalorder %v319, %v3042
    %vm3048 = vcmp.ge.s32.totalorder %v320, %v3042
    %vm3049 = vcmp.ge.s32.totalorder %v321, %v3042
    %vm3050 = vcmp.ge.s32.totalorder %v322, %v3042
    %v3051 = vsel %vm3043, 1, 0
    %v3052 = vsel %vm3044, 1, 0
    %v3053 = vsel %vm3045, 1, 0
    %v3054 = vsel %vm3046, 1, 0
    %v3055 = vsel %vm3047, 1, 0
    %v3056 = vsel %vm3048, 1, 0
    %v3057 = vsel %vm3049, 1, 0
    %v3058 = vsel %vm3050, 1, 0
    %v3059 = vsel %vm63, %v3051, 0
    %v3060 = vsel %vm63, %v3052, 0
    %v3061 = vsel %vm63, %v3053, 0
    %v3062 = vsel %vm63, %v3054, 0
    %v3063 = vsel %vm63, %v3055, 0
    %v3064 = vadd.s32 %v3059, %v3063
    %v3065 = vsel %vm63, %v3056, 0
    %v3066 = vadd.s32 %v3060, %v3065
    %v3067 = vsel %vm63, %v3057, 0
    %v3068 = vadd.s32 %v3061, %v3067
    %v3069 = vsel %vm63, %v3058, 0
    %v3070 = vadd.s32 %v3062, %v3069
    %v3071 = vadd.s32 %v3064, %v3066
    %v3072 = vadd.s32 %v3068, %v3070
    %v3073 = vadd.s32 %v3071, %v3072
    %v3074 = vand.u32 %v3073, 65535
    %v3075 = vshrl.u32 %v3073, 16
    %v3076 = vcvt.s32.f32 %v3074
    %v3077 = vcvt.s32.f32 %v3075
    %3078 = vadd.xlane.f32.xlu0 %v3076
    %v3079 = vpop.xlane.xlu0 %3078
    %3080 = vadd.xlane.f32.xlu0 %v3077
    %v3081 = vpop.xlane.xlu0 %3080
    %v3082 = vcvt.f32.s32 %v3079
    %v3083 = vcvt.f32.s32 %v3081
    %v3084 = vshll.u32 %v3083, 16
    %v3085 = vadd.s32 %v3084, %v3082
    %v3086 = vrot.slane %v3085, 4
    %v3087 = vadd.s32 %v3085, %v3086
    %v3088 = vrot.slane %v3087, 2
    %v3089 = vadd.s32 %v3087, %v3088
    %v3090 = vrot.slane %v3089, 1
    %v3091 = vadd.s32 %v3089, %v3090
    %s3092 = vtos %v3091
    %p3093 = scmp.ge.s32.totalorder %s3092, 2048
    %s3094 = scalar_select %p3093, %s3041, %s3040
    %s3095 = sor.u32 %s3094, 4096
    %v3096 = vstv %s3095
    %vm3097 = vcmp.ge.s32.totalorder %v315, %v3096
    %vm3098 = vcmp.ge.s32.totalorder %v316, %v3096
    %vm3099 = vcmp.ge.s32.totalorder %v317, %v3096
    %vm3100 = vcmp.ge.s32.totalorder %v318, %v3096
    %vm3101 = vcmp.ge.s32.totalorder %v319, %v3096
    %vm3102 = vcmp.ge.s32.totalorder %v320, %v3096
    %vm3103 = vcmp.ge.s32.totalorder %v321, %v3096
    %vm3104 = vcmp.ge.s32.totalorder %v322, %v3096
    %v3105 = vsel %vm3097, 1, 0
    %v3106 = vsel %vm3098, 1, 0
    %v3107 = vsel %vm3099, 1, 0
    %v3108 = vsel %vm3100, 1, 0
    %v3109 = vsel %vm3101, 1, 0
    %v3110 = vsel %vm3102, 1, 0
    %v3111 = vsel %vm3103, 1, 0
    %v3112 = vsel %vm3104, 1, 0
    %v3113 = vsel %vm63, %v3105, 0
    %v3114 = vsel %vm63, %v3106, 0
    %v3115 = vsel %vm63, %v3107, 0
    %v3116 = vsel %vm63, %v3108, 0
    %v3117 = vsel %vm63, %v3109, 0
    %v3118 = vadd.s32 %v3113, %v3117
    %v3119 = vsel %vm63, %v3110, 0
    %v3120 = vadd.s32 %v3114, %v3119
    %v3121 = vsel %vm63, %v3111, 0
    %v3122 = vadd.s32 %v3115, %v3121
    %v3123 = vsel %vm63, %v3112, 0
    %v3124 = vadd.s32 %v3116, %v3123
    %v3125 = vadd.s32 %v3118, %v3120
    %v3126 = vadd.s32 %v3122, %v3124
    %v3127 = vadd.s32 %v3125, %v3126
    %v3128 = vand.u32 %v3127, 65535
    %v3129 = vshrl.u32 %v3127, 16
    %v3130 = vcvt.s32.f32 %v3128
    %v3131 = vcvt.s32.f32 %v3129
    %3132 = vadd.xlane.f32.xlu0 %v3130
    %v3133 = vpop.xlane.xlu0 %3132
    %3134 = vadd.xlane.f32.xlu0 %v3131
    %v3135 = vpop.xlane.xlu0 %3134
    %v3136 = vcvt.f32.s32 %v3133
    %v3137 = vcvt.f32.s32 %v3135
    %v3138 = vshll.u32 %v3137, 16
    %v3139 = vadd.s32 %v3138, %v3136
    %v3140 = vrot.slane %v3139, 4
    %v3141 = vadd.s32 %v3139, %v3140
    %v3142 = vrot.slane %v3141, 2
    %v3143 = vadd.s32 %v3141, %v3142
    %v3144 = vrot.slane %v3143, 1
    %v3145 = vadd.s32 %v3143, %v3144
    %s3146 = vtos %v3145
    %p3147 = scmp.ge.s32.totalorder %s3146, 2048
    %s3148 = scalar_select %p3147, %s3095, %s3094
    %s3149 = sor.u32 %s3148, 2048
    %v3150 = vstv %s3149
    %vm3151 = vcmp.ge.s32.totalorder %v315, %v3150
    %vm3152 = vcmp.ge.s32.totalorder %v316, %v3150
    %vm3153 = vcmp.ge.s32.totalorder %v317, %v3150
    %vm3154 = vcmp.ge.s32.totalorder %v318, %v3150
    %vm3155 = vcmp.ge.s32.totalorder %v319, %v3150
    %vm3156 = vcmp.ge.s32.totalorder %v320, %v3150
    %vm3157 = vcmp.ge.s32.totalorder %v321, %v3150
    %vm3158 = vcmp.ge.s32.totalorder %v322, %v3150
    %v3159 = vsel %vm3151, 1, 0
    %v3160 = vsel %vm3152, 1, 0
    %v3161 = vsel %vm3153, 1, 0
    %v3162 = vsel %vm3154, 1, 0
    %v3163 = vsel %vm3155, 1, 0
    %v3164 = vsel %vm3156, 1, 0
    %v3165 = vsel %vm3157, 1, 0
    %v3166 = vsel %vm3158, 1, 0
    %v3167 = vsel %vm63, %v3159, 0
    %v3168 = vsel %vm63, %v3160, 0
    %v3169 = vsel %vm63, %v3161, 0
    %v3170 = vsel %vm63, %v3162, 0
    %v3171 = vsel %vm63, %v3163, 0
    %v3172 = vadd.s32 %v3167, %v3171
    %v3173 = vsel %vm63, %v3164, 0
    %v3174 = vadd.s32 %v3168, %v3173
    %v3175 = vsel %vm63, %v3165, 0
    %v3176 = vadd.s32 %v3169, %v3175
    %v3177 = vsel %vm63, %v3166, 0
    %v3178 = vadd.s32 %v3170, %v3177
    %v3179 = vadd.s32 %v3172, %v3174
    %v3180 = vadd.s32 %v3176, %v3178
    %v3181 = vadd.s32 %v3179, %v3180
    %v3182 = vand.u32 %v3181, 65535
    %v3183 = vshrl.u32 %v3181, 16
    %v3184 = vcvt.s32.f32 %v3182
    %v3185 = vcvt.s32.f32 %v3183
    %3186 = vadd.xlane.f32.xlu0 %v3184
    %v3187 = vpop.xlane.xlu0 %3186
    %3188 = vadd.xlane.f32.xlu0 %v3185
    %v3189 = vpop.xlane.xlu0 %3188
    %v3190 = vcvt.f32.s32 %v3187
    %v3191 = vcvt.f32.s32 %v3189
    %v3192 = vshll.u32 %v3191, 16
    %v3193 = vadd.s32 %v3192, %v3190
    %v3194 = vrot.slane %v3193, 4
    %v3195 = vadd.s32 %v3193, %v3194
    %v3196 = vrot.slane %v3195, 2
    %v3197 = vadd.s32 %v3195, %v3196
    %v3198 = vrot.slane %v3197, 1
    %v3199 = vadd.s32 %v3197, %v3198
    %s3200 = vtos %v3199
    %p3201 = scmp.ge.s32.totalorder %s3200, 2048
    %s3202 = scalar_select %p3201, %s3149, %s3148
    %s3203 = sor.u32 %s3202, 1024
    %v3204 = vstv %s3203
    %vm3205 = vcmp.ge.s32.totalorder %v315, %v3204
    %vm3206 = vcmp.ge.s32.totalorder %v316, %v3204
    %vm3207 = vcmp.ge.s32.totalorder %v317, %v3204
    %vm3208 = vcmp.ge.s32.totalorder %v318, %v3204
    %vm3209 = vcmp.ge.s32.totalorder %v319, %v3204
    %vm3210 = vcmp.ge.s32.totalorder %v320, %v3204
    %vm3211 = vcmp.ge.s32.totalorder %v321, %v3204
    %vm3212 = vcmp.ge.s32.totalorder %v322, %v3204
    %v3213 = vsel %vm3205, 1, 0
    %v3214 = vsel %vm3206, 1, 0
    %v3215 = vsel %vm3207, 1, 0
    %v3216 = vsel %vm3208, 1, 0
    %v3217 = vsel %vm3209, 1, 0
    %v3218 = vsel %vm3210, 1, 0
    %v3219 = vsel %vm3211, 1, 0
    %v3220 = vsel %vm3212, 1, 0
    %v3221 = vsel %vm63, %v3213, 0
    %v3222 = vsel %vm63, %v3214, 0
    %v3223 = vsel %vm63, %v3215, 0
    %v3224 = vsel %vm63, %v3216, 0
    %v3225 = vsel %vm63, %v3217, 0
    %v3226 = vadd.s32 %v3221, %v3225
    %v3227 = vsel %vm63, %v3218, 0
    %v3228 = vadd.s32 %v3222, %v3227
    %v3229 = vsel %vm63, %v3219, 0
    %v3230 = vadd.s32 %v3223, %v3229
    %v3231 = vsel %vm63, %v3220, 0
    %v3232 = vadd.s32 %v3224, %v3231
    %v3233 = vadd.s32 %v3226, %v3228
    %v3234 = vadd.s32 %v3230, %v3232
    %v3235 = vadd.s32 %v3233, %v3234
    %v3236 = vand.u32 %v3235, 65535
    %v3237 = vshrl.u32 %v3235, 16
    %v3238 = vcvt.s32.f32 %v3236
    %v3239 = vcvt.s32.f32 %v3237
    %3240 = vadd.xlane.f32.xlu0 %v3238
    %v3241 = vpop.xlane.xlu0 %3240
    %3242 = vadd.xlane.f32.xlu0 %v3239
    %v3243 = vpop.xlane.xlu0 %3242
    %v3244 = vcvt.f32.s32 %v3241
    %v3245 = vcvt.f32.s32 %v3243
    %v3246 = vshll.u32 %v3245, 16
    %v3247 = vadd.s32 %v3246, %v3244
    %v3248 = vrot.slane %v3247, 4
    %v3249 = vadd.s32 %v3247, %v3248
    %v3250 = vrot.slane %v3249, 2
    %v3251 = vadd.s32 %v3249, %v3250
    %v3252 = vrot.slane %v3251, 1
    %v3253 = vadd.s32 %v3251, %v3252
    %s3254 = vtos %v3253
    %p3255 = scmp.ge.s32.totalorder %s3254, 2048
    %s3256 = scalar_select %p3255, %s3203, %s3202
    %s3257 = sor.u32 %s3256, 512
    %v3258 = vstv %s3257
    %vm3259 = vcmp.ge.s32.totalorder %v315, %v3258
    %vm3260 = vcmp.ge.s32.totalorder %v316, %v3258
    %vm3261 = vcmp.ge.s32.totalorder %v317, %v3258
    %vm3262 = vcmp.ge.s32.totalorder %v318, %v3258
    %vm3263 = vcmp.ge.s32.totalorder %v319, %v3258
    %vm3264 = vcmp.ge.s32.totalorder %v320, %v3258
    %vm3265 = vcmp.ge.s32.totalorder %v321, %v3258
    %vm3266 = vcmp.ge.s32.totalorder %v322, %v3258
    %v3267 = vsel %vm3259, 1, 0
    %v3268 = vsel %vm3260, 1, 0
    %v3269 = vsel %vm3261, 1, 0
    %v3270 = vsel %vm3262, 1, 0
    %v3271 = vsel %vm3263, 1, 0
    %v3272 = vsel %vm3264, 1, 0
    %v3273 = vsel %vm3265, 1, 0
    %v3274 = vsel %vm3266, 1, 0
    %v3275 = vsel %vm63, %v3267, 0
    %v3276 = vsel %vm63, %v3268, 0
    %v3277 = vsel %vm63, %v3269, 0
    %v3278 = vsel %vm63, %v3270, 0
    %v3279 = vsel %vm63, %v3271, 0
    %v3280 = vadd.s32 %v3275, %v3279
    %v3281 = vsel %vm63, %v3272, 0
    %v3282 = vadd.s32 %v3276, %v3281
    %v3283 = vsel %vm63, %v3273, 0
    %v3284 = vadd.s32 %v3277, %v3283
    %v3285 = vsel %vm63, %v3274, 0
    %v3286 = vadd.s32 %v3278, %v3285
    %v3287 = vadd.s32 %v3280, %v3282
    %v3288 = vadd.s32 %v3284, %v3286
    %v3289 = vadd.s32 %v3287, %v3288
    %v3290 = vand.u32 %v3289, 65535
    %v3291 = vshrl.u32 %v3289, 16
    %v3292 = vcvt.s32.f32 %v3290
    %v3293 = vcvt.s32.f32 %v3291
    %3294 = vadd.xlane.f32.xlu0 %v3292
    %v3295 = vpop.xlane.xlu0 %3294
    %3296 = vadd.xlane.f32.xlu0 %v3293
    %v3297 = vpop.xlane.xlu0 %3296
    %v3298 = vcvt.f32.s32 %v3295
    %v3299 = vcvt.f32.s32 %v3297
    %v3300 = vshll.u32 %v3299, 16
    %v3301 = vadd.s32 %v3300, %v3298
    %v3302 = vrot.slane %v3301, 4
    %v3303 = vadd.s32 %v3301, %v3302
    %v3304 = vrot.slane %v3303, 2
    %v3305 = vadd.s32 %v3303, %v3304
    %v3306 = vrot.slane %v3305, 1
    %v3307 = vadd.s32 %v3305, %v3306
    %s3308 = vtos %v3307
    %p3309 = scmp.ge.s32.totalorder %s3308, 2048
    %s3310 = scalar_select %p3309, %s3257, %s3256
    %s3311 = sor.u32 %s3310, 256
    %v3312 = vstv %s3311
    %vm3313 = vcmp.ge.s32.totalorder %v315, %v3312
    %vm3314 = vcmp.ge.s32.totalorder %v316, %v3312
    %vm3315 = vcmp.ge.s32.totalorder %v317, %v3312
    %vm3316 = vcmp.ge.s32.totalorder %v318, %v3312
    %vm3317 = vcmp.ge.s32.totalorder %v319, %v3312
    %vm3318 = vcmp.ge.s32.totalorder %v320, %v3312
    %vm3319 = vcmp.ge.s32.totalorder %v321, %v3312
    %vm3320 = vcmp.ge.s32.totalorder %v322, %v3312
    %v3321 = vsel %vm3313, 1, 0
    %v3322 = vsel %vm3314, 1, 0
    %v3323 = vsel %vm3315, 1, 0
    %v3324 = vsel %vm3316, 1, 0
    %v3325 = vsel %vm3317, 1, 0
    %v3326 = vsel %vm3318, 1, 0
    %v3327 = vsel %vm3319, 1, 0
    %v3328 = vsel %vm3320, 1, 0
    %v3329 = vsel %vm63, %v3321, 0
    %v3330 = vsel %vm63, %v3322, 0
    %v3331 = vsel %vm63, %v3323, 0
    %v3332 = vsel %vm63, %v3324, 0
    %v3333 = vsel %vm63, %v3325, 0
    %v3334 = vadd.s32 %v3329, %v3333
    %v3335 = vsel %vm63, %v3326, 0
    %v3336 = vadd.s32 %v3330, %v3335
    %v3337 = vsel %vm63, %v3327, 0
    %v3338 = vadd.s32 %v3331, %v3337
    %v3339 = vsel %vm63, %v3328, 0
    %v3340 = vadd.s32 %v3332, %v3339
    %v3341 = vadd.s32 %v3334, %v3336
    %v3342 = vadd.s32 %v3338, %v3340
    %v3343 = vadd.s32 %v3341, %v3342
    %v3344 = vand.u32 %v3343, 65535
    %v3345 = vshrl.u32 %v3343, 16
    %v3346 = vcvt.s32.f32 %v3344
    %v3347 = vcvt.s32.f32 %v3345
    %3348 = vadd.xlane.f32.xlu0 %v3346
    %v3349 = vpop.xlane.xlu0 %3348
    %3350 = vadd.xlane.f32.xlu0 %v3347
    %v3351 = vpop.xlane.xlu0 %3350
    %v3352 = vcvt.f32.s32 %v3349
    %v3353 = vcvt.f32.s32 %v3351
    %v3354 = vshll.u32 %v3353, 16
    %v3355 = vadd.s32 %v3354, %v3352
    %v3356 = vrot.slane %v3355, 4
    %v3357 = vadd.s32 %v3355, %v3356
    %v3358 = vrot.slane %v3357, 2
    %v3359 = vadd.s32 %v3357, %v3358
    %v3360 = vrot.slane %v3359, 1
    %v3361 = vadd.s32 %v3359, %v3360
    %s3362 = vtos %v3361
    %p3363 = scmp.ge.s32.totalorder %s3362, 2048
    %s3364 = scalar_select %p3363, %s3311, %s3310
    %s3365 = sor.u32 %s3364, 128
    %v3366 = vstv %s3365
    %vm3367 = vcmp.ge.s32.totalorder %v315, %v3366
    %vm3368 = vcmp.ge.s32.totalorder %v316, %v3366
    %vm3369 = vcmp.ge.s32.totalorder %v317, %v3366
    %vm3370 = vcmp.ge.s32.totalorder %v318, %v3366
    %vm3371 = vcmp.ge.s32.totalorder %v319, %v3366
    %vm3372 = vcmp.ge.s32.totalorder %v320, %v3366
    %vm3373 = vcmp.ge.s32.totalorder %v321, %v3366
    %vm3374 = vcmp.ge.s32.totalorder %v322, %v3366
    %v3375 = vsel %vm3367, 1, 0
    %v3376 = vsel %vm3368, 1, 0
    %v3377 = vsel %vm3369, 1, 0
    %v3378 = vsel %vm3370, 1, 0
    %v3379 = vsel %vm3371, 1, 0
    %v3380 = vsel %vm3372, 1, 0
    %v3381 = vsel %vm3373, 1, 0
    %v3382 = vsel %vm3374, 1, 0
    %v3383 = vsel %vm63, %v3375, 0
    %v3384 = vsel %vm63, %v3376, 0
    %v3385 = vsel %vm63, %v3377, 0
    %v3386 = vsel %vm63, %v3378, 0
    %v3387 = vsel %vm63, %v3379, 0
    %v3388 = vadd.s32 %v3383, %v3387
    %v3389 = vsel %vm63, %v3380, 0
    %v3390 = vadd.s32 %v3384, %v3389
    %v3391 = vsel %vm63, %v3381, 0
    %v3392 = vadd.s32 %v3385, %v3391
    %v3393 = vsel %vm63, %v3382, 0
    %v3394 = vadd.s32 %v3386, %v3393
    %v3395 = vadd.s32 %v3388, %v3390
    %v3396 = vadd.s32 %v3392, %v3394
    %v3397 = vadd.s32 %v3395, %v3396
    %v3398 = vand.u32 %v3397, 65535
    %v3399 = vshrl.u32 %v3397, 16
    %v3400 = vcvt.s32.f32 %v3398
    %v3401 = vcvt.s32.f32 %v3399
    %3402 = vadd.xlane.f32.xlu0 %v3400
    %v3403 = vpop.xlane.xlu0 %3402
    %3404 = vadd.xlane.f32.xlu0 %v3401
    %v3405 = vpop.xlane.xlu0 %3404
    %v3406 = vcvt.f32.s32 %v3403
    %v3407 = vcvt.f32.s32 %v3405
    %v3408 = vshll.u32 %v3407, 16
    %v3409 = vadd.s32 %v3408, %v3406
    %v3410 = vrot.slane %v3409, 4
    %v3411 = vadd.s32 %v3409, %v3410
    %v3412 = vrot.slane %v3411, 2
    %v3413 = vadd.s32 %v3411, %v3412
    %v3414 = vrot.slane %v3413, 1
    %v3415 = vadd.s32 %v3413, %v3414
    %s3416 = vtos %v3415
    %p3417 = scmp.ge.s32.totalorder %s3416, 2048
    %s3418 = scalar_select %p3417, %s3365, %s3364
    %s3419 = sor.u32 %s3418, 64
    %v3420 = vstv %s3419
    %vm3421 = vcmp.ge.s32.totalorder %v315, %v3420
    %vm3422 = vcmp.ge.s32.totalorder %v316, %v3420
    %vm3423 = vcmp.ge.s32.totalorder %v317, %v3420
    %vm3424 = vcmp.ge.s32.totalorder %v318, %v3420
    %vm3425 = vcmp.ge.s32.totalorder %v319, %v3420
    %vm3426 = vcmp.ge.s32.totalorder %v320, %v3420
    %vm3427 = vcmp.ge.s32.totalorder %v321, %v3420
    %vm3428 = vcmp.ge.s32.totalorder %v322, %v3420
    %v3429 = vsel %vm3421, 1, 0
    %v3430 = vsel %vm3422, 1, 0
    %v3431 = vsel %vm3423, 1, 0
    %v3432 = vsel %vm3424, 1, 0
    %v3433 = vsel %vm3425, 1, 0
    %v3434 = vsel %vm3426, 1, 0
    %v3435 = vsel %vm3427, 1, 0
    %v3436 = vsel %vm3428, 1, 0
    %v3437 = vsel %vm63, %v3429, 0
    %v3438 = vsel %vm63, %v3430, 0
    %v3439 = vsel %vm63, %v3431, 0
    %v3440 = vsel %vm63, %v3432, 0
    %v3441 = vsel %vm63, %v3433, 0
    %v3442 = vadd.s32 %v3437, %v3441
    %v3443 = vsel %vm63, %v3434, 0
    %v3444 = vadd.s32 %v3438, %v3443
    %v3445 = vsel %vm63, %v3435, 0
    %v3446 = vadd.s32 %v3439, %v3445
    %v3447 = vsel %vm63, %v3436, 0
    %v3448 = vadd.s32 %v3440, %v3447
    %v3449 = vadd.s32 %v3442, %v3444
    %v3450 = vadd.s32 %v3446, %v3448
    %v3451 = vadd.s32 %v3449, %v3450
    %v3452 = vand.u32 %v3451, 65535
    %v3453 = vshrl.u32 %v3451, 16
    %v3454 = vcvt.s32.f32 %v3452
    %v3455 = vcvt.s32.f32 %v3453
    %3456 = vadd.xlane.f32.xlu0 %v3454
    %v3457 = vpop.xlane.xlu0 %3456
    %3458 = vadd.xlane.f32.xlu0 %v3455
    %v3459 = vpop.xlane.xlu0 %3458
    %v3460 = vcvt.f32.s32 %v3457
    %v3461 = vcvt.f32.s32 %v3459
    %v3462 = vshll.u32 %v3461, 16
    %v3463 = vadd.s32 %v3462, %v3460
    %v3464 = vrot.slane %v3463, 4
    %v3465 = vadd.s32 %v3463, %v3464
    %v3466 = vrot.slane %v3465, 2
    %v3467 = vadd.s32 %v3465, %v3466
    %v3468 = vrot.slane %v3467, 1
    %v3469 = vadd.s32 %v3467, %v3468
    %s3470 = vtos %v3469
    %p3471 = scmp.ge.s32.totalorder %s3470, 2048
    %s3472 = scalar_select %p3471, %s3419, %s3418
    %s3473 = sor.u32 %s3472, 32
    %v3474 = vstv %s3473
    %vm3475 = vcmp.ge.s32.totalorder %v315, %v3474
    %vm3476 = vcmp.ge.s32.totalorder %v316, %v3474
    %vm3477 = vcmp.ge.s32.totalorder %v317, %v3474
    %vm3478 = vcmp.ge.s32.totalorder %v318, %v3474
    %vm3479 = vcmp.ge.s32.totalorder %v319, %v3474
    %vm3480 = vcmp.ge.s32.totalorder %v320, %v3474
    %vm3481 = vcmp.ge.s32.totalorder %v321, %v3474
    %vm3482 = vcmp.ge.s32.totalorder %v322, %v3474
    %v3483 = vsel %vm3475, 1, 0
    %v3484 = vsel %vm3476, 1, 0
    %v3485 = vsel %vm3477, 1, 0
    %v3486 = vsel %vm3478, 1, 0
    %v3487 = vsel %vm3479, 1, 0
    %v3488 = vsel %vm3480, 1, 0
    %v3489 = vsel %vm3481, 1, 0
    %v3490 = vsel %vm3482, 1, 0
    %v3491 = vsel %vm63, %v3483, 0
    %v3492 = vsel %vm63, %v3484, 0
    %v3493 = vsel %vm63, %v3485, 0
    %v3494 = vsel %vm63, %v3486, 0
    %v3495 = vsel %vm63, %v3487, 0
    %v3496 = vadd.s32 %v3491, %v3495
    %v3497 = vsel %vm63, %v3488, 0
    %v3498 = vadd.s32 %v3492, %v3497
    %v3499 = vsel %vm63, %v3489, 0
    %v3500 = vadd.s32 %v3493, %v3499
    %v3501 = vsel %vm63, %v3490, 0
    %v3502 = vadd.s32 %v3494, %v3501
    %v3503 = vadd.s32 %v3496, %v3498
    %v3504 = vadd.s32 %v3500, %v3502
    %v3505 = vadd.s32 %v3503, %v3504
    %v3506 = vand.u32 %v3505, 65535
    %v3507 = vshrl.u32 %v3505, 16
    %v3508 = vcvt.s32.f32 %v3506
    %v3509 = vcvt.s32.f32 %v3507
    %3510 = vadd.xlane.f32.xlu0 %v3508
    %v3511 = vpop.xlane.xlu0 %3510
    %3512 = vadd.xlane.f32.xlu0 %v3509
    %v3513 = vpop.xlane.xlu0 %3512
    %v3514 = vcvt.f32.s32 %v3511
    %v3515 = vcvt.f32.s32 %v3513
    %v3516 = vshll.u32 %v3515, 16
    %v3517 = vadd.s32 %v3516, %v3514
    %v3518 = vrot.slane %v3517, 4
    %v3519 = vadd.s32 %v3517, %v3518
    %v3520 = vrot.slane %v3519, 2
    %v3521 = vadd.s32 %v3519, %v3520
    %v3522 = vrot.slane %v3521, 1
    %v3523 = vadd.s32 %v3521, %v3522
    %s3524 = vtos %v3523
    %p3525 = scmp.ge.s32.totalorder %s3524, 2048
    %s3526 = scalar_select %p3525, %s3473, %s3472
    %s3527 = sor.u32 %s3526, 16
    %v3528 = vstv %s3527
    %vm3529 = vcmp.ge.s32.totalorder %v315, %v3528
    %vm3530 = vcmp.ge.s32.totalorder %v316, %v3528
    %vm3531 = vcmp.ge.s32.totalorder %v317, %v3528
    %vm3532 = vcmp.ge.s32.totalorder %v318, %v3528
    %vm3533 = vcmp.ge.s32.totalorder %v319, %v3528
    %vm3534 = vcmp.ge.s32.totalorder %v320, %v3528
    %vm3535 = vcmp.ge.s32.totalorder %v321, %v3528
    %vm3536 = vcmp.ge.s32.totalorder %v322, %v3528
    %v3537 = vsel %vm3529, 1, 0
    %v3538 = vsel %vm3530, 1, 0
    %v3539 = vsel %vm3531, 1, 0
    %v3540 = vsel %vm3532, 1, 0
    %v3541 = vsel %vm3533, 1, 0
    %v3542 = vsel %vm3534, 1, 0
    %v3543 = vsel %vm3535, 1, 0
    %v3544 = vsel %vm3536, 1, 0
    %v3545 = vsel %vm63, %v3537, 0
    %v3546 = vsel %vm63, %v3538, 0
    %v3547 = vsel %vm63, %v3539, 0
    %v3548 = vsel %vm63, %v3540, 0
    %v3549 = vsel %vm63, %v3541, 0
    %v3550 = vadd.s32 %v3545, %v3549
    %v3551 = vsel %vm63, %v3542, 0
    %v3552 = vadd.s32 %v3546, %v3551
    %v3553 = vsel %vm63, %v3543, 0
    %v3554 = vadd.s32 %v3547, %v3553
    %v3555 = vsel %vm63, %v3544, 0
    %v3556 = vadd.s32 %v3548, %v3555
    %v3557 = vadd.s32 %v3550, %v3552
    %v3558 = vadd.s32 %v3554, %v3556
    %v3559 = vadd.s32 %v3557, %v3558
    %v3560 = vand.u32 %v3559, 65535
    %v3561 = vshrl.u32 %v3559, 16
    %v3562 = vcvt.s32.f32 %v3560
    %v3563 = vcvt.s32.f32 %v3561
    %3564 = vadd.xlane.f32.xlu0 %v3562
    %v3565 = vpop.xlane.xlu0 %3564
    %3566 = vadd.xlane.f32.xlu0 %v3563
    %v3567 = vpop.xlane.xlu0 %3566
    %v3568 = vcvt.f32.s32 %v3565
    %v3569 = vcvt.f32.s32 %v3567
    %v3570 = vshll.u32 %v3569, 16
    %v3571 = vadd.s32 %v3570, %v3568
    %v3572 = vrot.slane %v3571, 4
    %v3573 = vadd.s32 %v3571, %v3572
    %v3574 = vrot.slane %v3573, 2
    %v3575 = vadd.s32 %v3573, %v3574
    %v3576 = vrot.slane %v3575, 1
    %v3577 = vadd.s32 %v3575, %v3576
    %s3578 = vtos %v3577
    %p3579 = scmp.ge.s32.totalorder %s3578, 2048
    %s3580 = scalar_select %p3579, %s3527, %s3526
    %s3581 = sor.u32 %s3580, 8
    %v3582 = vstv %s3581
    %vm3583 = vcmp.ge.s32.totalorder %v315, %v3582
    %vm3584 = vcmp.ge.s32.totalorder %v316, %v3582
    %vm3585 = vcmp.ge.s32.totalorder %v317, %v3582
    %vm3586 = vcmp.ge.s32.totalorder %v318, %v3582
    %vm3587 = vcmp.ge.s32.totalorder %v319, %v3582
    %vm3588 = vcmp.ge.s32.totalorder %v320, %v3582
    %vm3589 = vcmp.ge.s32.totalorder %v321, %v3582
    %vm3590 = vcmp.ge.s32.totalorder %v322, %v3582
    %v3591 = vsel %vm3583, 1, 0
    %v3592 = vsel %vm3584, 1, 0
    %v3593 = vsel %vm3585, 1, 0
    %v3594 = vsel %vm3586, 1, 0
    %v3595 = vsel %vm3587, 1, 0
    %v3596 = vsel %vm3588, 1, 0
    %v3597 = vsel %vm3589, 1, 0
    %v3598 = vsel %vm3590, 1, 0
    %v3599 = vsel %vm63, %v3591, 0
    %v3600 = vsel %vm63, %v3592, 0
    %v3601 = vsel %vm63, %v3593, 0
    %v3602 = vsel %vm63, %v3594, 0
    %v3603 = vsel %vm63, %v3595, 0
    %v3604 = vadd.s32 %v3599, %v3603
    %v3605 = vsel %vm63, %v3596, 0
    %v3606 = vadd.s32 %v3600, %v3605
    %v3607 = vsel %vm63, %v3597, 0
    %v3608 = vadd.s32 %v3601, %v3607
    %v3609 = vsel %vm63, %v3598, 0
    %v3610 = vadd.s32 %v3602, %v3609
    %v3611 = vadd.s32 %v3604, %v3606
    %v3612 = vadd.s32 %v3608, %v3610
    %v3613 = vadd.s32 %v3611, %v3612
    %v3614 = vand.u32 %v3613, 65535
    %v3615 = vshrl.u32 %v3613, 16
    %v3616 = vcvt.s32.f32 %v3614
    %v3617 = vcvt.s32.f32 %v3615
    %3618 = vadd.xlane.f32.xlu0 %v3616
    %v3619 = vpop.xlane.xlu0 %3618
    %3620 = vadd.xlane.f32.xlu0 %v3617
    %v3621 = vpop.xlane.xlu0 %3620
    %v3622 = vcvt.f32.s32 %v3619
    %v3623 = vcvt.f32.s32 %v3621
    %v3624 = vshll.u32 %v3623, 16
    %v3625 = vadd.s32 %v3624, %v3622
    %v3626 = vrot.slane %v3625, 4
    %v3627 = vadd.s32 %v3625, %v3626
    %v3628 = vrot.slane %v3627, 2
    %v3629 = vadd.s32 %v3627, %v3628
    %v3630 = vrot.slane %v3629, 1
    %v3631 = vadd.s32 %v3629, %v3630
    %s3632 = vtos %v3631
    %p3633 = scmp.ge.s32.totalorder %s3632, 2048
    %s3634 = scalar_select %p3633, %s3581, %s3580
    %s3635 = sor.u32 %s3634, 4
    %v3636 = vstv %s3635
    %vm3637 = vcmp.ge.s32.totalorder %v315, %v3636
    %vm3638 = vcmp.ge.s32.totalorder %v316, %v3636
    %vm3639 = vcmp.ge.s32.totalorder %v317, %v3636
    %vm3640 = vcmp.ge.s32.totalorder %v318, %v3636
    %vm3641 = vcmp.ge.s32.totalorder %v319, %v3636
    %vm3642 = vcmp.ge.s32.totalorder %v320, %v3636
    %vm3643 = vcmp.ge.s32.totalorder %v321, %v3636
    %vm3644 = vcmp.ge.s32.totalorder %v322, %v3636
    %v3645 = vsel %vm3637, 1, 0
    %v3646 = vsel %vm3638, 1, 0
    %v3647 = vsel %vm3639, 1, 0
    %v3648 = vsel %vm3640, 1, 0
    %v3649 = vsel %vm3641, 1, 0
    %v3650 = vsel %vm3642, 1, 0
    %v3651 = vsel %vm3643, 1, 0
    %v3652 = vsel %vm3644, 1, 0
    %v3653 = vsel %vm63, %v3645, 0
    %v3654 = vsel %vm63, %v3646, 0
    %v3655 = vsel %vm63, %v3647, 0
    %v3656 = vsel %vm63, %v3648, 0
    %v3657 = vsel %vm63, %v3649, 0
    %v3658 = vadd.s32 %v3653, %v3657
    %v3659 = vsel %vm63, %v3650, 0
    %v3660 = vadd.s32 %v3654, %v3659
    %v3661 = vsel %vm63, %v3651, 0
    %v3662 = vadd.s32 %v3655, %v3661
    %v3663 = vsel %vm63, %v3652, 0
    %v3664 = vadd.s32 %v3656, %v3663
    %v3665 = vadd.s32 %v3658, %v3660
    %v3666 = vadd.s32 %v3662, %v3664
    %v3667 = vadd.s32 %v3665, %v3666
    %v3668 = vand.u32 %v3667, 65535
    %v3669 = vshrl.u32 %v3667, 16
    %v3670 = vcvt.s32.f32 %v3668
    %v3671 = vcvt.s32.f32 %v3669
    %3672 = vadd.xlane.f32.xlu0 %v3670
    %v3673 = vpop.xlane.xlu0 %3672
    %3674 = vadd.xlane.f32.xlu0 %v3671
    %v3675 = vpop.xlane.xlu0 %3674
    %v3676 = vcvt.f32.s32 %v3673
    %v3677 = vcvt.f32.s32 %v3675
    %v3678 = vshll.u32 %v3677, 16
    %v3679 = vadd.s32 %v3678, %v3676
    %v3680 = vrot.slane %v3679, 4
    %v3681 = vadd.s32 %v3679, %v3680
    %v3682 = vrot.slane %v3681, 2
    %v3683 = vadd.s32 %v3681, %v3682
    %v3684 = vrot.slane %v3683, 1
    %v3685 = vadd.s32 %v3683, %v3684
    %s3686 = vtos %v3685
    %p3687 = scmp.ge.s32.totalorder %s3686, 2048
    %s3688 = scalar_select %p3687, %s3635, %s3634
    %s3689 = sor.u32 %s3688, 2
    %v3690 = vstv %s3689
    %vm3691 = vcmp.ge.s32.totalorder %v315, %v3690
    %vm3692 = vcmp.ge.s32.totalorder %v316, %v3690
    %vm3693 = vcmp.ge.s32.totalorder %v317, %v3690
    %vm3694 = vcmp.ge.s32.totalorder %v318, %v3690
    %vm3695 = vcmp.ge.s32.totalorder %v319, %v3690
    %vm3696 = vcmp.ge.s32.totalorder %v320, %v3690
    %vm3697 = vcmp.ge.s32.totalorder %v321, %v3690
    %vm3698 = vcmp.ge.s32.totalorder %v322, %v3690
    %v3699 = vsel %vm3691, 1, 0
    %v3700 = vsel %vm3692, 1, 0
    %v3701 = vsel %vm3693, 1, 0
    %v3702 = vsel %vm3694, 1, 0
    %v3703 = vsel %vm3695, 1, 0
    %v3704 = vsel %vm3696, 1, 0
    %v3705 = vsel %vm3697, 1, 0
    %v3706 = vsel %vm3698, 1, 0
    %v3707 = vsel %vm63, %v3699, 0
    %v3708 = vsel %vm63, %v3700, 0
    %v3709 = vsel %vm63, %v3701, 0
    %v3710 = vsel %vm63, %v3702, 0
    %v3711 = vsel %vm63, %v3703, 0
    %v3712 = vadd.s32 %v3707, %v3711
    %v3713 = vsel %vm63, %v3704, 0
    %v3714 = vadd.s32 %v3708, %v3713
    %v3715 = vsel %vm63, %v3705, 0
    %v3716 = vadd.s32 %v3709, %v3715
    %v3717 = vsel %vm63, %v3706, 0
    %v3718 = vadd.s32 %v3710, %v3717
    %v3719 = vadd.s32 %v3712, %v3714
    %v3720 = vadd.s32 %v3716, %v3718
    %v3721 = vadd.s32 %v3719, %v3720
    %v3722 = vand.u32 %v3721, 65535
    %v3723 = vshrl.u32 %v3721, 16
    %v3724 = vcvt.s32.f32 %v3722
    %v3725 = vcvt.s32.f32 %v3723
    %3726 = vadd.xlane.f32.xlu0 %v3724
    %v3727 = vpop.xlane.xlu0 %3726
    %3728 = vadd.xlane.f32.xlu0 %v3725
    %v3729 = vpop.xlane.xlu0 %3728
    %v3730 = vcvt.f32.s32 %v3727
    %v3731 = vcvt.f32.s32 %v3729
    %v3732 = vshll.u32 %v3731, 16
    %v3733 = vadd.s32 %v3732, %v3730
    %v3734 = vrot.slane %v3733, 4
    %v3735 = vadd.s32 %v3733, %v3734
    %v3736 = vrot.slane %v3735, 2
    %v3737 = vadd.s32 %v3735, %v3736
    %v3738 = vrot.slane %v3737, 1
    %v3739 = vadd.s32 %v3737, %v3738
    %s3740 = vtos %v3739
    %p3741 = scmp.ge.s32.totalorder %s3740, 2048
    %s3742 = scalar_select %p3741, %s3689, %s3688
    %s3743 = sor.u32 %s3742, 1
    %v3744 = vstv %s3743
    %vm3745 = vcmp.ge.s32.totalorder %v315, %v3744
    %vm3746 = vcmp.ge.s32.totalorder %v316, %v3744
    %vm3747 = vcmp.ge.s32.totalorder %v317, %v3744
    %vm3748 = vcmp.ge.s32.totalorder %v318, %v3744
    %vm3749 = vcmp.ge.s32.totalorder %v319, %v3744
    %vm3750 = vcmp.ge.s32.totalorder %v320, %v3744
    %vm3751 = vcmp.ge.s32.totalorder %v321, %v3744
    %vm3752 = vcmp.ge.s32.totalorder %v322, %v3744
    %v3753 = vsel %vm3745, 1, 0
    %v3754 = vsel %vm3746, 1, 0
    %v3755 = vsel %vm3747, 1, 0
    %v3756 = vsel %vm3748, 1, 0
    %v3757 = vsel %vm3749, 1, 0
    %v3758 = vsel %vm3750, 1, 0
    %v3759 = vsel %vm3751, 1, 0
    %v3760 = vsel %vm3752, 1, 0
    %v3761 = vsel %vm63, %v3753, 0
    %v3762 = vsel %vm63, %v3754, 0
    %v3763 = vsel %vm63, %v3755, 0
    %v3764 = vsel %vm63, %v3756, 0
    %v3765 = vsel %vm63, %v3757, 0
    %v3766 = vadd.s32 %v3761, %v3765
    %v3767 = vsel %vm63, %v3758, 0
    %v3768 = vadd.s32 %v3762, %v3767
    %v3769 = vsel %vm63, %v3759, 0
    %v3770 = vadd.s32 %v3763, %v3769
    %v3771 = vsel %vm63, %v3760, 0
    %v3772 = vadd.s32 %v3764, %v3771
    %v3773 = vadd.s32 %v3766, %v3768
    %v3774 = vadd.s32 %v3770, %v3772
    %v3775 = vadd.s32 %v3773, %v3774
    %v3776 = vand.u32 %v3775, 65535
    %v3777 = vshrl.u32 %v3775, 16
    %v3778 = vcvt.s32.f32 %v3776
    %v3779 = vcvt.s32.f32 %v3777
    %3780 = vadd.xlane.f32.xlu0 %v3778
    %v3781 = vpop.xlane.xlu0 %3780
    %3782 = vadd.xlane.f32.xlu0 %v3779
    %v3783 = vpop.xlane.xlu0 %3782
    %v3784 = vcvt.f32.s32 %v3781
    %v3785 = vcvt.f32.s32 %v3783
    %v3786 = vshll.u32 %v3785, 16
    %v3787 = vadd.s32 %v3786, %v3784
    %v3788 = vrot.slane %v3787, 4
    %v3789 = vadd.s32 %v3787, %v3788
    %v3790 = vrot.slane %v3789, 2
    %v3791 = vadd.s32 %v3789, %v3790
    %v3792 = vrot.slane %v3791, 1
    %v3793 = vadd.s32 %v3791, %v3792
    %s3794 = vtos %v3793
    %p3795 = scmp.ge.s32.totalorder %s3794, 2048
    %s3796 = scalar_select %p3795, %s3743, %s3742
    %v3797 = vstv %s3796
    %vm3798 = vcmp.eq.s32.totalorder %v315, %v3797
    %vm3799 = vcmp.eq.s32.totalorder %v316, %v3797
    %vm3800 = vcmp.eq.s32.totalorder %v317, %v3797
    %vm3801 = vcmp.eq.s32.totalorder %v318, %v3797
    %vm3802 = vcmp.eq.s32.totalorder %v319, %v3797
    %vm3803 = vcmp.eq.s32.totalorder %v320, %v3797
    %vm3804 = vcmp.eq.s32.totalorder %v321, %v3797
    %vm3805 = vcmp.eq.s32.totalorder %v322, %v3797
    %v3806 = vsel %vm3798, %v315, 0.0
    %v3807 = vsel %vm3799, %v316, 0.0
    %v3808 = vsel %vm3800, %v317, 0.0
    %v3809 = vsel %vm3801, %v318, 0.0
    %v3810 = vsel %vm3802, %v319, 0.0
    %v3811 = vsel %vm3803, %v320, 0.0
    %v3812 = vsel %vm3804, %v321, 0.0
    %v3813 = vsel %vm3805, %v322, 0.0
    %v3814 = vsel %vm63, %v3806, -inf
    %v3815 = vsel %vm63, %v3807, -inf
    %v3816 = vsel %vm63, %v3808, -inf
    %v3817 = vsel %vm63, %v3809, -inf
    %v3818 = vsel %vm63, %v3810, -inf
    %v3819 = vmax.f32 %v3814, %v3818
    %v3820 = vsel %vm63, %v3811, -inf
    %v3821 = vmax.f32 %v3815, %v3820
    %v3822 = vsel %vm63, %v3812, -inf
    %v3823 = vmax.f32 %v3816, %v3822
    %v3824 = vsel %vm63, %v3813, -inf
    %v3825 = vmax.f32 %v3817, %v3824
    %v3826 = vmax.f32 %v3819, %v3821
    %v3827 = vmax.f32 %v3823, %v3825
    %v3828 = vmax.f32 %v3826, %v3827
    %3829 = vmax.xlane.f32.xlu0 %v3828
    %v3830 = vpop.xlane.xlu0 %3829
    %v3831 = vrot.slane %v3830, 4
    %v3832 = vmax.f32 %v3830, %v3831
    %v3833 = vrot.slane %v3832, 2
    %v3834 = vmax.f32 %v3832, %v3833
    %v3835 = vrot.slane %v3834, 1
    %v3836 = vmax.f32 %v3834, %v3835
    %s3837 = vtos %v3836
    %v3838 = vstv %s2116
    %v3839 = vrcp.pop %v3838
    %v3840 = vmul.f32 %v3838, %v3839
    %v3841 = vsub.f32 1.0, %v3840
    %v3842 = vmul.f32 %v3839, %v3841
    %v3843 = vadd.f32 %v3839, %v3842
    %vm3844 = vweird.f32 %v3838
    %vm3845 = vweird.f32 %v3839
    %vm3846 = vmor %vm3844, %vm3845
    %v3847 = vsel %vm3846, %v3839, %v3843
    %v3848 = vand.u32 2147483647, %v3838
    %vm3849 = vcmp.eq.f32.partialorder %v3848, 8.507059e+37
    %v3850 = vand.u32 %v3838, 2147483648
    %v3851 = vor.u32 1.1754944e-38, %v3850
    %v3852 = vsel %vm3849, %v3851, %v3847
    %s3853 = vtos %v3852
    %s3854 = smul.f32 0.5, %s3853
    %v3855 = vstv %s3837
    %v3856 = vrcp.pop %v3855
    %v3857 = vmul.f32 %v3855, %v3856
    %v3858 = vsub.f32 1.0, %v3857
    %v3859 = vmul.f32 %v3856, %v3858
    %v3860 = vadd.f32 %v3856, %v3859
    %vm3861 = vweird.f32 %v3855
    %vm3862 = vweird.f32 %v3856
    %vm3863 = vmor %vm3861, %vm3862
    %v3864 = vsel %vm3863, %v3856, %v3860
    %v3865 = vand.u32 2147483647, %v3855
    %vm3866 = vcmp.eq.f32.partialorder %v3865, 8.507059e+37
    %v3867 = vand.u32 %v3855, 2147483648
    %v3868 = vor.u32 1.1754944e-38, %v3867
    %v3869 = vsel %vm3866, %v3868, %v3864
    %s3870 = vtos %v3869
    %s3871 = smul.f32 0.5, %s3870
    %v3872 = vsub.f32 0.0, %v388
    %v3873 = vsub.f32 0.0, %v389
    %v3874 = vsub.f32 0.0, %v390
    %v3875 = vsub.f32 0.0, %v391
    %v3876 = vsub.f32 0.0, %v392
    %v3877 = vsub.f32 0.0, %v393
    %v3878 = vsub.f32 0.0, %v394
    %v3879 = vsub.f32 0.0, %v395
    %v3880 = vstv %s3854
    %v3881 = vmul.f32 %v3872, %v3880
    %v3882 = vmul.f32 %v3873, %v3880
    %v3883 = vmul.f32 %v3874, %v3880
    %v3884 = vmul.f32 %v3875, %v3880
    %v3885 = vmul.f32 %v3876, %v3880
    %v3886 = vmul.f32 %v3877, %v3880
    %v3887 = vmul.f32 %v3878, %v3880
    %v3888 = vmul.f32 %v3879, %v3880
    %v3889 = vmul.f32 %v3881, 1.442695
    %v3890 = vpow.pop %v3889
    %v3891 = vmul.f32 %v3882, 1.442695
    %v3892 = vpow.pop %v3891
    %v3893 = vmul.f32 %v3883, 1.442695
    %v3894 = vpow.pop %v3893
    %v3895 = vmul.f32 %v3884, 1.442695
    %v3896 = vpow.pop %v3895
    %v3897 = vmul.f32 %v3885, 1.442695
    %v3898 = vpow.pop %v3897
    %v3899 = vmul.f32 %v3886, 1.442695
    %v3900 = vpow.pop %v3899
    %v3901 = vmul.f32 %v3887, 1.442695
    %v3902 = vpow.pop %v3901
    %v3903 = vmul.f32 %v3888, 1.442695
    %v3904 = vpow.pop %v3903
    %v3905 = vsub.f32 0.0, %v315
    %v3906 = vsub.f32 0.0, %v316
    %v3907 = vsub.f32 0.0, %v317
    %v3908 = vsub.f32 0.0, %v318
    %v3909 = vsub.f32 0.0, %v319
    %v3910 = vsub.f32 0.0, %v320
    %v3911 = vsub.f32 0.0, %v321
    %v3912 = vsub.f32 0.0, %v322
    %v3913 = vstv %s3871
    %v3914 = vmul.f32 %v3905, %v3913
    %v3915 = vmul.f32 %v3906, %v3913
    %v3916 = vmul.f32 %v3907, %v3913
    %v3917 = vmul.f32 %v3908, %v3913
    %v3918 = vmul.f32 %v3909, %v3913
    %v3919 = vmul.f32 %v3910, %v3913
    %v3920 = vmul.f32 %v3911, %v3913
    %v3921 = vmul.f32 %v3912, %v3913
    %v3922 = vmul.f32 %v3914, 1.442695
    %v3923 = vpow.pop %v3922
    %v3924 = vmul.f32 %v3915, 1.442695
    %v3925 = vpow.pop %v3924
    %v3926 = vmul.f32 %v3916, 1.442695
    %v3927 = vpow.pop %v3926
    %v3928 = vmul.f32 %v3917, 1.442695
    %v3929 = vpow.pop %v3928
    %v3930 = vmul.f32 %v3918, 1.442695
    %v3931 = vpow.pop %v3930
    %v3932 = vmul.f32 %v3919, 1.442695
    %v3933 = vpow.pop %v3932
    %v3934 = vmul.f32 %v3920, 1.442695
    %v3935 = vpow.pop %v3934
    %v3936 = vmul.f32 %v3921, 1.442695
    %v3937 = vpow.pop %v3936
    %3938 = vst.msk [vmem:[%s2] sm:$0xff] %vm63, %v3890
    %3939 = vst.msk [vmem:[%s2 + $0x8] sm:$0xff] %vm63, %v3892
    %3940 = vst.msk [vmem:[%s2 + $0x10] sm:$0xff] %vm63, %v3894
    %3941 = vst.msk [vmem:[%s2 + $0x18] sm:$0xff] %vm63, %v3896
    %3942 = vst.msk [vmem:[%s2 + $0x20] sm:$0xff] %vm63, %v3898
    %3943 = vst.msk [vmem:[%s2 + $0x28] sm:$0xff] %vm63, %v3900
    %3944 = vst.msk [vmem:[%s2 + $0x30] sm:$0xff] %vm63, %v3902
    %3945 = vst.msk [vmem:[%s2 + $0x38] sm:$0xff] %vm63, %v3904
    %s3946 = scalar_lea.vmem %s2, 64
    %3947 = vst.msk [vmem:[%s3946] sm:$0xff] %vm63, %v3923
    %3948 = vst.msk [vmem:[%s3946 + $0x8] sm:$0xff] %vm63, %v3925
    %3949 = vst.msk [vmem:[%s3946 + $0x10] sm:$0xff] %vm63, %v3927
    %3950 = vst.msk [vmem:[%s3946 + $0x18] sm:$0xff] %vm63, %v3929
    %3951 = vst.msk [vmem:[%s3946 + $0x20] sm:$0xff] %vm63, %v3931
    %3952 = vst.msk [vmem:[%s3946 + $0x28] sm:$0xff] %vm63, %v3933
    %3953 = vst.msk [vmem:[%s3946 + $0x30] sm:$0xff] %vm63, %v3935
    %3954 = vst.msk [vmem:[%s3946 + $0x38] sm:$0xff] %vm63, %v3937
    %v3955 = vsel %vm63, %v3890, 0.0
    %3956 = vadd.xlane.f32.xlu0 %v3955
    %v3957 = vpop.xlane.xlu0 %3956
    %v3958 = vsel %vm63, %v3892, 0.0
    %3959 = vadd.xlane.f32.xlu0 %v3958
    %v3960 = vpop.xlane.xlu0 %3959
    %v3961 = vsel %vm63, %v3894, 0.0
    %3962 = vadd.xlane.f32.xlu0 %v3961
    %v3963 = vpop.xlane.xlu0 %3962
    %v3964 = vsel %vm63, %v3896, 0.0
    %3965 = vadd.xlane.f32.xlu0 %v3964
    %v3966 = vpop.xlane.xlu0 %3965
    %v3967 = vsel %vm63, %v3898, 0.0
    %3968 = vadd.xlane.f32.xlu0 %v3967
    %v3969 = vpop.xlane.xlu0 %3968
    %v3970 = vsel %vm63, %v3900, 0.0
    %3971 = vadd.xlane.f32.xlu0 %v3970
    %v3972 = vpop.xlane.xlu0 %3971
    %v3973 = vsel %vm63, %v3902, 0.0
    %3974 = vadd.xlane.f32.xlu0 %v3973
    %v3975 = vpop.xlane.xlu0 %3974
    %v3976 = vsel %vm63, %v3904, 0.0
    %3977 = vadd.xlane.f32.xlu0 %v3976
    %v3978 = vpop.xlane.xlu0 %3977
    %v3979 = vsel %vm63, %v3923, 0.0
    %3980 = vadd.xlane.f32.xlu0 %v3979
    %v3981 = vpop.xlane.xlu0 %3980
    %v3982 = vsel %vm63, %v3925, 0.0
    %3983 = vadd.xlane.f32.xlu0 %v3982
    %v3984 = vpop.xlane.xlu0 %3983
    %v3985 = vsel %vm63, %v3927, 0.0
    %3986 = vadd.xlane.f32.xlu0 %v3985
    %v3987 = vpop.xlane.xlu0 %3986
    %v3988 = vsel %vm63, %v3929, 0.0
    %3989 = vadd.xlane.f32.xlu0 %v3988
    %v3990 = vpop.xlane.xlu0 %3989
    %v3991 = vsel %vm63, %v3931, 0.0
    %3992 = vadd.xlane.f32.xlu0 %v3991
    %v3993 = vpop.xlane.xlu0 %3992
    %v3994 = vsel %vm63, %v3933, 0.0
    %3995 = vadd.xlane.f32.xlu0 %v3994
    %v3996 = vpop.xlane.xlu0 %3995
    %v3997 = vsel %vm63, %v3935, 0.0
    %3998 = vadd.xlane.f32.xlu0 %v3997
    %v3999 = vpop.xlane.xlu0 %3998
    %v4000 = vsel %vm63, %v3937, 0.0
    %4001 = vadd.xlane.f32.xlu0 %v4000
    %v4002 = vpop.xlane.xlu0 %4001
    %s4003 = smul.f32 %s3854, 2.0
    %v4004 = vrcp.pop 64.0
    %v4005 = vmul.f32 64.0, %v4004
    %v4006 = vsub.f32 1.0, %v4005
    %v4007 = vmul.f32 %v4004, %v4006
    %v4008 = vadd.f32 %v4004, %v4007
    %vm4009 = vweird.f32 %v4004
    %v4010 = vsel %vm4009, %v4004, %v4008
    %s4011 = vtos %v4010
    %s4012 = smul.f32 %s4003, %s4011
    %s4013 = smul.f32 %s3871, 2.0
    %v4014 = vrcp.pop 64.0
    %v4015 = vmul.f32 64.0, %v4014
    %v4016 = vsub.f32 1.0, %v4015
    %v4017 = vmul.f32 %v4014, %v4016
    %v4018 = vadd.f32 %v4014, %v4017
    %vm4019 = vweird.f32 %v4014
    %v4020 = vsel %vm4019, %v4014, %v4018
    %s4021 = vtos %v4020
    %s4022 = smul.f32 %s4013, %s4021
    %v4023 = vmul.f32 %v47, %v3957
    %v4024 = vmul.f32 %v48, %v3960
    %v4025 = vmul.f32 %v49, %v3963
    %v4026 = vmul.f32 %v50, %v3966
    %v4027 = vmul.f32 %v51, %v3969
    %v4028 = vmul.f32 %v52, %v3972
    %v4029 = vmul.f32 %v53, %v3975
    %v4030 = vmul.f32 %v54, %v3978
    %4031 = vxpose.xlu0.b32.start [1/16] %v3890, 128
    %4032 = vxpose.xlu0.b32.cont [2/16] %v3892, 128
    %4033 = vxpose.xlu0.b32.cont [3/16] %v3894, 128
    %4034 = vxpose.xlu0.b32.cont [4/16] %v3896, 128
    %4035 = vxpose.xlu0.b32.cont [5/16] %v3898, 128
    %4036 = vxpose.xlu0.b32.cont [6/16] %v3900, 128
    %4037 = vxpose.xlu0.b32.cont [7/16] %v3902, 128
    %4038 = vxpose.xlu0.b32.cont [8/16] %v3904, 128
    %4039 = vxpose.xlu0.b32.cont [9/16] 0.0, 128
    %4040 = vxpose.xlu0.b32.cont [10/16] 0.0, 128
    %4041 = vxpose.xlu0.b32.cont [11/16] 0.0, 128
    %4042 = vxpose.xlu0.b32.cont [12/16] 0.0, 128
    %4043 = vxpose.xlu0.b32.cont [13/16] 0.0, 128
    %4044 = vxpose.xlu0.b32.cont [14/16] 0.0, 128
    %4045 = vxpose.xlu0.b32.cont [15/16] 0.0, 128
    %4046 = vxpose.xlu0.b32.end [16/16] 0.0, 128
    %v4047 = vpop.trf.xlu0
    %v4048 = vpop.trf.xlu0
    %v4049 = vpop.trf.xlu0
    %v4050 = vpop.trf.xlu0
    %v4051 = vpop.trf.xlu0
    %v4052 = vpop.trf.xlu0
    %v4053 = vpop.trf.xlu0
    %v4054 = vpop.trf.xlu0
    %v4055 = vpop.trf.xlu0
    %v4056 = vpop.trf.xlu0
    %v4057 = vpop.trf.xlu0
    %v4058 = vpop.trf.xlu0
    %v4059 = vpop.trf.xlu0
    %v4060 = vpop.trf.xlu0
    %v4061 = vpop.trf.xlu0
    %v4062 = vpop.trf.xlu0
    %v4064 = vsel %vm63, %v4047, 0
    %v4067 = vsel %vm63, %v4048, 0
    %v4070 = vsel %vm63, %v4049, 0
    %v4073 = vsel %vm63, %v4050, 0
    %v4076 = vsel %vm63, %v4051, 0
    %v4079 = vsel %vm63, %v4052, 0
    %v4082 = vsel %vm63, %v4053, 0
    %v4085 = vsel %vm63, %v4054, 0
    %4087 = vmatpush.msra.mxu0 0.0
    %4088 = vmatpush.msra.mxu0 0.0
    %4089 = vmatpush.msra.mxu0 0.0
    %4090 = vmatpush.msra.mxu0 0.0
    %4091 = vmatpush.msra.mxu0 0.0
    %4092 = vmatpush.msra.mxu0 0.0
    %4093 = vmatpush.msra.mxu0 0.0
    %4094 = vmatpush.msra.mxu0 0.0
    %4095 = vmatpush.msra.mxu0 %v54
    %4096 = vmatpush.msra.mxu0 %v53
    %4097 = vmatpush.msra.mxu0 %v52
    %4098 = vmatpush.msra.mxu0 %v51
    %4099 = vmatpush.msra.mxu0 %v50
    %4100 = vmatpush.msra.mxu0 %v49
    %4101 = vmatpush.msra.mxu0 %v48
    %4102 = vmatpush.msra.mxu0 %v47
    %4103 = vmatmul.f32.gmra.mxu0 %v4064
    %v4104 = vpop.f32.mrf.mxu0
    %v4105 = vadd.f32 0.0, %v4104
    %4106 = vmatmul.f32.gmra.mxu0 %v4067
    %v4107 = vpop.f32.mrf.mxu0
    %v4108 = vadd.f32 0.0, %v4107
    %4109 = vmatmul.f32.gmra.mxu0 %v4070
    %v4110 = vpop.f32.mrf.mxu0
    %v4111 = vadd.f32 0.0, %v4110
    %4112 = vmatmul.f32.gmra.mxu0 %v4073
    %v4113 = vpop.f32.mrf.mxu0
    %v4114 = vadd.f32 0.0, %v4113
    %4115 = vmatmul.f32.gmra.mxu0 %v4076
    %v4116 = vpop.f32.mrf.mxu0
    %v4117 = vadd.f32 0.0, %v4116
    %4118 = vmatmul.f32.gmra.mxu0 %v4079
    %v4119 = vpop.f32.mrf.mxu0
    %v4120 = vadd.f32 0.0, %v4119
    %4121 = vmatmul.f32.gmra.mxu0 %v4082
    %v4122 = vpop.f32.mrf.mxu0
    %v4123 = vadd.f32 0.0, %v4122
    %4124 = vmatmul.f32.gmra.mxu0 %v4085
    %v4125 = vpop.f32.mrf.mxu0
    %v4126 = vadd.f32 0.0, %v4125
    %4127 = vdwg.mxu0
    %v4128 = vsub.f32 %v4023, %v4105
    %v4129 = vsub.f32 %v4024, %v4108
    %v4130 = vsub.f32 %v4025, %v4111
    %v4131 = vsub.f32 %v4026, %v4114
    %v4132 = vsub.f32 %v4027, %v4117
    %v4133 = vsub.f32 %v4028, %v4120
    %v4134 = vsub.f32 %v4029, %v4123
    %v4135 = vsub.f32 %v4030, %v4126
    %v4136 = vstv %s4012
    %v4137 = vmul.f32 %v4128, %v4136
    %v4138 = vmul.f32 %v4129, %v4136
    %v4139 = vmul.f32 %v4130, %v4136
    %v4140 = vmul.f32 %v4131, %v4136
    %v4141 = vmul.f32 %v4132, %v4136
    %v4142 = vmul.f32 %v4133, %v4136
    %v4143 = vmul.f32 %v4134, %v4136
    %v4144 = vmul.f32 %v4135, %v4136
    %4145 = vst.msk [vmem:[%s3] sm:$0xff] %vm63, %v4137
    %4146 = vst.msk [vmem:[%s3 + $0x8] sm:$0xff] %vm63, %v4138
    %4147 = vst.msk [vmem:[%s3 + $0x10] sm:$0xff] %vm63, %v4139
    %4148 = vst.msk [vmem:[%s3 + $0x18] sm:$0xff] %vm63, %v4140
    %4149 = vst.msk [vmem:[%s3 + $0x20] sm:$0xff] %vm63, %v4141
    %4150 = vst.msk [vmem:[%s3 + $0x28] sm:$0xff] %vm63, %v4142
    %4151 = vst.msk [vmem:[%s3 + $0x30] sm:$0xff] %vm63, %v4143
    %4152 = vst.msk [vmem:[%s3 + $0x38] sm:$0xff] %vm63, %v4144
    %v4153 = vmul.f32 %v55, %v3957
    %v4154 = vmul.f32 %v56, %v3960
    %v4155 = vmul.f32 %v57, %v3963
    %v4156 = vmul.f32 %v58, %v3966
    %v4157 = vmul.f32 %v59, %v3969
    %v4158 = vmul.f32 %v60, %v3972
    %v4159 = vmul.f32 %v61, %v3975
    %v4160 = vmul.f32 %v62, %v3978
    %4161 = vmatpush.msra.mxu0 0.0
    %4162 = vmatpush.msra.mxu0 0.0
    %4163 = vmatpush.msra.mxu0 0.0
    %4164 = vmatpush.msra.mxu0 0.0
    %4165 = vmatpush.msra.mxu0 0.0
    %4166 = vmatpush.msra.mxu0 0.0
    %4167 = vmatpush.msra.mxu0 0.0
    %4168 = vmatpush.msra.mxu0 0.0
    %4169 = vmatpush.msra.mxu0 %v62
    %4170 = vmatpush.msra.mxu0 %v61
    %4171 = vmatpush.msra.mxu0 %v60
    %4172 = vmatpush.msra.mxu0 %v59
    %4173 = vmatpush.msra.mxu0 %v58
    %4174 = vmatpush.msra.mxu0 %v57
    %4175 = vmatpush.msra.mxu0 %v56
    %4176 = vmatpush.msra.mxu0 %v55
    %4177 = vmatmul.f32.gmra.mxu0 %v4064
    %v4178 = vpop.f32.mrf.mxu0
    %v4179 = vadd.f32 0.0, %v4178
    %4180 = vmatmul.f32.gmra.mxu0 %v4067
    %v4181 = vpop.f32.mrf.mxu0
    %v4182 = vadd.f32 0.0, %v4181
    %4183 = vmatmul.f32.gmra.mxu0 %v4070
    %v4184 = vpop.f32.mrf.mxu0
    %v4185 = vadd.f32 0.0, %v4184
    %4186 = vmatmul.f32.gmra.mxu0 %v4073
    %v4187 = vpop.f32.mrf.mxu0
    %v4188 = vadd.f32 0.0, %v4187
    %4189 = vmatmul.f32.gmra.mxu0 %v4076
    %v4190 = vpop.f32.mrf.mxu0
    %v4191 = vadd.f32 0.0, %v4190
    %4192 = vmatmul.f32.gmra.mxu0 %v4079
    %v4193 = vpop.f32.mrf.mxu0
    %v4194 = vadd.f32 0.0, %v4193
    %4195 = vmatmul.f32.gmra.mxu0 %v4082
    %v4196 = vpop.f32.mrf.mxu0
    %v4197 = vadd.f32 0.0, %v4196
    %4198 = vmatmul.f32.gmra.mxu0 %v4085
    %v4199 = vpop.f32.mrf.mxu0
    %v4200 = vadd.f32 0.0, %v4199
    %4201 = vdwg.mxu0
    %v4202 = vsub.f32 %v4153, %v4179
    %v4203 = vsub.f32 %v4154, %v4182
    %v4204 = vsub.f32 %v4155, %v4185
    %v4205 = vsub.f32 %v4156, %v4188
    %v4206 = vsub.f32 %v4157, %v4191
    %v4207 = vsub.f32 %v4158, %v4194
    %v4208 = vsub.f32 %v4159, %v4197
    %v4209 = vsub.f32 %v4160, %v4200
    %v4210 = vmul.f32 %v4202, %v4136
    %v4211 = vmul.f32 %v4203, %v4136
    %v4212 = vmul.f32 %v4204, %v4136
    %v4213 = vmul.f32 %v4205, %v4136
    %v4214 = vmul.f32 %v4206, %v4136
    %v4215 = vmul.f32 %v4207, %v4136
    %v4216 = vmul.f32 %v4208, %v4136
    %v4217 = vmul.f32 %v4209, %v4136
    %4218 = vst.msk [vmem:[%s4] sm:$0xff] %vm63, %v4210
    %4219 = vst.msk [vmem:[%s4 + $0x8] sm:$0xff] %vm63, %v4211
    %4220 = vst.msk [vmem:[%s4 + $0x10] sm:$0xff] %vm63, %v4212
    %4221 = vst.msk [vmem:[%s4 + $0x18] sm:$0xff] %vm63, %v4213
    %4222 = vst.msk [vmem:[%s4 + $0x20] sm:$0xff] %vm63, %v4214
    %4223 = vst.msk [vmem:[%s4 + $0x28] sm:$0xff] %vm63, %v4215
    %4224 = vst.msk [vmem:[%s4 + $0x30] sm:$0xff] %vm63, %v4216
    %4225 = vst.msk [vmem:[%s4 + $0x38] sm:$0xff] %vm63, %v4217
    %v4226 = vmul.f32 %v55, %v3981
    %v4227 = vmul.f32 %v56, %v3984
    %v4228 = vmul.f32 %v57, %v3987
    %v4229 = vmul.f32 %v58, %v3990
    %v4230 = vmul.f32 %v59, %v3993
    %v4231 = vmul.f32 %v60, %v3996
    %v4232 = vmul.f32 %v61, %v3999
    %v4233 = vmul.f32 %v62, %v4002
    %4234 = vxpose.xlu0.b32.start [1/16] %v3923, 128
    %4235 = vxpose.xlu0.b32.cont [2/16] %v3925, 128
    %4236 = vxpose.xlu0.b32.cont [3/16] %v3927, 128
    %4237 = vxpose.xlu0.b32.cont [4/16] %v3929, 128
    %4238 = vxpose.xlu0.b32.cont [5/16] %v3931, 128
    %4239 = vxpose.xlu0.b32.cont [6/16] %v3933, 128
    %4240 = vxpose.xlu0.b32.cont [7/16] %v3935, 128
    %4241 = vxpose.xlu0.b32.cont [8/16] %v3937, 128
    %4242 = vxpose.xlu0.b32.cont [9/16] 0.0, 128
    %4243 = vxpose.xlu0.b32.cont [10/16] 0.0, 128
    %4244 = vxpose.xlu0.b32.cont [11/16] 0.0, 128
    %4245 = vxpose.xlu0.b32.cont [12/16] 0.0, 128
    %4246 = vxpose.xlu0.b32.cont [13/16] 0.0, 128
    %4247 = vxpose.xlu0.b32.cont [14/16] 0.0, 128
    %4248 = vxpose.xlu0.b32.cont [15/16] 0.0, 128
    %4249 = vxpose.xlu0.b32.end [16/16] 0.0, 128
    %v4250 = vpop.trf.xlu0
    %v4251 = vpop.trf.xlu0
    %v4252 = vpop.trf.xlu0
    %v4253 = vpop.trf.xlu0
    %v4254 = vpop.trf.xlu0
    %v4255 = vpop.trf.xlu0
    %v4256 = vpop.trf.xlu0
    %v4257 = vpop.trf.xlu0
    %v4258 = vpop.trf.xlu0
    %v4259 = vpop.trf.xlu0
    %v4260 = vpop.trf.xlu0
    %v4261 = vpop.trf.xlu0
    %v4262 = vpop.trf.xlu0
    %v4263 = vpop.trf.xlu0
    %v4264 = vpop.trf.xlu0
    %v4265 = vpop.trf.xlu0
    %v4267 = vsel %vm63, %v4250, 0
    %v4270 = vsel %vm63, %v4251, 0
    %v4273 = vsel %vm63, %v4252, 0
    %v4276 = vsel %vm63, %v4253, 0
    %v4279 = vsel %vm63, %v4254, 0
    %v4282 = vsel %vm63, %v4255, 0
    %v4285 = vsel %vm63, %v4256, 0
    %v4288 = vsel %vm63, %v4257, 0
    %4290 = vmatpush.msra.mxu0 0.0
    %4291 = vmatpush.msra.mxu0 0.0
    %4292 = vmatpush.msra.mxu0 0.0
    %4293 = vmatpush.msra.mxu0 0.0
    %4294 = vmatpush.msra.mxu0 0.0
    %4295 = vmatpush.msra.mxu0 0.0
    %4296 = vmatpush.msra.mxu0 0.0
    %4297 = vmatpush.msra.mxu0 0.0
    %4298 = vmatpush.msra.mxu0 %v62
    %4299 = vmatpush.msra.mxu0 %v61
    %4300 = vmatpush.msra.mxu0 %v60
    %4301 = vmatpush.msra.mxu0 %v59
    %4302 = vmatpush.msra.mxu0 %v58
    %4303 = vmatpush.msra.mxu0 %v57
    %4304 = vmatpush.msra.mxu0 %v56
    %4305 = vmatpush.msra.mxu0 %v55
    %4306 = vmatmul.f32.gmra.mxu0 %v4267
    %v4307 = vpop.f32.mrf.mxu0
    %v4308 = vadd.f32 0.0, %v4307
    %4309 = vmatmul.f32.gmra.mxu0 %v4270
    %v4310 = vpop.f32.mrf.mxu0
    %v4311 = vadd.f32 0.0, %v4310
    %4312 = vmatmul.f32.gmra.mxu0 %v4273
    %v4313 = vpop.f32.mrf.mxu0
    %v4314 = vadd.f32 0.0, %v4313
    %4315 = vmatmul.f32.gmra.mxu0 %v4276
    %v4316 = vpop.f32.mrf.mxu0
    %v4317 = vadd.f32 0.0, %v4316
    %4318 = vmatmul.f32.gmra.mxu0 %v4279
    %v4319 = vpop.f32.mrf.mxu0
    %v4320 = vadd.f32 0.0, %v4319
    %4321 = vmatmul.f32.gmra.mxu0 %v4282
    %v4322 = vpop.f32.mrf.mxu0
    %v4323 = vadd.f32 0.0, %v4322
    %4324 = vmatmul.f32.gmra.mxu0 %v4285
    %v4325 = vpop.f32.mrf.mxu0
    %v4326 = vadd.f32 0.0, %v4325
    %4327 = vmatmul.f32.gmra.mxu0 %v4288
    %v4328 = vpop.f32.mrf.mxu0
    %v4329 = vadd.f32 0.0, %v4328
    %4330 = vdwg.mxu0
    %v4331 = vsub.f32 %v4226, %v4308
    %v4332 = vsub.f32 %v4227, %v4311
    %v4333 = vsub.f32 %v4228, %v4314
    %v4334 = vsub.f32 %v4229, %v4317
    %v4335 = vsub.f32 %v4230, %v4320
    %v4336 = vsub.f32 %v4231, %v4323
    %v4337 = vsub.f32 %v4232, %v4326
    %v4338 = vsub.f32 %v4233, %v4329
    %v4339 = vstv %s4022
    %v4340 = vmul.f32 %v4331, %v4339
    %v4341 = vmul.f32 %v4332, %v4339
    %v4342 = vmul.f32 %v4333, %v4339
    %v4343 = vmul.f32 %v4334, %v4339
    %v4344 = vmul.f32 %v4335, %v4339
    %v4345 = vmul.f32 %v4336, %v4339
    %v4346 = vmul.f32 %v4337, %v4339
    %v4347 = vmul.f32 %v4338, %v4339
    %4348 = vst.msk [vmem:[%s5] sm:$0xff] %vm63, %v4340
    %4349 = vst.msk [vmem:[%s5 + $0x8] sm:$0xff] %vm63, %v4341
    %4350 = vst.msk [vmem:[%s5 + $0x10] sm:$0xff] %vm63, %v4342
    %4351 = vst.msk [vmem:[%s5 + $0x18] sm:$0xff] %vm63, %v4343
    %4352 = vst.msk [vmem:[%s5 + $0x20] sm:$0xff] %vm63, %v4344
    %4353 = vst.msk [vmem:[%s5 + $0x28] sm:$0xff] %vm63, %v4345
    %4354 = vst.msk [vmem:[%s5 + $0x30] sm:$0xff] %vm63, %v4346
    %4355 = vst.msk [vmem:[%s5 + $0x38] sm:$0xff] %vm63, %v4347
    // Predicated region
    $region18: #{mutual_information_gradient_estimator.2} parent=1 // pred_check
      _
    $region19: #{mutual_information_gradient_estimator.2} parent=1 // pred_check_branch
      %4357 = sbr.rel (0) target = $region21
    $region20: #{mutual_information_gradient_estimator.2} parent=1 // pred_region
      _
    $region21: #{mutual_information_gradient_estimator.2} parent=1 // pred_fallthru
      _
    // Predicated region
    $region22: #{mutual_information_gradient_estimator.2} parent=1 // pred_check
      _
    $region23: #{mutual_information_gradient_estimator.2} parent=1 // pred_check_branch
      %4359 = sbr.rel (0) target = $region25
    $region24: #{mutual_information_gradient_estimator.2} parent=1 // pred_region
      _
    $region25: #{mutual_information_gradient_estimator.2} parent=1 // pred_fallthru
      _
    // Predicated region
    $region26: #{mutual_information_gradient_estimator.2} parent=1 // pred_check
      _
    $region27: #{mutual_information_gradient_estimator.2} parent=1 // pred_check_branch
      %4361 = sbr.rel (0) target = $region29
    $region28: #{mutual_information_gradient_estimator.2} parent=1 // pred_region
      _
    $region29: #{mutual_information_gradient_estimator.2} parent=1 // pred_fallthru
      _
    // Predicated region
    $region30: #{mutual_information_gradient_estimator.2} parent=1 // pred_check
      _
    $region31: #{mutual_information_gradient_estimator.2} parent=1 // pred_check_branch
      %4363 = sbr.rel (0) target = $region33
    $region32: #{mutual_information_gradient_estimator.2} parent=1 // pred_region
      _
    $region33: #{mutual_information_gradient_estimator.2} parent=1 // pred_fallthru
      _
    // Predicated region
    $region34: #{mutual_information_gradient_estimator.2} parent=1 // pred_check
      _
    $region35: #{mutual_information_gradient_estimator.2} parent=1 // pred_check_branch
      %4365 = sbr.rel (0) target = $region37
    $region36: #{mutual_information_gradient_estimator.2} parent=1 // pred_region
      _
    $region37: #{mutual_information_gradient_estimator.2} parent=1 // pred_fallthru
      _
    // Predicated region
    $region38: #{mutual_information_gradient_estimator.2} parent=1 // pred_check
      _
    $region39: #{mutual_information_gradient_estimator.2} parent=1 // pred_check_branch
      %4367 = sbr.rel (0) target = $region41
    $region40: #{mutual_information_gradient_estimator.2} parent=1 // pred_region
      _
    $region41: #{mutual_information_gradient_estimator.2} parent=1 // pred_fallthru
      _
    // Predicated region
    $region42: #{mutual_information_gradient_estimator.2} parent=1 // pred_check
      _
    $region43: #{mutual_information_gradient_estimator.2} parent=1 // pred_check_branch
      %4369 = sbr.rel (0) target = $region45
    $region44: #{mutual_information_gradient_estimator.2} parent=1 // pred_region
      _
    $region45: #{mutual_information_gradient_estimator.2} parent=1 // pred_fallthru
      _
    // Predicated region
    $region46: #{mutual_information_gradient_estimator.2} parent=1 // pred_check
      _
    $region47: #{mutual_information_gradient_estimator.2} parent=1 // pred_check_branch
      %4371 = sbr.rel (0) target = $region49
    $region48: #{mutual_information_gradient_estimator.2} parent=1 // pred_region
      _
    $region49: #{mutual_information_gradient_estimator.2} parent=1 // pred_fallthru
      _
    %4372 = vsyncpa [#allocation3], 1
    %4373 = vsyncpa [#allocation5], 1

</llo_original>
